<compile_context>
chip_gen: v7x
topology: tpu7x:2x2x1
jax: 0.10.0
libtpu: 0.0.40
codegen_flags: <defaults>
</compile_context>

<pallas_src>
import functools

import jax
import jax.numpy as jnp
from jax.experimental import pallas as pl
from jax.experimental.pallas import tpu as pltpu

EPS = 1e-5          # torch.nn.GroupNorm default eps
NUM_GROUPS = 32


# --------------------------------------------------------------------------- kernel
def _fused_kernel(video_ref, spatial_ref, scale_ref,
                  w1_ref, b1_ref, g1_ref, be1_ref,
                  w2_ref, b2_ref,
                  ws_ref, bs_ref,
                  g2_ref, be2_ref,
                  out_ref, p_ref, *, H, W, groups, pad):
    HW = H * W
    pw = p_ref.shape[-1]

    # Zero ONLY the guard rows of the row-padded conv-result scratch.  Done
    # unconditionally every grid step (cheap: 2*pad rows) so that per-core
    # scratch on megacore parts is initialized no matter which program_ids a
    # core executes.  The interior rows are fully overwritten by every conv.
    zeros_pad = jnp.zeros((pad, pw), jnp.float32)
    p_ref[0:pad, :] = zeros_pad
    p_ref[pad + HW:2 * pad + HW, :] = zeros_pad

    # W-boundary masks on the *output* rows, hoisted out of all tap loops.
    wpos = jax.lax.broadcasted_iota(jnp.int32, (HW, 1), 0) % W
    mask_l = (wpos >= 1).astype(jnp.float32)        # dx=0 taps invalid at w==0
    mask_r = (wpos <= W - 2).astype(jnp.float32)    # dx=2 taps invalid at w==W-1

    def conv3x3(x_flat, w_ref, b_ref):
        """3x3 conv, padding=1: ONE (HW,Cin)@(Cin,9*Cout) MXU matmul on the
        unshifted aligned input, then 9 shifted row-window reads of the
        row-padded result (through the scratch ref) + VPU adds."""
        ncols = w_ref.shape[-1]
        cout = ncols // 9
        p_ref[pad:pad + HW, 0:ncols] = jnp.dot(
            x_flat, w_ref[...], preferred_element_type=jnp.float32)

        def tap(dy, dx):
            t = 3 * dy + dx
            ofs = pad + (dy - 1) * W + (dx - 1)
            return p_ref[ofs:ofs + HW, t * cout:(t + 1) * cout]

        centre = tap(0, 1) + tap(1, 1) + tap(2, 1)
        left = tap(0, 0) + tap(1, 0) + tap(2, 0)     # read input at w-1
        right = tap(0, 2) + tap(1, 2) + tap(2, 2)    # read input at w+1
        ml = jnp.broadcast_to(mask_l, (HW, cout))    # hoisted: 1 broadcast each
        mr = jnp.broadcast_to(mask_r, (HW, cout))
        return centre + left * ml + right * mr + b_ref[...]

    def gn_relu(acc, gamma_ref, beta_ref, cg):
        """GroupNorm (channels-per-group = cg) + ReLU on (HW, C)."""
        C = acc.shape[-1]
        inv_n = 1.0 / float(HW)
        col_mean = jnp.sum(acc, axis=0, keepdims=True) * inv_n        # (1, C)
        if cg == 1:                       # this module's config (group size 1)
            mean_c = col_mean
        else:                             # general path: within-group averaging
            r = jax.lax.broadcasted_iota(jnp.int32, (C, C), 0) // cg
            c = jax.lax.broadcasted_iota(jnp.int32, (C, C), 1) // cg
            proj = jnp.where(r == c, 1.0 / cg, 0.0)
            mean_c = jnp.dot(col_mean, proj, preferred_element_type=jnp.float32)
        cen = acc - mean_c
        col_var = jnp.sum(cen * cen, axis=0, keepdims=True) * inv_n
        if cg == 1:
            var_c = col_var
        else:
            var_c = jnp.dot(col_var, proj, preferred_element_type=jnp.float32)
        y = cen * jax.lax.rsqrt(var_c + EPS)
        y = y * gamma_ref[...] + beta_ref[...]
        return jnp.maximum(y, 0.0)

    mid = b1_ref.shape[-1]
    sdim = b2_ref.shape[-1]
    cg1 = max(mid // groups, 1)
    cg2 = max(sdim // groups, 1)

    # video branch: conv -> GN -> ReLU -> conv (its GN is deferred and fused)
    v = gn_relu(conv3x3(video_ref[0], w1_ref, b1_ref), g1_ref, be1_ref, cg1)
    a_v = conv3x3(v, w2_ref, b2_ref)
    # spatial branch: conv (GN deferred and fused)
    a_s = conv3x3(spatial_ref[0], ws_ref, bs_ref)
    # ONE GroupNorm+ReLU pass over the concatenated 2*sdim channels (exact:
    # each half is a multiple of the group size, so no group straddles the seam)
    st = gn_relu(jnp.concatenate([a_v, a_s], axis=-1), g2_ref, be2_ref, cg2)
    # gated fuse: st*gate + st == st*(gate+1); scale = gate+1 comes from XLA
    out_ref[0] = (st * scale_ref[0]).astype(out_ref.dtype)


# --------------------------------------------------------------------------- wrapper
def channel_attention_fusion(params, spatial_feature, video_feature, bert_feature,
                             *, groups=NUM_GROUPS):
    """Forward pass.  spatial/video features are NCHW (torch convention)."""
    B, Ct, H, W = video_feature.shape
    Cs = spatial_feature.shape[1]
    HW = H * W
    mid = params["v1_w"].shape[-1]
    sdim = params["v2_w"].shape[-1]
    two_s = params["l_w"].shape[-1]

    # coord channels: x varies along W, y along H (torch.meshgrid 'ij' order)
    x_range = jnp.linspace(-1.0, 1.0, W)
    y_range = jnp.linspace(-1.0, 1.0, H)
    yy, xx = jnp.meshgrid(y_range, x_range, indexing="ij")
    coord = jnp.broadcast_to(jnp.stack([xx, yy], axis=-1), (B, H, W, 2))

    # thin XLA glue: NCHW -> NHWC, append coords, flatten spatial dims
    video_in = jnp.concatenate(
        [jnp.transpose(video_feature, (0, 2, 3, 1)), coord], axis=-1
    ).reshape(B, HW, Ct + 2)
    spatial_in = jnp.concatenate(
        [jnp.transpose(spatial_feature, (0, 2, 3, 1)), coord], axis=-1
    ).reshape(B, HW, Cs + 2)

    # sentence gate hoisted out of the kernel (M=1 matmul does not belong on
    # the kernel's serialized tail); pass scale = gate + 1
    scale = (jax.nn.sigmoid(bert_feature @ params["l_w"] + params["l_b"]) + 1.0
             ).reshape(B, 1, two_s).astype(jnp.float32)

    # N-stack the conv weights: (3,3,Cin,Cout) -> (Cin, 9*Cout), tap t = 3*dy+dx
    def stack_w(w):
        cin, cout = w.shape[2], w.shape[3]
        return jnp.transpose(w, (2, 0, 1, 3)).reshape(cin, 9 * cout)

    w1 = stack_w(params["v1_w"])
    w2 = stack_w(params["v2_w"])
    ws = stack_w(params["s_w"])

    # gamma/beta for the fused (video-conv2 ++ spatial-conv) GroupNorm
    g2s = jnp.concatenate([params["v2_g"], params["s_g"]]).reshape(1, 2 * sdim)
    be2s = jnp.concatenate([params["v2_be"], params["s_be"]]).reshape(1, 2 * sdim)

    pad = max(8, -(-(W + 1) // 8) * 8)        # >= W+1 and a multiple of 8
    prows = 2 * pad + HW
    pcols = 9 * max(mid, sdim)

    def const_spec(*shape):
        n = len(shape)
        return pl.BlockSpec(shape, lambda b: (0,) * n)

    kernel = functools.partial(_fused_kernel, H=H, W=W, groups=groups, pad=pad)
    out_flat = pl.pallas_call(
        kernel,
        out_shape=jax.ShapeDtypeStruct((B, HW, two_s), jnp.float32),
        grid_spec=pltpu.PrefetchScalarGridSpec(
            num_scalar_prefetch=0,
            grid=(B,),
            in_specs=[
                pl.BlockSpec((1, HW, Ct + 2), lambda b: (b, 0, 0)),
                pl.BlockSpec((1, HW, Cs + 2), lambda b: (b, 0, 0)),
                pl.BlockSpec((1, 1, two_s), lambda b: (b, 0, 0)),
                const_spec(Ct + 2, 9 * mid), const_spec(1, mid),
                const_spec(1, mid), const_spec(1, mid),
                const_spec(mid, 9 * sdim), const_spec(1, sdim),
                const_spec(Cs + 2, 9 * sdim), const_spec(1, sdim),
                const_spec(1, 2 * sdim), const_spec(1, 2 * sdim),
            ],
            out_specs=pl.BlockSpec((1, HW, two_s), lambda b: (b, 0, 0)),
            scratch_shapes=[pltpu.VMEM((prows, pcols), jnp.float32)],
        ),
        compiler_params=pltpu.CompilerParams(
            dimension_semantics=("parallel",)),
    )(video_in, spatial_in, scale,
      w1, params["v1_b"].reshape(1, mid),
      params["v1_g"].reshape(1, mid), params["v1_be"].reshape(1, mid),
      w2, params["v2_b"].reshape(1, sdim),
      ws, params["s_b"].reshape(1, sdim),
      g2s, be2s)

    out_nhwc = out_flat.reshape(B, H, W, two_s)
    return jnp.transpose(out_nhwc, (0, 3, 1, 2))          # back to NCHW


# --------------------------------------------------------------------------- params
def init_params(key, temporal_dim, spatial_dim, bert_dim):
    """Deterministic synthetic parameters (shapes follow the torch module)."""
    ks = jax.random.split(key, 16)
    n = lambda k, shape, s=0.05: jax.random.normal(k, shape, jnp.float32) * s
    mid = temporal_dim // 2
    return {
        # video_reduce: Conv2d(T+2 -> T//2)+GN+ReLU + Conv2d(T//2 -> S)+GN+ReLU
        "v1_w": n(ks[0], (3, 3, temporal_dim + 2, mid)), "v1_b": n(ks[1], (mid,)),
        "v1_g": 1.0 + n(ks[2], (mid,), 0.1), "v1_be": n(ks[3], (mid,), 0.1),
        "v2_w": n(ks[4], (3, 3, mid, spatial_dim)), "v2_b": n(ks[5], (spatial_dim,)),
        "v2_g": 1.0 + n(ks[6], (spatial_dim,), 0.1), "v2_be": n(ks[7], (spatial_dim,), 0.1),
        # spatial_reduce: Conv2d(S+2 -> S) + GN + ReLU
        "s_w": n(ks[8], (3, 3, spatial_dim + 2, spatial_dim)), "s_b": n(ks[9], (spatial_dim,)),
        "s_g": 1.0 + n(ks[10], (spatial_dim,), 0.1), "s_be": n(ks[11], (spatial_dim,), 0.1),
        # sentence_reduce: Linear(bert_dim -> 2S) + Sigmoid
        "l_w": n(ks[12], (bert_dim, spatial_dim * 2), 0.1),
        "l_b": n(ks[13], (spatial_dim * 2,), 0.1),
    }


# --------------------------------------------------------------------------- reference
def reference_forward(params, spatial_feature, video_feature, bert_feature):
    B, _, H, W = video_feature.shape
    x_range = jnp.linspace(-1.0, 1.0, W)
    y_range = jnp.linspace(-1.0, 1.0, H)
    yy, xx = jnp.meshgrid(y_range, x_range, indexing="ij")
    coord = jnp.broadcast_to(jnp.stack([xx, yy], axis=0), (B, 2, H, W))
    video_in = jnp.concatenate([video_feature, coord], axis=1)
    spatial_in = jnp.concatenate([spatial_feature, coord], axis=1)

    def conv_gn_relu(x, w_hwio, b, gamma, beta, groups=NUM_GROUPS):
        w_oihw = jnp.transpose(w_hwio, (3, 2, 0, 1))
        y = jax.lax.conv_general_dilated(
            x, w_oihw, window_strides=(1, 1), padding="SAME",
            dimension_numbers=("NCHW", "OIHW", "NCHW"))
        y = y + b[None, :, None, None]
        Bc, C, Hh, Ww = y.shape
        yg = y.reshape(Bc, groups, C // groups, Hh, Ww)
        mean = jnp.mean(yg, axis=(2, 3, 4), keepdims=True)
        var = jnp.mean((yg - mean) ** 2, axis=(2, 3, 4), keepdims=True)
        yn = ((yg - mean) / jnp.sqrt(var + EPS)).reshape(Bc, C, Hh, Ww)
        yn = yn * gamma[None, :, None, None] + beta[None, :, None, None]
        return jnp.maximum(yn, 0.0)

    v = conv_gn_relu(video_in, params["v1_w"], params["v1_b"], params["v1_g"], params["v1_be"])
    v = conv_gn_relu(v, params["v2_w"], params["v2_b"], params["v2_g"], params["v2_be"])
    s = conv_gn_relu(spatial_in, params["s_w"], params["s_b"], params["s_g"], params["s_be"])
    gate = jax.nn.sigmoid(bert_feature @ params["l_w"] + params["l_b"])
    st = jnp.concatenate([v, s], axis=1)
    return st * gate[..., None, None] + st


# --------------------------------------------------------------------------- main
if __name__ == "__main__":
    temporal_dim, spatial_dim, bert_dim = 64, 32, 32   # GroupNorm(32, .) needs /32
    B, H, W = 2, 16, 16

    key = jax.random.PRNGKey(0)
    kp, k1, k2, k3 = jax.random.split(key, 4)
    params = init_params(kp, temporal_dim, spatial_dim, bert_dim)

    spatial_feature = jax.random.normal(k1, (B, spatial_dim, H, W), jnp.float32)
    video_feature = jax.random.normal(k2, (B, temporal_dim, H, W), jnp.float32)
    bert_feature = jax.random.normal(k3, (B, bert_dim), jnp.float32)

    out = channel_attention_fusion(params, spatial_feature, video_feature, bert_feature)
    out = jax.block_until_ready(out)

    ref = reference_forward(params, spatial_feature, video_feature, bert_feature)
    assert out.shape == (B, 2 * spatial_dim, H, W), out.shape
    max_err = float(jnp.max(jnp.abs(out - ref)))
    assert max_err < 1e-3, f"max abs error {max_err}"

    print("KERNEL_OK")
</pallas_src>

<mosaic_0001>
module attributes {stable_mosaic.version = 11 : i64} {
  func.func @_fused_kernel(%arg0: i32, %arg1: memref<1x256x66xf32, #tpu.memory_space<vmem>>, %arg2: memref<1x256x34xf32, #tpu.memory_space<vmem>>, %arg3: memref<1x1x64xf32, #tpu.memory_space<vmem>>, %arg4: memref<66x288xf32, #tpu.memory_space<vmem>>, %arg5: memref<1x32xf32, #tpu.memory_space<vmem>>, %arg6: memref<1x32xf32, #tpu.memory_space<vmem>>, %arg7: memref<1x32xf32, #tpu.memory_space<vmem>>, %arg8: memref<32x288xf32, #tpu.memory_space<vmem>>, %arg9: memref<1x32xf32, #tpu.memory_space<vmem>>, %arg10: memref<34x288xf32, #tpu.memory_space<vmem>>, %arg11: memref<1x32xf32, #tpu.memory_space<vmem>>, %arg12: memref<1x64xf32, #tpu.memory_space<vmem>>, %arg13: memref<1x64xf32, #tpu.memory_space<vmem>>, %arg14: memref<1x256x64xf32, #tpu.memory_space<vmem>>, %arg15: memref<304x288xf32, #tpu.memory_space<vmem>>) attributes {dimension_semantics = [#tpu.dimension_semantics<parallel>], iteration_bounds = array<i64: 2>, scalar_prefetch = 0 : i64, scratch_operands = 1 : i64, tpu.core_type = #tpu.core_type<tc>, window_params = [{transform_indices = @transform_0, window_bounds = array<i64: 1, 256, 66>}, {transform_indices = @transform_1, window_bounds = array<i64: 1, 256, 34>}, {transform_indices = @transform_2, window_bounds = array<i64: 1, 1, 64>}, {pipeline_mode = #tpu.pipeline_mode<synchronous>, transform_indices = @transform_3, window_bounds = array<i64: 66, 288>}, {pipeline_mode = #tpu.pipeline_mode<synchronous>, transform_indices = @transform_4, window_bounds = array<i64: 1, 32>}, {pipeline_mode = #tpu.pipeline_mode<synchronous>, transform_indices = @transform_5, window_bounds = array<i64: 1, 32>}, {pipeline_mode = #tpu.pipeline_mode<synchronous>, transform_indices = @transform_6, window_bounds = array<i64: 1, 32>}, {pipeline_mode = #tpu.pipeline_mode<synchronous>, transform_indices = @transform_7, window_bounds = array<i64: 32, 288>}, {pipeline_mode = #tpu.pipeline_mode<synchronous>, transform_indices = @transform_8, window_bounds = array<i64: 1, 32>}, {pipeline_mode = #tpu.pipeline_mode<synchronous>, transform_indices = @transform_9, window_bounds = array<i64: 34, 288>}, {pipeline_mode = #tpu.pipeline_mode<synchronous>, transform_indices = @transform_10, window_bounds = array<i64: 1, 32>}, {pipeline_mode = #tpu.pipeline_mode<synchronous>, transform_indices = @transform_11, window_bounds = array<i64: 1, 64>}, {pipeline_mode = #tpu.pipeline_mode<synchronous>, transform_indices = @transform_12, window_bounds = array<i64: 1, 64>}, {transform_indices = @transform_13, window_bounds = array<i64: 1, 256, 64>}]} {
    %cst = arith.constant 0.000000e+00 : f32
    %0 = vector.broadcast %cst : f32 to vector<24x288xf32>
    %c0 = arith.constant 0 : index
    %c0_0 = arith.constant 0 : index
    %1 = vector.load %arg15[%c0, %c0_0] : memref<304x288xf32, #tpu.memory_space<vmem>>, vector<24x288xf32>
    tpu.vector_store %arg15[%c0, %c0_0], %0 {strides = array<i32>} : memref<304x288xf32, #tpu.memory_space<vmem>>, vector<24x288xf32>,
    %c280 = arith.constant 280 : index
    %c0_1 = arith.constant 0 : index
    %2 = vector.load %arg15[%c280, %c0_1] : memref<304x288xf32, #tpu.memory_space<vmem>>, vector<24x288xf32>
    tpu.vector_store %arg15[%c280, %c0_1], %0 {strides = array<i32>} : memref<304x288xf32, #tpu.memory_space<vmem>>, vector<24x288xf32>,
    %3 = tpu.iota {dimensions = array<i32: 0>} : vector<256x1xi32>
    %c16_i32 = arith.constant 16 : i32
    %c0_i32 = arith.constant 0 : i32
    %4 = arith.cmpi eq, %c16_i32, %c0_i32 : i32
    %c1_i32 = arith.constant 1 : i32
    %5 = arith.select %4, %c1_i32, %c16_i32 : i32
    %6 = vector.broadcast %5 : i32 to vector<256x1xi32>
    %7 = arith.remsi %3, %6 : vector<256x1xi32>
    %c0_i32_2 = arith.constant 0 : i32
    %8 = vector.broadcast %c0_i32_2 : i32 to vector<256x1xi32>
    %9 = arith.cmpi ne, %7, %8 : vector<256x1xi32>
    %c0_i32_3 = arith.constant 0 : i32
    %10 = vector.broadcast %c0_i32_3 : i32 to vector<256x1xi32>
    %11 = arith.cmpi slt, %7, %10 : vector<256x1xi32>
    %c0_i32_4 = arith.constant 0 : i32
    %12 = arith.cmpi slt, %5, %c0_i32_4 : i32
    %13 = vector.broadcast %12 : i1 to vector<256x1xi1>
    %14 = vector.broadcast %13 : vector<256x1xi1> to vector<256x1xi1>
    %15 = arith.xori %11, %14 : vector<256x1xi1>
    %16 = arith.andi %15, %9 : vector<256x1xi1>
    %17 = vector.broadcast %5 : i32 to vector<256x1xi32>
    %18 = arith.addi %7, %17 : vector<256x1xi32>
    %19 = arith.select %16, %18, %7 : vector<256x1xi1>, vector<256x1xi32>
    %c1_i32_5 = arith.constant 1 : i32
    %20 = vector.broadcast %c1_i32_5 : i32 to vector<256x1xi32>
    %21 = arith.cmpi sge, %19, %20 : vector<256x1xi32>
    %22 = arith.extui %21 : vector<256x1xi1> to vector<256x1xi32>
    %23 = arith.sitofp %22 : vector<256x1xi32> to vector<256x1xf32>
    %c14_i32 = arith.constant 14 : i32
    %24 = vector.broadcast %c14_i32 : i32 to vector<256x1xi32>
    %25 = arith.cmpi sle, %19, %24 : vector<256x1xi32>
    %26 = arith.extui %25 : vector<256x1xi1> to vector<256x1xi32>
    %27 = arith.sitofp %26 : vector<256x1xi32> to vector<256x1xf32>
    %c0_6 = arith.constant 0 : index
    %c0_7 = arith.constant 0 : index
    %c0_8 = arith.constant 0 : index
    %28 = vector.load %arg1[%c0_6, %c0_7, %c0_8] : memref<1x256x66xf32, #tpu.memory_space<vmem>>, vector<1x256x66xf32>
    %29 = vector.shape_cast %28 : vector<1x256x66xf32> to vector<256x66xf32>
    %c0_9 = arith.constant 0 : index
    %c0_10 = arith.constant 0 : index
    %30 = vector.load %arg4[%c0_9, %c0_10] : memref<66x288xf32, #tpu.memory_space<vmem>>, vector<66x288xf32>
    %cst_11 = arith.constant dense<0.000000e+00> : vector<256x288xf32>
    %31 = tpu.matmul %29, %30, %cst_11 {dimension_numbers = #tpu.dot_dimension_numbers<[1], [0], [0], [1], [0, 0, 1, 1], [], []>} : vector<256x66xf32>, vector<66x288xf32>, vector<256x288xf32> -> vector<256x288xf32>
    %c24 = arith.constant 24 : index
    %c0_12 = arith.constant 0 : index
    %32 = vector.load %arg15[%c24, %c0_12] : memref<304x288xf32, #tpu.memory_space<vmem>>, vector<256x288xf32>
    tpu.vector_store %arg15[%c24, %c0_12], %31 {strides = array<i32>} : memref<304x288xf32, #tpu.memory_space<vmem>>, vector<256x288xf32>,
    %c8 = arith.constant 8 : index
    %c32 = arith.constant 32 : index
    %33 = vector.load %arg15[%c8, %c32] : memref<304x288xf32, #tpu.memory_space<vmem>>, vector<256x32xf32>
    %c24_13 = arith.constant 24 : index
    %c128 = arith.constant 128 : index
    %34 = vector.load %arg15[%c24_13, %c128] : memref<304x288xf32, #tpu.memory_space<vmem>>, vector<256x32xf32>
    %35 = arith.addf %33, %34 : vector<256x32xf32>
    %c40 = arith.constant 40 : index
    %c224 = arith.constant 224 : index
    %36 = vector.load %arg15[%c40, %c224] : memref<304x288xf32, #tpu.memory_space<vmem>>, vector<256x32xf32>
    %37 = arith.addf %35, %36 : vector<256x32xf32>
    %c7 = arith.constant 7 : index
    %c0_14 = arith.constant 0 : index
    %38 = vector.load %arg15[%c7, %c0_14] : memref<304x288xf32, #tpu.memory_space<vmem>>, vector<256x32xf32>
    %c23 = arith.constant 23 : index
    %c96 = arith.constant 96 : index
    %39 = vector.load %arg15[%c23, %c96] : memref<304x288xf32, #tpu.memory_space<vmem>>, vector<256x32xf32>
    %40 = arith.addf %38, %39 : vector<256x32xf32>
    %c39 = arith.constant 39 : index
    %c192 = arith.constant 192 : index
    %41 = vector.load %arg15[%c39, %c192] : memref<304x288xf32, #tpu.memory_space<vmem>>, vector<256x32xf32>
    %42 = arith.addf %40, %41 : vector<256x32xf32>
    %c9 = arith.constant 9 : index
    %c64 = arith.constant 64 : index
    %43 = vector.load %arg15[%c9, %c64] : memref<304x288xf32, #tpu.memory_space<vmem>>, vector<256x32xf32>
    %c25 = arith.constant 25 : index
    %c160 = arith.constant 160 : index
    %44 = vector.load %arg15[%c25, %c160] : memref<304x288xf32, #tpu.memory_space<vmem>>, vector<256x32xf32>
    %45 = arith.addf %43, %44 : vector<256x32xf32>
    %c41 = arith.constant 41 : index
    %c256 = arith.constant 256 : index
    %46 = vector.load %arg15[%c41, %c256] : memref<304x288xf32, #tpu.memory_space<vmem>>, vector<256x32xf32>
    %47 = arith.addf %45, %46 : vector<256x32xf32>
    %48 = vector.shape_cast %23 : vector<256x1xf32> to vector<256x1xf32>
    %49 = vector.broadcast %48 : vector<256x1xf32> to vector<256x32xf32>
    %50 = vector.shape_cast %27 : vector<256x1xf32> to vector<256x1xf32>
    %51 = vector.broadcast %50 : vector<256x1xf32> to vector<256x32xf32>
    %52 = arith.mulf %42, %49 : vector<256x32xf32>
    %53 = arith.addf %37, %52 : vector<256x32xf32>
    %54 = arith.mulf %47, %51 : vector<256x32xf32>
    %55 = arith.addf %53, %54 : vector<256x32xf32>
    %c0_15 = arith.constant 0 : index
    %c0_16 = arith.constant 0 : index
    %56 = vector.load %arg5[%c0_15, %c0_16] : memref<1x32xf32, #tpu.memory_space<vmem>>, vector<1x32xf32>
    %57 = vector.broadcast %56 : vector<1x32xf32> to vector<256x32xf32>
    %58 = arith.addf %55, %57 : vector<256x32xf32>
    %cst_17 = arith.constant dense<0.000000e+00> : vector<32xf32>
    %59 = vector.multi_reduction <add>, %58, %cst_17 [0] : vector<256x32xf32> to vector<32xf32>
    %60 = vector.shape_cast %59 : vector<32xf32> to vector<1x32xf32>
    %cst_18 = arith.constant 3.906250e-03 : f32
    %61 = vector.broadcast %cst_18 : f32 to vector<1x32xf32>
    %62 = arith.mulf %60, %61 : vector<1x32xf32>
    %63 = vector.broadcast %62 : vector<1x32xf32> to vector<256x32xf32>
    %64 = arith.subf %58, %63 : vector<256x32xf32>
    %65 = arith.mulf %64, %64 : vector<256x32xf32>
    %cst_19 = arith.constant dense<0.000000e+00> : vector<32xf32>
    %66 = vector.multi_reduction <add>, %65, %cst_19 [0] : vector<256x32xf32> to vector<32xf32>
    %67 = vector.shape_cast %66 : vector<32xf32> to vector<1x32xf32>
    %cst_20 = arith.constant 3.906250e-03 : f32
    %68 = vector.broadcast %cst_20 : f32 to vector<1x32xf32>
    %69 = arith.mulf %67, %68 : vector<1x32xf32>
    %cst_21 = arith.constant 9.99999974E-6 : f32
    %70 = vector.broadcast %cst_21 : f32 to vector<1x32xf32>
    %71 = arith.addf %69, %70 : vector<1x32xf32>
    %72 = math.rsqrt %71 : vector<1x32xf32>
    %73 = vector.broadcast %72 : vector<1x32xf32> to vector<256x32xf32>
    %74 = arith.mulf %64, %73 : vector<256x32xf32>
    %c0_22 = arith.constant 0 : index
    %c0_23 = arith.constant 0 : index
    %75 = vector.load %arg6[%c0_22, %c0_23] : memref<1x32xf32, #tpu.memory_space<vmem>>, vector<1x32xf32>
    %76 = vector.broadcast %75 : vector<1x32xf32> to vector<256x32xf32>
    %77 = arith.mulf %74, %76 : vector<256x32xf32>
    %c0_24 = arith.constant 0 : index
    %c0_25 = arith.constant 0 : index
    %78 = vector.load %arg7[%c0_24, %c0_25] : memref<1x32xf32, #tpu.memory_space<vmem>>, vector<1x32xf32>
    %79 = vector.broadcast %78 : vector<1x32xf32> to vector<256x32xf32>
    %80 = arith.addf %77, %79 : vector<256x32xf32>
    %cst_26 = arith.constant 0.000000e+00 : f32
    %81 = vector.broadcast %cst_26 : f32 to vector<256x32xf32>
    %82 = arith.maximumf %80, %81 : vector<256x32xf32>
    %c0_27 = arith.constant 0 : index
    %c0_28 = arith.constant 0 : index
    %83 = vector.load %arg8[%c0_27, %c0_28] : memref<32x288xf32, #tpu.memory_space<vmem>>, vector<32x288xf32>
    %cst_29 = arith.constant dense<0.000000e+00> : vector<256x288xf32>
    %84 = tpu.matmul %82, %83, %cst_29 {dimension_numbers = #tpu.dot_dimension_numbers<[1], [0], [0], [1], [0, 0, 1, 1], [], []>} : vector<256x32xf32>, vector<32x288xf32>, vector<256x288xf32> -> vector<256x288xf32>
    %c24_30 = arith.constant 24 : index
    %c0_31 = arith.constant 0 : index
    %85 = vector.load %arg15[%c24_30, %c0_31] : memref<304x288xf32, #tpu.memory_space<vmem>>, vector<256x288xf32>
    tpu.vector_store %arg15[%c24_30, %c0_31], %84 {strides = array<i32>} : memref<304x288xf32, #tpu.memory_space<vmem>>, vector<256x288xf32>,
    %c8_32 = arith.constant 8 : index
    %c32_33 = arith.constant 32 : index
    %86 = vector.load %arg15[%c8_32, %c32_33] : memref<304x288xf32, #tpu.memory_space<vmem>>, vector<256x32xf32>
    %c24_34 = arith.constant 24 : index
    %c128_35 = arith.constant 128 : index
    %87 = vector.load %arg15[%c24_34, %c128_35] : memref<304x288xf32, #tpu.memory_space<vmem>>, vector<256x32xf32>
    %88 = arith.addf %86, %87 : vector<256x32xf32>
    %c40_36 = arith.constant 40 : index
    %c224_37 = arith.constant 224 : index
    %89 = vector.load %arg15[%c40_36, %c224_37] : memref<304x288xf32, #tpu.memory_space<vmem>>, vector<256x32xf32>
    %90 = arith.addf %88, %89 : vector<256x32xf32>
    %c7_38 = arith.constant 7 : index
    %c0_39 = arith.constant 0 : index
    %91 = vector.load %arg15[%c7_38, %c0_39] : memref<304x288xf32, #tpu.memory_space<vmem>>, vector<256x32xf32>
    %c23_40 = arith.constant 23 : index
    %c96_41 = arith.constant 96 : index
    %92 = vector.load %arg15[%c23_40, %c96_41] : memref<304x288xf32, #tpu.memory_space<vmem>>, vector<256x32xf32>
    %93 = arith.addf %91, %92 : vector<256x32xf32>
    %c39_42 = arith.constant 39 : index
    %c192_43 = arith.constant 192 : index
    %94 = vector.load %arg15[%c39_42, %c192_43] : memref<304x288xf32, #tpu.memory_space<vmem>>, vector<256x32xf32>
    %95 = arith.addf %93, %94 : vector<256x32xf32>
    %c9_44 = arith.constant 9 : index
    %c64_45 = arith.constant 64 : index
    %96 = vector.load %arg15[%c9_44, %c64_45] : memref<304x288xf32, #tpu.memory_space<vmem>>, vector<256x32xf32>
    %c25_46 = arith.constant 25 : index
    %c160_47 = arith.constant 160 : index
    %97 = vector.load %arg15[%c25_46, %c160_47] : memref<304x288xf32, #tpu.memory_space<vmem>>, vector<256x32xf32>
    %98 = arith.addf %96, %97 : vector<256x32xf32>
    %c41_48 = arith.constant 41 : index
    %c256_49 = arith.constant 256 : index
    %99 = vector.load %arg15[%c41_48, %c256_49] : memref<304x288xf32, #tpu.memory_space<vmem>>, vector<256x32xf32>
    %100 = arith.addf %98, %99 : vector<256x32xf32>
    %101 = vector.shape_cast %23 : vector<256x1xf32> to vector<256x1xf32>
    %102 = vector.broadcast %101 : vector<256x1xf32> to vector<256x32xf32>
    %103 = vector.shape_cast %27 : vector<256x1xf32> to vector<256x1xf32>
    %104 = vector.broadcast %103 : vector<256x1xf32> to vector<256x32xf32>
    %105 = arith.mulf %95, %102 : vector<256x32xf32>
    %106 = arith.addf %90, %105 : vector<256x32xf32>
    %107 = arith.mulf %100, %104 : vector<256x32xf32>
    %108 = arith.addf %106, %107 : vector<256x32xf32>
    %c0_50 = arith.constant 0 : index
    %c0_51 = arith.constant 0 : index
    %109 = vector.load %arg9[%c0_50, %c0_51] : memref<1x32xf32, #tpu.memory_space<vmem>>, vector<1x32xf32>
    %110 = vector.broadcast %109 : vector<1x32xf32> to vector<256x32xf32>
    %111 = arith.addf %108, %110 : vector<256x32xf32>
    %c0_52 = arith.constant 0 : index
    %c0_53 = arith.constant 0 : index
    %c0_54 = arith.constant 0 : index
    %112 = vector.load %arg2[%c0_52, %c0_53, %c0_54] : memref<1x256x34xf32, #tpu.memory_space<vmem>>, vector<1x256x34xf32>
    %113 = vector.shape_cast %112 : vector<1x256x34xf32> to vector<256x34xf32>
    %c0_55 = arith.constant 0 : index
    %c0_56 = arith.constant 0 : index
    %114 = vector.load %arg10[%c0_55, %c0_56] : memref<34x288xf32, #tpu.memory_space<vmem>>, vector<34x288xf32>
    %cst_57 = arith.constant dense<0.000000e+00> : vector<256x288xf32>
    %115 = tpu.matmul %113, %114, %cst_57 {dimension_numbers = #tpu.dot_dimension_numbers<[1], [0], [0], [1], [0, 0, 1, 1], [], []>} : vector<256x34xf32>, vector<34x288xf32>, vector<256x288xf32> -> vector<256x288xf32>
    %c24_58 = arith.constant 24 : index
    %c0_59 = arith.constant 0 : index
    %116 = vector.load %arg15[%c24_58, %c0_59] : memref<304x288xf32, #tpu.memory_space<vmem>>, vector<256x288xf32>
    tpu.vector_store %arg15[%c24_58, %c0_59], %115 {strides = array<i32>} : memref<304x288xf32, #tpu.memory_space<vmem>>, vector<256x288xf32>,
    %c8_60 = arith.constant 8 : index
    %c32_61 = arith.constant 32 : index
    %117 = vector.load %arg15[%c8_60, %c32_61] : memref<304x288xf32, #tpu.memory_space<vmem>>, vector<256x32xf32>
    %c24_62 = arith.constant 24 : index
    %c128_63 = arith.constant 128 : index
    %118 = vector.load %arg15[%c24_62, %c128_63] : memref<304x288xf32, #tpu.memory_space<vmem>>, vector<256x32xf32>
    %119 = arith.addf %117, %118 : vector<256x32xf32>
    %c40_64 = arith.constant 40 : index
    %c224_65 = arith.constant 224 : index
    %120 = vector.load %arg15[%c40_64, %c224_65] : memref<304x288xf32, #tpu.memory_space<vmem>>, vector<256x32xf32>
    %121 = arith.addf %119, %120 : vector<256x32xf32>
    %c7_66 = arith.constant 7 : index
    %c0_67 = arith.constant 0 : index
    %122 = vector.load %arg15[%c7_66, %c0_67] : memref<304x288xf32, #tpu.memory_space<vmem>>, vector<256x32xf32>
    %c23_68 = arith.constant 23 : index
    %c96_69 = arith.constant 96 : index
    %123 = vector.load %arg15[%c23_68, %c96_69] : memref<304x288xf32, #tpu.memory_space<vmem>>, vector<256x32xf32>
    %124 = arith.addf %122, %123 : vector<256x32xf32>
    %c39_70 = arith.constant 39 : index
    %c192_71 = arith.constant 192 : index
    %125 = vector.load %arg15[%c39_70, %c192_71] : memref<304x288xf32, #tpu.memory_space<vmem>>, vector<256x32xf32>
    %126 = arith.addf %124, %125 : vector<256x32xf32>
    %c9_72 = arith.constant 9 : index
    %c64_73 = arith.constant 64 : index
    %127 = vector.load %arg15[%c9_72, %c64_73] : memref<304x288xf32, #tpu.memory_space<vmem>>, vector<256x32xf32>
    %c25_74 = arith.constant 25 : index
    %c160_75 = arith.constant 160 : index
    %128 = vector.load %arg15[%c25_74, %c160_75] : memref<304x288xf32, #tpu.memory_space<vmem>>, vector<256x32xf32>
    %129 = arith.addf %127, %128 : vector<256x32xf32>
    %c41_76 = arith.constant 41 : index
    %c256_77 = arith.constant 256 : index
    %130 = vector.load %arg15[%c41_76, %c256_77] : memref<304x288xf32, #tpu.memory_space<vmem>>, vector<256x32xf32>
    %131 = arith.addf %129, %130 : vector<256x32xf32>
    %132 = vector.shape_cast %23 : vector<256x1xf32> to vector<256x1xf32>
    %133 = vector.broadcast %132 : vector<256x1xf32> to vector<256x32xf32>
    %134 = vector.shape_cast %27 : vector<256x1xf32> to vector<256x1xf32>
    %135 = vector.broadcast %134 : vector<256x1xf32> to vector<256x32xf32>
    %136 = arith.mulf %126, %133 : vector<256x32xf32>
    %137 = arith.addf %121, %136 : vector<256x32xf32>
    %138 = arith.mulf %131, %135 : vector<256x32xf32>
    %139 = arith.addf %137, %138 : vector<256x32xf32>
    %c0_78 = arith.constant 0 : index
    %c0_79 = arith.constant 0 : index
    %140 = vector.load %arg11[%c0_78, %c0_79] : memref<1x32xf32, #tpu.memory_space<vmem>>, vector<1x32xf32>
    %141 = vector.broadcast %140 : vector<1x32xf32> to vector<256x32xf32>
    %142 = arith.addf %139, %141 : vector<256x32xf32>
    %143 = tpu.concatenate %111, %142 in 1 : vector<256x32xf32>, vector<256x32xf32> -> vector<256x64xf32>
    %cst_80 = arith.constant dense<0.000000e+00> : vector<64xf32>
    %144 = vector.multi_reduction <add>, %143, %cst_80 [0] : vector<256x64xf32> to vector<64xf32>
    %145 = vector.shape_cast %144 : vector<64xf32> to vector<1x64xf32>
    %cst_81 = arith.constant 3.906250e-03 : f32
    %146 = vector.broadcast %cst_81 : f32 to vector<1x64xf32>
    %147 = arith.mulf %145, %146 : vector<1x64xf32>
    %148 = vector.broadcast %147 : vector<1x64xf32> to vector<256x64xf32>
    %149 = arith.subf %143, %148 : vector<256x64xf32>
    %150 = arith.mulf %149, %149 : vector<256x64xf32>
    %cst_82 = arith.constant dense<0.000000e+00> : vector<64xf32>
    %151 = vector.multi_reduction <add>, %150, %cst_82 [0] : vector<256x64xf32> to vector<64xf32>
    %152 = vector.shape_cast %151 : vector<64xf32> to vector<1x64xf32>
    %cst_83 = arith.constant 3.906250e-03 : f32
    %153 = vector.broadcast %cst_83 : f32 to vector<1x64xf32>
    %154 = arith.mulf %152, %153 : vector<1x64xf32>
    %cst_84 = arith.constant 9.99999974E-6 : f32
    %155 = vector.broadcast %cst_84 : f32 to vector<1x64xf32>
    %156 = arith.addf %154, %155 : vector<1x64xf32>
    %157 = math.rsqrt %156 : vector<1x64xf32>
    %158 = vector.broadcast %157 : vector<1x64xf32> to vector<256x64xf32>
    %159 = arith.mulf %149, %158 : vector<256x64xf32>
    %c0_85 = arith.constant 0 : index
    %c0_86 = arith.constant 0 : index
    %160 = vector.load %arg12[%c0_85, %c0_86] : memref<1x64xf32, #tpu.memory_space<vmem>>, vector<1x64xf32>
    %161 = vector.broadcast %160 : vector<1x64xf32> to vector<256x64xf32>
    %162 = arith.mulf %159, %161 : vector<256x64xf32>
    %c0_87 = arith.constant 0 : index
    %c0_88 = arith.constant 0 : index
    %163 = vector.load %arg13[%c0_87, %c0_88] : memref<1x64xf32, #tpu.memory_space<vmem>>, vector<1x64xf32>
    %164 = vector.broadcast %163 : vector<1x64xf32> to vector<256x64xf32>
    %165 = arith.addf %162, %164 : vector<256x64xf32>
    %cst_89 = arith.constant 0.000000e+00 : f32
    %166 = vector.broadcast %cst_89 : f32 to vector<256x64xf32>
    %167 = arith.maximumf %165, %166 : vector<256x64xf32>
    %c0_90 = arith.constant 0 : index
    %c0_91 = arith.constant 0 : index
    %c0_92 = arith.constant 0 : index
    %168 = vector.load %arg3[%c0_90, %c0_91, %c0_92] : memref<1x1x64xf32, #tpu.memory_space<vmem>>, vector<1x1x64xf32>
    %169 = vector.shape_cast %168 : vector<1x1x64xf32> to vector<1x64xf32>
    %170 = vector.broadcast %169 : vector<1x64xf32> to vector<256x64xf32>
    %171 = arith.mulf %167, %170 : vector<256x64xf32>
    %c0_93 = arith.constant 0 : index
    %c0_94 = arith.constant 0 : index
    %c0_95 = arith.constant 0 : index
    %172 = vector.load %arg14[%c0_93, %c0_94, %c0_95] : memref<1x256x64xf32, #tpu.memory_space<vmem>>, vector<1x256x64xf32>
    %173 = vector.shape_cast %172 : vector<1x256x64xf32> to vector<256x64xf32>
    %174 = vector.shape_cast %171 : vector<256x64xf32> to vector<1x256x64xf32>
    tpu.vector_store %arg14[%c0_93, %c0_94, %c0_95], %174 {strides = array<i32>} : memref<1x256x64xf32, #tpu.memory_space<vmem>>, vector<1x256x64xf32>,
    return
  }
  func.func @transform_0(%arg0: i32) -> (i32, i32, i32) {
    %c0_i32 = arith.constant 0 : i32
    %c0_i32_0 = arith.constant 0 : i32
    %c0_i32_1 = arith.constant 0 : i32
    return %arg0, %c0_i32, %c0_i32_0 : i32, i32, i32
  }
  func.func @transform_1(%arg0: i32) -> (i32, i32, i32) {
    %c0_i32 = arith.constant 0 : i32
    %c0_i32_0 = arith.constant 0 : i32
    %c0_i32_1 = arith.constant 0 : i32
    return %arg0, %c0_i32, %c0_i32_0 : i32, i32, i32
  }
  func.func @transform_2(%arg0: i32) -> (i32, i32, i32) {
    %c0_i32 = arith.constant 0 : i32
    %c0_i32_0 = arith.constant 0 : i32
    %c0_i32_1 = arith.constant 0 : i32
    return %arg0, %c0_i32, %c0_i32_0 : i32, i32, i32
  }
  func.func @transform_3(%arg0: i32) -> (i32, i32) {
    %c0_i32 = arith.constant 0 : i32
    %c0_i32_0 = arith.constant 0 : i32
    %c0_i32_1 = arith.constant 0 : i32
    return %c0_i32, %c0_i32_0 : i32, i32
  }
  func.func @transform_4(%arg0: i32) -> (i32, i32) {
    %c0_i32 = arith.constant 0 : i32
    %c0_i32_0 = arith.constant 0 : i32
    %c0_i32_1 = arith.constant 0 : i32
    return %c0_i32, %c0_i32_0 : i32, i32
  }
  func.func @transform_5(%arg0: i32) -> (i32, i32) {
    %c0_i32 = arith.constant 0 : i32
    %c0_i32_0 = arith.constant 0 : i32
    %c0_i32_1 = arith.constant 0 : i32
    return %c0_i32, %c0_i32_0 : i32, i32
  }
  func.func @transform_6(%arg0: i32) -> (i32, i32) {
    %c0_i32 = arith.constant 0 : i32
    %c0_i32_0 = arith.constant 0 : i32
    %c0_i32_1 = arith.constant 0 : i32
    return %c0_i32, %c0_i32_0 : i32, i32
  }
  func.func @transform_7(%arg0: i32) -> (i32, i32) {
    %c0_i32 = arith.constant 0 : i32
    %c0_i32_0 = arith.constant 0 : i32
    %c0_i32_1 = arith.constant 0 : i32
    return %c0_i32, %c0_i32_0 : i32, i32
  }
  func.func @transform_8(%arg0: i32) -> (i32, i32) {
    %c0_i32 = arith.constant 0 : i32
    %c0_i32_0 = arith.constant 0 : i32
    %c0_i32_1 = arith.constant 0 : i32
    return %c0_i32, %c0_i32_0 : i32, i32
  }
  func.func @transform_9(%arg0: i32) -> (i32, i32) {
    %c0_i32 = arith.constant 0 : i32
    %c0_i32_0 = arith.constant 0 : i32
    %c0_i32_1 = arith.constant 0 : i32
    return %c0_i32, %c0_i32_0 : i32, i32
  }
  func.func @transform_10(%arg0: i32) -> (i32, i32) {
    %c0_i32 = arith.constant 0 : i32
    %c0_i32_0 = arith.constant 0 : i32
    %c0_i32_1 = arith.constant 0 : i32
    return %c0_i32, %c0_i32_0 : i32, i32
  }
  func.func @transform_11(%arg0: i32) -> (i32, i32) {
    %c0_i32 = arith.constant 0 : i32
    %c0_i32_0 = arith.constant 0 : i32
    %c0_i32_1 = arith.constant 0 : i32
    return %c0_i32, %c0_i32_0 : i32, i32
  }
  func.func @transform_12(%arg0: i32) -> (i32, i32) {
    %c0_i32 = arith.constant 0 : i32
    %c0_i32_0 = arith.constant 0 : i32
    %c0_i32_1 = arith.constant 0 : i32
    return %c0_i32, %c0_i32_0 : i32, i32
  }
  func.func @transform_13(%arg0: i32) -> (i32, i32, i32) {
    %c0_i32 = arith.constant 0 : i32
    %c0_i32_0 = arith.constant 0 : i32
    %c0_i32_1 = arith.constant 0 : i32
    return %arg0, %c0_i32, %c0_i32_0 : i32, i32, i32
  }
}

</mosaic_0001>

<llo_original>
// kernel: tpu_custom_call.1
$region0: #{tpu_custom_call.1}
  #allocation0 [shape = 'u32[]', space=smem, size = 0x4, offset = 0x4, fixed_abs, tag = 'smem constant byte address 0x4 - core index']
  #allocation1 [shape = 'u32[144,128]{1,0:T(1,128)}', space=vmem, size = 0x12000, scoped, tag = 'internal scratch']
  #allocation2 [shape = 'f32[304,288]{1,0:T(8,128)}', space=vmem, size = 0x72000, scoped, tag = 'scratch operand']
  %s0 = inlined_call_operand.vmem [shape: f32[2,256,66], index: 0, kind: input, shape index: {}]
  %s1 = inlined_call_operand.vmem [shape: f32[2,256,34], index: 1, kind: input, shape index: {}]
  %s2 = inlined_call_operand.vmem [shape: f32[2,1,64], index: 2, kind: input, shape index: {}]
  %s3 = inlined_call_operand.vmem [shape: f32[66,288], index: 3, kind: input, shape index: {}]
  %s4 = inlined_call_operand.vmem [shape: f32[1,32], index: 4, kind: input, shape index: {}]
  %s5 = inlined_call_operand.vmem [shape: f32[1,32], index: 5, kind: input, shape index: {}]
  %s6 = inlined_call_operand.vmem [shape: f32[1,32], index: 6, kind: input, shape index: {}]
  %s7 = inlined_call_operand.vmem [shape: f32[32,288], index: 7, kind: input, shape index: {}]
  %s8 = inlined_call_operand.vmem [shape: f32[1,32], index: 8, kind: input, shape index: {}]
  %s9 = inlined_call_operand.vmem [shape: f32[34,288], index: 9, kind: input, shape index: {}]
  %s10 = inlined_call_operand.vmem [shape: f32[1,32], index: 10, kind: input, shape index: {}]
  %s11 = inlined_call_operand.vmem [shape: f32[1,64], index: 11, kind: input, shape index: {}]
  %s12 = inlined_call_operand.vmem [shape: f32[1,64], index: 12, kind: input, shape index: {}]
  %s13 = inlined_call_operand.vmem [shape: f32[2,256,64], index: 13, kind: output, shape index: {}]
  %s14 = sld [smem:[#allocation0]]
  $region85: #{tpu_custom_call.1} parent=0
    _
  %s16 = ssub.s32 1, %s14
  %s17 = scalar_select 0, %s16, %s14
  loop: start=0, step=1, limit=4
  $region2: #{tpu_custom_call.1} parent=0 // loop_pre_header
    _
  $region3: #{tpu_custom_call.1} parent=0 // loop_header
    %s19 = sphi 0, %s23
    %p20 = scmp.ge.s32.totalorder %s19, 4
    %s29 = sphi 0, %s31
    %s32 = sphi 0, %s29
    %s33 = sphi 0, %s32
    %s49 = sphi 0, %s33
    %s55 = sphi 0, %s57
    %s58 = sphi 0, %s55
    %s59 = sphi 0, %s58
    %s75 = sphi 0, %s59
    %s81 = sphi 0, %s83
    %s84 = sphi 0, %s81
    %s85 = sphi 0, %s84
    %s101 = sphi 0, %s85
    %s105 = sphi 0, %s105
    %s107 = sphi 0, %s105
    %s108 = sphi 0, %s107
    %s122 = sphi 0, %s108
    %s126 = sphi 0, %s126
    %s128 = sphi 0, %s126
    %s129 = sphi 0, %s128
    %s143 = sphi 0, %s129
    %s147 = sphi 0, %s147
    %s149 = sphi 0, %s147
    %s150 = sphi 0, %s149
    %s164 = sphi 0, %s150
    %s168 = sphi 0, %s168
    %s170 = sphi 0, %s168
    %s171 = sphi 0, %s170
    %s185 = sphi 0, %s171
    %s189 = sphi 0, %s189
    %s191 = sphi 0, %s189
    %s192 = sphi 0, %s191
    %s206 = sphi 0, %s192
    %s210 = sphi 0, %s210
    %s212 = sphi 0, %s210
    %s213 = sphi 0, %s212
    %s227 = sphi 0, %s213
    %s231 = sphi 0, %s231
    %s233 = sphi 0, %s231
    %s234 = sphi 0, %s233
    %s248 = sphi 0, %s234
    %s252 = sphi 0, %s252
    %s254 = sphi 0, %s252
    %s255 = sphi 0, %s254
    %s269 = sphi 0, %s255
    %s273 = sphi 0, %s273
    %s275 = sphi 0, %s273
    %s276 = sphi 0, %s275
    %s290 = sphi 0, %s276
    %s294 = sphi 0, %s294
    %s296 = sphi 0, %s294
    %s297 = sphi 0, %s296
    %s311 = sphi 0, %s297
    %s317 = sphi 0, %s319
    %s320 = sphi 0, %s317
    %s321 = sphi 0, %s320
    %s337 = sphi 0, %s321
  $region4: #{tpu_custom_call.1} parent=0 // loop_header_branch
    %22 = sbr.rel (%p20) target = $region8
  $region5: #{tpu_custom_call.1} parent=0 // loop_body
    %s24 = ssub.s32 %s19, 1
    %s25 = ssub.s32 %s19, 2
    %s26 = sadd.s32 %s19, 1
    %s27 = ssub.s32 %s19, %s26
    %p28 = scmp.eq.s32.totalorder %s27, 0
    %s30 = sadd.s32 %s29, 1
    %s31 = scalar_select %p28, %s29, %s30
    %p34 = pneg %p28
    %p35 = scmp.eq.s32.totalorder %s19, 1
    %p36 = por %p34, %p35
    %p37 = scmp.ne.s32.totalorder %s29, %s32
    %p38 = scmp.eq.s32.totalorder %s19, 0
    %p39 = por %p37, %p38
    %p40 = scmp.ne.s32.totalorder %s29, %s32
    %p41 = scmp.eq.s32.totalorder %s24, 1
    %p42 = por %p40, %p41
    %p43 = scmp.ne.s32.totalorder %s32, %s33
    %p44 = scmp.eq.s32.totalorder %s24, 0
    %p45 = por %p43, %p44
    %p46 = scmp.ne.s32.totalorder %s32, %s33
    %p47 = scmp.eq.s32.totalorder %s25, 1
    %p48 = por %p46, %p47
    %p50 = scmp.ne.s32.totalorder %s33, %s49
    %p51 = scmp.eq.s32.totalorder %s25, 0
    %p52 = por %p50, %p51
    %s53 = ssub.s32 %s19, %s26
    %p54 = scmp.eq.s32.totalorder %s53, 0
    %s56 = sadd.s32 %s55, 1
    %s57 = scalar_select %p54, %s55, %s56
    %p60 = pneg %p54
    %p61 = scmp.eq.s32.totalorder %s19, 1
    %p62 = por %p60, %p61
    %p63 = scmp.ne.s32.totalorder %s55, %s58
    %p64 = scmp.eq.s32.totalorder %s19, 0
    %p65 = por %p63, %p64
    %p66 = scmp.ne.s32.totalorder %s55, %s58
    %p67 = scmp.eq.s32.totalorder %s24, 1
    %p68 = por %p66, %p67
    %p69 = scmp.ne.s32.totalorder %s58, %s59
    %p70 = scmp.eq.s32.totalorder %s24, 0
    %p71 = por %p69, %p70
    %p72 = scmp.ne.s32.totalorder %s58, %s59
    %p73 = scmp.eq.s32.totalorder %s25, 1
    %p74 = por %p72, %p73
    %p76 = scmp.ne.s32.totalorder %s59, %s75
    %p77 = scmp.eq.s32.totalorder %s25, 0
    %p78 = por %p76, %p77
    %s79 = ssub.s32 %s19, %s26
    %p80 = scmp.eq.s32.totalorder %s79, 0
    %s82 = sadd.s32 %s81, 1
    %s83 = scalar_select %p80, %s81, %s82
    %p86 = pneg %p80
    %p87 = scmp.eq.s32.totalorder %s19, 1
    %p88 = por %p86, %p87
    %p89 = scmp.ne.s32.totalorder %s81, %s84
    %p90 = scmp.eq.s32.totalorder %s19, 0
    %p91 = por %p89, %p90
    %p92 = scmp.ne.s32.totalorder %s81, %s84
    %p93 = scmp.eq.s32.totalorder %s24, 1
    %p94 = por %p92, %p93
    %p95 = scmp.ne.s32.totalorder %s84, %s85
    %p96 = scmp.eq.s32.totalorder %s24, 0
    %p97 = por %p95, %p96
    %p98 = scmp.ne.s32.totalorder %s84, %s85
    %p99 = scmp.eq.s32.totalorder %s25, 1
    %p100 = por %p98, %p99
    %p102 = scmp.ne.s32.totalorder %s85, %s101
    %p103 = scmp.eq.s32.totalorder %s25, 0
    %p104 = por %p102, %p103
    %s106 = sadd.s32 %s105, 1
    %p109 = scmp.eq.s32.totalorder %s19, 1
    %p110 = scmp.ne.s32.totalorder %s105, %s107
    %p111 = scmp.eq.s32.totalorder %s19, 0
    %p112 = por %p110, %p111
    %p113 = scmp.ne.s32.totalorder %s105, %s107
    %p114 = scmp.eq.s32.totalorder %s24, 1
    %p115 = por %p113, %p114
    %p116 = scmp.ne.s32.totalorder %s107, %s108
    %p117 = scmp.eq.s32.totalorder %s24, 0
    %p118 = por %p116, %p117
    %p119 = scmp.ne.s32.totalorder %s107, %s108
    %p120 = scmp.eq.s32.totalorder %s25, 1
    %p121 = por %p119, %p120
    %p123 = scmp.ne.s32.totalorder %s108, %s122
    %p124 = scmp.eq.s32.totalorder %s25, 0
    %p125 = por %p123, %p124
    %s127 = sadd.s32 %s126, 1
    %p130 = scmp.eq.s32.totalorder %s19, 1
    %p131 = scmp.ne.s32.totalorder %s126, %s128
    %p132 = scmp.eq.s32.totalorder %s19, 0
    %p133 = por %p131, %p132
    %p134 = scmp.ne.s32.totalorder %s126, %s128
    %p135 = scmp.eq.s32.totalorder %s24, 1
    %p136 = por %p134, %p135
    %p137 = scmp.ne.s32.totalorder %s128, %s129
    %p138 = scmp.eq.s32.totalorder %s24, 0
    %p139 = por %p137, %p138
    %p140 = scmp.ne.s32.totalorder %s128, %s129
    %p141 = scmp.eq.s32.totalorder %s25, 1
    %p142 = por %p140, %p141
    %p144 = scmp.ne.s32.totalorder %s129, %s143
    %p145 = scmp.eq.s32.totalorder %s25, 0
    %p146 = por %p144, %p145
    %s148 = sadd.s32 %s147, 1
    %p151 = scmp.eq.s32.totalorder %s19, 1
    %p152 = scmp.ne.s32.totalorder %s147, %s149
    %p153 = scmp.eq.s32.totalorder %s19, 0
    %p154 = por %p152, %p153
    %p155 = scmp.ne.s32.totalorder %s147, %s149
    %p156 = scmp.eq.s32.totalorder %s24, 1
    %p157 = por %p155, %p156
    %p158 = scmp.ne.s32.totalorder %s149, %s150
    %p159 = scmp.eq.s32.totalorder %s24, 0
    %p160 = por %p158, %p159
    %p161 = scmp.ne.s32.totalorder %s149, %s150
    %p162 = scmp.eq.s32.totalorder %s25, 1
    %p163 = por %p161, %p162
    %p165 = scmp.ne.s32.totalorder %s150, %s164
    %p166 = scmp.eq.s32.totalorder %s25, 0
    %p167 = por %p165, %p166
    %s169 = sadd.s32 %s168, 1
    %p172 = scmp.eq.s32.totalorder %s19, 1
    %p173 = scmp.ne.s32.totalorder %s168, %s170
    %p174 = scmp.eq.s32.totalorder %s19, 0
    %p175 = por %p173, %p174
    %p176 = scmp.ne.s32.totalorder %s168, %s170
    %p177 = scmp.eq.s32.totalorder %s24, 1
    %p178 = por %p176, %p177
    %p179 = scmp.ne.s32.totalorder %s170, %s171
    %p180 = scmp.eq.s32.totalorder %s24, 0
    %p181 = por %p179, %p180
    %p182 = scmp.ne.s32.totalorder %s170, %s171
    %p183 = scmp.eq.s32.totalorder %s25, 1
    %p184 = por %p182, %p183
    %p186 = scmp.ne.s32.totalorder %s171, %s185
    %p187 = scmp.eq.s32.totalorder %s25, 0
    %p188 = por %p186, %p187
    %s190 = sadd.s32 %s189, 1
    %p193 = scmp.eq.s32.totalorder %s19, 1
    %p194 = scmp.ne.s32.totalorder %s189, %s191
    %p195 = scmp.eq.s32.totalorder %s19, 0
    %p196 = por %p194, %p195
    %p197 = scmp.ne.s32.totalorder %s189, %s191
    %p198 = scmp.eq.s32.totalorder %s24, 1
    %p199 = por %p197, %p198
    %p200 = scmp.ne.s32.totalorder %s191, %s192
    %p201 = scmp.eq.s32.totalorder %s24, 0
    %p202 = por %p200, %p201
    %p203 = scmp.ne.s32.totalorder %s191, %s192
    %p204 = scmp.eq.s32.totalorder %s25, 1
    %p205 = por %p203, %p204
    %p207 = scmp.ne.s32.totalorder %s192, %s206
    %p208 = scmp.eq.s32.totalorder %s25, 0
    %p209 = por %p207, %p208
    %s211 = sadd.s32 %s210, 1
    %p214 = scmp.eq.s32.totalorder %s19, 1
    %p215 = scmp.ne.s32.totalorder %s210, %s212
    %p216 = scmp.eq.s32.totalorder %s19, 0
    %p217 = por %p215, %p216
    %p218 = scmp.ne.s32.totalorder %s210, %s212
    %p219 = scmp.eq.s32.totalorder %s24, 1
    %p220 = por %p218, %p219
    %p221 = scmp.ne.s32.totalorder %s212, %s213
    %p222 = scmp.eq.s32.totalorder %s24, 0
    %p223 = por %p221, %p222
    %p224 = scmp.ne.s32.totalorder %s212, %s213
    %p225 = scmp.eq.s32.totalorder %s25, 1
    %p226 = por %p224, %p225
    %p228 = scmp.ne.s32.totalorder %s213, %s227
    %p229 = scmp.eq.s32.totalorder %s25, 0
    %p230 = por %p228, %p229
    %s232 = sadd.s32 %s231, 1
    %p235 = scmp.eq.s32.totalorder %s19, 1
    %p236 = scmp.ne.s32.totalorder %s231, %s233
    %p237 = scmp.eq.s32.totalorder %s19, 0
    %p238 = por %p236, %p237
    %p239 = scmp.ne.s32.totalorder %s231, %s233
    %p240 = scmp.eq.s32.totalorder %s24, 1
    %p241 = por %p239, %p240
    %p242 = scmp.ne.s32.totalorder %s233, %s234
    %p243 = scmp.eq.s32.totalorder %s24, 0
    %p244 = por %p242, %p243
    %p245 = scmp.ne.s32.totalorder %s233, %s234
    %p246 = scmp.eq.s32.totalorder %s25, 1
    %p247 = por %p245, %p246
    %p249 = scmp.ne.s32.totalorder %s234, %s248
    %p250 = scmp.eq.s32.totalorder %s25, 0
    %p251 = por %p249, %p250
    %s253 = sadd.s32 %s252, 1
    %p256 = scmp.eq.s32.totalorder %s19, 1
    %p257 = scmp.ne.s32.totalorder %s252, %s254
    %p258 = scmp.eq.s32.totalorder %s19, 0
    %p259 = por %p257, %p258
    %p260 = scmp.ne.s32.totalorder %s252, %s254
    %p261 = scmp.eq.s32.totalorder %s24, 1
    %p262 = por %p260, %p261
    %p263 = scmp.ne.s32.totalorder %s254, %s255
    %p264 = scmp.eq.s32.totalorder %s24, 0
    %p265 = por %p263, %p264
    %p266 = scmp.ne.s32.totalorder %s254, %s255
    %p267 = scmp.eq.s32.totalorder %s25, 1
    %p268 = por %p266, %p267
    %p270 = scmp.ne.s32.totalorder %s255, %s269
    %p271 = scmp.eq.s32.totalorder %s25, 0
    %p272 = por %p270, %p271
    %s274 = sadd.s32 %s273, 1
    %p277 = scmp.eq.s32.totalorder %s19, 1
    %p278 = scmp.ne.s32.totalorder %s273, %s275
    %p279 = scmp.eq.s32.totalorder %s19, 0
    %p280 = por %p278, %p279
    %p281 = scmp.ne.s32.totalorder %s273, %s275
    %p282 = scmp.eq.s32.totalorder %s24, 1
    %p283 = por %p281, %p282
    %p284 = scmp.ne.s32.totalorder %s275, %s276
    %p285 = scmp.eq.s32.totalorder %s24, 0
    %p286 = por %p284, %p285
    %p287 = scmp.ne.s32.totalorder %s275, %s276
    %p288 = scmp.eq.s32.totalorder %s25, 1
    %p289 = por %p287, %p288
    %p291 = scmp.ne.s32.totalorder %s276, %s290
    %p292 = scmp.eq.s32.totalorder %s25, 0
    %p293 = por %p291, %p292
    %s295 = sadd.s32 %s294, 1
    %p298 = scmp.eq.s32.totalorder %s19, 1
    %p299 = scmp.ne.s32.totalorder %s294, %s296
    %p300 = scmp.eq.s32.totalorder %s19, 0
    %p301 = por %p299, %p300
    %p302 = scmp.ne.s32.totalorder %s294, %s296
    %p303 = scmp.eq.s32.totalorder %s24, 1
    %p304 = por %p302, %p303
    %p305 = scmp.ne.s32.totalorder %s296, %s297
    %p306 = scmp.eq.s32.totalorder %s24, 0
    %p307 = por %p305, %p306
    %p308 = scmp.ne.s32.totalorder %s296, %s297
    %p309 = scmp.eq.s32.totalorder %s25, 1
    %p310 = por %p308, %p309
    %p312 = scmp.ne.s32.totalorder %s297, %s311
    %p313 = scmp.eq.s32.totalorder %s25, 0
    %p314 = por %p312, %p313
    %s315 = ssub.s32 %s19, %s26
    %p316 = scmp.eq.s32.totalorder %s315, 0
    %s318 = sadd.s32 %s317, 1
    %s319 = scalar_select %p316, %s317, %s318
    %p322 = pneg %p316
    %p323 = scmp.eq.s32.totalorder %s19, 1
    %p324 = por %p322, %p323
    %p325 = scmp.ne.s32.totalorder %s317, %s320
    %p326 = scmp.eq.s32.totalorder %s19, 0
    %p327 = por %p325, %p326
    %p328 = scmp.ne.s32.totalorder %s317, %s320
    %p329 = scmp.eq.s32.totalorder %s24, 1
    %p330 = por %p328, %p329
    %p331 = scmp.ne.s32.totalorder %s320, %s321
    %p332 = scmp.eq.s32.totalorder %s24, 0
    %p333 = por %p331, %p332
    %p334 = scmp.ne.s32.totalorder %s320, %s321
    %p335 = scmp.eq.s32.totalorder %s25, 1
    %p336 = por %p334, %p335
    %p338 = scmp.ne.s32.totalorder %s321, %s337
    %p339 = scmp.eq.s32.totalorder %s25, 0
    %p340 = por %p338, %p339
    %p341 = scmp.le.s32.totalorder 1, %s19
    %p342 = scmp.lt.s32.totalorder %s19, 3
    %p343 = pnand %p341, %p342
    %p344 = pneg %p343
    // Predicated region
    $region9: #{tpu_custom_call.1} parent=5 // pred_check
      _
    $region10: #{tpu_custom_call.1} parent=5 // pred_check_branch
      %346 = sbr.rel (%p343) target = $region12
    $region11: #{tpu_custom_call.1} parent=5 // pred_region
      %s347 = ssub.s32 %s19, 1
      // Predicated region
      $region13: #{tpu_custom_call.1} parent=11 // pred_check
        %p348 = pneg %p118
      $region14: #{tpu_custom_call.1} parent=11 // pred_check_branch
        %350 = sbr.rel (%p348) target = $region16
      $region15: #{tpu_custom_call.1} parent=11 // pred_region
        _
      $region16: #{tpu_custom_call.1} parent=11 // pred_fallthru
        _
      // Predicated region
      $region17: #{tpu_custom_call.1} parent=11 // pred_check
        %p351 = pneg %p139
      $region18: #{tpu_custom_call.1} parent=11 // pred_check_branch
        %353 = sbr.rel (%p351) target = $region20
      $region19: #{tpu_custom_call.1} parent=11 // pred_region
        _
      $region20: #{tpu_custom_call.1} parent=11 // pred_fallthru
        _
      // Predicated region
      $region21: #{tpu_custom_call.1} parent=11 // pred_check
        %p354 = pneg %p160
      $region22: #{tpu_custom_call.1} parent=11 // pred_check_branch
        %356 = sbr.rel (%p354) target = $region24
      $region23: #{tpu_custom_call.1} parent=11 // pred_region
        _
      $region24: #{tpu_custom_call.1} parent=11 // pred_fallthru
        _
      // Predicated region
      $region25: #{tpu_custom_call.1} parent=11 // pred_check
        %p357 = pneg %p181
      $region26: #{tpu_custom_call.1} parent=11 // pred_check_branch
        %359 = sbr.rel (%p357) target = $region28
      $region27: #{tpu_custom_call.1} parent=11 // pred_region
        _
      $region28: #{tpu_custom_call.1} parent=11 // pred_fallthru
        _
      // Predicated region
      $region29: #{tpu_custom_call.1} parent=11 // pred_check
        %p360 = pneg %p202
      $region30: #{tpu_custom_call.1} parent=11 // pred_check_branch
        %362 = sbr.rel (%p360) target = $region32
      $region31: #{tpu_custom_call.1} parent=11 // pred_region
        _
      $region32: #{tpu_custom_call.1} parent=11 // pred_fallthru
        _
      // Predicated region
      $region33: #{tpu_custom_call.1} parent=11 // pred_check
        %p363 = pneg %p223
      $region34: #{tpu_custom_call.1} parent=11 // pred_check_branch
        %365 = sbr.rel (%p363) target = $region36
      $region35: #{tpu_custom_call.1} parent=11 // pred_region
        _
      $region36: #{tpu_custom_call.1} parent=11 // pred_fallthru
        _
      // Predicated region
      $region37: #{tpu_custom_call.1} parent=11 // pred_check
        %p366 = pneg %p244
      $region38: #{tpu_custom_call.1} parent=11 // pred_check_branch
        %368 = sbr.rel (%p366) target = $region40
      $region39: #{tpu_custom_call.1} parent=11 // pred_region
        _
      $region40: #{tpu_custom_call.1} parent=11 // pred_fallthru
        _
      // Predicated region
      $region41: #{tpu_custom_call.1} parent=11 // pred_check
        %p369 = pneg %p265
      $region42: #{tpu_custom_call.1} parent=11 // pred_check_branch
        %371 = sbr.rel (%p369) target = $region44
      $region43: #{tpu_custom_call.1} parent=11 // pred_region
        _
      $region44: #{tpu_custom_call.1} parent=11 // pred_fallthru
        _
      // Predicated region
      $region45: #{tpu_custom_call.1} parent=11 // pred_check
        %p372 = pneg %p286
      $region46: #{tpu_custom_call.1} parent=11 // pred_check_branch
        %374 = sbr.rel (%p372) target = $region48
      $region47: #{tpu_custom_call.1} parent=11 // pred_region
        _
      $region48: #{tpu_custom_call.1} parent=11 // pred_fallthru
        _
      // Predicated region
      $region49: #{tpu_custom_call.1} parent=11 // pred_check
        %p375 = pneg %p307
      $region50: #{tpu_custom_call.1} parent=11 // pred_check_branch
        %377 = sbr.rel (%p375) target = $region52
      $region51: #{tpu_custom_call.1} parent=11 // pred_region
        _
      $region52: #{tpu_custom_call.1} parent=11 // pred_fallthru
        _
    $region12: #{tpu_custom_call.1} parent=5 // pred_fallthru
      _
    %p378 = scmp.lt.s32.totalorder %s19, 2
    // Predicated region
    $region53: #{tpu_custom_call.1} parent=5 // pred_check
      %p379 = pneg %p378
    $region54: #{tpu_custom_call.1} parent=5 // pred_check_branch
      %381 = sbr.rel (%p379) target = $region56
    $region55: #{tpu_custom_call.1} parent=5 // pred_region
      // Predicated region
      $region57: #{tpu_custom_call.1} parent=55 // pred_check
        %p382 = pneg %p39
      $region58: #{tpu_custom_call.1} parent=55 // pred_check_branch
        %384 = sbr.rel (%p382) target = $region60
      $region59: #{tpu_custom_call.1} parent=55 // pred_region
        %p385 = scmp.lt.s32.totalorder %s19, 1
        %s386 = scalar_select %p385, %s19, 1
        %s387 = smul.addr %s386, 32
        %s388 = smul.addr %s387, 8
        %s389 = scalar_lea.vmem %s0, %s388
      $region60: #{tpu_custom_call.1} parent=55 // pred_fallthru
        _
      // Predicated region
      $region61: #{tpu_custom_call.1} parent=55 // pred_check
        %p390 = pneg %p65
      $region62: #{tpu_custom_call.1} parent=55 // pred_check_branch
        %392 = sbr.rel (%p390) target = $region64
      $region63: #{tpu_custom_call.1} parent=55 // pred_region
        %p393 = scmp.lt.s32.totalorder %s19, 1
        %s394 = scalar_select %p393, %s19, 1
        %s395 = smul.addr %s394, 32
        %s396 = smul.addr %s395, 8
        %s397 = scalar_lea.vmem %s1, %s396
      $region64: #{tpu_custom_call.1} parent=55 // pred_fallthru
        _
      // Predicated region
      $region65: #{tpu_custom_call.1} parent=55 // pred_check
        %p398 = pneg %p91
      $region66: #{tpu_custom_call.1} parent=55 // pred_check_branch
        %400 = sbr.rel (%p398) target = $region68
      $region67: #{tpu_custom_call.1} parent=55 // pred_region
        %p401 = scmp.lt.s32.totalorder %s19, 1
        %s402 = scalar_select %p401, %s19, 1
        %s403 = scalar_lea.vmem %s2, %s402
      $region68: #{tpu_custom_call.1} parent=55 // pred_fallthru
        _
    $region56: #{tpu_custom_call.1} parent=5 // pred_fallthru
      _
    %p404 = scmp.le.s32.totalorder 1, %s19
    %p405 = scmp.lt.s32.totalorder %s19, 3
    %p406 = pnand %p404, %p405
    %p407 = pneg %p406
    // Predicated region
    $region69: #{tpu_custom_call.1} parent=5 // pred_check
      _
    $region70: #{tpu_custom_call.1} parent=5 // pred_check_branch
      %409 = sbr.rel (%p406) target = $region72
    $region71: #{tpu_custom_call.1} parent=5 // pred_region
      %s410 = ssub.s32 %s19, 1
      %p411 = scmp.lt.s32.totalorder %s24, 1
      %s412 = scalar_select %p411, %s24, 1
      %s413 = smul.addr %s412, 32
      %s414 = smul.addr %s413, 8
      %s415 = scalar_lea.vmem %s0, %s414
      %p416 = pneg %p45
      %p417 = pneg %p42
      %p418 = scmp.lt.s32.totalorder %s24, 1
      %s419 = scalar_select %p418, %s24, 1
      %s420 = smul.addr %s419, 32
      %s421 = smul.addr %s420, 8
      %s422 = scalar_lea.vmem %s1, %s421
      %p423 = pneg %p71
      %p424 = pneg %p68
      %p425 = scmp.lt.s32.totalorder %s24, 1
      %s426 = scalar_select %p425, %s24, 1
      %s427 = scalar_lea.vmem %s2, %s426
      %p428 = pneg %p97
      %p429 = pneg %p94
      %p430 = pneg %p118
      %p431 = pneg %p115
      %p432 = pneg %p139
      %p433 = pneg %p136
      %p434 = pneg %p160
      %p435 = pneg %p157
      %p436 = pneg %p181
      %p437 = pneg %p178
      %p438 = pneg %p202
      %p439 = pneg %p199
      %p440 = pneg %p223
      %p441 = pneg %p220
      %p442 = pneg %p244
      %p443 = pneg %p241
      %p444 = pneg %p265
      %p445 = pneg %p262
      %p446 = pneg %p286
      %p447 = pneg %p283
      %p448 = pneg %p307
      %p449 = pneg %p304
      %p450 = pneg %p333
      %p451 = pneg %p330
      %p452 = scmp.lt.s32.totalorder %s24, 1
      %s453 = scalar_select %p452, %s24, 1
      %s454 = smul.addr %s453, 32
      %s455 = smul.addr %s454, 8
      %s456 = scalar_lea.vmem %s13, %s455
      %p457 = scmp.lt.s32.totalorder %s24, 1
      %s458 = scalar_select %p457, %s24, 1
      %s459 = smul.addr %s458, 32
      %s460 = smul.addr %s459, 8
      %s461 = scalar_lea.vmem %s0, %s460
      %p462 = scmp.lt.s32.totalorder %s24, 1
      %s463 = scalar_select %p462, %s24, 1
      %s464 = smul.addr %s463, 32
      %s465 = smul.addr %s464, 8
      %s466 = scalar_lea.vmem %s1, %s465
      %p467 = scmp.lt.s32.totalorder %s24, 1
      %s468 = scalar_select %p467, %s24, 1
      %s469 = scalar_lea.vmem %s2, %s468
      %p470 = scmp.lt.s32.totalorder %s24, 1
      %s471 = scalar_select %p470, %s24, 1
      %s472 = smul.addr %s471, 32
      %s473 = smul.addr %s472, 8
      %s474 = scalar_lea.vmem %s13, %s473
      %475 = vst [vmem:[#allocation2] sm:$0xff] 0.0
      %476 = vst [vmem:[#allocation2 + $0x8] sm:$0xff] 0.0
      %vm477 = vcmask 261120
      %478 = vst.msk [vmem:[#allocation2 + $0x10] sm:$0xff] %vm477, 0.0
      %479 = vst [vmem:[#allocation2 + $0x18] sm:$0xff] 0.0
      %480 = vst [vmem:[#allocation2 + $0x20] sm:$0xff] 0.0
      %481 = vst.msk [vmem:[#allocation2 + $0x28] sm:$0xff] %vm477, 0.0
      %482 = vst [vmem:[#allocation2 + $0x30] sm:$0xff] 0.0
      %483 = vst [vmem:[#allocation2 + $0x38] sm:$0xff] 0.0
      %484 = vst.msk [vmem:[#allocation2 + $0x40] sm:$0xff] %vm477, 0.0
      %485 = vst [vmem:[#allocation2 + $0x348] sm:$0xff] 0.0
      %486 = vst [vmem:[#allocation2 + $0x350] sm:$0xff] 0.0
      %487 = vst.msk [vmem:[#allocation2 + $0x358] sm:$0xff] %vm477, 0.0
      %488 = vst [vmem:[#allocation2 + $0x360] sm:$0xff] 0.0
      %489 = vst [vmem:[#allocation2 + $0x368] sm:$0xff] 0.0
      %490 = vst.msk [vmem:[#allocation2 + $0x370] sm:$0xff] %vm477, 0.0
      %491 = vst [vmem:[#allocation2 + $0x378] sm:$0xff] 0.0
      %492 = vst [vmem:[#allocation2 + $0x380] sm:$0xff] 0.0
      %493 = vst.msk [vmem:[#allocation2 + $0x388] sm:$0xff] %vm477, 0.0
      %v494 = vlaneseq
      %v495 = vshrl.u32 %v494, 7
      %v496 = vadd.s32 %v495, 8
      %v497 = vadd.s32 %v495, 16
      %v498 = vadd.s32 %v495, 24
      %v499 = vadd.s32 %v495, 32
      %v500 = vadd.s32 %v495, 40
      %v501 = vadd.s32 %v495, 48
      %v502 = vadd.s32 %v495, 56
      %v503 = vadd.s32 %v495, 64
      %v504 = vadd.s32 %v495, 72
      %v505 = vadd.s32 %v495, 80
      %v506 = vadd.s32 %v495, 88
      %v507 = vadd.s32 %v495, 96
      %v508 = vadd.s32 %v495, 104
      %v509 = vadd.s32 %v495, 112
      %v510 = vadd.s32 %v495, 120
      %v511 = vadd.s32 %v495, 128
      %v512 = vadd.s32 %v495, 136
      %v513 = vadd.s32 %v495, 144
      %v514 = vadd.s32 %v495, 152
      %v515 = vadd.s32 %v495, 160
      %v516 = vadd.s32 %v495, 168
      %v517 = vadd.s32 %v495, 176
      %v518 = vadd.s32 %v495, 184
      %v519 = vadd.s32 %v495, 192
      %v520 = vadd.s32 %v495, 200
      %v521 = vadd.s32 %v495, 208
      %v522 = vadd.s32 %v495, 216
      %v523 = vadd.s32 %v495, 224
      %v524 = vadd.s32 %v495, 232
      %v525 = vadd.s32 %v495, 240
      %v526 = vadd.s32 %v495, 248
      %vm527 = vcmp.lt.s32.totalorder %v495, 0
      %v528 = vsub.s32 0, %v495
      %v529 = vsel %vm527, %v528, %v495
      %v530 = vshrl.u32 %v529, 4
      %v531 = vand.u32 %v529, 15
      %v532 = vsub.s32 0, %v531
      %v533 = vsel %vm527, %v532, %v531
      %vm534 = vcmp.lt.s32.totalorder %v496, 0
      %v535 = vsub.s32 0, %v496
      %v536 = vsel %vm534, %v535, %v496
      %v537 = vshrl.u32 %v536, 4
      %v538 = vand.u32 %v536, 15
      %v539 = vsub.s32 0, %v538
      %v540 = vsel %vm534, %v539, %v538
      %vm541 = vcmp.lt.s32.totalorder %v497, 0
      %v542 = vsub.s32 0, %v497
      %v543 = vsel %vm541, %v542, %v497
      %v544 = vshrl.u32 %v543, 4
      %v545 = vand.u32 %v543, 15
      %v546 = vsub.s32 0, %v545
      %v547 = vsel %vm541, %v546, %v545
      %vm548 = vcmp.lt.s32.totalorder %v498, 0
      %v549 = vsub.s32 0, %v498
      %v550 = vsel %vm548, %v549, %v498
      %v551 = vshrl.u32 %v550, 4
      %v552 = vand.u32 %v550, 15
      %v553 = vsub.s32 0, %v552
      %v554 = vsel %vm548, %v553, %v552
      %vm555 = vcmp.lt.s32.totalorder %v499, 0
      %v556 = vsub.s32 0, %v499
      %v557 = vsel %vm555, %v556, %v499
      %v558 = vshrl.u32 %v557, 4
      %v559 = vand.u32 %v557, 15
      %v560 = vsub.s32 0, %v559
      %v561 = vsel %vm555, %v560, %v559
      %vm562 = vcmp.lt.s32.totalorder %v500, 0
      %v563 = vsub.s32 0, %v500
      %v564 = vsel %vm562, %v563, %v500
      %v565 = vshrl.u32 %v564, 4
      %v566 = vand.u32 %v564, 15
      %v567 = vsub.s32 0, %v566
      %v568 = vsel %vm562, %v567, %v566
      %vm569 = vcmp.lt.s32.totalorder %v501, 0
      %v570 = vsub.s32 0, %v501
      %v571 = vsel %vm569, %v570, %v501
      %v572 = vshrl.u32 %v571, 4
      %v573 = vand.u32 %v571, 15
      %v574 = vsub.s32 0, %v573
      %v575 = vsel %vm569, %v574, %v573
      %vm576 = vcmp.lt.s32.totalorder %v502, 0
      %v577 = vsub.s32 0, %v502
      %v578 = vsel %vm576, %v577, %v502
      %v579 = vshrl.u32 %v578, 4
      %v580 = vand.u32 %v578, 15
      %v581 = vsub.s32 0, %v580
      %v582 = vsel %vm576, %v581, %v580
      %vm583 = vcmp.lt.s32.totalorder %v503, 0
      %v584 = vsub.s32 0, %v503
      %v585 = vsel %vm583, %v584, %v503
      %v586 = vshrl.u32 %v585, 4
      %v587 = vand.u32 %v585, 15
      %v588 = vsub.s32 0, %v587
      %v589 = vsel %vm583, %v588, %v587
      %vm590 = vcmp.lt.s32.totalorder %v504, 0
      %v591 = vsub.s32 0, %v504
      %v592 = vsel %vm590, %v591, %v504
      %v593 = vshrl.u32 %v592, 4
      %v594 = vand.u32 %v592, 15
      %v595 = vsub.s32 0, %v594
      %v596 = vsel %vm590, %v595, %v594
      %vm597 = vcmp.lt.s32.totalorder %v505, 0
      %v598 = vsub.s32 0, %v505
      %v599 = vsel %vm597, %v598, %v505
      %v600 = vshrl.u32 %v599, 4
      %v601 = vand.u32 %v599, 15
      %v602 = vsub.s32 0, %v601
      %v603 = vsel %vm597, %v602, %v601
      %vm604 = vcmp.lt.s32.totalorder %v506, 0
      %v605 = vsub.s32 0, %v506
      %v606 = vsel %vm604, %v605, %v506
      %v607 = vshrl.u32 %v606, 4
      %v608 = vand.u32 %v606, 15
      %v609 = vsub.s32 0, %v608
      %v610 = vsel %vm604, %v609, %v608
      %vm611 = vcmp.lt.s32.totalorder %v507, 0
      %v612 = vsub.s32 0, %v507
      %v613 = vsel %vm611, %v612, %v507
      %v614 = vshrl.u32 %v613, 4
      %v615 = vand.u32 %v613, 15
      %v616 = vsub.s32 0, %v615
      %v617 = vsel %vm611, %v616, %v615
      %vm618 = vcmp.lt.s32.totalorder %v508, 0
      %v619 = vsub.s32 0, %v508
      %v620 = vsel %vm618, %v619, %v508
      %v621 = vshrl.u32 %v620, 4
      %v622 = vand.u32 %v620, 15
      %v623 = vsub.s32 0, %v622
      %v624 = vsel %vm618, %v623, %v622
      %vm625 = vcmp.lt.s32.totalorder %v509, 0
      %v626 = vsub.s32 0, %v509
      %v627 = vsel %vm625, %v626, %v509
      %v628 = vshrl.u32 %v627, 4
      %v629 = vand.u32 %v627, 15
      %v630 = vsub.s32 0, %v629
      %v631 = vsel %vm625, %v630, %v629
      %vm632 = vcmp.lt.s32.totalorder %v510, 0
      %v633 = vsub.s32 0, %v510
      %v634 = vsel %vm632, %v633, %v510
      %v635 = vshrl.u32 %v634, 4
      %v636 = vand.u32 %v634, 15
      %v637 = vsub.s32 0, %v636
      %v638 = vsel %vm632, %v637, %v636
      %vm639 = vcmp.lt.s32.totalorder %v511, 0
      %v640 = vsub.s32 0, %v511
      %v641 = vsel %vm639, %v640, %v511
      %v642 = vshrl.u32 %v641, 4
      %v643 = vand.u32 %v641, 15
      %v644 = vsub.s32 0, %v643
      %v645 = vsel %vm639, %v644, %v643
      %vm646 = vcmp.lt.s32.totalorder %v512, 0
      %v647 = vsub.s32 0, %v512
      %v648 = vsel %vm646, %v647, %v512
      %v649 = vshrl.u32 %v648, 4
      %v650 = vand.u32 %v648, 15
      %v651 = vsub.s32 0, %v650
      %v652 = vsel %vm646, %v651, %v650
      %vm653 = vcmp.lt.s32.totalorder %v513, 0
      %v654 = vsub.s32 0, %v513
      %v655 = vsel %vm653, %v654, %v513
      %v656 = vshrl.u32 %v655, 4
      %v657 = vand.u32 %v655, 15
      %v658 = vsub.s32 0, %v657
      %v659 = vsel %vm653, %v658, %v657
      %vm660 = vcmp.lt.s32.totalorder %v514, 0
      %v661 = vsub.s32 0, %v514
      %v662 = vsel %vm660, %v661, %v514
      %v663 = vshrl.u32 %v662, 4
      %v664 = vand.u32 %v662, 15
      %v665 = vsub.s32 0, %v664
      %v666 = vsel %vm660, %v665, %v664
      %vm667 = vcmp.lt.s32.totalorder %v515, 0
      %v668 = vsub.s32 0, %v515
      %v669 = vsel %vm667, %v668, %v515
      %v670 = vshrl.u32 %v669, 4
      %v671 = vand.u32 %v669, 15
      %v672 = vsub.s32 0, %v671
      %v673 = vsel %vm667, %v672, %v671
      %vm674 = vcmp.lt.s32.totalorder %v516, 0
      %v675 = vsub.s32 0, %v516
      %v676 = vsel %vm674, %v675, %v516
      %v677 = vshrl.u32 %v676, 4
      %v678 = vand.u32 %v676, 15
      %v679 = vsub.s32 0, %v678
      %v680 = vsel %vm674, %v679, %v678
      %vm681 = vcmp.lt.s32.totalorder %v517, 0
      %v682 = vsub.s32 0, %v517
      %v683 = vsel %vm681, %v682, %v517
      %v684 = vshrl.u32 %v683, 4
      %v685 = vand.u32 %v683, 15
      %v686 = vsub.s32 0, %v685
      %v687 = vsel %vm681, %v686, %v685
      %vm688 = vcmp.lt.s32.totalorder %v518, 0
      %v689 = vsub.s32 0, %v518
      %v690 = vsel %vm688, %v689, %v518
      %v691 = vshrl.u32 %v690, 4
      %v692 = vand.u32 %v690, 15
      %v693 = vsub.s32 0, %v692
      %v694 = vsel %vm688, %v693, %v692
      %vm695 = vcmp.lt.s32.totalorder %v519, 0
      %v696 = vsub.s32 0, %v519
      %v697 = vsel %vm695, %v696, %v519
      %v698 = vshrl.u32 %v697, 4
      %v699 = vand.u32 %v697, 15
      %v700 = vsub.s32 0, %v699
      %v701 = vsel %vm695, %v700, %v699
      %vm702 = vcmp.lt.s32.totalorder %v520, 0
      %v703 = vsub.s32 0, %v520
      %v704 = vsel %vm702, %v703, %v520
      %v705 = vshrl.u32 %v704, 4
      %v706 = vand.u32 %v704, 15
      %v707 = vsub.s32 0, %v706
      %v708 = vsel %vm702, %v707, %v706
      %vm709 = vcmp.lt.s32.totalorder %v521, 0
      %v710 = vsub.s32 0, %v521
      %v711 = vsel %vm709, %v710, %v521
      %v712 = vshrl.u32 %v711, 4
      %v713 = vand.u32 %v711, 15
      %v714 = vsub.s32 0, %v713
      %v715 = vsel %vm709, %v714, %v713
      %vm716 = vcmp.lt.s32.totalorder %v522, 0
      %v717 = vsub.s32 0, %v522
      %v718 = vsel %vm716, %v717, %v522
      %v719 = vshrl.u32 %v718, 4
      %v720 = vand.u32 %v718, 15
      %v721 = vsub.s32 0, %v720
      %v722 = vsel %vm716, %v721, %v720
      %vm723 = vcmp.lt.s32.totalorder %v523, 0
      %v724 = vsub.s32 0, %v523
      %v725 = vsel %vm723, %v724, %v523
      %v726 = vshrl.u32 %v725, 4
      %v727 = vand.u32 %v725, 15
      %v728 = vsub.s32 0, %v727
      %v729 = vsel %vm723, %v728, %v727
      %vm730 = vcmp.lt.s32.totalorder %v524, 0
      %v731 = vsub.s32 0, %v524
      %v732 = vsel %vm730, %v731, %v524
      %v733 = vshrl.u32 %v732, 4
      %v734 = vand.u32 %v732, 15
      %v735 = vsub.s32 0, %v734
      %v736 = vsel %vm730, %v735, %v734
      %vm737 = vcmp.lt.s32.totalorder %v525, 0
      %v738 = vsub.s32 0, %v525
      %v739 = vsel %vm737, %v738, %v525
      %v740 = vshrl.u32 %v739, 4
      %v741 = vand.u32 %v739, 15
      %v742 = vsub.s32 0, %v741
      %v743 = vsel %vm737, %v742, %v741
      %vm744 = vcmp.lt.s32.totalorder %v526, 0
      %v745 = vsub.s32 0, %v526
      %v746 = vsel %vm744, %v745, %v526
      %v747 = vshrl.u32 %v746, 4
      %v748 = vand.u32 %v746, 15
      %v749 = vsub.s32 0, %v748
      %v750 = vsel %vm744, %v749, %v748
      %vm751 = vcmp.ne.s32.totalorder %v533, 0
      %vm752 = vcmp.ne.s32.totalorder %v540, 0
      %vm753 = vcmp.ne.s32.totalorder %v547, 0
      %vm754 = vcmp.ne.s32.totalorder %v554, 0
      %vm755 = vcmp.ne.s32.totalorder %v561, 0
      %vm756 = vcmp.ne.s32.totalorder %v568, 0
      %vm757 = vcmp.ne.s32.totalorder %v575, 0
      %vm758 = vcmp.ne.s32.totalorder %v582, 0
      %vm759 = vcmp.ne.s32.totalorder %v589, 0
      %vm760 = vcmp.ne.s32.totalorder %v596, 0
      %vm761 = vcmp.ne.s32.totalorder %v603, 0
      %vm762 = vcmp.ne.s32.totalorder %v610, 0
      %vm763 = vcmp.ne.s32.totalorder %v617, 0
      %vm764 = vcmp.ne.s32.totalorder %v624, 0
      %vm765 = vcmp.ne.s32.totalorder %v631, 0
      %vm766 = vcmp.ne.s32.totalorder %v638, 0
      %vm767 = vcmp.ne.s32.totalorder %v645, 0
      %vm768 = vcmp.ne.s32.totalorder %v652, 0
      %vm769 = vcmp.ne.s32.totalorder %v659, 0
      %vm770 = vcmp.ne.s32.totalorder %v666, 0
      %vm771 = vcmp.ne.s32.totalorder %v673, 0
      %vm772 = vcmp.ne.s32.totalorder %v680, 0
      %vm773 = vcmp.ne.s32.totalorder %v687, 0
      %vm774 = vcmp.ne.s32.totalorder %v694, 0
      %vm775 = vcmp.ne.s32.totalorder %v701, 0
      %vm776 = vcmp.ne.s32.totalorder %v708, 0
      %vm777 = vcmp.ne.s32.totalorder %v715, 0
      %vm778 = vcmp.ne.s32.totalorder %v722, 0
      %vm779 = vcmp.ne.s32.totalorder %v729, 0
      %vm780 = vcmp.ne.s32.totalorder %v736, 0
      %vm781 = vcmp.ne.s32.totalorder %v743, 0
      %vm782 = vcmp.ne.s32.totalorder %v750, 0
      %vm783 = vcmp.lt.s32.totalorder %v533, 0
      %vm784 = vcmp.lt.s32.totalorder %v540, 0
      %vm785 = vcmp.lt.s32.totalorder %v547, 0
      %vm786 = vcmp.lt.s32.totalorder %v554, 0
      %vm787 = vcmp.lt.s32.totalorder %v561, 0
      %vm788 = vcmp.lt.s32.totalorder %v568, 0
      %vm789 = vcmp.lt.s32.totalorder %v575, 0
      %vm790 = vcmp.lt.s32.totalorder %v582, 0
      %vm791 = vcmp.lt.s32.totalorder %v589, 0
      %vm792 = vcmp.lt.s32.totalorder %v596, 0
      %vm793 = vcmp.lt.s32.totalorder %v603, 0
      %vm794 = vcmp.lt.s32.totalorder %v610, 0
      %vm795 = vcmp.lt.s32.totalorder %v617, 0
      %vm796 = vcmp.lt.s32.totalorder %v624, 0
      %vm797 = vcmp.lt.s32.totalorder %v631, 0
      %vm798 = vcmp.lt.s32.totalorder %v638, 0
      %vm799 = vcmp.lt.s32.totalorder %v645, 0
      %vm800 = vcmp.lt.s32.totalorder %v652, 0
      %vm801 = vcmp.lt.s32.totalorder %v659, 0
      %vm802 = vcmp.lt.s32.totalorder %v666, 0
      %vm803 = vcmp.lt.s32.totalorder %v673, 0
      %vm804 = vcmp.lt.s32.totalorder %v680, 0
      %vm805 = vcmp.lt.s32.totalorder %v687, 0
      %vm806 = vcmp.lt.s32.totalorder %v694, 0
      %vm807 = vcmp.lt.s32.totalorder %v701, 0
      %vm808 = vcmp.lt.s32.totalorder %v708, 0
      %vm809 = vcmp.lt.s32.totalorder %v715, 0
      %vm810 = vcmp.lt.s32.totalorder %v722, 0
      %vm811 = vcmp.lt.s32.totalorder %v729, 0
      %vm812 = vcmp.lt.s32.totalorder %v736, 0
      %vm813 = vcmp.lt.s32.totalorder %v743, 0
      %vm814 = vcmp.lt.s32.totalorder %v750, 0
      %vm815 = vmand %vm783, %vm751
      %vm816 = vmand %vm784, %vm752
      %vm817 = vmand %vm785, %vm753
      %vm818 = vmand %vm786, %vm754
      %vm819 = vmand %vm787, %vm755
      %vm820 = vmand %vm788, %vm756
      %vm821 = vmand %vm789, %vm757
      %vm822 = vmand %vm790, %vm758
      %vm823 = vmand %vm791, %vm759
      %vm824 = vmand %vm792, %vm760
      %vm825 = vmand %vm793, %vm761
      %vm826 = vmand %vm794, %vm762
      %vm827 = vmand %vm795, %vm763
      %vm828 = vmand %vm796, %vm764
      %vm829 = vmand %vm797, %vm765
      %vm830 = vmand %vm798, %vm766
      %vm831 = vmand %vm799, %vm767
      %vm832 = vmand %vm800, %vm768
      %vm833 = vmand %vm801, %vm769
      %vm834 = vmand %vm802, %vm770
      %vm835 = vmand %vm803, %vm771
      %vm836 = vmand %vm804, %vm772
      %vm837 = vmand %vm805, %vm773
      %vm838 = vmand %vm806, %vm774
      %vm839 = vmand %vm807, %vm775
      %vm840 = vmand %vm808, %vm776
      %vm841 = vmand %vm809, %vm777
      %vm842 = vmand %vm810, %vm778
      %vm843 = vmand %vm811, %vm779
      %vm844 = vmand %vm812, %vm780
      %vm845 = vmand %vm813, %vm781
      %vm846 = vmand %vm814, %vm782
      %v847 = vadd.s32 %v533, 16
      %v848 = vadd.s32 %v540, 16
      %v849 = vadd.s32 %v547, 16
      %v850 = vadd.s32 %v554, 16
      %v851 = vadd.s32 %v561, 16
      %v852 = vadd.s32 %v568, 16
      %v853 = vadd.s32 %v575, 16
      %v854 = vadd.s32 %v582, 16
      %v855 = vadd.s32 %v589, 16
      %v856 = vadd.s32 %v596, 16
      %v857 = vadd.s32 %v603, 16
      %v858 = vadd.s32 %v610, 16
      %v859 = vadd.s32 %v617, 16
      %v860 = vadd.s32 %v624, 16
      %v861 = vadd.s32 %v631, 16
      %v862 = vadd.s32 %v638, 16
      %v863 = vadd.s32 %v645, 16
      %v864 = vadd.s32 %v652, 16
      %v865 = vadd.s32 %v659, 16
      %v866 = vadd.s32 %v666, 16
      %v867 = vadd.s32 %v673, 16
      %v868 = vadd.s32 %v680, 16
      %v869 = vadd.s32 %v687, 16
      %v870 = vadd.s32 %v694, 16
      %v871 = vadd.s32 %v701, 16
      %v872 = vadd.s32 %v708, 16
      %v873 = vadd.s32 %v715, 16
      %v874 = vadd.s32 %v722, 16
      %v875 = vadd.s32 %v729, 16
      %v876 = vadd.s32 %v736, 16
      %v877 = vadd.s32 %v743, 16
      %v878 = vadd.s32 %v750, 16
      %v879 = vsel %vm815, %v847, %v533
      %v880 = vsel %vm816, %v848, %v540
      %v881 = vsel %vm817, %v849, %v547
      %v882 = vsel %vm818, %v850, %v554
      %v883 = vsel %vm819, %v851, %v561
      %v884 = vsel %vm820, %v852, %v568
      %v885 = vsel %vm821, %v853, %v575
      %v886 = vsel %vm822, %v854, %v582
      %v887 = vsel %vm823, %v855, %v589
      %v888 = vsel %vm824, %v856, %v596
      %v889 = vsel %vm825, %v857, %v603
      %v890 = vsel %vm826, %v858, %v610
      %v891 = vsel %vm827, %v859, %v617
      %v892 = vsel %vm828, %v860, %v624
      %v893 = vsel %vm829, %v861, %v631
      %v894 = vsel %vm830, %v862, %v638
      %v895 = vsel %vm831, %v863, %v645
      %v896 = vsel %vm832, %v864, %v652
      %v897 = vsel %vm833, %v865, %v659
      %v898 = vsel %vm834, %v866, %v666
      %v899 = vsel %vm835, %v867, %v673
      %v900 = vsel %vm836, %v868, %v680
      %v901 = vsel %vm837, %v869, %v687
      %v902 = vsel %vm838, %v870, %v694
      %v903 = vsel %vm839, %v871, %v701
      %v904 = vsel %vm840, %v872, %v708
      %v905 = vsel %vm841, %v873, %v715
      %v906 = vsel %vm842, %v874, %v722
      %v907 = vsel %vm843, %v875, %v729
      %v908 = vsel %vm844, %v876, %v736
      %v909 = vsel %vm845, %v877, %v743
      %v910 = vsel %vm846, %v878, %v750
      %vm911 = vcmp.ge.s32.totalorder %v879, 1
      %vm912 = vcmp.ge.s32.totalorder %v880, 1
      %vm913 = vcmp.ge.s32.totalorder %v881, 1
      %vm914 = vcmp.ge.s32.totalorder %v882, 1
      %vm915 = vcmp.ge.s32.totalorder %v883, 1
      %vm916 = vcmp.ge.s32.totalorder %v884, 1
      %vm917 = vcmp.ge.s32.totalorder %v885, 1
      %vm918 = vcmp.ge.s32.totalorder %v886, 1
      %vm919 = vcmp.ge.s32.totalorder %v887, 1
      %vm920 = vcmp.ge.s32.totalorder %v888, 1
      %vm921 = vcmp.ge.s32.totalorder %v889, 1
      %vm922 = vcmp.ge.s32.totalorder %v890, 1
      %vm923 = vcmp.ge.s32.totalorder %v891, 1
      %vm924 = vcmp.ge.s32.totalorder %v892, 1
      %vm925 = vcmp.ge.s32.totalorder %v893, 1
      %vm926 = vcmp.ge.s32.totalorder %v894, 1
      %vm927 = vcmp.ge.s32.totalorder %v895, 1
      %vm928 = vcmp.ge.s32.totalorder %v896, 1
      %vm929 = vcmp.ge.s32.totalorder %v897, 1
      %vm930 = vcmp.ge.s32.totalorder %v898, 1
      %vm931 = vcmp.ge.s32.totalorder %v899, 1
      %vm932 = vcmp.ge.s32.totalorder %v900, 1
      %vm933 = vcmp.ge.s32.totalorder %v901, 1
      %vm934 = vcmp.ge.s32.totalorder %v902, 1
      %vm935 = vcmp.ge.s32.totalorder %v903, 1
      %vm936 = vcmp.ge.s32.totalorder %v904, 1
      %vm937 = vcmp.ge.s32.totalorder %v905, 1
      %vm938 = vcmp.ge.s32.totalorder %v906, 1
      %vm939 = vcmp.ge.s32.totalorder %v907, 1
      %vm940 = vcmp.ge.s32.totalorder %v908, 1
      %vm941 = vcmp.ge.s32.totalorder %v909, 1
      %vm942 = vcmp.ge.s32.totalorder %v910, 1
      %v943 = vsel %vm911, 1, 0
      %v944 = vsel %vm912, 1, 0
      %v945 = vsel %vm913, 1, 0
      %v946 = vsel %vm914, 1, 0
      %v947 = vsel %vm915, 1, 0
      %v948 = vsel %vm916, 1, 0
      %v949 = vsel %vm917, 1, 0
      %v950 = vsel %vm918, 1, 0
      %v951 = vsel %vm919, 1, 0
      %v952 = vsel %vm920, 1, 0
      %v953 = vsel %vm921, 1, 0
      %v954 = vsel %vm922, 1, 0
      %v955 = vsel %vm923, 1, 0
      %v956 = vsel %vm924, 1, 0
      %v957 = vsel %vm925, 1, 0
      %v958 = vsel %vm926, 1, 0
      %v959 = vsel %vm927, 1, 0
      %v960 = vsel %vm928, 1, 0
      %v961 = vsel %vm929, 1, 0
      %v962 = vsel %vm930, 1, 0
      %v963 = vsel %vm931, 1, 0
      %v964 = vsel %vm932, 1, 0
      %v965 = vsel %vm933, 1, 0
      %v966 = vsel %vm934, 1, 0
      %v967 = vsel %vm935, 1, 0
      %v968 = vsel %vm936, 1, 0
      %v969 = vsel %vm937, 1, 0
      %v970 = vsel %vm938, 1, 0
      %v971 = vsel %vm939, 1, 0
      %v972 = vsel %vm940, 1, 0
      %v973 = vsel %vm941, 1, 0
      %v974 = vsel %vm942, 1, 0
      %v975 = vcvt.s32.f32 %v943
      %v976 = vcvt.s32.f32 %v944
      %v977 = vcvt.s32.f32 %v945
      %v978 = vcvt.s32.f32 %v946
      %v979 = vcvt.s32.f32 %v947
      %v980 = vcvt.s32.f32 %v948
      %v981 = vcvt.s32.f32 %v949
      %v982 = vcvt.s32.f32 %v950
      %v983 = vcvt.s32.f32 %v951
      %v984 = vcvt.s32.f32 %v952
      %v985 = vcvt.s32.f32 %v953
      %v986 = vcvt.s32.f32 %v954
      %v987 = vcvt.s32.f32 %v955
      %v988 = vcvt.s32.f32 %v956
      %v989 = vcvt.s32.f32 %v957
      %v990 = vcvt.s32.f32 %v958
      %v991 = vcvt.s32.f32 %v959
      %v992 = vcvt.s32.f32 %v960
      %v993 = vcvt.s32.f32 %v961
      %v994 = vcvt.s32.f32 %v962
      %v995 = vcvt.s32.f32 %v963
      %v996 = vcvt.s32.f32 %v964
      %v997 = vcvt.s32.f32 %v965
      %v998 = vcvt.s32.f32 %v966
      %v999 = vcvt.s32.f32 %v967
      %v1000 = vcvt.s32.f32 %v968
      %v1001 = vcvt.s32.f32 %v969
      %v1002 = vcvt.s32.f32 %v970
      %v1003 = vcvt.s32.f32 %v971
      %v1004 = vcvt.s32.f32 %v972
      %v1005 = vcvt.s32.f32 %v973
      %v1006 = vcvt.s32.f32 %v974
      %vm1007 = vcmp.le.s32.totalorder %v879, 14
      %vm1008 = vcmp.le.s32.totalorder %v880, 14
      %vm1009 = vcmp.le.s32.totalorder %v881, 14
      %vm1010 = vcmp.le.s32.totalorder %v882, 14
      %vm1011 = vcmp.le.s32.totalorder %v883, 14
      %vm1012 = vcmp.le.s32.totalorder %v884, 14
      %vm1013 = vcmp.le.s32.totalorder %v885, 14
      %vm1014 = vcmp.le.s32.totalorder %v886, 14
      %vm1015 = vcmp.le.s32.totalorder %v887, 14
      %vm1016 = vcmp.le.s32.totalorder %v888, 14
      %vm1017 = vcmp.le.s32.totalorder %v889, 14
      %vm1018 = vcmp.le.s32.totalorder %v890, 14
      %vm1019 = vcmp.le.s32.totalorder %v891, 14
      %vm1020 = vcmp.le.s32.totalorder %v892, 14
      %vm1021 = vcmp.le.s32.totalorder %v893, 14
      %vm1022 = vcmp.le.s32.totalorder %v894, 14
      %vm1023 = vcmp.le.s32.totalorder %v895, 14
      %vm1024 = vcmp.le.s32.totalorder %v896, 14
      %vm1025 = vcmp.le.s32.totalorder %v897, 14
      %vm1026 = vcmp.le.s32.totalorder %v898, 14
      %vm1027 = vcmp.le.s32.totalorder %v899, 14
      %vm1028 = vcmp.le.s32.totalorder %v900, 14
      %vm1029 = vcmp.le.s32.totalorder %v901, 14
      %vm1030 = vcmp.le.s32.totalorder %v902, 14
      %vm1031 = vcmp.le.s32.totalorder %v903, 14
      %vm1032 = vcmp.le.s32.totalorder %v904, 14
      %vm1033 = vcmp.le.s32.totalorder %v905, 14
      %vm1034 = vcmp.le.s32.totalorder %v906, 14
      %vm1035 = vcmp.le.s32.totalorder %v907, 14
      %vm1036 = vcmp.le.s32.totalorder %v908, 14
      %vm1037 = vcmp.le.s32.totalorder %v909, 14
      %vm1038 = vcmp.le.s32.totalorder %v910, 14
      %v1039 = vsel %vm1007, 1, 0
      %v1040 = vsel %vm1008, 1, 0
      %v1041 = vsel %vm1009, 1, 0
      %v1042 = vsel %vm1010, 1, 0
      %v1043 = vsel %vm1011, 1, 0
      %v1044 = vsel %vm1012, 1, 0
      %v1045 = vsel %vm1013, 1, 0
      %v1046 = vsel %vm1014, 1, 0
      %v1047 = vsel %vm1015, 1, 0
      %v1048 = vsel %vm1016, 1, 0
      %v1049 = vsel %vm1017, 1, 0
      %v1050 = vsel %vm1018, 1, 0
      %v1051 = vsel %vm1019, 1, 0
      %v1052 = vsel %vm1020, 1, 0
      %v1053 = vsel %vm1021, 1, 0
      %v1054 = vsel %vm1022, 1, 0
      %v1055 = vsel %vm1023, 1, 0
      %v1056 = vsel %vm1024, 1, 0
      %v1057 = vsel %vm1025, 1, 0
      %v1058 = vsel %vm1026, 1, 0
      %v1059 = vsel %vm1027, 1, 0
      %v1060 = vsel %vm1028, 1, 0
      %v1061 = vsel %vm1029, 1, 0
      %v1062 = vsel %vm1030, 1, 0
      %v1063 = vsel %vm1031, 1, 0
      %v1064 = vsel %vm1032, 1, 0
      %v1065 = vsel %vm1033, 1, 0
      %v1066 = vsel %vm1034, 1, 0
      %v1067 = vsel %vm1035, 1, 0
      %v1068 = vsel %vm1036, 1, 0
      %v1069 = vsel %vm1037, 1, 0
      %v1070 = vsel %vm1038, 1, 0
      %v1071 = vcvt.s32.f32 %v1039
      %v1072 = vcvt.s32.f32 %v1040
      %v1073 = vcvt.s32.f32 %v1041
      %v1074 = vcvt.s32.f32 %v1042
      %v1075 = vcvt.s32.f32 %v1043
      %v1076 = vcvt.s32.f32 %v1044
      %v1077 = vcvt.s32.f32 %v1045
      %v1078 = vcvt.s32.f32 %v1046
      %v1079 = vcvt.s32.f32 %v1047
      %v1080 = vcvt.s32.f32 %v1048
      %v1081 = vcvt.s32.f32 %v1049
      %v1082 = vcvt.s32.f32 %v1050
      %v1083 = vcvt.s32.f32 %v1051
      %v1084 = vcvt.s32.f32 %v1052
      %v1085 = vcvt.s32.f32 %v1053
      %v1086 = vcvt.s32.f32 %v1054
      %v1087 = vcvt.s32.f32 %v1055
      %v1088 = vcvt.s32.f32 %v1056
      %v1089 = vcvt.s32.f32 %v1057
      %v1090 = vcvt.s32.f32 %v1058
      %v1091 = vcvt.s32.f32 %v1059
      %v1092 = vcvt.s32.f32 %v1060
      %v1093 = vcvt.s32.f32 %v1061
      %v1094 = vcvt.s32.f32 %v1062
      %v1095 = vcvt.s32.f32 %v1063
      %v1096 = vcvt.s32.f32 %v1064
      %v1097 = vcvt.s32.f32 %v1065
      %v1098 = vcvt.s32.f32 %v1066
      %v1099 = vcvt.s32.f32 %v1067
      %v1100 = vcvt.s32.f32 %v1068
      %v1101 = vcvt.s32.f32 %v1069
      %v1102 = vcvt.s32.f32 %v1070
      %v1103 = vld [vmem:[%s461] sm:$0xff]
      %v1104 = vld [vmem:[%s461 + $0x8] sm:$0xff]
      %v1105 = vld [vmem:[%s461 + $0x10] sm:$0xff]
      %v1106 = vld [vmem:[%s461 + $0x18] sm:$0xff]
      %v1107 = vld [vmem:[%s461 + $0x20] sm:$0xff]
      %v1108 = vld [vmem:[%s461 + $0x28] sm:$0xff]
      %v1109 = vld [vmem:[%s461 + $0x30] sm:$0xff]
      %v1110 = vld [vmem:[%s461 + $0x38] sm:$0xff]
      %v1111 = vld [vmem:[%s461 + $0x40] sm:$0xff]
      %v1112 = vld [vmem:[%s461 + $0x48] sm:$0xff]
      %v1113 = vld [vmem:[%s461 + $0x50] sm:$0xff]
      %v1114 = vld [vmem:[%s461 + $0x58] sm:$0xff]
      %v1115 = vld [vmem:[%s461 + $0x60] sm:$0xff]
      %v1116 = vld [vmem:[%s461 + $0x68] sm:$0xff]
      %v1117 = vld [vmem:[%s461 + $0x70] sm:$0xff]
      %v1118 = vld [vmem:[%s461 + $0x78] sm:$0xff]
      %v1119 = vld [vmem:[%s461 + $0x80] sm:$0xff]
      %v1120 = vld [vmem:[%s461 + $0x88] sm:$0xff]
      %v1121 = vld [vmem:[%s461 + $0x90] sm:$0xff]
      %v1122 = vld [vmem:[%s461 + $0x98] sm:$0xff]
      %v1123 = vld [vmem:[%s461 + $0xa0] sm:$0xff]
      %v1124 = vld [vmem:[%s461 + $0xa8] sm:$0xff]
      %v1125 = vld [vmem:[%s461 + $0xb0] sm:$0xff]
      %v1126 = vld [vmem:[%s461 + $0xb8] sm:$0xff]
      %v1127 = vld [vmem:[%s461 + $0xc0] sm:$0xff]
      %v1128 = vld [vmem:[%s461 + $0xc8] sm:$0xff]
      %v1129 = vld [vmem:[%s461 + $0xd0] sm:$0xff]
      %v1130 = vld [vmem:[%s461 + $0xd8] sm:$0xff]
      %v1131 = vld [vmem:[%s461 + $0xe0] sm:$0xff]
      %v1132 = vld [vmem:[%s461 + $0xe8] sm:$0xff]
      %v1133 = vld [vmem:[%s461 + $0xf0] sm:$0xff]
      %v1134 = vld [vmem:[%s461 + $0xf8] sm:$0xff]
      %v1135 = vld [vmem:[%s3] sm:$0xff]
      %v1136 = vld [vmem:[%s3 + $0x8] sm:$0xff]
      %v1137 = vld [vmem:[%s3 + $0x10] sm:$0xff]
      %v1138 = vld [vmem:[%s3 + $0x18] sm:$0xff]
      %v1139 = vld [vmem:[%s3 + $0x20] sm:$0xff]
      %v1140 = vld [vmem:[%s3 + $0x28] sm:$0xff]
      %v1141 = vld [vmem:[%s3 + $0x30] sm:$0xff]
      %v1142 = vld [vmem:[%s3 + $0x38] sm:$0xff]
      %v1143 = vld [vmem:[%s3 + $0x40] sm:$0xff]
      %v1144 = vld [vmem:[%s3 + $0x48] sm:$0xff]
      %v1145 = vld [vmem:[%s3 + $0x50] sm:$0xff]
      %v1146 = vld [vmem:[%s3 + $0x58] sm:$0xff]
      %v1147 = vld [vmem:[%s3 + $0x60] sm:$0xff]
      %v1148 = vld [vmem:[%s3 + $0x68] sm:$0xff]
      %v1149 = vld [vmem:[%s3 + $0x70] sm:$0xff]
      %v1150 = vld [vmem:[%s3 + $0x78] sm:$0xff]
      %v1151 = vld [vmem:[%s3 + $0x80] sm:$0xff]
      %v1152 = vld [vmem:[%s3 + $0x88] sm:$0xff]
      %v1153 = vld [vmem:[%s3 + $0x90] sm:$0xff]
      %v1154 = vld [vmem:[%s3 + $0x98] sm:$0xff]
      %v1155 = vld [vmem:[%s3 + $0xa0] sm:$0xff]
      %v1156 = vld [vmem:[%s3 + $0xa8] sm:$0xff]
      %v1157 = vld [vmem:[%s3 + $0xb0] sm:$0xff]
      %v1158 = vld [vmem:[%s3 + $0xb8] sm:$0xff]
      %v1159 = vld [vmem:[%s3 + $0xc0] sm:$0x3]
      %v1160 = vld [vmem:[%s3 + $0xc8] sm:$0x3]
      %v1161 = vld [vmem:[%s3 + $0xd0] sm:$0x3]
      %vm1162 = vcmask 539648
      %v1164 = vsel %vm1162, %v1103, 0
      %v1167 = vsel %vm1162, %v1104, 0
      %v1170 = vsel %vm1162, %v1105, 0
      %v1173 = vsel %vm1162, %v1106, 0
      %v1176 = vsel %vm1162, %v1107, 0
      %v1179 = vsel %vm1162, %v1108, 0
      %v1182 = vsel %vm1162, %v1109, 0
      %v1185 = vsel %vm1162, %v1110, 0
      %v1188 = vsel %vm1162, %v1111, 0
      %v1191 = vsel %vm1162, %v1112, 0
      %v1194 = vsel %vm1162, %v1113, 0
      %v1197 = vsel %vm1162, %v1114, 0
      %v1200 = vsel %vm1162, %v1115, 0
      %v1203 = vsel %vm1162, %v1116, 0
      %v1206 = vsel %vm1162, %v1117, 0
      %v1209 = vsel %vm1162, %v1118, 0
      %v1212 = vsel %vm1162, %v1119, 0
      %v1215 = vsel %vm1162, %v1120, 0
      %v1218 = vsel %vm1162, %v1121, 0
      %v1221 = vsel %vm1162, %v1122, 0
      %v1224 = vsel %vm1162, %v1123, 0
      %v1227 = vsel %vm1162, %v1124, 0
      %v1230 = vsel %vm1162, %v1125, 0
      %v1233 = vsel %vm1162, %v1126, 0
      %v1236 = vsel %vm1162, %v1127, 0
      %v1239 = vsel %vm1162, %v1128, 0
      %v1242 = vsel %vm1162, %v1129, 0
      %v1245 = vsel %vm1162, %v1130, 0
      %v1248 = vsel %vm1162, %v1131, 0
      %v1251 = vsel %vm1162, %v1132, 0
      %v1254 = vsel %vm1162, %v1133, 0
      %v1257 = vsel %vm1162, %v1134, 0
      %vm1259 = vcmask 1041408
      %v1261 = vsel %vm1259, %v1159, 0
      %v1264 = vsel %vm1259, %v1160, 0
      %v1267 = vsel %vm1259, %v1161, 0
      %1269 = vmatprep.subr.mxu0 %v1136
      %1270 = vmatpush1.msra.mxu0 %v1135
      %1271 = vmatprep.subr.mxu0 %v1139
      %1272 = vmatpush1.msra.mxu0 %v1138
      %1273 = vmatprep.subr.mxu0 %v1142
      %1274 = vmatpush1.msra.mxu0 %v1141
      %1275 = vmatprep.subr.mxu0 %v1145
      %1276 = vmatpush1.msra.mxu0 %v1144
      %1277 = vmatprep.subr.mxu0 %v1148
      %1278 = vmatpush1.msra.mxu0 %v1147
      %1279 = vmatprep.subr.mxu0 %v1151
      %1280 = vmatpush1.msra.mxu0 %v1150
      %1281 = vmatprep.subr.mxu0 %v1154
      %1282 = vmatpush1.msra.mxu0 %v1153
      %1283 = vmatprep.subr.mxu0 %v1157
      %1284 = vmatpush1.msra.mxu0 %v1156
      %1285 = vmatprep.subr.mxu0 %v1264
      %1286 = vmatpush1.msra.mxu0 %v1261
      %1287 = vmatprep.subr.mxu0 0.0
      %1288 = vmatpush1.msra.mxu0 0.0
      %1289 = vmatprep.subr.mxu0 0.0
      %1290 = vmatpush1.msra.mxu0 0.0
      %1291 = vmatprep.subr.mxu0 0.0
      %1292 = vmatpush1.msra.mxu0 0.0
      %1293 = vmatprep.subr.mxu0 0.0
      %1294 = vmatpush1.msra.mxu0 0.0
      %1295 = vmatprep.subr.mxu0 0.0
      %1296 = vmatpush1.msra.mxu0 0.0
      %1297 = vmatprep.subr.mxu0 0.0
      %1298 = vmatpush1.msra.mxu0 0.0
      %1299 = vmatprep.subr.mxu0 0.0
      %1300 = vmatpush1.msra.mxu0 0.0
      %1301 = vmatprep.subr.mxu0 0.0
      %1302 = vmatpush1.msra.mxu0 0.0
      %1303 = vmatprep.subr.mxu0 0.0
      %1304 = vmatpush1.msra.mxu0 0.0
      %1305 = vmatprep.subr.mxu0 0.0
      %1306 = vmatpush1.msra.mxu0 0.0
      %1307 = vmatprep.subr.mxu0 0.0
      %1308 = vmatpush1.msra.mxu0 0.0
      %1309 = vmatprep.subr.mxu0 0.0
      %1310 = vmatpush1.msra.mxu0 0.0
      %1311 = vmatprep.subr.mxu0 0.0
      %1312 = vmatpush1.msra.mxu0 0.0
      %1313 = vmatprep.subr.mxu0 0.0
      %1314 = vmatpush1.msra.mxu0 0.0
      %1315 = vmatprep.subr.mxu0 0.0
      %1316 = vmatpush1.msra.mxu0 0.0
      %1317 = vmatprep.subr.mxu0 0.0
      %1318 = vmatpush1.msra.mxu0 0.0
      %1319 = vmatprep.subr.mxu0 0.0
      %1320 = vmatpush1.msra.mxu0 0.0
      %1321 = vmatprep.subr.mxu0 0.0
      %1322 = vmatpush1.msra.mxu0 0.0
      %1323 = vmatprep.subr.mxu0 0.0
      %1324 = vmatpush1.msra.mxu0 0.0
      %1325 = vmatprep.subr.mxu0 0.0
      %1326 = vmatpush1.msra.mxu0 0.0
      %1327 = vmatprep.subr.mxu0 0.0
      %1328 = vmatpush1.msra.mxu0 0.0
      %1329 = vmatprep.subr.mxu0 0.0
      %1330 = vmatpush1.msra.mxu0 0.0
      %1331 = vmatprep.subr.mxu0 0.0
      %1332 = vmatpush1.msra.mxu0 0.0
      %1333 = vmatprep.mubr.f32.mxu0 0.0
      %1334 = vmatmul.mubr.f32.gmra.mrb[0].mxu0 %v1164
      %v1335 = vpop.f32.mrb[0].mxu0
      %v1336 = vadd.f32 0.0, %v1335
      %v1337 = vpop.f32.mrb[0].mxu0
      %v1338 = vadd.f32 0.0, %v1337
      %1339 = vmatprep.mubr.f32.mxu0 0.0
      %1340 = vmatmul.mubr.f32.gmra.mrb[0].mxu0 %v1167
      %v1341 = vpop.f32.mrb[0].mxu0
      %v1342 = vadd.f32 0.0, %v1341
      %v1343 = vpop.f32.mrb[0].mxu0
      %v1344 = vadd.f32 0.0, %v1343
      %1345 = vmatprep.mubr.f32.mxu0 0.0
      %1346 = vmatmul.mubr.f32.gmra.mrb[0].mxu0 %v1170
      %v1347 = vpop.f32.mrb[0].mxu0
      %v1348 = vadd.f32 0.0, %v1347
      %v1349 = vpop.f32.mrb[0].mxu0
      %v1350 = vadd.f32 0.0, %v1349
      %1351 = vmatprep.mubr.f32.mxu0 0.0
      %1352 = vmatmul.mubr.f32.gmra.mrb[0].mxu0 %v1173
      %v1353 = vpop.f32.mrb[0].mxu0
      %v1354 = vadd.f32 0.0, %v1353
      %v1355 = vpop.f32.mrb[0].mxu0
      %v1356 = vadd.f32 0.0, %v1355
      %1357 = vmatprep.mubr.f32.mxu0 0.0
      %1358 = vmatmul.mubr.f32.gmra.mrb[0].mxu0 %v1176
      %v1359 = vpop.f32.mrb[0].mxu0
      %v1360 = vadd.f32 0.0, %v1359
      %v1361 = vpop.f32.mrb[0].mxu0
      %v1362 = vadd.f32 0.0, %v1361
      %1363 = vmatprep.mubr.f32.mxu0 0.0
      %1364 = vmatmul.mubr.f32.gmra.mrb[0].mxu0 %v1179
      %v1365 = vpop.f32.mrb[0].mxu0
      %v1366 = vadd.f32 0.0, %v1365
      %v1367 = vpop.f32.mrb[0].mxu0
      %v1368 = vadd.f32 0.0, %v1367
      %1369 = vmatprep.mubr.f32.mxu0 0.0
      %1370 = vmatmul.mubr.f32.gmra.mrb[0].mxu0 %v1182
      %v1371 = vpop.f32.mrb[0].mxu0
      %v1372 = vadd.f32 0.0, %v1371
      %v1373 = vpop.f32.mrb[0].mxu0
      %v1374 = vadd.f32 0.0, %v1373
      %1375 = vmatprep.mubr.f32.mxu0 0.0
      %1376 = vmatmul.mubr.f32.gmra.mrb[0].mxu0 %v1185
      %v1377 = vpop.f32.mrb[0].mxu0
      %v1378 = vadd.f32 0.0, %v1377
      %v1379 = vpop.f32.mrb[0].mxu0
      %v1380 = vadd.f32 0.0, %v1379
      %1381 = vmatprep.mubr.f32.mxu0 0.0
      %1382 = vmatmul.mubr.f32.gmra.mrb[0].mxu0 %v1188
      %v1383 = vpop.f32.mrb[0].mxu0
      %v1384 = vadd.f32 0.0, %v1383
      %v1385 = vpop.f32.mrb[0].mxu0
      %v1386 = vadd.f32 0.0, %v1385
      %1387 = vmatprep.mubr.f32.mxu0 0.0
      %1388 = vmatmul.mubr.f32.gmra.mrb[0].mxu0 %v1191
      %v1389 = vpop.f32.mrb[0].mxu0
      %v1390 = vadd.f32 0.0, %v1389
      %v1391 = vpop.f32.mrb[0].mxu0
      %v1392 = vadd.f32 0.0, %v1391
      %1393 = vmatprep.mubr.f32.mxu0 0.0
      %1394 = vmatmul.mubr.f32.gmra.mrb[0].mxu0 %v1194
      %v1395 = vpop.f32.mrb[0].mxu0
      %v1396 = vadd.f32 0.0, %v1395
      %v1397 = vpop.f32.mrb[0].mxu0
      %v1398 = vadd.f32 0.0, %v1397
      %1399 = vmatprep.mubr.f32.mxu0 0.0
      %1400 = vmatmul.mubr.f32.gmra.mrb[0].mxu0 %v1197
      %v1401 = vpop.f32.mrb[0].mxu0
      %v1402 = vadd.f32 0.0, %v1401
      %v1403 = vpop.f32.mrb[0].mxu0
      %v1404 = vadd.f32 0.0, %v1403
      %1405 = vmatprep.mubr.f32.mxu0 0.0
      %1406 = vmatmul.mubr.f32.gmra.mrb[0].mxu0 %v1200
      %v1407 = vpop.f32.mrb[0].mxu0
      %v1408 = vadd.f32 0.0, %v1407
      %v1409 = vpop.f32.mrb[0].mxu0
      %v1410 = vadd.f32 0.0, %v1409
      %1411 = vmatprep.mubr.f32.mxu0 0.0
      %1412 = vmatmul.mubr.f32.gmra.mrb[0].mxu0 %v1203
      %v1413 = vpop.f32.mrb[0].mxu0
      %v1414 = vadd.f32 0.0, %v1413
      %v1415 = vpop.f32.mrb[0].mxu0
      %v1416 = vadd.f32 0.0, %v1415
      %1417 = vmatprep.mubr.f32.mxu0 0.0
      %1418 = vmatmul.mubr.f32.gmra.mrb[0].mxu0 %v1206
      %v1419 = vpop.f32.mrb[0].mxu0
      %v1420 = vadd.f32 0.0, %v1419
      %v1421 = vpop.f32.mrb[0].mxu0
      %v1422 = vadd.f32 0.0, %v1421
      %1423 = vmatprep.mubr.f32.mxu0 0.0
      %1424 = vmatmul.mubr.f32.gmra.mrb[0].mxu0 %v1209
      %v1425 = vpop.f32.mrb[0].mxu0
      %v1426 = vadd.f32 0.0, %v1425
      %v1427 = vpop.f32.mrb[0].mxu0
      %v1428 = vadd.f32 0.0, %v1427
      %1429 = vmatprep.mubr.f32.mxu0 0.0
      %1430 = vmatmul.mubr.f32.gmra.mrb[0].mxu0 %v1212
      %v1431 = vpop.f32.mrb[0].mxu0
      %v1432 = vadd.f32 0.0, %v1431
      %v1433 = vpop.f32.mrb[0].mxu0
      %v1434 = vadd.f32 0.0, %v1433
      %1435 = vmatprep.mubr.f32.mxu0 0.0
      %1436 = vmatmul.mubr.f32.gmra.mrb[0].mxu0 %v1215
      %v1437 = vpop.f32.mrb[0].mxu0
      %v1438 = vadd.f32 0.0, %v1437
      %v1439 = vpop.f32.mrb[0].mxu0
      %v1440 = vadd.f32 0.0, %v1439
      %1441 = vmatprep.mubr.f32.mxu0 0.0
      %1442 = vmatmul.mubr.f32.gmra.mrb[0].mxu0 %v1218
      %v1443 = vpop.f32.mrb[0].mxu0
      %v1444 = vadd.f32 0.0, %v1443
      %v1445 = vpop.f32.mrb[0].mxu0
      %v1446 = vadd.f32 0.0, %v1445
      %1447 = vmatprep.mubr.f32.mxu0 0.0
      %1448 = vmatmul.mubr.f32.gmra.mrb[0].mxu0 %v1221
      %v1449 = vpop.f32.mrb[0].mxu0
      %v1450 = vadd.f32 0.0, %v1449
      %v1451 = vpop.f32.mrb[0].mxu0
      %v1452 = vadd.f32 0.0, %v1451
      %1453 = vmatprep.mubr.f32.mxu0 0.0
      %1454 = vmatmul.mubr.f32.gmra.mrb[0].mxu0 %v1224
      %v1455 = vpop.f32.mrb[0].mxu0
      %v1456 = vadd.f32 0.0, %v1455
      %v1457 = vpop.f32.mrb[0].mxu0
      %v1458 = vadd.f32 0.0, %v1457
      %1459 = vmatprep.mubr.f32.mxu0 0.0
      %1460 = vmatmul.mubr.f32.gmra.mrb[0].mxu0 %v1227
      %v1461 = vpop.f32.mrb[0].mxu0
      %v1462 = vadd.f32 0.0, %v1461
      %v1463 = vpop.f32.mrb[0].mxu0
      %v1464 = vadd.f32 0.0, %v1463
      %1465 = vmatprep.mubr.f32.mxu0 0.0
      %1466 = vmatmul.mubr.f32.gmra.mrb[0].mxu0 %v1230
      %v1467 = vpop.f32.mrb[0].mxu0
      %v1468 = vadd.f32 0.0, %v1467
      %v1469 = vpop.f32.mrb[0].mxu0
      %v1470 = vadd.f32 0.0, %v1469
      %1471 = vmatprep.mubr.f32.mxu0 0.0
      %1472 = vmatmul.mubr.f32.gmra.mrb[0].mxu0 %v1233
      %v1473 = vpop.f32.mrb[0].mxu0
      %v1474 = vadd.f32 0.0, %v1473
      %v1475 = vpop.f32.mrb[0].mxu0
      %v1476 = vadd.f32 0.0, %v1475
      %1477 = vmatprep.mubr.f32.mxu0 0.0
      %1478 = vmatmul.mubr.f32.gmra.mrb[0].mxu0 %v1236
      %v1479 = vpop.f32.mrb[0].mxu0
      %v1480 = vadd.f32 0.0, %v1479
      %v1481 = vpop.f32.mrb[0].mxu0
      %v1482 = vadd.f32 0.0, %v1481
      %1483 = vmatprep.mubr.f32.mxu0 0.0
      %1484 = vmatmul.mubr.f32.gmra.mrb[0].mxu0 %v1239
      %v1485 = vpop.f32.mrb[0].mxu0
      %v1486 = vadd.f32 0.0, %v1485
      %v1487 = vpop.f32.mrb[0].mxu0
      %v1488 = vadd.f32 0.0, %v1487
      %1489 = vmatprep.mubr.f32.mxu0 0.0
      %1490 = vmatmul.mubr.f32.gmra.mrb[0].mxu0 %v1242
      %v1491 = vpop.f32.mrb[0].mxu0
      %v1492 = vadd.f32 0.0, %v1491
      %v1493 = vpop.f32.mrb[0].mxu0
      %v1494 = vadd.f32 0.0, %v1493
      %1495 = vmatprep.mubr.f32.mxu0 0.0
      %1496 = vmatmul.mubr.f32.gmra.mrb[0].mxu0 %v1245
      %v1497 = vpop.f32.mrb[0].mxu0
      %v1498 = vadd.f32 0.0, %v1497
      %v1499 = vpop.f32.mrb[0].mxu0
      %v1500 = vadd.f32 0.0, %v1499
      %1501 = vmatprep.mubr.f32.mxu0 0.0
      %1502 = vmatmul.mubr.f32.gmra.mrb[0].mxu0 %v1248
      %v1503 = vpop.f32.mrb[0].mxu0
      %v1504 = vadd.f32 0.0, %v1503
      %v1505 = vpop.f32.mrb[0].mxu0
      %v1506 = vadd.f32 0.0, %v1505
      %1507 = vmatprep.mubr.f32.mxu0 0.0
      %1508 = vmatmul.mubr.f32.gmra.mrb[0].mxu0 %v1251
      %v1509 = vpop.f32.mrb[0].mxu0
      %v1510 = vadd.f32 0.0, %v1509
      %v1511 = vpop.f32.mrb[0].mxu0
      %v1512 = vadd.f32 0.0, %v1511
      %1513 = vmatprep.mubr.f32.mxu0 0.0
      %1514 = vmatmul.mubr.f32.gmra.mrb[0].mxu0 %v1254
      %v1515 = vpop.f32.mrb[0].mxu0
      %v1516 = vadd.f32 0.0, %v1515
      %v1517 = vpop.f32.mrb[0].mxu0
      %v1518 = vadd.f32 0.0, %v1517
      %1519 = vmatprep.mubr.f32.mxu0 0.0
      %1520 = vmatmul.mubr.f32.gmra.mrb[0].mxu0 %v1257
      %v1521 = vpop.f32.mrb[0].mxu0
      %v1522 = vadd.f32 0.0, %v1521
      %v1523 = vpop.f32.mrb[0].mxu0
      %v1524 = vadd.f32 0.0, %v1523
      %1525 = vdwg.mxu0
      %1526 = vmatprep.subr.mxu0 0.0
      %1527 = vmatpush1.msra.mxu0 %v1137
      %1528 = vmatprep.subr.mxu0 0.0
      %1529 = vmatpush1.msra.mxu0 %v1140
      %1530 = vmatprep.subr.mxu0 0.0
      %1531 = vmatpush1.msra.mxu0 %v1143
      %1532 = vmatprep.subr.mxu0 0.0
      %1533 = vmatpush1.msra.mxu0 %v1146
      %1534 = vmatprep.subr.mxu0 0.0
      %1535 = vmatpush1.msra.mxu0 %v1149
      %1536 = vmatprep.subr.mxu0 0.0
      %1537 = vmatpush1.msra.mxu0 %v1152
      %1538 = vmatprep.subr.mxu0 0.0
      %1539 = vmatpush1.msra.mxu0 %v1155
      %1540 = vmatprep.subr.mxu0 0.0
      %1541 = vmatpush1.msra.mxu0 %v1158
      %1542 = vmatprep.subr.mxu0 0.0
      %1543 = vmatpush1.msra.mxu0 %v1267
      %1544 = vmatprep.subr.mxu0 0.0
      %1545 = vmatpush1.msra.mxu0 0.0
      %1546 = vmatprep.subr.mxu0 0.0
      %1547 = vmatpush1.msra.mxu0 0.0
      %1548 = vmatprep.subr.mxu0 0.0
      %1549 = vmatpush1.msra.mxu0 0.0
      %1550 = vmatprep.subr.mxu0 0.0
      %1551 = vmatpush1.msra.mxu0 0.0
      %1552 = vmatprep.subr.mxu0 0.0
      %1553 = vmatpush1.msra.mxu0 0.0
      %1554 = vmatprep.subr.mxu0 0.0
      %1555 = vmatpush1.msra.mxu0 0.0
      %1556 = vmatprep.subr.mxu0 0.0
      %1557 = vmatpush1.msra.mxu0 0.0
      %1558 = vmatprep.subr.mxu0 0.0
      %1559 = vmatpush1.msra.mxu0 0.0
      %1560 = vmatprep.subr.mxu0 0.0
      %1561 = vmatpush1.msra.mxu0 0.0
      %1562 = vmatprep.subr.mxu0 0.0
      %1563 = vmatpush1.msra.mxu0 0.0
      %1564 = vmatprep.subr.mxu0 0.0
      %1565 = vmatpush1.msra.mxu0 0.0
      %1566 = vmatprep.subr.mxu0 0.0
      %1567 = vmatpush1.msra.mxu0 0.0
      %1568 = vmatprep.subr.mxu0 0.0
      %1569 = vmatpush1.msra.mxu0 0.0
      %1570 = vmatprep.subr.mxu0 0.0
      %1571 = vmatpush1.msra.mxu0 0.0
      %1572 = vmatprep.subr.mxu0 0.0
      %1573 = vmatpush1.msra.mxu0 0.0
      %1574 = vmatprep.subr.mxu0 0.0
      %1575 = vmatpush1.msra.mxu0 0.0
      %1576 = vmatprep.subr.mxu0 0.0
      %1577 = vmatpush1.msra.mxu0 0.0
      %1578 = vmatprep.subr.mxu0 0.0
      %1579 = vmatpush1.msra.mxu0 0.0
      %1580 = vmatprep.subr.mxu0 0.0
      %1581 = vmatpush1.msra.mxu0 0.0
      %1582 = vmatprep.subr.mxu0 0.0
      %1583 = vmatpush1.msra.mxu0 0.0
      %1584 = vmatprep.subr.mxu0 0.0
      %1585 = vmatpush1.msra.mxu0 0.0
      %1586 = vmatprep.subr.mxu0 0.0
      %1587 = vmatpush1.msra.mxu0 0.0
      %1588 = vmatprep.subr.mxu0 0.0
      %1589 = vmatpush1.msra.mxu0 0.0
      %1590 = vmatprep.mubr.f32.mxu0 0.0
      %1591 = vmatmul.mubr.f32.gmra.mrb[0].mxu0 %v1164
      %v1592 = vpop.f32.mrb[0].mxu0
      %v1593 = vadd.f32 0.0, %v1592
      %v1594 = vpop.f32.mrb[0].mxu0
      %1595 = vmatprep.mubr.f32.mxu0 0.0
      %1596 = vmatmul.mubr.f32.gmra.mrb[0].mxu0 %v1167
      %v1597 = vpop.f32.mrb[0].mxu0
      %v1598 = vadd.f32 0.0, %v1597
      %v1599 = vpop.f32.mrb[0].mxu0
      %1600 = vmatprep.mubr.f32.mxu0 0.0
      %1601 = vmatmul.mubr.f32.gmra.mrb[0].mxu0 %v1170
      %v1602 = vpop.f32.mrb[0].mxu0
      %v1603 = vadd.f32 0.0, %v1602
      %v1604 = vpop.f32.mrb[0].mxu0
      %1605 = vmatprep.mubr.f32.mxu0 0.0
      %1606 = vmatmul.mubr.f32.gmra.mrb[0].mxu0 %v1173
      %v1607 = vpop.f32.mrb[0].mxu0
      %v1608 = vadd.f32 0.0, %v1607
      %v1609 = vpop.f32.mrb[0].mxu0
      %1610 = vmatprep.mubr.f32.mxu0 0.0
      %1611 = vmatmul.mubr.f32.gmra.mrb[0].mxu0 %v1176
      %v1612 = vpop.f32.mrb[0].mxu0
      %v1613 = vadd.f32 0.0, %v1612
      %v1614 = vpop.f32.mrb[0].mxu0
      %1615 = vmatprep.mubr.f32.mxu0 0.0
      %1616 = vmatmul.mubr.f32.gmra.mrb[0].mxu0 %v1179
      %v1617 = vpop.f32.mrb[0].mxu0
      %v1618 = vadd.f32 0.0, %v1617
      %v1619 = vpop.f32.mrb[0].mxu0
      %1620 = vmatprep.mubr.f32.mxu0 0.0
      %1621 = vmatmul.mubr.f32.gmra.mrb[0].mxu0 %v1182
      %v1622 = vpop.f32.mrb[0].mxu0
      %v1623 = vadd.f32 0.0, %v1622
      %v1624 = vpop.f32.mrb[0].mxu0
      %1625 = vmatprep.mubr.f32.mxu0 0.0
      %1626 = vmatmul.mubr.f32.gmra.mrb[0].mxu0 %v1185
      %v1627 = vpop.f32.mrb[0].mxu0
      %v1628 = vadd.f32 0.0, %v1627
      %v1629 = vpop.f32.mrb[0].mxu0
      %1630 = vmatprep.mubr.f32.mxu0 0.0
      %1631 = vmatmul.mubr.f32.gmra.mrb[0].mxu0 %v1188
      %v1632 = vpop.f32.mrb[0].mxu0
      %v1633 = vadd.f32 0.0, %v1632
      %v1634 = vpop.f32.mrb[0].mxu0
      %1635 = vmatprep.mubr.f32.mxu0 0.0
      %1636 = vmatmul.mubr.f32.gmra.mrb[0].mxu0 %v1191
      %v1637 = vpop.f32.mrb[0].mxu0
      %v1638 = vadd.f32 0.0, %v1637
      %v1639 = vpop.f32.mrb[0].mxu0
      %1640 = vmatprep.mubr.f32.mxu0 0.0
      %1641 = vmatmul.mubr.f32.gmra.mrb[0].mxu0 %v1194
      %v1642 = vpop.f32.mrb[0].mxu0
      %v1643 = vadd.f32 0.0, %v1642
      %v1644 = vpop.f32.mrb[0].mxu0
      %1645 = vmatprep.mubr.f32.mxu0 0.0
      %1646 = vmatmul.mubr.f32.gmra.mrb[0].mxu0 %v1197
      %v1647 = vpop.f32.mrb[0].mxu0
      %v1648 = vadd.f32 0.0, %v1647
      %v1649 = vpop.f32.mrb[0].mxu0
      %1650 = vmatprep.mubr.f32.mxu0 0.0
      %1651 = vmatmul.mubr.f32.gmra.mrb[0].mxu0 %v1200
      %v1652 = vpop.f32.mrb[0].mxu0
      %v1653 = vadd.f32 0.0, %v1652
      %v1654 = vpop.f32.mrb[0].mxu0
      %1655 = vmatprep.mubr.f32.mxu0 0.0
      %1656 = vmatmul.mubr.f32.gmra.mrb[0].mxu0 %v1203
      %v1657 = vpop.f32.mrb[0].mxu0
      %v1658 = vadd.f32 0.0, %v1657
      %v1659 = vpop.f32.mrb[0].mxu0
      %1660 = vmatprep.mubr.f32.mxu0 0.0
      %1661 = vmatmul.mubr.f32.gmra.mrb[0].mxu0 %v1206
      %v1662 = vpop.f32.mrb[0].mxu0
      %v1663 = vadd.f32 0.0, %v1662
      %v1664 = vpop.f32.mrb[0].mxu0
      %1665 = vmatprep.mubr.f32.mxu0 0.0
      %1666 = vmatmul.mubr.f32.gmra.mrb[0].mxu0 %v1209
      %v1667 = vpop.f32.mrb[0].mxu0
      %v1668 = vadd.f32 0.0, %v1667
      %v1669 = vpop.f32.mrb[0].mxu0
      %1670 = vmatprep.mubr.f32.mxu0 0.0
      %1671 = vmatmul.mubr.f32.gmra.mrb[0].mxu0 %v1212
      %v1672 = vpop.f32.mrb[0].mxu0
      %v1673 = vadd.f32 0.0, %v1672
      %v1674 = vpop.f32.mrb[0].mxu0
      %1675 = vmatprep.mubr.f32.mxu0 0.0
      %1676 = vmatmul.mubr.f32.gmra.mrb[0].mxu0 %v1215
      %v1677 = vpop.f32.mrb[0].mxu0
      %v1678 = vadd.f32 0.0, %v1677
      %v1679 = vpop.f32.mrb[0].mxu0
      %1680 = vmatprep.mubr.f32.mxu0 0.0
      %1681 = vmatmul.mubr.f32.gmra.mrb[0].mxu0 %v1218
      %v1682 = vpop.f32.mrb[0].mxu0
      %v1683 = vadd.f32 0.0, %v1682
      %v1684 = vpop.f32.mrb[0].mxu0
      %1685 = vmatprep.mubr.f32.mxu0 0.0
      %1686 = vmatmul.mubr.f32.gmra.mrb[0].mxu0 %v1221
      %v1687 = vpop.f32.mrb[0].mxu0
      %v1688 = vadd.f32 0.0, %v1687
      %v1689 = vpop.f32.mrb[0].mxu0
      %1690 = vmatprep.mubr.f32.mxu0 0.0
      %1691 = vmatmul.mubr.f32.gmra.mrb[0].mxu0 %v1224
      %v1692 = vpop.f32.mrb[0].mxu0
      %v1693 = vadd.f32 0.0, %v1692
      %v1694 = vpop.f32.mrb[0].mxu0
      %1695 = vmatprep.mubr.f32.mxu0 0.0
      %1696 = vmatmul.mubr.f32.gmra.mrb[0].mxu0 %v1227
      %v1697 = vpop.f32.mrb[0].mxu0
      %v1698 = vadd.f32 0.0, %v1697
      %v1699 = vpop.f32.mrb[0].mxu0
      %1700 = vmatprep.mubr.f32.mxu0 0.0
      %1701 = vmatmul.mubr.f32.gmra.mrb[0].mxu0 %v1230
      %v1702 = vpop.f32.mrb[0].mxu0
      %v1703 = vadd.f32 0.0, %v1702
      %v1704 = vpop.f32.mrb[0].mxu0
      %1705 = vmatprep.mubr.f32.mxu0 0.0
      %1706 = vmatmul.mubr.f32.gmra.mrb[0].mxu0 %v1233
      %v1707 = vpop.f32.mrb[0].mxu0
      %v1708 = vadd.f32 0.0, %v1707
      %v1709 = vpop.f32.mrb[0].mxu0
      %1710 = vmatprep.mubr.f32.mxu0 0.0
      %1711 = vmatmul.mubr.f32.gmra.mrb[0].mxu0 %v1236
      %v1712 = vpop.f32.mrb[0].mxu0
      %v1713 = vadd.f32 0.0, %v1712
      %v1714 = vpop.f32.mrb[0].mxu0
      %1715 = vmatprep.mubr.f32.mxu0 0.0
      %1716 = vmatmul.mubr.f32.gmra.mrb[0].mxu0 %v1239
      %v1717 = vpop.f32.mrb[0].mxu0
      %v1718 = vadd.f32 0.0, %v1717
      %v1719 = vpop.f32.mrb[0].mxu0
      %1720 = vmatprep.mubr.f32.mxu0 0.0
      %1721 = vmatmul.mubr.f32.gmra.mrb[0].mxu0 %v1242
      %v1722 = vpop.f32.mrb[0].mxu0
      %v1723 = vadd.f32 0.0, %v1722
      %v1724 = vpop.f32.mrb[0].mxu0
      %1725 = vmatprep.mubr.f32.mxu0 0.0
      %1726 = vmatmul.mubr.f32.gmra.mrb[0].mxu0 %v1245
      %v1727 = vpop.f32.mrb[0].mxu0
      %v1728 = vadd.f32 0.0, %v1727
      %v1729 = vpop.f32.mrb[0].mxu0
      %1730 = vmatprep.mubr.f32.mxu0 0.0
      %1731 = vmatmul.mubr.f32.gmra.mrb[0].mxu0 %v1248
      %v1732 = vpop.f32.mrb[0].mxu0
      %v1733 = vadd.f32 0.0, %v1732
      %v1734 = vpop.f32.mrb[0].mxu0
      %1735 = vmatprep.mubr.f32.mxu0 0.0
      %1736 = vmatmul.mubr.f32.gmra.mrb[0].mxu0 %v1251
      %v1737 = vpop.f32.mrb[0].mxu0
      %v1738 = vadd.f32 0.0, %v1737
      %v1739 = vpop.f32.mrb[0].mxu0
      %1740 = vmatprep.mubr.f32.mxu0 0.0
      %1741 = vmatmul.mubr.f32.gmra.mrb[0].mxu0 %v1254
      %v1742 = vpop.f32.mrb[0].mxu0
      %v1743 = vadd.f32 0.0, %v1742
      %v1744 = vpop.f32.mrb[0].mxu0
      %1745 = vmatprep.mubr.f32.mxu0 0.0
      %1746 = vmatmul.mubr.f32.gmra.mrb[0].mxu0 %v1257
      %v1747 = vpop.f32.mrb[0].mxu0
      %v1748 = vadd.f32 0.0, %v1747
      %v1749 = vpop.f32.mrb[0].mxu0
      %1750 = vdwg.mxu0
      %1751 = vst [vmem:[#allocation2 + $0x48] sm:$0xff] %v1336
      %1752 = vst [vmem:[#allocation2 + $0x50] sm:$0xff] %v1338
      %1753 = vst.msk [vmem:[#allocation2 + $0x58] sm:$0xff] %vm477, %v1593
      %1754 = vst [vmem:[#allocation2 + $0x60] sm:$0xff] %v1342
      %1755 = vst [vmem:[#allocation2 + $0x68] sm:$0xff] %v1344
      %1756 = vst.msk [vmem:[#allocation2 + $0x70] sm:$0xff] %vm477, %v1598
      %1757 = vst [vmem:[#allocation2 + $0x78] sm:$0xff] %v1348
      %1758 = vst [vmem:[#allocation2 + $0x80] sm:$0xff] %v1350
      %1759 = vst.msk [vmem:[#allocation2 + $0x88] sm:$0xff] %vm477, %v1603
      %1760 = vst [vmem:[#allocation2 + $0x90] sm:$0xff] %v1354
      %1761 = vst [vmem:[#allocation2 + $0x98] sm:$0xff] %v1356
      %1762 = vst.msk [vmem:[#allocation2 + $0xa0] sm:$0xff] %vm477, %v1608
      %1763 = vst [vmem:[#allocation2 + $0xa8] sm:$0xff] %v1360
      %1764 = vst [vmem:[#allocation2 + $0xb0] sm:$0xff] %v1362
      %1765 = vst.msk [vmem:[#allocation2 + $0xb8] sm:$0xff] %vm477, %v1613
      %1766 = vst [vmem:[#allocation2 + $0xc0] sm:$0xff] %v1366
      %1767 = vst [vmem:[#allocation2 + $0xc8] sm:$0xff] %v1368
      %1768 = vst.msk [vmem:[#allocation2 + $0xd0] sm:$0xff] %vm477, %v1618
      %1769 = vst [vmem:[#allocation2 + $0xd8] sm:$0xff] %v1372
      %1770 = vst [vmem:[#allocation2 + $0xe0] sm:$0xff] %v1374
      %1771 = vst.msk [vmem:[#allocation2 + $0xe8] sm:$0xff] %vm477, %v1623
      %1772 = vst [vmem:[#allocation2 + $0xf0] sm:$0xff] %v1378
      %1773 = vst [vmem:[#allocation2 + $0xf8] sm:$0xff] %v1380
      %1774 = vst.msk [vmem:[#allocation2 + $0x100] sm:$0xff] %vm477, %v1628
      %1775 = vst [vmem:[#allocation2 + $0x108] sm:$0xff] %v1384
      %1776 = vst [vmem:[#allocation2 + $0x110] sm:$0xff] %v1386
      %1777 = vst.msk [vmem:[#allocation2 + $0x118] sm:$0xff] %vm477, %v1633
      %1778 = vst [vmem:[#allocation2 + $0x120] sm:$0xff] %v1390
      %1779 = vst [vmem:[#allocation2 + $0x128] sm:$0xff] %v1392
      %1780 = vst.msk [vmem:[#allocation2 + $0x130] sm:$0xff] %vm477, %v1638
      %1781 = vst [vmem:[#allocation2 + $0x138] sm:$0xff] %v1396
      %1782 = vst [vmem:[#allocation2 + $0x140] sm:$0xff] %v1398
      %1783 = vst.msk [vmem:[#allocation2 + $0x148] sm:$0xff] %vm477, %v1643
      %1784 = vst [vmem:[#allocation2 + $0x150] sm:$0xff] %v1402
      %1785 = vst [vmem:[#allocation2 + $0x158] sm:$0xff] %v1404
      %1786 = vst.msk [vmem:[#allocation2 + $0x160] sm:$0xff] %vm477, %v1648
      %1787 = vst [vmem:[#allocation2 + $0x168] sm:$0xff] %v1408
      %1788 = vst [vmem:[#allocation2 + $0x170] sm:$0xff] %v1410
      %1789 = vst.msk [vmem:[#allocation2 + $0x178] sm:$0xff] %vm477, %v1653
      %1790 = vst [vmem:[#allocation2 + $0x180] sm:$0xff] %v1414
      %1791 = vst [vmem:[#allocation2 + $0x188] sm:$0xff] %v1416
      %1792 = vst.msk [vmem:[#allocation2 + $0x190] sm:$0xff] %vm477, %v1658
      %1793 = vst [vmem:[#allocation2 + $0x198] sm:$0xff] %v1420
      %1794 = vst [vmem:[#allocation2 + $0x1a0] sm:$0xff] %v1422
      %1795 = vst.msk [vmem:[#allocation2 + $0x1a8] sm:$0xff] %vm477, %v1663
      %1796 = vst [vmem:[#allocation2 + $0x1b0] sm:$0xff] %v1426
      %1797 = vst [vmem:[#allocation2 + $0x1b8] sm:$0xff] %v1428
      %1798 = vst.msk [vmem:[#allocation2 + $0x1c0] sm:$0xff] %vm477, %v1668
      %1799 = vst [vmem:[#allocation2 + $0x1c8] sm:$0xff] %v1432
      %1800 = vst [vmem:[#allocation2 + $0x1d0] sm:$0xff] %v1434
      %1801 = vst.msk [vmem:[#allocation2 + $0x1d8] sm:$0xff] %vm477, %v1673
      %1802 = vst [vmem:[#allocation2 + $0x1e0] sm:$0xff] %v1438
      %1803 = vst [vmem:[#allocation2 + $0x1e8] sm:$0xff] %v1440
      %1804 = vst.msk [vmem:[#allocation2 + $0x1f0] sm:$0xff] %vm477, %v1678
      %1805 = vst [vmem:[#allocation2 + $0x1f8] sm:$0xff] %v1444
      %1806 = vst [vmem:[#allocation2 + $0x200] sm:$0xff] %v1446
      %1807 = vst.msk [vmem:[#allocation2 + $0x208] sm:$0xff] %vm477, %v1683
      %1808 = vst [vmem:[#allocation2 + $0x210] sm:$0xff] %v1450
      %1809 = vst [vmem:[#allocation2 + $0x218] sm:$0xff] %v1452
      %1810 = vst.msk [vmem:[#allocation2 + $0x220] sm:$0xff] %vm477, %v1688
      %1811 = vst [vmem:[#allocation2 + $0x228] sm:$0xff] %v1456
      %1812 = vst [vmem:[#allocation2 + $0x230] sm:$0xff] %v1458
      %1813 = vst.msk [vmem:[#allocation2 + $0x238] sm:$0xff] %vm477, %v1693
      %1814 = vst [vmem:[#allocation2 + $0x240] sm:$0xff] %v1462
      %1815 = vst [vmem:[#allocation2 + $0x248] sm:$0xff] %v1464
      %1816 = vst.msk [vmem:[#allocation2 + $0x250] sm:$0xff] %vm477, %v1698
      %1817 = vst [vmem:[#allocation2 + $0x258] sm:$0xff] %v1468
      %1818 = vst [vmem:[#allocation2 + $0x260] sm:$0xff] %v1470
      %1819 = vst.msk [vmem:[#allocation2 + $0x268] sm:$0xff] %vm477, %v1703
      %1820 = vst [vmem:[#allocation2 + $0x270] sm:$0xff] %v1474
      %1821 = vst [vmem:[#allocation2 + $0x278] sm:$0xff] %v1476
      %1822 = vst.msk [vmem:[#allocation2 + $0x280] sm:$0xff] %vm477, %v1708
      %1823 = vst [vmem:[#allocation2 + $0x288] sm:$0xff] %v1480
      %1824 = vst [vmem:[#allocation2 + $0x290] sm:$0xff] %v1482
      %1825 = vst.msk [vmem:[#allocation2 + $0x298] sm:$0xff] %vm477, %v1713
      %1826 = vst [vmem:[#allocation2 + $0x2a0] sm:$0xff] %v1486
      %1827 = vst [vmem:[#allocation2 + $0x2a8] sm:$0xff] %v1488
      %1828 = vst.msk [vmem:[#allocation2 + $0x2b0] sm:$0xff] %vm477, %v1718
      %1829 = vst [vmem:[#allocation2 + $0x2b8] sm:$0xff] %v1492
      %1830 = vst [vmem:[#allocation2 + $0x2c0] sm:$0xff] %v1494
      %1831 = vst.msk [vmem:[#allocation2 + $0x2c8] sm:$0xff] %vm477, %v1723
      %1832 = vst [vmem:[#allocation2 + $0x2d0] sm:$0xff] %v1498
      %1833 = vst [vmem:[#allocation2 + $0x2d8] sm:$0xff] %v1500
      %1834 = vst.msk [vmem:[#allocation2 + $0x2e0] sm:$0xff] %vm477, %v1728
      %1835 = vst [vmem:[#allocation2 + $0x2e8] sm:$0xff] %v1504
      %1836 = vst [vmem:[#allocation2 + $0x2f0] sm:$0xff] %v1506
      %1837 = vst.msk [vmem:[#allocation2 + $0x2f8] sm:$0xff] %vm477, %v1733
      %1838 = vst [vmem:[#allocation2 + $0x300] sm:$0xff] %v1510
      %1839 = vst [vmem:[#allocation2 + $0x308] sm:$0xff] %v1512
      %1840 = vst.msk [vmem:[#allocation2 + $0x310] sm:$0xff] %vm477, %v1738
      %1841 = vst [vmem:[#allocation2 + $0x318] sm:$0xff] %v1516
      %1842 = vst [vmem:[#allocation2 + $0x320] sm:$0xff] %v1518
      %1843 = vst.msk [vmem:[#allocation2 + $0x328] sm:$0xff] %vm477, %v1743
      %1844 = vst [vmem:[#allocation2 + $0x330] sm:$0xff] %v1522
      %1845 = vst [vmem:[#allocation2 + $0x338] sm:$0xff] %v1524
      %1846 = vst.msk [vmem:[#allocation2 + $0x340] sm:$0xff] %vm477, %v1748
      %v1847 = vld [vmem:[#allocation2 + $0x18] sm:$0xff]
      %v1848 = vld [vmem:[#allocation2 + $0x30] sm:$0xff]
      %v1849 = vld [vmem:[#allocation2 + $0x48] sm:$0xff]
      %v1850 = vld [vmem:[#allocation2 + $0x60] sm:$0xff]
      %v1851 = vld [vmem:[#allocation2 + $0x78] sm:$0xff]
      %v1852 = vld [vmem:[#allocation2 + $0x90] sm:$0xff]
      %v1853 = vld [vmem:[#allocation2 + $0xa8] sm:$0xff]
      %v1854 = vld [vmem:[#allocation2 + $0xc0] sm:$0xff]
      %v1855 = vld [vmem:[#allocation2 + $0xd8] sm:$0xff]
      %v1856 = vld [vmem:[#allocation2 + $0xf0] sm:$0xff]
      %v1857 = vld [vmem:[#allocation2 + $0x108] sm:$0xff]
      %v1858 = vld [vmem:[#allocation2 + $0x120] sm:$0xff]
      %v1859 = vld [vmem:[#allocation2 + $0x138] sm:$0xff]
      %v1860 = vld [vmem:[#allocation2 + $0x150] sm:$0xff]
      %v1861 = vld [vmem:[#allocation2 + $0x168] sm:$0xff]
      %v1862 = vld [vmem:[#allocation2 + $0x180] sm:$0xff]
      %v1863 = vld [vmem:[#allocation2 + $0x198] sm:$0xff]
      %v1864 = vld [vmem:[#allocation2 + $0x1b0] sm:$0xff]
      %v1865 = vld [vmem:[#allocation2 + $0x1c8] sm:$0xff]
      %v1866 = vld [vmem:[#allocation2 + $0x1e0] sm:$0xff]
      %v1867 = vld [vmem:[#allocation2 + $0x1f8] sm:$0xff]
      %v1868 = vld [vmem:[#allocation2 + $0x210] sm:$0xff]
      %v1869 = vld [vmem:[#allocation2 + $0x228] sm:$0xff]
      %v1870 = vld [vmem:[#allocation2 + $0x240] sm:$0xff]
      %v1871 = vld [vmem:[#allocation2 + $0x258] sm:$0xff]
      %v1872 = vld [vmem:[#allocation2 + $0x270] sm:$0xff]
      %v1873 = vld [vmem:[#allocation2 + $0x288] sm:$0xff]
      %v1874 = vld [vmem:[#allocation2 + $0x2a0] sm:$0xff]
      %v1875 = vld [vmem:[#allocation2 + $0x2b8] sm:$0xff]
      %v1876 = vld [vmem:[#allocation2 + $0x2d0] sm:$0xff]
      %v1877 = vld [vmem:[#allocation2 + $0x2e8] sm:$0xff]
      %v1878 = vld [vmem:[#allocation2 + $0x300] sm:$0xff]
      %v1879 = vld [vmem:[#allocation2 + $0x50] sm:$0xff]
      %v1880 = vld [vmem:[#allocation2 + $0x68] sm:$0xff]
      %v1881 = vld [vmem:[#allocation2 + $0x80] sm:$0xff]
      %v1882 = vld [vmem:[#allocation2 + $0x98] sm:$0xff]
      %v1883 = vld [vmem:[#allocation2 + $0xb0] sm:$0xff]
      %v1884 = vld [vmem:[#allocation2 + $0xc8] sm:$0xff]
      %v1885 = vld [vmem:[#allocation2 + $0xe0] sm:$0xff]
      %v1886 = vld [vmem:[#allocation2 + $0xf8] sm:$0xff]
      %v1887 = vld [vmem:[#allocation2 + $0x110] sm:$0xff]
      %v1888 = vld [vmem:[#allocation2 + $0x128] sm:$0xff]
      %v1889 = vld [vmem:[#allocation2 + $0x140] sm:$0xff]
      %v1890 = vld [vmem:[#allocation2 + $0x158] sm:$0xff]
      %v1891 = vld [vmem:[#allocation2 + $0x170] sm:$0xff]
      %v1892 = vld [vmem:[#allocation2 + $0x188] sm:$0xff]
      %v1893 = vld [vmem:[#allocation2 + $0x1a0] sm:$0xff]
      %v1894 = vld [vmem:[#allocation2 + $0x1b8] sm:$0xff]
      %v1895 = vld [vmem:[#allocation2 + $0x1d0] sm:$0xff]
      %v1896 = vld [vmem:[#allocation2 + $0x1e8] sm:$0xff]
      %v1897 = vld [vmem:[#allocation2 + $0x200] sm:$0xff]
      %v1898 = vld [vmem:[#allocation2 + $0x218] sm:$0xff]
      %v1899 = vld [vmem:[#allocation2 + $0x230] sm:$0xff]
      %v1900 = vld [vmem:[#allocation2 + $0x248] sm:$0xff]
      %v1901 = vld [vmem:[#allocation2 + $0x260] sm:$0xff]
      %v1902 = vld [vmem:[#allocation2 + $0x278] sm:$0xff]
      %v1903 = vld [vmem:[#allocation2 + $0x290] sm:$0xff]
      %v1904 = vld [vmem:[#allocation2 + $0x2a8] sm:$0xff]
      %v1905 = vld [vmem:[#allocation2 + $0x2c0] sm:$0xff]
      %v1906 = vld [vmem:[#allocation2 + $0x2d8] sm:$0xff]
      %v1907 = vld [vmem:[#allocation2 + $0x2f0] sm:$0xff]
      %v1908 = vld [vmem:[#allocation2 + $0x308] sm:$0xff]
      %v1909 = vld [vmem:[#allocation2 + $0x320] sm:$0xff]
      %v1910 = vld [vmem:[#allocation2 + $0x338] sm:$0xff]
      %1943 = vrot.lane.b32.xlu0 %v1879, 32
      %v1944 = vpop.permute.xlu0 %1943
      %1945 = vrot.lane.b32.xlu0 %v1880, 32
      %v1946 = vpop.permute.xlu0 %1945
      %1947 = vrot.lane.b32.xlu0 %v1881, 32
      %v1948 = vpop.permute.xlu0 %1947
      %1949 = vrot.lane.b32.xlu0 %v1882, 32
      %v1950 = vpop.permute.xlu0 %1949
      %1951 = vrot.lane.b32.xlu0 %v1883, 32
      %v1952 = vpop.permute.xlu0 %1951
      %1953 = vrot.lane.b32.xlu0 %v1884, 32
      %v1954 = vpop.permute.xlu0 %1953
      %1955 = vrot.lane.b32.xlu0 %v1885, 32
      %v1956 = vpop.permute.xlu0 %1955
      %1957 = vrot.lane.b32.xlu0 %v1886, 32
      %v1958 = vpop.permute.xlu0 %1957
      %1959 = vrot.lane.b32.xlu0 %v1887, 32
      %v1960 = vpop.permute.xlu0 %1959
      %1961 = vrot.lane.b32.xlu0 %v1888, 32
      %v1962 = vpop.permute.xlu0 %1961
      %1963 = vrot.lane.b32.xlu0 %v1889, 32
      %v1964 = vpop.permute.xlu0 %1963
      %1965 = vrot.lane.b32.xlu0 %v1890, 32
      %v1966 = vpop.permute.xlu0 %1965
      %1967 = vrot.lane.b32.xlu0 %v1891, 32
      %v1968 = vpop.permute.xlu0 %1967
      %1969 = vrot.lane.b32.xlu0 %v1892, 32
      %v1970 = vpop.permute.xlu0 %1969
      %1971 = vrot.lane.b32.xlu0 %v1893, 32
      %v1972 = vpop.permute.xlu0 %1971
      %1973 = vrot.lane.b32.xlu0 %v1894, 32
      %v1974 = vpop.permute.xlu0 %1973
      %1975 = vrot.lane.b32.xlu0 %v1895, 32
      %v1976 = vpop.permute.xlu0 %1975
      %1977 = vrot.lane.b32.xlu0 %v1896, 32
      %v1978 = vpop.permute.xlu0 %1977
      %1979 = vrot.lane.b32.xlu0 %v1897, 32
      %v1980 = vpop.permute.xlu0 %1979
      %1981 = vrot.lane.b32.xlu0 %v1898, 32
      %v1982 = vpop.permute.xlu0 %1981
      %1983 = vrot.lane.b32.xlu0 %v1899, 32
      %v1984 = vpop.permute.xlu0 %1983
      %1985 = vrot.lane.b32.xlu0 %v1900, 32
      %v1986 = vpop.permute.xlu0 %1985
      %1987 = vrot.lane.b32.xlu0 %v1901, 32
      %v1988 = vpop.permute.xlu0 %1987
      %1989 = vrot.lane.b32.xlu0 %v1902, 32
      %v1990 = vpop.permute.xlu0 %1989
      %1991 = vrot.lane.b32.xlu0 %v1903, 32
      %v1992 = vpop.permute.xlu0 %1991
      %1993 = vrot.lane.b32.xlu0 %v1904, 32
      %v1994 = vpop.permute.xlu0 %1993
      %1995 = vrot.lane.b32.xlu0 %v1905, 32
      %v1996 = vpop.permute.xlu0 %1995
      %1997 = vrot.lane.b32.xlu0 %v1906, 32
      %v1998 = vpop.permute.xlu0 %1997
      %1999 = vrot.lane.b32.xlu0 %v1907, 32
      %v2000 = vpop.permute.xlu0 %1999
      %2001 = vrot.lane.b32.xlu0 %v1908, 32
      %v2002 = vpop.permute.xlu0 %2001
      %2003 = vrot.lane.b32.xlu0 %v1909, 32
      %v2004 = vpop.permute.xlu0 %2003
      %2005 = vrot.lane.b32.xlu0 %v1910, 32
      %v2006 = vpop.permute.xlu0 %2005
      %v2039 = vadd.f32 %v1847, %v1944
      %v2040 = vadd.f32 %v1848, %v1946
      %v2041 = vadd.f32 %v1849, %v1948
      %v2042 = vadd.f32 %v1850, %v1950
      %v2043 = vadd.f32 %v1851, %v1952
      %v2044 = vadd.f32 %v1852, %v1954
      %v2045 = vadd.f32 %v1853, %v1956
      %v2046 = vadd.f32 %v1854, %v1958
      %v2047 = vadd.f32 %v1855, %v1960
      %v2048 = vadd.f32 %v1856, %v1962
      %v2049 = vadd.f32 %v1857, %v1964
      %v2050 = vadd.f32 %v1858, %v1966
      %v2051 = vadd.f32 %v1859, %v1968
      %v2052 = vadd.f32 %v1860, %v1970
      %v2053 = vadd.f32 %v1861, %v1972
      %v2054 = vadd.f32 %v1862, %v1974
      %v2055 = vadd.f32 %v1863, %v1976
      %v2056 = vadd.f32 %v1864, %v1978
      %v2057 = vadd.f32 %v1865, %v1980
      %v2058 = vadd.f32 %v1866, %v1982
      %v2059 = vadd.f32 %v1867, %v1984
      %v2060 = vadd.f32 %v1868, %v1986
      %v2061 = vadd.f32 %v1869, %v1988
      %v2062 = vadd.f32 %v1870, %v1990
      %v2063 = vadd.f32 %v1871, %v1992
      %v2064 = vadd.f32 %v1872, %v1994
      %v2065 = vadd.f32 %v1873, %v1996
      %v2066 = vadd.f32 %v1874, %v1998
      %v2067 = vadd.f32 %v1875, %v2000
      %v2068 = vadd.f32 %v1876, %v2002
      %v2069 = vadd.f32 %v1877, %v2004
      %v2070 = vadd.f32 %v1878, %v2006
      %v2071 = vld [vmem:[#allocation2 + $0x350] sm:$0xff]
      %v2072 = vld [vmem:[#allocation2 + $0x368] sm:$0xff]
      %2075 = vrot.lane.b32.xlu0 %v1881, 64
      %v2076 = vpop.permute.xlu0 %2075
      %2077 = vrot.lane.b32.xlu0 %v1882, 64
      %v2078 = vpop.permute.xlu0 %2077
      %2079 = vrot.lane.b32.xlu0 %v1883, 64
      %v2080 = vpop.permute.xlu0 %2079
      %2081 = vrot.lane.b32.xlu0 %v1884, 64
      %v2082 = vpop.permute.xlu0 %2081
      %2083 = vrot.lane.b32.xlu0 %v1885, 64
      %v2084 = vpop.permute.xlu0 %2083
      %2085 = vrot.lane.b32.xlu0 %v1886, 64
      %v2086 = vpop.permute.xlu0 %2085
      %2087 = vrot.lane.b32.xlu0 %v1887, 64
      %v2088 = vpop.permute.xlu0 %2087
      %2089 = vrot.lane.b32.xlu0 %v1888, 64
      %v2090 = vpop.permute.xlu0 %2089
      %2091 = vrot.lane.b32.xlu0 %v1889, 64
      %v2092 = vpop.permute.xlu0 %2091
      %2093 = vrot.lane.b32.xlu0 %v1890, 64
      %v2094 = vpop.permute.xlu0 %2093
      %2095 = vrot.lane.b32.xlu0 %v1891, 64
      %v2096 = vpop.permute.xlu0 %2095
      %2097 = vrot.lane.b32.xlu0 %v1892, 64
      %v2098 = vpop.permute.xlu0 %2097
      %2099 = vrot.lane.b32.xlu0 %v1893, 64
      %v2100 = vpop.permute.xlu0 %2099
      %2101 = vrot.lane.b32.xlu0 %v1894, 64
      %v2102 = vpop.permute.xlu0 %2101
      %2103 = vrot.lane.b32.xlu0 %v1895, 64
      %v2104 = vpop.permute.xlu0 %2103
      %2105 = vrot.lane.b32.xlu0 %v1896, 64
      %v2106 = vpop.permute.xlu0 %2105
      %2107 = vrot.lane.b32.xlu0 %v1897, 64
      %v2108 = vpop.permute.xlu0 %2107
      %2109 = vrot.lane.b32.xlu0 %v1898, 64
      %v2110 = vpop.permute.xlu0 %2109
      %2111 = vrot.lane.b32.xlu0 %v1899, 64
      %v2112 = vpop.permute.xlu0 %2111
      %2113 = vrot.lane.b32.xlu0 %v1900, 64
      %v2114 = vpop.permute.xlu0 %2113
      %2115 = vrot.lane.b32.xlu0 %v1901, 64
      %v2116 = vpop.permute.xlu0 %2115
      %2117 = vrot.lane.b32.xlu0 %v1902, 64
      %v2118 = vpop.permute.xlu0 %2117
      %2119 = vrot.lane.b32.xlu0 %v1903, 64
      %v2120 = vpop.permute.xlu0 %2119
      %2121 = vrot.lane.b32.xlu0 %v1904, 64
      %v2122 = vpop.permute.xlu0 %2121
      %2123 = vrot.lane.b32.xlu0 %v1905, 64
      %v2124 = vpop.permute.xlu0 %2123
      %2125 = vrot.lane.b32.xlu0 %v1906, 64
      %v2126 = vpop.permute.xlu0 %2125
      %2127 = vrot.lane.b32.xlu0 %v1907, 64
      %v2128 = vpop.permute.xlu0 %2127
      %2129 = vrot.lane.b32.xlu0 %v1908, 64
      %v2130 = vpop.permute.xlu0 %2129
      %2131 = vrot.lane.b32.xlu0 %v1909, 64
      %v2132 = vpop.permute.xlu0 %2131
      %2133 = vrot.lane.b32.xlu0 %v1910, 64
      %v2134 = vpop.permute.xlu0 %2133
      %2135 = vrot.lane.b32.xlu0 %v2071, 64
      %v2136 = vpop.permute.xlu0 %2135
      %2137 = vrot.lane.b32.xlu0 %v2072, 64
      %v2138 = vpop.permute.xlu0 %2137
      %v2171 = vadd.f32 %v2039, %v2076
      %v2172 = vadd.f32 %v2040, %v2078
      %v2173 = vadd.f32 %v2041, %v2080
      %v2174 = vadd.f32 %v2042, %v2082
      %v2175 = vadd.f32 %v2043, %v2084
      %v2176 = vadd.f32 %v2044, %v2086
      %v2177 = vadd.f32 %v2045, %v2088
      %v2178 = vadd.f32 %v2046, %v2090
      %v2179 = vadd.f32 %v2047, %v2092
      %v2180 = vadd.f32 %v2048, %v2094
      %v2181 = vadd.f32 %v2049, %v2096
      %v2182 = vadd.f32 %v2050, %v2098
      %v2183 = vadd.f32 %v2051, %v2100
      %v2184 = vadd.f32 %v2052, %v2102
      %v2185 = vadd.f32 %v2053, %v2104
      %v2186 = vadd.f32 %v2054, %v2106
      %v2187 = vadd.f32 %v2055, %v2108
      %v2188 = vadd.f32 %v2056, %v2110
      %v2189 = vadd.f32 %v2057, %v2112
      %v2190 = vadd.f32 %v2058, %v2114
      %v2191 = vadd.f32 %v2059, %v2116
      %v2192 = vadd.f32 %v2060, %v2118
      %v2193 = vadd.f32 %v2061, %v2120
      %v2194 = vadd.f32 %v2062, %v2122
      %v2195 = vadd.f32 %v2063, %v2124
      %v2196 = vadd.f32 %v2064, %v2126
      %v2197 = vadd.f32 %v2065, %v2128
      %v2198 = vadd.f32 %v2066, %v2130
      %v2199 = vadd.f32 %v2067, %v2132
      %v2200 = vadd.f32 %v2068, %v2134
      %v2201 = vadd.f32 %v2069, %v2136
      %v2202 = vadd.f32 %v2070, %v2138
      %v2203 = vld [vmem:[#allocation2] sm:$0x80]
      %v2204 = vld [vmem:[#allocation2 + $0x300] sm:$0x7f]
      %v2205 = vld [vmem:[#allocation2 + $0x30] sm:$0x80]
      %v2206 = vld [vmem:[#allocation2 + $0x318] sm:$0xff]
      %v2207 = vld [vmem:[#allocation2 + $0x330] sm:$0x7f]
      %2241 = vrot.lane.b32.xlu0 %v2205, 32
      %v2242 = vpop.permute.xlu0 %2241
      %2243 = vrot.lane.b32.xlu0 %v1849, 32
      %v2244 = vpop.permute.xlu0 %2243
      %2245 = vrot.lane.b32.xlu0 %v1850, 32
      %v2246 = vpop.permute.xlu0 %2245
      %2247 = vrot.lane.b32.xlu0 %v1851, 32
      %v2248 = vpop.permute.xlu0 %2247
      %2249 = vrot.lane.b32.xlu0 %v1852, 32
      %v2250 = vpop.permute.xlu0 %2249
      %2251 = vrot.lane.b32.xlu0 %v1853, 32
      %v2252 = vpop.permute.xlu0 %2251
      %2253 = vrot.lane.b32.xlu0 %v1854, 32
      %v2254 = vpop.permute.xlu0 %2253
      %2255 = vrot.lane.b32.xlu0 %v1855, 32
      %v2256 = vpop.permute.xlu0 %2255
      %2257 = vrot.lane.b32.xlu0 %v1856, 32
      %v2258 = vpop.permute.xlu0 %2257
      %2259 = vrot.lane.b32.xlu0 %v1857, 32
      %v2260 = vpop.permute.xlu0 %2259
      %2261 = vrot.lane.b32.xlu0 %v1858, 32
      %v2262 = vpop.permute.xlu0 %2261
      %2263 = vrot.lane.b32.xlu0 %v1859, 32
      %v2264 = vpop.permute.xlu0 %2263
      %2265 = vrot.lane.b32.xlu0 %v1860, 32
      %v2266 = vpop.permute.xlu0 %2265
      %2267 = vrot.lane.b32.xlu0 %v1861, 32
      %v2268 = vpop.permute.xlu0 %2267
      %2269 = vrot.lane.b32.xlu0 %v1862, 32
      %v2270 = vpop.permute.xlu0 %2269
      %2271 = vrot.lane.b32.xlu0 %v1863, 32
      %v2272 = vpop.permute.xlu0 %2271
      %2273 = vrot.lane.b32.xlu0 %v1864, 32
      %v2274 = vpop.permute.xlu0 %2273
      %2275 = vrot.lane.b32.xlu0 %v1865, 32
      %v2276 = vpop.permute.xlu0 %2275
      %2277 = vrot.lane.b32.xlu0 %v1866, 32
      %v2278 = vpop.permute.xlu0 %2277
      %2279 = vrot.lane.b32.xlu0 %v1867, 32
      %v2280 = vpop.permute.xlu0 %2279
      %2281 = vrot.lane.b32.xlu0 %v1868, 32
      %v2282 = vpop.permute.xlu0 %2281
      %2283 = vrot.lane.b32.xlu0 %v1869, 32
      %v2284 = vpop.permute.xlu0 %2283
      %2285 = vrot.lane.b32.xlu0 %v1870, 32
      %v2286 = vpop.permute.xlu0 %2285
      %2287 = vrot.lane.b32.xlu0 %v1871, 32
      %v2288 = vpop.permute.xlu0 %2287
      %2289 = vrot.lane.b32.xlu0 %v1872, 32
      %v2290 = vpop.permute.xlu0 %2289
      %2291 = vrot.lane.b32.xlu0 %v1873, 32
      %v2292 = vpop.permute.xlu0 %2291
      %2293 = vrot.lane.b32.xlu0 %v1874, 32
      %v2294 = vpop.permute.xlu0 %2293
      %2295 = vrot.lane.b32.xlu0 %v1875, 32
      %v2296 = vpop.permute.xlu0 %2295
      %2297 = vrot.lane.b32.xlu0 %v1876, 32
      %v2298 = vpop.permute.xlu0 %2297
      %2299 = vrot.lane.b32.xlu0 %v1877, 32
      %v2300 = vpop.permute.xlu0 %2299
      %2301 = vrot.lane.b32.xlu0 %v1878, 32
      %v2302 = vpop.permute.xlu0 %2301
      %2303 = vrot.lane.b32.xlu0 %v2206, 32
      %v2304 = vpop.permute.xlu0 %2303
      %2305 = vrot.lane.b32.xlu0 %v2207, 32
      %v2306 = vpop.permute.xlu0 %2305
      %v2340 = vadd.f32 %v2203, %v2242
      %v2341 = vadd.f32 %v1847, %v2244
      %v2342 = vadd.f32 %v1848, %v2246
      %v2343 = vadd.f32 %v1849, %v2248
      %v2344 = vadd.f32 %v1850, %v2250
      %v2345 = vadd.f32 %v1851, %v2252
      %v2346 = vadd.f32 %v1852, %v2254
      %v2347 = vadd.f32 %v1853, %v2256
      %v2348 = vadd.f32 %v1854, %v2258
      %v2349 = vadd.f32 %v1855, %v2260
      %v2350 = vadd.f32 %v1856, %v2262
      %v2351 = vadd.f32 %v1857, %v2264
      %v2352 = vadd.f32 %v1858, %v2266
      %v2353 = vadd.f32 %v1859, %v2268
      %v2354 = vadd.f32 %v1860, %v2270
      %v2355 = vadd.f32 %v1861, %v2272
      %v2356 = vadd.f32 %v1862, %v2274
      %v2357 = vadd.f32 %v1863, %v2276
      %v2358 = vadd.f32 %v1864, %v2278
      %v2359 = vadd.f32 %v1865, %v2280
      %v2360 = vadd.f32 %v1866, %v2282
      %v2361 = vadd.f32 %v1867, %v2284
      %v2362 = vadd.f32 %v1868, %v2286
      %v2363 = vadd.f32 %v1869, %v2288
      %v2364 = vadd.f32 %v1870, %v2290
      %v2365 = vadd.f32 %v1871, %v2292
      %v2366 = vadd.f32 %v1872, %v2294
      %v2367 = vadd.f32 %v1873, %v2296
      %v2368 = vadd.f32 %v1874, %v2298
      %v2369 = vadd.f32 %v1875, %v2300
      %v2370 = vadd.f32 %v1876, %v2302
      %v2371 = vadd.f32 %v1877, %v2304
      %v2372 = vadd.f32 %v2204, %v2306
      %v2373 = vld [vmem:[#allocation2 + $0x68] sm:$0x80]
      %v2374 = vld [vmem:[#allocation2 + $0x368] sm:$0x7f]
      %2377 = vrot.lane.b32.xlu0 %v2373, 64
      %v2378 = vpop.permute.xlu0 %2377
      %2379 = vrot.lane.b32.xlu0 %v2374, 64
      %v2380 = vpop.permute.xlu0 %2379
      %v2383 = vadd.f32 %v2340, %v2378
      %v2384 = vadd.f32 %v2341, %v2076
      %v2385 = vadd.f32 %v2342, %v2078
      %v2386 = vadd.f32 %v2343, %v2080
      %v2387 = vadd.f32 %v2344, %v2082
      %v2388 = vadd.f32 %v2345, %v2084
      %v2389 = vadd.f32 %v2346, %v2086
      %v2390 = vadd.f32 %v2347, %v2088
      %v2391 = vadd.f32 %v2348, %v2090
      %v2392 = vadd.f32 %v2349, %v2092
      %v2393 = vadd.f32 %v2350, %v2094
      %v2394 = vadd.f32 %v2351, %v2096
      %v2395 = vadd.f32 %v2352, %v2098
      %v2396 = vadd.f32 %v2353, %v2100
      %v2397 = vadd.f32 %v2354, %v2102
      %v2398 = vadd.f32 %v2355, %v2104
      %v2399 = vadd.f32 %v2356, %v2106
      %v2400 = vadd.f32 %v2357, %v2108
      %v2401 = vadd.f32 %v2358, %v2110
      %v2402 = vadd.f32 %v2359, %v2112
      %v2403 = vadd.f32 %v2360, %v2114
      %v2404 = vadd.f32 %v2361, %v2116
      %v2405 = vadd.f32 %v2362, %v2118
      %v2406 = vadd.f32 %v2363, %v2120
      %v2407 = vadd.f32 %v2364, %v2122
      %v2408 = vadd.f32 %v2365, %v2124
      %v2409 = vadd.f32 %v2366, %v2126
      %v2410 = vadd.f32 %v2367, %v2128
      %v2411 = vadd.f32 %v2368, %v2130
      %v2412 = vadd.f32 %v2369, %v2132
      %v2413 = vadd.f32 %v2370, %v2134
      %v2414 = vadd.f32 %v2371, %v2136
      %v2415 = vadd.f32 %v2372, %v2380
      %v2416 = vld [vmem:[#allocation2 + $0x18] sm:$0xfe]
      %v2417 = vld [vmem:[#allocation2 + $0x318] sm:$0x1]
      %v2418 = vld [vmem:[#allocation2 + $0x50] sm:$0xfe]
      %v2419 = vld [vmem:[#allocation2 + $0x350] sm:$0x1]
      %2422 = vrot.lane.b32.xlu0 %v2418, 32
      %v2423 = vpop.permute.xlu0 %2422
      %2424 = vrot.lane.b32.xlu0 %v2419, 32
      %v2425 = vpop.permute.xlu0 %2424
      %v2428 = vadd.f32 %v2416, %v2423
      %v2429 = vadd.f32 %v2417, %v2425
      %v2430 = vld [vmem:[#allocation2 + $0x88] sm:$0xfe]
      %v2431 = vld [vmem:[#allocation2 + $0xa0] sm:$0xff]
      %v2432 = vld [vmem:[#allocation2 + $0xb8] sm:$0xff]
      %v2433 = vld [vmem:[#allocation2 + $0xd0] sm:$0xff]
      %v2434 = vld [vmem:[#allocation2 + $0xe8] sm:$0xff]
      %v2435 = vld [vmem:[#allocation2 + $0x100] sm:$0xff]
      %v2436 = vld [vmem:[#allocation2 + $0x118] sm:$0xff]
      %v2437 = vld [vmem:[#allocation2 + $0x130] sm:$0xff]
      %v2438 = vld [vmem:[#allocation2 + $0x148] sm:$0xff]
      %v2439 = vld [vmem:[#allocation2 + $0x160] sm:$0xff]
      %v2440 = vld [vmem:[#allocation2 + $0x178] sm:$0xff]
      %v2441 = vld [vmem:[#allocation2 + $0x190] sm:$0xff]
      %v2442 = vld [vmem:[#allocation2 + $0x1a8] sm:$0xff]
      %v2443 = vld [vmem:[#allocation2 + $0x1c0] sm:$0xff]
      %v2444 = vld [vmem:[#allocation2 + $0x1d8] sm:$0xff]
      %v2445 = vld [vmem:[#allocation2 + $0x1f0] sm:$0xff]
      %v2446 = vld [vmem:[#allocation2 + $0x208] sm:$0xff]
      %v2447 = vld [vmem:[#allocation2 + $0x220] sm:$0xff]
      %v2448 = vld [vmem:[#allocation2 + $0x238] sm:$0xff]
      %v2449 = vld [vmem:[#allocation2 + $0x250] sm:$0xff]
      %v2450 = vld [vmem:[#allocation2 + $0x268] sm:$0xff]
      %v2451 = vld [vmem:[#allocation2 + $0x280] sm:$0xff]
      %v2452 = vld [vmem:[#allocation2 + $0x298] sm:$0xff]
      %v2453 = vld [vmem:[#allocation2 + $0x2b0] sm:$0xff]
      %v2454 = vld [vmem:[#allocation2 + $0x2c8] sm:$0xff]
      %v2455 = vld [vmem:[#allocation2 + $0x2e0] sm:$0xff]
      %v2456 = vld [vmem:[#allocation2 + $0x2f8] sm:$0xff]
      %v2457 = vld [vmem:[#allocation2 + $0x310] sm:$0xff]
      %v2458 = vld [vmem:[#allocation2 + $0x328] sm:$0xff]
      %v2459 = vld [vmem:[#allocation2 + $0x340] sm:$0xff]
      %v2460 = vld [vmem:[#allocation2 + $0x358] sm:$0xff]
      %v2461 = vld [vmem:[#allocation2 + $0x370] sm:$0xff]
      %v2462 = vld [vmem:[#allocation2 + $0x388] sm:$0x1]
      %2496 = vrot.lane.b32.xlu0 %v2430, 64
      %v2497 = vpop.permute.xlu0 %2496
      %2498 = vrot.lane.b32.xlu0 %v2431, 64
      %v2499 = vpop.permute.xlu0 %2498
      %2500 = vrot.lane.b32.xlu0 %v2432, 64
      %v2501 = vpop.permute.xlu0 %2500
      %2502 = vrot.lane.b32.xlu0 %v2433, 64
      %v2503 = vpop.permute.xlu0 %2502
      %2504 = vrot.lane.b32.xlu0 %v2434, 64
      %v2505 = vpop.permute.xlu0 %2504
      %2506 = vrot.lane.b32.xlu0 %v2435, 64
      %v2507 = vpop.permute.xlu0 %2506
      %2508 = vrot.lane.b32.xlu0 %v2436, 64
      %v2509 = vpop.permute.xlu0 %2508
      %2510 = vrot.lane.b32.xlu0 %v2437, 64
      %v2511 = vpop.permute.xlu0 %2510
      %2512 = vrot.lane.b32.xlu0 %v2438, 64
      %v2513 = vpop.permute.xlu0 %2512
      %2514 = vrot.lane.b32.xlu0 %v2439, 64
      %v2515 = vpop.permute.xlu0 %2514
      %2516 = vrot.lane.b32.xlu0 %v2440, 64
      %v2517 = vpop.permute.xlu0 %2516
      %2518 = vrot.lane.b32.xlu0 %v2441, 64
      %v2519 = vpop.permute.xlu0 %2518
      %2520 = vrot.lane.b32.xlu0 %v2442, 64
      %v2521 = vpop.permute.xlu0 %2520
      %2522 = vrot.lane.b32.xlu0 %v2443, 64
      %v2523 = vpop.permute.xlu0 %2522
      %2524 = vrot.lane.b32.xlu0 %v2444, 64
      %v2525 = vpop.permute.xlu0 %2524
      %2526 = vrot.lane.b32.xlu0 %v2445, 64
      %v2527 = vpop.permute.xlu0 %2526
      %2528 = vrot.lane.b32.xlu0 %v2446, 64
      %v2529 = vpop.permute.xlu0 %2528
      %2530 = vrot.lane.b32.xlu0 %v2447, 64
      %v2531 = vpop.permute.xlu0 %2530
      %2532 = vrot.lane.b32.xlu0 %v2448, 64
      %v2533 = vpop.permute.xlu0 %2532
      %2534 = vrot.lane.b32.xlu0 %v2449, 64
      %v2535 = vpop.permute.xlu0 %2534
      %2536 = vrot.lane.b32.xlu0 %v2450, 64
      %v2537 = vpop.permute.xlu0 %2536
      %2538 = vrot.lane.b32.xlu0 %v2451, 64
      %v2539 = vpop.permute.xlu0 %2538
      %2540 = vrot.lane.b32.xlu0 %v2452, 64
      %v2541 = vpop.permute.xlu0 %2540
      %2542 = vrot.lane.b32.xlu0 %v2453, 64
      %v2543 = vpop.permute.xlu0 %2542
      %2544 = vrot.lane.b32.xlu0 %v2454, 64
      %v2545 = vpop.permute.xlu0 %2544
      %2546 = vrot.lane.b32.xlu0 %v2455, 64
      %v2547 = vpop.permute.xlu0 %2546
      %2548 = vrot.lane.b32.xlu0 %v2456, 64
      %v2549 = vpop.permute.xlu0 %2548
      %2550 = vrot.lane.b32.xlu0 %v2457, 64
      %v2551 = vpop.permute.xlu0 %2550
      %2552 = vrot.lane.b32.xlu0 %v2458, 64
      %v2553 = vpop.permute.xlu0 %2552
      %2554 = vrot.lane.b32.xlu0 %v2459, 64
      %v2555 = vpop.permute.xlu0 %2554
      %2556 = vrot.lane.b32.xlu0 %v2460, 64
      %v2557 = vpop.permute.xlu0 %2556
      %2558 = vrot.lane.b32.xlu0 %v2461, 64
      %v2559 = vpop.permute.xlu0 %2558
      %2560 = vrot.lane.b32.xlu0 %v2462, 64
      %v2561 = vpop.permute.xlu0 %2560
      %v2595 = vadd.f32 %v2428, %v2497
      %v2596 = vadd.f32 %v2040, %v2499
      %v2597 = vadd.f32 %v2041, %v2501
      %v2598 = vadd.f32 %v2042, %v2503
      %v2599 = vadd.f32 %v2043, %v2505
      %v2600 = vadd.f32 %v2044, %v2507
      %v2601 = vadd.f32 %v2045, %v2509
      %v2602 = vadd.f32 %v2046, %v2511
      %v2603 = vadd.f32 %v2047, %v2513
      %v2604 = vadd.f32 %v2048, %v2515
      %v2605 = vadd.f32 %v2049, %v2517
      %v2606 = vadd.f32 %v2050, %v2519
      %v2607 = vadd.f32 %v2051, %v2521
      %v2608 = vadd.f32 %v2052, %v2523
      %v2609 = vadd.f32 %v2053, %v2525
      %v2610 = vadd.f32 %v2054, %v2527
      %v2611 = vadd.f32 %v2055, %v2529
      %v2612 = vadd.f32 %v2056, %v2531
      %v2613 = vadd.f32 %v2057, %v2533
      %v2614 = vadd.f32 %v2058, %v2535
      %v2615 = vadd.f32 %v2059, %v2537
      %v2616 = vadd.f32 %v2060, %v2539
      %v2617 = vadd.f32 %v2061, %v2541
      %v2618 = vadd.f32 %v2062, %v2543
      %v2619 = vadd.f32 %v2063, %v2545
      %v2620 = vadd.f32 %v2064, %v2547
      %v2621 = vadd.f32 %v2065, %v2549
      %v2622 = vadd.f32 %v2066, %v2551
      %v2623 = vadd.f32 %v2067, %v2553
      %v2624 = vadd.f32 %v2068, %v2555
      %v2625 = vadd.f32 %v2069, %v2557
      %v2626 = vadd.f32 %v2070, %v2559
      %v2627 = vadd.f32 %v2429, %v2561
      %vm2660 = vcmask 1046528
      %v2661 = vrot.slane %v975, 1
      %v2662 = vrot.slane %v976, 1
      %v2663 = vsel %vm2660, %v2661, %v2662
      %v2664 = vrot.slane %v977, 1
      %v2665 = vsel %vm2660, %v2662, %v2664
      %v2666 = vrot.slane %v978, 1
      %v2667 = vsel %vm2660, %v2664, %v2666
      %v2668 = vrot.slane %v979, 1
      %v2669 = vsel %vm2660, %v2666, %v2668
      %v2670 = vrot.slane %v980, 1
      %v2671 = vsel %vm2660, %v2668, %v2670
      %v2672 = vrot.slane %v981, 1
      %v2673 = vsel %vm2660, %v2670, %v2672
      %v2674 = vrot.slane %v982, 1
      %v2675 = vsel %vm2660, %v2672, %v2674
      %v2676 = vrot.slane %v983, 1
      %v2677 = vsel %vm2660, %v2674, %v2676
      %v2678 = vrot.slane %v984, 1
      %v2679 = vsel %vm2660, %v2676, %v2678
      %v2680 = vrot.slane %v985, 1
      %v2681 = vsel %vm2660, %v2678, %v2680
      %v2682 = vrot.slane %v986, 1
      %v2683 = vsel %vm2660, %v2680, %v2682
      %v2684 = vrot.slane %v987, 1
      %v2685 = vsel %vm2660, %v2682, %v2684
      %v2686 = vrot.slane %v988, 1
      %v2687 = vsel %vm2660, %v2684, %v2686
      %v2688 = vrot.slane %v989, 1
      %v2689 = vsel %vm2660, %v2686, %v2688
      %v2690 = vrot.slane %v990, 1
      %v2691 = vsel %vm2660, %v2688, %v2690
      %v2692 = vrot.slane %v991, 1
      %v2693 = vsel %vm2660, %v2690, %v2692
      %v2694 = vrot.slane %v992, 1
      %v2695 = vsel %vm2660, %v2692, %v2694
      %v2696 = vrot.slane %v993, 1
      %v2697 = vsel %vm2660, %v2694, %v2696
      %v2698 = vrot.slane %v994, 1
      %v2699 = vsel %vm2660, %v2696, %v2698
      %v2700 = vrot.slane %v995, 1
      %v2701 = vsel %vm2660, %v2698, %v2700
      %v2702 = vrot.slane %v996, 1
      %v2703 = vsel %vm2660, %v2700, %v2702
      %v2704 = vrot.slane %v997, 1
      %v2705 = vsel %vm2660, %v2702, %v2704
      %v2706 = vrot.slane %v998, 1
      %v2707 = vsel %vm2660, %v2704, %v2706
      %v2708 = vrot.slane %v999, 1
      %v2709 = vsel %vm2660, %v2706, %v2708
      %v2710 = vrot.slane %v1000, 1
      %v2711 = vsel %vm2660, %v2708, %v2710
      %v2712 = vrot.slane %v1001, 1
      %v2713 = vsel %vm2660, %v2710, %v2712
      %v2714 = vrot.slane %v1002, 1
      %v2715 = vsel %vm2660, %v2712, %v2714
      %v2716 = vrot.slane %v1003, 1
      %v2717 = vsel %vm2660, %v2714, %v2716
      %v2718 = vrot.slane %v1004, 1
      %v2719 = vsel %vm2660, %v2716, %v2718
      %v2720 = vrot.slane %v1005, 1
      %v2721 = vsel %vm2660, %v2718, %v2720
      %v2722 = vrot.slane %v1006, 1
      %v2723 = vsel %vm2660, %v2720, %v2722
      %v2757 = vmul.f32 %v2383, %v2661
      %v2758 = vmul.f32 %v2384, %v2663
      %v2759 = vmul.f32 %v2385, %v2665
      %v2760 = vmul.f32 %v2386, %v2667
      %v2761 = vmul.f32 %v2387, %v2669
      %v2762 = vmul.f32 %v2388, %v2671
      %v2763 = vmul.f32 %v2389, %v2673
      %v2764 = vmul.f32 %v2390, %v2675
      %v2765 = vmul.f32 %v2391, %v2677
      %v2766 = vmul.f32 %v2392, %v2679
      %v2767 = vmul.f32 %v2393, %v2681
      %v2768 = vmul.f32 %v2394, %v2683
      %v2769 = vmul.f32 %v2395, %v2685
      %v2770 = vmul.f32 %v2396, %v2687
      %v2771 = vmul.f32 %v2397, %v2689
      %v2772 = vmul.f32 %v2398, %v2691
      %v2773 = vmul.f32 %v2399, %v2693
      %v2774 = vmul.f32 %v2400, %v2695
      %v2775 = vmul.f32 %v2401, %v2697
      %v2776 = vmul.f32 %v2402, %v2699
      %v2777 = vmul.f32 %v2403, %v2701
      %v2778 = vmul.f32 %v2404, %v2703
      %v2779 = vmul.f32 %v2405, %v2705
      %v2780 = vmul.f32 %v2406, %v2707
      %v2781 = vmul.f32 %v2407, %v2709
      %v2782 = vmul.f32 %v2408, %v2711
      %v2783 = vmul.f32 %v2409, %v2713
      %v2784 = vmul.f32 %v2410, %v2715
      %v2785 = vmul.f32 %v2411, %v2717
      %v2786 = vmul.f32 %v2412, %v2719
      %v2787 = vmul.f32 %v2413, %v2721
      %v2788 = vmul.f32 %v2414, %v2723
      %v2789 = vmul.f32 %v2415, %v2722
      %vm2823 = vcmask 1040384
      %v2824 = vrot.slane %v2757, 7
      %v2825 = vrot.slane %v2758, 7
      %v2826 = vsel %vm2823, %v2824, %v2825
      %v2827 = vrot.slane %v2759, 7
      %v2828 = vsel %vm2823, %v2825, %v2827
      %v2829 = vrot.slane %v2760, 7
      %v2830 = vsel %vm2823, %v2827, %v2829
      %v2831 = vrot.slane %v2761, 7
      %v2832 = vsel %vm2823, %v2829, %v2831
      %v2833 = vrot.slane %v2762, 7
      %v2834 = vsel %vm2823, %v2831, %v2833
      %v2835 = vrot.slane %v2763, 7
      %v2836 = vsel %vm2823, %v2833, %v2835
      %v2837 = vrot.slane %v2764, 7
      %v2838 = vsel %vm2823, %v2835, %v2837
      %v2839 = vrot.slane %v2765, 7
      %v2840 = vsel %vm2823, %v2837, %v2839
      %v2841 = vrot.slane %v2766, 7
      %v2842 = vsel %vm2823, %v2839, %v2841
      %v2843 = vrot.slane %v2767, 7
      %v2844 = vsel %vm2823, %v2841, %v2843
      %v2845 = vrot.slane %v2768, 7
      %v2846 = vsel %vm2823, %v2843, %v2845
      %v2847 = vrot.slane %v2769, 7
      %v2848 = vsel %vm2823, %v2845, %v2847
      %v2849 = vrot.slane %v2770, 7
      %v2850 = vsel %vm2823, %v2847, %v2849
      %v2851 = vrot.slane %v2771, 7
      %v2852 = vsel %vm2823, %v2849, %v2851
      %v2853 = vrot.slane %v2772, 7
      %v2854 = vsel %vm2823, %v2851, %v2853
      %v2855 = vrot.slane %v2773, 7
      %v2856 = vsel %vm2823, %v2853, %v2855
      %v2857 = vrot.slane %v2774, 7
      %v2858 = vsel %vm2823, %v2855, %v2857
      %v2859 = vrot.slane %v2775, 7
      %v2860 = vsel %vm2823, %v2857, %v2859
      %v2861 = vrot.slane %v2776, 7
      %v2862 = vsel %vm2823, %v2859, %v2861
      %v2863 = vrot.slane %v2777, 7
      %v2864 = vsel %vm2823, %v2861, %v2863
      %v2865 = vrot.slane %v2778, 7
      %v2866 = vsel %vm2823, %v2863, %v2865
      %v2867 = vrot.slane %v2779, 7
      %v2868 = vsel %vm2823, %v2865, %v2867
      %v2869 = vrot.slane %v2780, 7
      %v2870 = vsel %vm2823, %v2867, %v2869
      %v2871 = vrot.slane %v2781, 7
      %v2872 = vsel %vm2823, %v2869, %v2871
      %v2873 = vrot.slane %v2782, 7
      %v2874 = vsel %vm2823, %v2871, %v2873
      %v2875 = vrot.slane %v2783, 7
      %v2876 = vsel %vm2823, %v2873, %v2875
      %v2877 = vrot.slane %v2784, 7
      %v2878 = vsel %vm2823, %v2875, %v2877
      %v2879 = vrot.slane %v2785, 7
      %v2880 = vsel %vm2823, %v2877, %v2879
      %v2881 = vrot.slane %v2786, 7
      %v2882 = vsel %vm2823, %v2879, %v2881
      %v2883 = vrot.slane %v2787, 7
      %v2884 = vsel %vm2823, %v2881, %v2883
      %v2885 = vrot.slane %v2788, 7
      %v2886 = vsel %vm2823, %v2883, %v2885
      %v2887 = vrot.slane %v2789, 7
      %v2888 = vsel %vm2823, %v2885, %v2887
      %2889 = vrot.lane.b32.xlu0 %v2826, 32
      %v2890 = vpop.permute.xlu0 %2889
      %2891 = vrot.lane.b32.xlu0 %v2828, 32
      %v2892 = vpop.permute.xlu0 %2891
      %2893 = vrot.lane.b32.xlu0 %v2830, 32
      %v2894 = vpop.permute.xlu0 %2893
      %2895 = vrot.lane.b32.xlu0 %v2832, 32
      %v2896 = vpop.permute.xlu0 %2895
      %2897 = vrot.lane.b32.xlu0 %v2834, 32
      %v2898 = vpop.permute.xlu0 %2897
      %2899 = vrot.lane.b32.xlu0 %v2836, 32
      %v2900 = vpop.permute.xlu0 %2899
      %2901 = vrot.lane.b32.xlu0 %v2838, 32
      %v2902 = vpop.permute.xlu0 %2901
      %2903 = vrot.lane.b32.xlu0 %v2840, 32
      %v2904 = vpop.permute.xlu0 %2903
      %2905 = vrot.lane.b32.xlu0 %v2842, 32
      %v2906 = vpop.permute.xlu0 %2905
      %2907 = vrot.lane.b32.xlu0 %v2844, 32
      %v2908 = vpop.permute.xlu0 %2907
      %2909 = vrot.lane.b32.xlu0 %v2846, 32
      %v2910 = vpop.permute.xlu0 %2909
      %2911 = vrot.lane.b32.xlu0 %v2848, 32
      %v2912 = vpop.permute.xlu0 %2911
      %2913 = vrot.lane.b32.xlu0 %v2850, 32
      %v2914 = vpop.permute.xlu0 %2913
      %2915 = vrot.lane.b32.xlu0 %v2852, 32
      %v2916 = vpop.permute.xlu0 %2915
      %2917 = vrot.lane.b32.xlu0 %v2854, 32
      %v2918 = vpop.permute.xlu0 %2917
      %2919 = vrot.lane.b32.xlu0 %v2856, 32
      %v2920 = vpop.permute.xlu0 %2919
      %2921 = vrot.lane.b32.xlu0 %v2858, 32
      %v2922 = vpop.permute.xlu0 %2921
      %2923 = vrot.lane.b32.xlu0 %v2860, 32
      %v2924 = vpop.permute.xlu0 %2923
      %2925 = vrot.lane.b32.xlu0 %v2862, 32
      %v2926 = vpop.permute.xlu0 %2925
      %2927 = vrot.lane.b32.xlu0 %v2864, 32
      %v2928 = vpop.permute.xlu0 %2927
      %2929 = vrot.lane.b32.xlu0 %v2866, 32
      %v2930 = vpop.permute.xlu0 %2929
      %2931 = vrot.lane.b32.xlu0 %v2868, 32
      %v2932 = vpop.permute.xlu0 %2931
      %2933 = vrot.lane.b32.xlu0 %v2870, 32
      %v2934 = vpop.permute.xlu0 %2933
      %2935 = vrot.lane.b32.xlu0 %v2872, 32
      %v2936 = vpop.permute.xlu0 %2935
      %2937 = vrot.lane.b32.xlu0 %v2874, 32
      %v2938 = vpop.permute.xlu0 %2937
      %2939 = vrot.lane.b32.xlu0 %v2876, 32
      %v2940 = vpop.permute.xlu0 %2939
      %2941 = vrot.lane.b32.xlu0 %v2878, 32
      %v2942 = vpop.permute.xlu0 %2941
      %2943 = vrot.lane.b32.xlu0 %v2880, 32
      %v2944 = vpop.permute.xlu0 %2943
      %2945 = vrot.lane.b32.xlu0 %v2882, 32
      %v2946 = vpop.permute.xlu0 %2945
      %2947 = vrot.lane.b32.xlu0 %v2884, 32
      %v2948 = vpop.permute.xlu0 %2947
      %2949 = vrot.lane.b32.xlu0 %v2886, 32
      %v2950 = vpop.permute.xlu0 %2949
      %2951 = vrot.lane.b32.xlu0 %v2888, 32
      %v2952 = vpop.permute.xlu0 %2951
      %v2985 = vadd.f32 %v2171, %v2890
      %v2986 = vadd.f32 %v2172, %v2892
      %v2987 = vadd.f32 %v2173, %v2894
      %v2988 = vadd.f32 %v2174, %v2896
      %v2989 = vadd.f32 %v2175, %v2898
      %v2990 = vadd.f32 %v2176, %v2900
      %v2991 = vadd.f32 %v2177, %v2902
      %v2992 = vadd.f32 %v2178, %v2904
      %v2993 = vadd.f32 %v2179, %v2906
      %v2994 = vadd.f32 %v2180, %v2908
      %v2995 = vadd.f32 %v2181, %v2910
      %v2996 = vadd.f32 %v2182, %v2912
      %v2997 = vadd.f32 %v2183, %v2914
      %v2998 = vadd.f32 %v2184, %v2916
      %v2999 = vadd.f32 %v2185, %v2918
      %v3000 = vadd.f32 %v2186, %v2920
      %v3001 = vadd.f32 %v2187, %v2922
      %v3002 = vadd.f32 %v2188, %v2924
      %v3003 = vadd.f32 %v2189, %v2926
      %v3004 = vadd.f32 %v2190, %v2928
      %v3005 = vadd.f32 %v2191, %v2930
      %v3006 = vadd.f32 %v2192, %v2932
      %v3007 = vadd.f32 %v2193, %v2934
      %v3008 = vadd.f32 %v2194, %v2936
      %v3009 = vadd.f32 %v2195, %v2938
      %v3010 = vadd.f32 %v2196, %v2940
      %v3011 = vadd.f32 %v2197, %v2942
      %v3012 = vadd.f32 %v2198, %v2944
      %v3013 = vadd.f32 %v2199, %v2946
      %v3014 = vadd.f32 %v2200, %v2948
      %v3015 = vadd.f32 %v2201, %v2950
      %v3016 = vadd.f32 %v2202, %v2952
      %v3049 = vrot.slane %v1071, 7
      %v3050 = vrot.slane %v1072, 7
      %v3051 = vsel %vm2823, %v3049, %v3050
      %v3052 = vrot.slane %v1073, 7
      %v3053 = vsel %vm2823, %v3050, %v3052
      %v3054 = vrot.slane %v1074, 7
      %v3055 = vsel %vm2823, %v3052, %v3054
      %v3056 = vrot.slane %v1075, 7
      %v3057 = vsel %vm2823, %v3054, %v3056
      %v3058 = vrot.slane %v1076, 7
      %v3059 = vsel %vm2823, %v3056, %v3058
      %v3060 = vrot.slane %v1077, 7
      %v3061 = vsel %vm2823, %v3058, %v3060
      %v3062 = vrot.slane %v1078, 7
      %v3063 = vsel %vm2823, %v3060, %v3062
      %v3064 = vrot.slane %v1079, 7
      %v3065 = vsel %vm2823, %v3062, %v3064
      %v3066 = vrot.slane %v1080, 7
      %v3067 = vsel %vm2823, %v3064, %v3066
      %v3068 = vrot.slane %v1081, 7
      %v3069 = vsel %vm2823, %v3066, %v3068
      %v3070 = vrot.slane %v1082, 7
      %v3071 = vsel %vm2823, %v3068, %v3070
      %v3072 = vrot.slane %v1083, 7
      %v3073 = vsel %vm2823, %v3070, %v3072
      %v3074 = vrot.slane %v1084, 7
      %v3075 = vsel %vm2823, %v3072, %v3074
      %v3076 = vrot.slane %v1085, 7
      %v3077 = vsel %vm2823, %v3074, %v3076
      %v3078 = vrot.slane %v1086, 7
      %v3079 = vsel %vm2823, %v3076, %v3078
      %v3080 = vrot.slane %v1087, 7
      %v3081 = vsel %vm2823, %v3078, %v3080
      %v3082 = vrot.slane %v1088, 7
      %v3083 = vsel %vm2823, %v3080, %v3082
      %v3084 = vrot.slane %v1089, 7
      %v3085 = vsel %vm2823, %v3082, %v3084
      %v3086 = vrot.slane %v1090, 7
      %v3087 = vsel %vm2823, %v3084, %v3086
      %v3088 = vrot.slane %v1091, 7
      %v3089 = vsel %vm2823, %v3086, %v3088
      %v3090 = vrot.slane %v1092, 7
      %v3091 = vsel %vm2823, %v3088, %v3090
      %v3092 = vrot.slane %v1093, 7
      %v3093 = vsel %vm2823, %v3090, %v3092
      %v3094 = vrot.slane %v1094, 7
      %v3095 = vsel %vm2823, %v3092, %v3094
      %v3096 = vrot.slane %v1095, 7
      %v3097 = vsel %vm2823, %v3094, %v3096
      %v3098 = vrot.slane %v1096, 7
      %v3099 = vsel %vm2823, %v3096, %v3098
      %v3100 = vrot.slane %v1097, 7
      %v3101 = vsel %vm2823, %v3098, %v3100
      %v3102 = vrot.slane %v1098, 7
      %v3103 = vsel %vm2823, %v3100, %v3102
      %v3104 = vrot.slane %v1099, 7
      %v3105 = vsel %vm2823, %v3102, %v3104
      %v3106 = vrot.slane %v1100, 7
      %v3107 = vsel %vm2823, %v3104, %v3106
      %v3108 = vrot.slane %v1101, 7
      %v3109 = vsel %vm2823, %v3106, %v3108
      %v3110 = vrot.slane %v1102, 7
      %v3111 = vsel %vm2823, %v3108, %v3110
      %v3145 = vmul.f32 %v2595, %v3049
      %v3146 = vmul.f32 %v2596, %v3051
      %v3147 = vmul.f32 %v2597, %v3053
      %v3148 = vmul.f32 %v2598, %v3055
      %v3149 = vmul.f32 %v2599, %v3057
      %v3150 = vmul.f32 %v2600, %v3059
      %v3151 = vmul.f32 %v2601, %v3061
      %v3152 = vmul.f32 %v2602, %v3063
      %v3153 = vmul.f32 %v2603, %v3065
      %v3154 = vmul.f32 %v2604, %v3067
      %v3155 = vmul.f32 %v2605, %v3069
      %v3156 = vmul.f32 %v2606, %v3071
      %v3157 = vmul.f32 %v2607, %v3073
      %v3158 = vmul.f32 %v2608, %v3075
      %v3159 = vmul.f32 %v2609, %v3077
      %v3160 = vmul.f32 %v2610, %v3079
      %v3161 = vmul.f32 %v2611, %v3081
      %v3162 = vmul.f32 %v2612, %v3083
      %v3163 = vmul.f32 %v2613, %v3085
      %v3164 = vmul.f32 %v2614, %v3087
      %v3165 = vmul.f32 %v2615, %v3089
      %v3166 = vmul.f32 %v2616, %v3091
      %v3167 = vmul.f32 %v2617, %v3093
      %v3168 = vmul.f32 %v2618, %v3095
      %v3169 = vmul.f32 %v2619, %v3097
      %v3170 = vmul.f32 %v2620, %v3099
      %v3171 = vmul.f32 %v2621, %v3101
      %v3172 = vmul.f32 %v2622, %v3103
      %v3173 = vmul.f32 %v2623, %v3105
      %v3174 = vmul.f32 %v2624, %v3107
      %v3175 = vmul.f32 %v2625, %v3109
      %v3176 = vmul.f32 %v2626, %v3111
      %v3177 = vmul.f32 %v2627, %v3110
      %v3211 = vrot.slane %v3145, 1
      %v3212 = vrot.slane %v3146, 1
      %v3213 = vsel %vm2660, %v3211, %v3212
      %v3214 = vrot.slane %v3147, 1
      %v3215 = vsel %vm2660, %v3212, %v3214
      %v3216 = vrot.slane %v3148, 1
      %v3217 = vsel %vm2660, %v3214, %v3216
      %v3218 = vrot.slane %v3149, 1
      %v3219 = vsel %vm2660, %v3216, %v3218
      %v3220 = vrot.slane %v3150, 1
      %v3221 = vsel %vm2660, %v3218, %v3220
      %v3222 = vrot.slane %v3151, 1
      %v3223 = vsel %vm2660, %v3220, %v3222
      %v3224 = vrot.slane %v3152, 1
      %v3225 = vsel %vm2660, %v3222, %v3224
      %v3226 = vrot.slane %v3153, 1
      %v3227 = vsel %vm2660, %v3224, %v3226
      %v3228 = vrot.slane %v3154, 1
      %v3229 = vsel %vm2660, %v3226, %v3228
      %v3230 = vrot.slane %v3155, 1
      %v3231 = vsel %vm2660, %v3228, %v3230
      %v3232 = vrot.slane %v3156, 1
      %v3233 = vsel %vm2660, %v3230, %v3232
      %v3234 = vrot.slane %v3157, 1
      %v3235 = vsel %vm2660, %v3232, %v3234
      %v3236 = vrot.slane %v3158, 1
      %v3237 = vsel %vm2660, %v3234, %v3236
      %v3238 = vrot.slane %v3159, 1
      %v3239 = vsel %vm2660, %v3236, %v3238
      %v3240 = vrot.slane %v3160, 1
      %v3241 = vsel %vm2660, %v3238, %v3240
      %v3242 = vrot.slane %v3161, 1
      %v3243 = vsel %vm2660, %v3240, %v3242
      %v3244 = vrot.slane %v3162, 1
      %v3245 = vsel %vm2660, %v3242, %v3244
      %v3246 = vrot.slane %v3163, 1
      %v3247 = vsel %vm2660, %v3244, %v3246
      %v3248 = vrot.slane %v3164, 1
      %v3249 = vsel %vm2660, %v3246, %v3248
      %v3250 = vrot.slane %v3165, 1
      %v3251 = vsel %vm2660, %v3248, %v3250
      %v3252 = vrot.slane %v3166, 1
      %v3253 = vsel %vm2660, %v3250, %v3252
      %v3254 = vrot.slane %v3167, 1
      %v3255 = vsel %vm2660, %v3252, %v3254
      %v3256 = vrot.slane %v3168, 1
      %v3257 = vsel %vm2660, %v3254, %v3256
      %v3258 = vrot.slane %v3169, 1
      %v3259 = vsel %vm2660, %v3256, %v3258
      %v3260 = vrot.slane %v3170, 1
      %v3261 = vsel %vm2660, %v3258, %v3260
      %v3262 = vrot.slane %v3171, 1
      %v3263 = vsel %vm2660, %v3260, %v3262
      %v3264 = vrot.slane %v3172, 1
      %v3265 = vsel %vm2660, %v3262, %v3264
      %v3266 = vrot.slane %v3173, 1
      %v3267 = vsel %vm2660, %v3264, %v3266
      %v3268 = vrot.slane %v3174, 1
      %v3269 = vsel %vm2660, %v3266, %v3268
      %v3270 = vrot.slane %v3175, 1
      %v3271 = vsel %vm2660, %v3268, %v3270
      %v3272 = vrot.slane %v3176, 1
      %v3273 = vsel %vm2660, %v3270, %v3272
      %v3274 = vrot.slane %v3177, 1
      %v3275 = vsel %vm2660, %v3272, %v3274
      %3276 = vrot.lane.b32.xlu0 %v3213, 96
      %v3277 = vpop.permute.xlu0 %3276
      %3278 = vrot.lane.b32.xlu0 %v3215, 96
      %v3279 = vpop.permute.xlu0 %3278
      %3280 = vrot.lane.b32.xlu0 %v3217, 96
      %v3281 = vpop.permute.xlu0 %3280
      %3282 = vrot.lane.b32.xlu0 %v3219, 96
      %v3283 = vpop.permute.xlu0 %3282
      %3284 = vrot.lane.b32.xlu0 %v3221, 96
      %v3285 = vpop.permute.xlu0 %3284
      %3286 = vrot.lane.b32.xlu0 %v3223, 96
      %v3287 = vpop.permute.xlu0 %3286
      %3288 = vrot.lane.b32.xlu0 %v3225, 96
      %v3289 = vpop.permute.xlu0 %3288
      %3290 = vrot.lane.b32.xlu0 %v3227, 96
      %v3291 = vpop.permute.xlu0 %3290
      %3292 = vrot.lane.b32.xlu0 %v3229, 96
      %v3293 = vpop.permute.xlu0 %3292
      %3294 = vrot.lane.b32.xlu0 %v3231, 96
      %v3295 = vpop.permute.xlu0 %3294
      %3296 = vrot.lane.b32.xlu0 %v3233, 96
      %v3297 = vpop.permute.xlu0 %3296
      %3298 = vrot.lane.b32.xlu0 %v3235, 96
      %v3299 = vpop.permute.xlu0 %3298
      %3300 = vrot.lane.b32.xlu0 %v3237, 96
      %v3301 = vpop.permute.xlu0 %3300
      %3302 = vrot.lane.b32.xlu0 %v3239, 96
      %v3303 = vpop.permute.xlu0 %3302
      %3304 = vrot.lane.b32.xlu0 %v3241, 96
      %v3305 = vpop.permute.xlu0 %3304
      %3306 = vrot.lane.b32.xlu0 %v3243, 96
      %v3307 = vpop.permute.xlu0 %3306
      %3308 = vrot.lane.b32.xlu0 %v3245, 96
      %v3309 = vpop.permute.xlu0 %3308
      %3310 = vrot.lane.b32.xlu0 %v3247, 96
      %v3311 = vpop.permute.xlu0 %3310
      %3312 = vrot.lane.b32.xlu0 %v3249, 96
      %v3313 = vpop.permute.xlu0 %3312
      %3314 = vrot.lane.b32.xlu0 %v3251, 96
      %v3315 = vpop.permute.xlu0 %3314
      %3316 = vrot.lane.b32.xlu0 %v3253, 96
      %v3317 = vpop.permute.xlu0 %3316
      %3318 = vrot.lane.b32.xlu0 %v3255, 96
      %v3319 = vpop.permute.xlu0 %3318
      %3320 = vrot.lane.b32.xlu0 %v3257, 96
      %v3321 = vpop.permute.xlu0 %3320
      %3322 = vrot.lane.b32.xlu0 %v3259, 96
      %v3323 = vpop.permute.xlu0 %3322
      %3324 = vrot.lane.b32.xlu0 %v3261, 96
      %v3325 = vpop.permute.xlu0 %3324
      %3326 = vrot.lane.b32.xlu0 %v3263, 96
      %v3327 = vpop.permute.xlu0 %3326
      %3328 = vrot.lane.b32.xlu0 %v3265, 96
      %v3329 = vpop.permute.xlu0 %3328
      %3330 = vrot.lane.b32.xlu0 %v3267, 96
      %v3331 = vpop.permute.xlu0 %3330
      %3332 = vrot.lane.b32.xlu0 %v3269, 96
      %v3333 = vpop.permute.xlu0 %3332
      %3334 = vrot.lane.b32.xlu0 %v3271, 96
      %v3335 = vpop.permute.xlu0 %3334
      %3336 = vrot.lane.b32.xlu0 %v3273, 96
      %v3337 = vpop.permute.xlu0 %3336
      %3338 = vrot.lane.b32.xlu0 %v3275, 96
      %v3339 = vpop.permute.xlu0 %3338
      %v3372 = vadd.f32 %v2985, %v3277
      %v3373 = vadd.f32 %v2986, %v3279
      %v3374 = vadd.f32 %v2987, %v3281
      %v3375 = vadd.f32 %v2988, %v3283
      %v3376 = vadd.f32 %v2989, %v3285
      %v3377 = vadd.f32 %v2990, %v3287
      %v3378 = vadd.f32 %v2991, %v3289
      %v3379 = vadd.f32 %v2992, %v3291
      %v3380 = vadd.f32 %v2993, %v3293
      %v3381 = vadd.f32 %v2994, %v3295
      %v3382 = vadd.f32 %v2995, %v3297
      %v3383 = vadd.f32 %v2996, %v3299
      %v3384 = vadd.f32 %v2997, %v3301
      %v3385 = vadd.f32 %v2998, %v3303
      %v3386 = vadd.f32 %v2999, %v3305
      %v3387 = vadd.f32 %v3000, %v3307
      %v3388 = vadd.f32 %v3001, %v3309
      %v3389 = vadd.f32 %v3002, %v3311
      %v3390 = vadd.f32 %v3003, %v3313
      %v3391 = vadd.f32 %v3004, %v3315
      %v3392 = vadd.f32 %v3005, %v3317
      %v3393 = vadd.f32 %v3006, %v3319
      %v3394 = vadd.f32 %v3007, %v3321
      %v3395 = vadd.f32 %v3008, %v3323
      %v3396 = vadd.f32 %v3009, %v3325
      %v3397 = vadd.f32 %v3010, %v3327
      %v3398 = vadd.f32 %v3011, %v3329
      %v3399 = vadd.f32 %v3012, %v3331
      %v3400 = vadd.f32 %v3013, %v3333
      %v3401 = vadd.f32 %v3014, %v3335
      %v3402 = vadd.f32 %v3015, %v3337
      %v3403 = vadd.f32 %v3016, %v3339
      %v3404 = vld [vmem:[%s4] sm:$0x1]
      %v3406 = vlaneseq
      %v3407 = vshrl.u32 %v3406, 7
      %v3408 = vsub.s32 0, %v3407
      %v3409 = vrot.slane %v3404, %v3408
      %3410 = vrot.lane.b32.xlu0 %v3409, 32
      %v3411 = vpop.permute.xlu0 %3410
      %v3413 = vadd.f32 %v3372, %v3411
      %v3414 = vadd.f32 %v3373, %v3411
      %v3415 = vadd.f32 %v3374, %v3411
      %v3416 = vadd.f32 %v3375, %v3411
      %v3417 = vadd.f32 %v3376, %v3411
      %v3418 = vadd.f32 %v3377, %v3411
      %v3419 = vadd.f32 %v3378, %v3411
      %v3420 = vadd.f32 %v3379, %v3411
      %v3421 = vadd.f32 %v3380, %v3411
      %v3422 = vadd.f32 %v3381, %v3411
      %v3423 = vadd.f32 %v3382, %v3411
      %v3424 = vadd.f32 %v3383, %v3411
      %v3425 = vadd.f32 %v3384, %v3411
      %v3426 = vadd.f32 %v3385, %v3411
      %v3427 = vadd.f32 %v3386, %v3411
      %v3428 = vadd.f32 %v3387, %v3411
      %v3429 = vadd.f32 %v3388, %v3411
      %v3430 = vadd.f32 %v3389, %v3411
      %v3431 = vadd.f32 %v3390, %v3411
      %v3432 = vadd.f32 %v3391, %v3411
      %v3433 = vadd.f32 %v3392, %v3411
      %v3434 = vadd.f32 %v3393, %v3411
      %v3435 = vadd.f32 %v3394, %v3411
      %v3436 = vadd.f32 %v3395, %v3411
      %v3437 = vadd.f32 %v3396, %v3411
      %v3438 = vadd.f32 %v3397, %v3411
      %v3439 = vadd.f32 %v3398, %v3411
      %v3440 = vadd.f32 %v3399, %v3411
      %v3441 = vadd.f32 %v3400, %v3411
      %v3442 = vadd.f32 %v3401, %v3411
      %v3443 = vadd.f32 %v3402, %v3411
      %v3444 = vadd.f32 %v3403, %v3411
      %vm3445 = vcmask 523520
      %v3446 = vsel %vm3445, %v3413, 0.0
      %v3447 = vsel %vm3445, %v3414, 0.0
      %v3448 = vadd.f32 %v3446, %v3447
      %v3449 = vsel %vm3445, %v3415, 0.0
      %v3450 = vadd.f32 %v3448, %v3449
      %v3451 = vsel %vm3445, %v3416, 0.0
      %v3452 = vadd.f32 %v3450, %v3451
      %v3453 = vsel %vm3445, %v3417, 0.0
      %v3454 = vadd.f32 %v3452, %v3453
      %v3455 = vsel %vm3445, %v3418, 0.0
      %v3456 = vadd.f32 %v3454, %v3455
      %v3457 = vsel %vm3445, %v3419, 0.0
      %v3458 = vadd.f32 %v3456, %v3457
      %v3459 = vsel %vm3445, %v3420, 0.0
      %v3460 = vadd.f32 %v3458, %v3459
      %v3461 = vsel %vm3445, %v3421, 0.0
      %v3462 = vadd.f32 %v3460, %v3461
      %v3463 = vsel %vm3445, %v3422, 0.0
      %v3464 = vadd.f32 %v3462, %v3463
      %v3465 = vsel %vm3445, %v3423, 0.0
      %v3466 = vadd.f32 %v3464, %v3465
      %v3467 = vsel %vm3445, %v3424, 0.0
      %v3468 = vadd.f32 %v3466, %v3467
      %v3469 = vsel %vm3445, %v3425, 0.0
      %v3470 = vadd.f32 %v3468, %v3469
      %v3471 = vsel %vm3445, %v3426, 0.0
      %v3472 = vadd.f32 %v3470, %v3471
      %v3473 = vsel %vm3445, %v3427, 0.0
      %v3474 = vadd.f32 %v3472, %v3473
      %v3475 = vsel %vm3445, %v3428, 0.0
      %v3476 = vadd.f32 %v3474, %v3475
      %v3477 = vsel %vm3445, %v3429, 0.0
      %v3478 = vadd.f32 %v3476, %v3477
      %v3479 = vsel %vm3445, %v3430, 0.0
      %v3480 = vadd.f32 %v3478, %v3479
      %v3481 = vsel %vm3445, %v3431, 0.0
      %v3482 = vadd.f32 %v3480, %v3481
      %v3483 = vsel %vm3445, %v3432, 0.0
      %v3484 = vadd.f32 %v3482, %v3483
      %v3485 = vsel %vm3445, %v3433, 0.0
      %v3486 = vadd.f32 %v3484, %v3485
      %v3487 = vsel %vm3445, %v3434, 0.0
      %v3488 = vadd.f32 %v3486, %v3487
      %v3489 = vsel %vm3445, %v3435, 0.0
      %v3490 = vadd.f32 %v3488, %v3489
      %v3491 = vsel %vm3445, %v3436, 0.0
      %v3492 = vadd.f32 %v3490, %v3491
      %v3493 = vsel %vm3445, %v3437, 0.0
      %v3494 = vadd.f32 %v3492, %v3493
      %v3495 = vsel %vm3445, %v3438, 0.0
      %v3496 = vadd.f32 %v3494, %v3495
      %v3497 = vsel %vm3445, %v3439, 0.0
      %v3498 = vadd.f32 %v3496, %v3497
      %v3499 = vsel %vm3445, %v3440, 0.0
      %v3500 = vadd.f32 %v3498, %v3499
      %v3501 = vsel %vm3445, %v3441, 0.0
      %v3502 = vadd.f32 %v3500, %v3501
      %v3503 = vsel %vm3445, %v3442, 0.0
      %v3504 = vadd.f32 %v3502, %v3503
      %v3505 = vsel %vm3445, %v3443, 0.0
      %v3506 = vadd.f32 %v3504, %v3505
      %v3507 = vsel %vm3445, %v3444, 0.0
      %v3508 = vadd.f32 %v3506, %v3507
      %v3509 = vrot.slane %v3508, 4
      %v3510 = vadd.f32 %v3508, %v3509
      %v3511 = vrot.slane %v3510, 2
      %v3512 = vadd.f32 %v3510, %v3511
      %v3513 = vrot.slane %v3512, 1
      %v3514 = vadd.f32 %v3512, %v3513
      %v3515 = vmul.f32 %v3514, 0.00390625
      %v3516 = vsub.f32 %v3413, %v3515
      %v3517 = vsub.f32 %v3414, %v3515
      %v3518 = vsub.f32 %v3415, %v3515
      %v3519 = vsub.f32 %v3416, %v3515
      %v3520 = vsub.f32 %v3417, %v3515
      %v3521 = vsub.f32 %v3418, %v3515
      %v3522 = vsub.f32 %v3419, %v3515
      %v3523 = vsub.f32 %v3420, %v3515
      %v3524 = vsub.f32 %v3421, %v3515
      %v3525 = vsub.f32 %v3422, %v3515
      %v3526 = vsub.f32 %v3423, %v3515
      %v3527 = vsub.f32 %v3424, %v3515
      %v3528 = vsub.f32 %v3425, %v3515
      %v3529 = vsub.f32 %v3426, %v3515
      %v3530 = vsub.f32 %v3427, %v3515
      %v3531 = vsub.f32 %v3428, %v3515
      %v3532 = vsub.f32 %v3429, %v3515
      %v3533 = vsub.f32 %v3430, %v3515
      %v3534 = vsub.f32 %v3431, %v3515
      %v3535 = vsub.f32 %v3432, %v3515
      %v3536 = vsub.f32 %v3433, %v3515
      %v3537 = vsub.f32 %v3434, %v3515
      %v3538 = vsub.f32 %v3435, %v3515
      %v3539 = vsub.f32 %v3436, %v3515
      %v3540 = vsub.f32 %v3437, %v3515
      %v3541 = vsub.f32 %v3438, %v3515
      %v3542 = vsub.f32 %v3439, %v3515
      %v3543 = vsub.f32 %v3440, %v3515
      %v3544 = vsub.f32 %v3441, %v3515
      %v3545 = vsub.f32 %v3442, %v3515
      %v3546 = vsub.f32 %v3443, %v3515
      %v3547 = vsub.f32 %v3444, %v3515
      %v3548 = vmul.f32 %v3516, %v3516
      %v3549 = vmul.f32 %v3517, %v3517
      %v3550 = vmul.f32 %v3518, %v3518
      %v3551 = vmul.f32 %v3519, %v3519
      %v3552 = vmul.f32 %v3520, %v3520
      %v3553 = vmul.f32 %v3521, %v3521
      %v3554 = vmul.f32 %v3522, %v3522
      %v3555 = vmul.f32 %v3523, %v3523
      %v3556 = vmul.f32 %v3524, %v3524
      %v3557 = vmul.f32 %v3525, %v3525
      %v3558 = vmul.f32 %v3526, %v3526
      %v3559 = vmul.f32 %v3527, %v3527
      %v3560 = vmul.f32 %v3528, %v3528
      %v3561 = vmul.f32 %v3529, %v3529
      %v3562 = vmul.f32 %v3530, %v3530
      %v3563 = vmul.f32 %v3531, %v3531
      %v3564 = vmul.f32 %v3532, %v3532
      %v3565 = vmul.f32 %v3533, %v3533
      %v3566 = vmul.f32 %v3534, %v3534
      %v3567 = vmul.f32 %v3535, %v3535
      %v3568 = vmul.f32 %v3536, %v3536
      %v3569 = vmul.f32 %v3537, %v3537
      %v3570 = vmul.f32 %v3538, %v3538
      %v3571 = vmul.f32 %v3539, %v3539
      %v3572 = vmul.f32 %v3540, %v3540
      %v3573 = vmul.f32 %v3541, %v3541
      %v3574 = vmul.f32 %v3542, %v3542
      %v3575 = vmul.f32 %v3543, %v3543
      %v3576 = vmul.f32 %v3544, %v3544
      %v3577 = vmul.f32 %v3545, %v3545
      %v3578 = vmul.f32 %v3546, %v3546
      %v3579 = vmul.f32 %v3547, %v3547
      %v3580 = vsel %vm3445, %v3548, 0.0
      %v3581 = vsel %vm3445, %v3549, 0.0
      %v3582 = vadd.f32 %v3580, %v3581
      %v3583 = vsel %vm3445, %v3550, 0.0
      %v3584 = vadd.f32 %v3582, %v3583
      %v3585 = vsel %vm3445, %v3551, 0.0
      %v3586 = vadd.f32 %v3584, %v3585
      %v3587 = vsel %vm3445, %v3552, 0.0
      %v3588 = vadd.f32 %v3586, %v3587
      %v3589 = vsel %vm3445, %v3553, 0.0
      %v3590 = vadd.f32 %v3588, %v3589
      %v3591 = vsel %vm3445, %v3554, 0.0
      %v3592 = vadd.f32 %v3590, %v3591
      %v3593 = vsel %vm3445, %v3555, 0.0
      %v3594 = vadd.f32 %v3592, %v3593
      %v3595 = vsel %vm3445, %v3556, 0.0
      %v3596 = vadd.f32 %v3594, %v3595
      %v3597 = vsel %vm3445, %v3557, 0.0
      %v3598 = vadd.f32 %v3596, %v3597
      %v3599 = vsel %vm3445, %v3558, 0.0
      %v3600 = vadd.f32 %v3598, %v3599
      %v3601 = vsel %vm3445, %v3559, 0.0
      %v3602 = vadd.f32 %v3600, %v3601
      %v3603 = vsel %vm3445, %v3560, 0.0
      %v3604 = vadd.f32 %v3602, %v3603
      %v3605 = vsel %vm3445, %v3561, 0.0
      %v3606 = vadd.f32 %v3604, %v3605
      %v3607 = vsel %vm3445, %v3562, 0.0
      %v3608 = vadd.f32 %v3606, %v3607
      %v3609 = vsel %vm3445, %v3563, 0.0
      %v3610 = vadd.f32 %v3608, %v3609
      %v3611 = vsel %vm3445, %v3564, 0.0
      %v3612 = vadd.f32 %v3610, %v3611
      %v3613 = vsel %vm3445, %v3565, 0.0
      %v3614 = vadd.f32 %v3612, %v3613
      %v3615 = vsel %vm3445, %v3566, 0.0
      %v3616 = vadd.f32 %v3614, %v3615
      %v3617 = vsel %vm3445, %v3567, 0.0
      %v3618 = vadd.f32 %v3616, %v3617
      %v3619 = vsel %vm3445, %v3568, 0.0
      %v3620 = vadd.f32 %v3618, %v3619
      %v3621 = vsel %vm3445, %v3569, 0.0
      %v3622 = vadd.f32 %v3620, %v3621
      %v3623 = vsel %vm3445, %v3570, 0.0
      %v3624 = vadd.f32 %v3622, %v3623
      %v3625 = vsel %vm3445, %v3571, 0.0
      %v3626 = vadd.f32 %v3624, %v3625
      %v3627 = vsel %vm3445, %v3572, 0.0
      %v3628 = vadd.f32 %v3626, %v3627
      %v3629 = vsel %vm3445, %v3573, 0.0
      %v3630 = vadd.f32 %v3628, %v3629
      %v3631 = vsel %vm3445, %v3574, 0.0
      %v3632 = vadd.f32 %v3630, %v3631
      %v3633 = vsel %vm3445, %v3575, 0.0
      %v3634 = vadd.f32 %v3632, %v3633
      %v3635 = vsel %vm3445, %v3576, 0.0
      %v3636 = vadd.f32 %v3634, %v3635
      %v3637 = vsel %vm3445, %v3577, 0.0
      %v3638 = vadd.f32 %v3636, %v3637
      %v3639 = vsel %vm3445, %v3578, 0.0
      %v3640 = vadd.f32 %v3638, %v3639
      %v3641 = vsel %vm3445, %v3579, 0.0
      %v3642 = vadd.f32 %v3640, %v3641
      %v3643 = vrot.slane %v3642, 4
      %v3644 = vadd.f32 %v3642, %v3643
      %v3645 = vrot.slane %v3644, 2
      %v3646 = vadd.f32 %v3644, %v3645
      %v3647 = vrot.slane %v3646, 1
      %v3648 = vadd.f32 %v3646, %v3647
      %v3649 = vmul.f32 %v3648, 0.00390625
      %v3650 = vadd.f32 %v3649, 1e-05
      %v3651 = vrsqrt.pop %v3650
      %v3652 = vmul.f32 %v3516, %v3651
      %v3653 = vmul.f32 %v3517, %v3651
      %v3654 = vmul.f32 %v3518, %v3651
      %v3655 = vmul.f32 %v3519, %v3651
      %v3656 = vmul.f32 %v3520, %v3651
      %v3657 = vmul.f32 %v3521, %v3651
      %v3658 = vmul.f32 %v3522, %v3651
      %v3659 = vmul.f32 %v3523, %v3651
      %v3660 = vmul.f32 %v3524, %v3651
      %v3661 = vmul.f32 %v3525, %v3651
      %v3662 = vmul.f32 %v3526, %v3651
      %v3663 = vmul.f32 %v3527, %v3651
      %v3664 = vmul.f32 %v3528, %v3651
      %v3665 = vmul.f32 %v3529, %v3651
      %v3666 = vmul.f32 %v3530, %v3651
      %v3667 = vmul.f32 %v3531, %v3651
      %v3668 = vmul.f32 %v3532, %v3651
      %v3669 = vmul.f32 %v3533, %v3651
      %v3670 = vmul.f32 %v3534, %v3651
      %v3671 = vmul.f32 %v3535, %v3651
      %v3672 = vmul.f32 %v3536, %v3651
      %v3673 = vmul.f32 %v3537, %v3651
      %v3674 = vmul.f32 %v3538, %v3651
      %v3675 = vmul.f32 %v3539, %v3651
      %v3676 = vmul.f32 %v3540, %v3651
      %v3677 = vmul.f32 %v3541, %v3651
      %v3678 = vmul.f32 %v3542, %v3651
      %v3679 = vmul.f32 %v3543, %v3651
      %v3680 = vmul.f32 %v3544, %v3651
      %v3681 = vmul.f32 %v3545, %v3651
      %v3682 = vmul.f32 %v3546, %v3651
      %v3683 = vmul.f32 %v3547, %v3651
      %v3684 = vld [vmem:[%s5] sm:$0x1]
      %v3686 = vlaneseq
      %v3687 = vshrl.u32 %v3686, 7
      %v3688 = vsub.s32 0, %v3687
      %v3689 = vrot.slane %v3684, %v3688
      %3690 = vrot.lane.b32.xlu0 %v3689, 32
      %v3691 = vpop.permute.xlu0 %3690
      %v3693 = vmul.f32 %v3652, %v3691
      %v3694 = vmul.f32 %v3653, %v3691
      %v3695 = vmul.f32 %v3654, %v3691
      %v3696 = vmul.f32 %v3655, %v3691
      %v3697 = vmul.f32 %v3656, %v3691
      %v3698 = vmul.f32 %v3657, %v3691
      %v3699 = vmul.f32 %v3658, %v3691
      %v3700 = vmul.f32 %v3659, %v3691
      %v3701 = vmul.f32 %v3660, %v3691
      %v3702 = vmul.f32 %v3661, %v3691
      %v3703 = vmul.f32 %v3662, %v3691
      %v3704 = vmul.f32 %v3663, %v3691
      %v3705 = vmul.f32 %v3664, %v3691
      %v3706 = vmul.f32 %v3665, %v3691
      %v3707 = vmul.f32 %v3666, %v3691
      %v3708 = vmul.f32 %v3667, %v3691
      %v3709 = vmul.f32 %v3668, %v3691
      %v3710 = vmul.f32 %v3669, %v3691
      %v3711 = vmul.f32 %v3670, %v3691
      %v3712 = vmul.f32 %v3671, %v3691
      %v3713 = vmul.f32 %v3672, %v3691
      %v3714 = vmul.f32 %v3673, %v3691
      %v3715 = vmul.f32 %v3674, %v3691
      %v3716 = vmul.f32 %v3675, %v3691
      %v3717 = vmul.f32 %v3676, %v3691
      %v3718 = vmul.f32 %v3677, %v3691
      %v3719 = vmul.f32 %v3678, %v3691
      %v3720 = vmul.f32 %v3679, %v3691
      %v3721 = vmul.f32 %v3680, %v3691
      %v3722 = vmul.f32 %v3681, %v3691
      %v3723 = vmul.f32 %v3682, %v3691
      %v3724 = vmul.f32 %v3683, %v3691
      %v3725 = vld [vmem:[%s6] sm:$0x1]
      %v3727 = vlaneseq
      %v3728 = vshrl.u32 %v3727, 7
      %v3729 = vsub.s32 0, %v3728
      %v3730 = vrot.slane %v3725, %v3729
      %3731 = vrot.lane.b32.xlu0 %v3730, 32
      %v3732 = vpop.permute.xlu0 %3731
      %v3734 = vadd.f32 %v3693, %v3732
      %v3735 = vadd.f32 %v3694, %v3732
      %v3736 = vadd.f32 %v3695, %v3732
      %v3737 = vadd.f32 %v3696, %v3732
      %v3738 = vadd.f32 %v3697, %v3732
      %v3739 = vadd.f32 %v3698, %v3732
      %v3740 = vadd.f32 %v3699, %v3732
      %v3741 = vadd.f32 %v3700, %v3732
      %v3742 = vadd.f32 %v3701, %v3732
      %v3743 = vadd.f32 %v3702, %v3732
      %v3744 = vadd.f32 %v3703, %v3732
      %v3745 = vadd.f32 %v3704, %v3732
      %v3746 = vadd.f32 %v3705, %v3732
      %v3747 = vadd.f32 %v3706, %v3732
      %v3748 = vadd.f32 %v3707, %v3732
      %v3749 = vadd.f32 %v3708, %v3732
      %v3750 = vadd.f32 %v3709, %v3732
      %v3751 = vadd.f32 %v3710, %v3732
      %v3752 = vadd.f32 %v3711, %v3732
      %v3753 = vadd.f32 %v3712, %v3732
      %v3754 = vadd.f32 %v3713, %v3732
      %v3755 = vadd.f32 %v3714, %v3732
      %v3756 = vadd.f32 %v3715, %v3732
      %v3757 = vadd.f32 %v3716, %v3732
      %v3758 = vadd.f32 %v3717, %v3732
      %v3759 = vadd.f32 %v3718, %v3732
      %v3760 = vadd.f32 %v3719, %v3732
      %v3761 = vadd.f32 %v3720, %v3732
      %v3762 = vadd.f32 %v3721, %v3732
      %v3763 = vadd.f32 %v3722, %v3732
      %v3764 = vadd.f32 %v3723, %v3732
      %v3765 = vadd.f32 %v3724, %v3732
      %v3766 = vmax.f32 %v3734, 0.0
      %v3767 = vmax.f32 %v3735, 0.0
      %v3768 = vmax.f32 %v3736, 0.0
      %v3769 = vmax.f32 %v3737, 0.0
      %v3770 = vmax.f32 %v3738, 0.0
      %v3771 = vmax.f32 %v3739, 0.0
      %v3772 = vmax.f32 %v3740, 0.0
      %v3773 = vmax.f32 %v3741, 0.0
      %v3774 = vmax.f32 %v3742, 0.0
      %v3775 = vmax.f32 %v3743, 0.0
      %v3776 = vmax.f32 %v3744, 0.0
      %v3777 = vmax.f32 %v3745, 0.0
      %v3778 = vmax.f32 %v3746, 0.0
      %v3779 = vmax.f32 %v3747, 0.0
      %v3780 = vmax.f32 %v3748, 0.0
      %v3781 = vmax.f32 %v3749, 0.0
      %v3782 = vmax.f32 %v3750, 0.0
      %v3783 = vmax.f32 %v3751, 0.0
      %v3784 = vmax.f32 %v3752, 0.0
      %v3785 = vmax.f32 %v3753, 0.0
      %v3786 = vmax.f32 %v3754, 0.0
      %v3787 = vmax.f32 %v3755, 0.0
      %v3788 = vmax.f32 %v3756, 0.0
      %v3789 = vmax.f32 %v3757, 0.0
      %v3790 = vmax.f32 %v3758, 0.0
      %v3791 = vmax.f32 %v3759, 0.0
      %v3792 = vmax.f32 %v3760, 0.0
      %v3793 = vmax.f32 %v3761, 0.0
      %v3794 = vmax.f32 %v3762, 0.0
      %v3795 = vmax.f32 %v3763, 0.0
      %v3796 = vmax.f32 %v3764, 0.0
      %v3797 = vmax.f32 %v3765, 0.0
      %v3798 = vld [vmem:[%s7] sm:$0xff]
      %v3799 = vld [vmem:[%s7 + $0x8] sm:$0xff]
      %v3800 = vld [vmem:[%s7 + $0x10] sm:$0xff]
      %v3801 = vld [vmem:[%s7 + $0x18] sm:$0xff]
      %v3802 = vld [vmem:[%s7 + $0x20] sm:$0xff]
      %v3803 = vld [vmem:[%s7 + $0x28] sm:$0xff]
      %v3804 = vld [vmem:[%s7 + $0x30] sm:$0xff]
      %v3805 = vld [vmem:[%s7 + $0x38] sm:$0xff]
      %v3806 = vld [vmem:[%s7 + $0x40] sm:$0xff]
      %v3807 = vld [vmem:[%s7 + $0x48] sm:$0xff]
      %v3808 = vld [vmem:[%s7 + $0x50] sm:$0xff]
      %v3809 = vld [vmem:[%s7 + $0x58] sm:$0xff]
      %3842 = vrot.lane.b32.xlu0 %v3766, 96
      %v3843 = vpop.permute.xlu0 %3842
      %3844 = vrot.lane.b32.xlu0 %v3767, 96
      %v3845 = vpop.permute.xlu0 %3844
      %3846 = vrot.lane.b32.xlu0 %v3768, 96
      %v3847 = vpop.permute.xlu0 %3846
      %3848 = vrot.lane.b32.xlu0 %v3769, 96
      %v3849 = vpop.permute.xlu0 %3848
      %3850 = vrot.lane.b32.xlu0 %v3770, 96
      %v3851 = vpop.permute.xlu0 %3850
      %3852 = vrot.lane.b32.xlu0 %v3771, 96
      %v3853 = vpop.permute.xlu0 %3852
      %3854 = vrot.lane.b32.xlu0 %v3772, 96
      %v3855 = vpop.permute.xlu0 %3854
      %3856 = vrot.lane.b32.xlu0 %v3773, 96
      %v3857 = vpop.permute.xlu0 %3856
      %3858 = vrot.lane.b32.xlu0 %v3774, 96
      %v3859 = vpop.permute.xlu0 %3858
      %3860 = vrot.lane.b32.xlu0 %v3775, 96
      %v3861 = vpop.permute.xlu0 %3860
      %3862 = vrot.lane.b32.xlu0 %v3776, 96
      %v3863 = vpop.permute.xlu0 %3862
      %3864 = vrot.lane.b32.xlu0 %v3777, 96
      %v3865 = vpop.permute.xlu0 %3864
      %3866 = vrot.lane.b32.xlu0 %v3778, 96
      %v3867 = vpop.permute.xlu0 %3866
      %3868 = vrot.lane.b32.xlu0 %v3779, 96
      %v3869 = vpop.permute.xlu0 %3868
      %3870 = vrot.lane.b32.xlu0 %v3780, 96
      %v3871 = vpop.permute.xlu0 %3870
      %3872 = vrot.lane.b32.xlu0 %v3781, 96
      %v3873 = vpop.permute.xlu0 %3872
      %3874 = vrot.lane.b32.xlu0 %v3782, 96
      %v3875 = vpop.permute.xlu0 %3874
      %3876 = vrot.lane.b32.xlu0 %v3783, 96
      %v3877 = vpop.permute.xlu0 %3876
      %3878 = vrot.lane.b32.xlu0 %v3784, 96
      %v3879 = vpop.permute.xlu0 %3878
      %3880 = vrot.lane.b32.xlu0 %v3785, 96
      %v3881 = vpop.permute.xlu0 %3880
      %3882 = vrot.lane.b32.xlu0 %v3786, 96
      %v3883 = vpop.permute.xlu0 %3882
      %3884 = vrot.lane.b32.xlu0 %v3787, 96
      %v3885 = vpop.permute.xlu0 %3884
      %3886 = vrot.lane.b32.xlu0 %v3788, 96
      %v3887 = vpop.permute.xlu0 %3886
      %3888 = vrot.lane.b32.xlu0 %v3789, 96
      %v3889 = vpop.permute.xlu0 %3888
      %3890 = vrot.lane.b32.xlu0 %v3790, 96
      %v3891 = vpop.permute.xlu0 %3890
      %3892 = vrot.lane.b32.xlu0 %v3791, 96
      %v3893 = vpop.permute.xlu0 %3892
      %3894 = vrot.lane.b32.xlu0 %v3792, 96
      %v3895 = vpop.permute.xlu0 %3894
      %3896 = vrot.lane.b32.xlu0 %v3793, 96
      %v3897 = vpop.permute.xlu0 %3896
      %3898 = vrot.lane.b32.xlu0 %v3794, 96
      %v3899 = vpop.permute.xlu0 %3898
      %3900 = vrot.lane.b32.xlu0 %v3795, 96
      %v3901 = vpop.permute.xlu0 %3900
      %3902 = vrot.lane.b32.xlu0 %v3796, 96
      %v3903 = vpop.permute.xlu0 %3902
      %3904 = vrot.lane.b32.xlu0 %v3797, 96
      %v3905 = vpop.permute.xlu0 %3904
      %v3906 = vsel %vm477, %v3843, 0
      %v3908 = vsel %vm477, %v3845, 0
      %v3910 = vsel %vm477, %v3847, 0
      %v3912 = vsel %vm477, %v3849, 0
      %v3914 = vsel %vm477, %v3851, 0
      %v3916 = vsel %vm477, %v3853, 0
      %v3918 = vsel %vm477, %v3855, 0
      %v3920 = vsel %vm477, %v3857, 0
      %v3922 = vsel %vm477, %v3859, 0
      %v3924 = vsel %vm477, %v3861, 0
      %v3926 = vsel %vm477, %v3863, 0
      %v3928 = vsel %vm477, %v3865, 0
      %v3930 = vsel %vm477, %v3867, 0
      %v3932 = vsel %vm477, %v3869, 0
      %v3934 = vsel %vm477, %v3871, 0
      %v3936 = vsel %vm477, %v3873, 0
      %v3938 = vsel %vm477, %v3875, 0
      %v3940 = vsel %vm477, %v3877, 0
      %v3942 = vsel %vm477, %v3879, 0
      %v3944 = vsel %vm477, %v3881, 0
      %v3946 = vsel %vm477, %v3883, 0
      %v3948 = vsel %vm477, %v3885, 0
      %v3950 = vsel %vm477, %v3887, 0
      %v3952 = vsel %vm477, %v3889, 0
      %v3954 = vsel %vm477, %v3891, 0
      %v3956 = vsel %vm477, %v3893, 0
      %v3958 = vsel %vm477, %v3895, 0
      %v3960 = vsel %vm477, %v3897, 0
      %v3962 = vsel %vm477, %v3899, 0
      %v3964 = vsel %vm477, %v3901, 0
      %v3966 = vsel %vm477, %v3903, 0
      %v3968 = vsel %vm477, %v3905, 0
      %3970 = vmatprep.subr.mxu0 %v3799
      %3971 = vmatpush1.msra.mxu0 %v3798
      %3972 = vmatprep.subr.mxu0 %v3802
      %3973 = vmatpush1.msra.mxu0 %v3801
      %3974 = vmatprep.subr.mxu0 %v3805
      %3975 = vmatpush1.msra.mxu0 %v3804
      %3976 = vmatprep.subr.mxu0 %v3808
      %3977 = vmatpush1.msra.mxu0 %v3807
      %3978 = vmatprep.subr.mxu0 0.0
      %3979 = vmatpush1.msra.mxu0 0.0
      %3980 = vmatprep.subr.mxu0 0.0
      %3981 = vmatpush1.msra.mxu0 0.0
      %3982 = vmatprep.subr.mxu0 0.0
      %3983 = vmatpush1.msra.mxu0 0.0
      %3984 = vmatprep.subr.mxu0 0.0
      %3985 = vmatpush1.msra.mxu0 0.0
      %3986 = vmatprep.subr.mxu0 0.0
      %3987 = vmatpush1.msra.mxu0 0.0
      %3988 = vmatprep.subr.mxu0 0.0
      %3989 = vmatpush1.msra.mxu0 0.0
      %3990 = vmatprep.subr.mxu0 0.0
      %3991 = vmatpush1.msra.mxu0 0.0
      %3992 = vmatprep.subr.mxu0 0.0
      %3993 = vmatpush1.msra.mxu0 0.0
      %3994 = vmatprep.subr.mxu0 0.0
      %3995 = vmatpush1.msra.mxu0 0.0
      %3996 = vmatprep.subr.mxu0 0.0
      %3997 = vmatpush1.msra.mxu0 0.0
      %3998 = vmatprep.subr.mxu0 0.0
      %3999 = vmatpush1.msra.mxu0 0.0
      %4000 = vmatprep.subr.mxu0 0.0
      %4001 = vmatpush1.msra.mxu0 0.0
      %4002 = vmatprep.subr.mxu0 0.0
      %4003 = vmatpush1.msra.mxu0 0.0
      %4004 = vmatprep.subr.mxu0 0.0
      %4005 = vmatpush1.msra.mxu0 0.0
      %4006 = vmatprep.subr.mxu0 0.0
      %4007 = vmatpush1.msra.mxu0 0.0
      %4008 = vmatprep.subr.mxu0 0.0
      %4009 = vmatpush1.msra.mxu0 0.0
      %4010 = vmatprep.subr.mxu0 0.0
      %4011 = vmatpush1.msra.mxu0 0.0
      %4012 = vmatprep.subr.mxu0 0.0
      %4013 = vmatpush1.msra.mxu0 0.0
      %4014 = vmatprep.subr.mxu0 0.0
      %4015 = vmatpush1.msra.mxu0 0.0
      %4016 = vmatprep.subr.mxu0 0.0
      %4017 = vmatpush1.msra.mxu0 0.0
      %4018 = vmatprep.subr.mxu0 0.0
      %4019 = vmatpush1.msra.mxu0 0.0
      %4020 = vmatprep.subr.mxu0 0.0
      %4021 = vmatpush1.msra.mxu0 0.0
      %4022 = vmatprep.subr.mxu0 0.0
      %4023 = vmatpush1.msra.mxu0 0.0
      %4024 = vmatprep.subr.mxu0 0.0
      %4025 = vmatpush1.msra.mxu0 0.0
      %4026 = vmatprep.subr.mxu0 0.0
      %4027 = vmatpush1.msra.mxu0 0.0
      %4028 = vmatprep.subr.mxu0 0.0
      %4029 = vmatpush1.msra.mxu0 0.0
      %4030 = vmatprep.subr.mxu0 0.0
      %4031 = vmatpush1.msra.mxu0 0.0
      %4032 = vmatprep.subr.mxu0 0.0
      %4033 = vmatpush1.msra.mxu0 0.0
      %4034 = vmatprep.mubr.f32.mxu0 0.0
      %4035 = vmatmul.mubr.f32.gmra.mrb[0].mxu0 %v3906
      %v4036 = vpop.f32.mrb[0].mxu0
      %v4037 = vadd.f32 0.0, %v4036
      %v4038 = vpop.f32.mrb[0].mxu0
      %v4039 = vadd.f32 0.0, %v4038
      %4040 = vmatprep.mubr.f32.mxu0 0.0
      %4041 = vmatmul.mubr.f32.gmra.mrb[0].mxu0 %v3908
      %v4042 = vpop.f32.mrb[0].mxu0
      %v4043 = vadd.f32 0.0, %v4042
      %v4044 = vpop.f32.mrb[0].mxu0
      %v4045 = vadd.f32 0.0, %v4044
      %4046 = vmatprep.mubr.f32.mxu0 0.0
      %4047 = vmatmul.mubr.f32.gmra.mrb[0].mxu0 %v3910
      %v4048 = vpop.f32.mrb[0].mxu0
      %v4049 = vadd.f32 0.0, %v4048
      %v4050 = vpop.f32.mrb[0].mxu0
      %v4051 = vadd.f32 0.0, %v4050
      %4052 = vmatprep.mubr.f32.mxu0 0.0
      %4053 = vmatmul.mubr.f32.gmra.mrb[0].mxu0 %v3912
      %v4054 = vpop.f32.mrb[0].mxu0
      %v4055 = vadd.f32 0.0, %v4054
      %v4056 = vpop.f32.mrb[0].mxu0
      %v4057 = vadd.f32 0.0, %v4056
      %4058 = vmatprep.mubr.f32.mxu0 0.0
      %4059 = vmatmul.mubr.f32.gmra.mrb[0].mxu0 %v3914
      %v4060 = vpop.f32.mrb[0].mxu0
      %v4061 = vadd.f32 0.0, %v4060
      %v4062 = vpop.f32.mrb[0].mxu0
      %v4063 = vadd.f32 0.0, %v4062
      %4064 = vmatprep.mubr.f32.mxu0 0.0
      %4065 = vmatmul.mubr.f32.gmra.mrb[0].mxu0 %v3916
      %v4066 = vpop.f32.mrb[0].mxu0
      %v4067 = vadd.f32 0.0, %v4066
      %v4068 = vpop.f32.mrb[0].mxu0
      %v4069 = vadd.f32 0.0, %v4068
      %4070 = vmatprep.mubr.f32.mxu0 0.0
      %4071 = vmatmul.mubr.f32.gmra.mrb[0].mxu0 %v3918
      %v4072 = vpop.f32.mrb[0].mxu0
      %v4073 = vadd.f32 0.0, %v4072
      %v4074 = vpop.f32.mrb[0].mxu0
      %v4075 = vadd.f32 0.0, %v4074
      %4076 = vmatprep.mubr.f32.mxu0 0.0
      %4077 = vmatmul.mubr.f32.gmra.mrb[0].mxu0 %v3920
      %v4078 = vpop.f32.mrb[0].mxu0
      %v4079 = vadd.f32 0.0, %v4078
      %v4080 = vpop.f32.mrb[0].mxu0
      %v4081 = vadd.f32 0.0, %v4080
      %4082 = vmatprep.mubr.f32.mxu0 0.0
      %4083 = vmatmul.mubr.f32.gmra.mrb[0].mxu0 %v3922
      %v4084 = vpop.f32.mrb[0].mxu0
      %v4085 = vadd.f32 0.0, %v4084
      %v4086 = vpop.f32.mrb[0].mxu0
      %v4087 = vadd.f32 0.0, %v4086
      %4088 = vmatprep.mubr.f32.mxu0 0.0
      %4089 = vmatmul.mubr.f32.gmra.mrb[0].mxu0 %v3924
      %v4090 = vpop.f32.mrb[0].mxu0
      %v4091 = vadd.f32 0.0, %v4090
      %v4092 = vpop.f32.mrb[0].mxu0
      %v4093 = vadd.f32 0.0, %v4092
      %4094 = vmatprep.mubr.f32.mxu0 0.0
      %4095 = vmatmul.mubr.f32.gmra.mrb[0].mxu0 %v3926
      %v4096 = vpop.f32.mrb[0].mxu0
      %v4097 = vadd.f32 0.0, %v4096
      %v4098 = vpop.f32.mrb[0].mxu0
      %v4099 = vadd.f32 0.0, %v4098
      %4100 = vmatprep.mubr.f32.mxu0 0.0
      %4101 = vmatmul.mubr.f32.gmra.mrb[0].mxu0 %v3928
      %v4102 = vpop.f32.mrb[0].mxu0
      %v4103 = vadd.f32 0.0, %v4102
      %v4104 = vpop.f32.mrb[0].mxu0
      %v4105 = vadd.f32 0.0, %v4104
      %4106 = vmatprep.mubr.f32.mxu0 0.0
      %4107 = vmatmul.mubr.f32.gmra.mrb[0].mxu0 %v3930
      %v4108 = vpop.f32.mrb[0].mxu0
      %v4109 = vadd.f32 0.0, %v4108
      %v4110 = vpop.f32.mrb[0].mxu0
      %v4111 = vadd.f32 0.0, %v4110
      %4112 = vmatprep.mubr.f32.mxu0 0.0
      %4113 = vmatmul.mubr.f32.gmra.mrb[0].mxu0 %v3932
      %v4114 = vpop.f32.mrb[0].mxu0
      %v4115 = vadd.f32 0.0, %v4114
      %v4116 = vpop.f32.mrb[0].mxu0
      %v4117 = vadd.f32 0.0, %v4116
      %4118 = vmatprep.mubr.f32.mxu0 0.0
      %4119 = vmatmul.mubr.f32.gmra.mrb[0].mxu0 %v3934
      %v4120 = vpop.f32.mrb[0].mxu0
      %v4121 = vadd.f32 0.0, %v4120
      %v4122 = vpop.f32.mrb[0].mxu0
      %v4123 = vadd.f32 0.0, %v4122
      %4124 = vmatprep.mubr.f32.mxu0 0.0
      %4125 = vmatmul.mubr.f32.gmra.mrb[0].mxu0 %v3936
      %v4126 = vpop.f32.mrb[0].mxu0
      %v4127 = vadd.f32 0.0, %v4126
      %v4128 = vpop.f32.mrb[0].mxu0
      %v4129 = vadd.f32 0.0, %v4128
      %4130 = vmatprep.mubr.f32.mxu0 0.0
      %4131 = vmatmul.mubr.f32.gmra.mrb[0].mxu0 %v3938
      %v4132 = vpop.f32.mrb[0].mxu0
      %v4133 = vadd.f32 0.0, %v4132
      %v4134 = vpop.f32.mrb[0].mxu0
      %v4135 = vadd.f32 0.0, %v4134
      %4136 = vmatprep.mubr.f32.mxu0 0.0
      %4137 = vmatmul.mubr.f32.gmra.mrb[0].mxu0 %v3940
      %v4138 = vpop.f32.mrb[0].mxu0
      %v4139 = vadd.f32 0.0, %v4138
      %v4140 = vpop.f32.mrb[0].mxu0
      %v4141 = vadd.f32 0.0, %v4140
      %4142 = vmatprep.mubr.f32.mxu0 0.0
      %4143 = vmatmul.mubr.f32.gmra.mrb[0].mxu0 %v3942
      %v4144 = vpop.f32.mrb[0].mxu0
      %v4145 = vadd.f32 0.0, %v4144
      %v4146 = vpop.f32.mrb[0].mxu0
      %v4147 = vadd.f32 0.0, %v4146
      %4148 = vmatprep.mubr.f32.mxu0 0.0
      %4149 = vmatmul.mubr.f32.gmra.mrb[0].mxu0 %v3944
      %v4150 = vpop.f32.mrb[0].mxu0
      %v4151 = vadd.f32 0.0, %v4150
      %v4152 = vpop.f32.mrb[0].mxu0
      %v4153 = vadd.f32 0.0, %v4152
      %4154 = vmatprep.mubr.f32.mxu0 0.0
      %4155 = vmatmul.mubr.f32.gmra.mrb[0].mxu0 %v3946
      %v4156 = vpop.f32.mrb[0].mxu0
      %v4157 = vadd.f32 0.0, %v4156
      %v4158 = vpop.f32.mrb[0].mxu0
      %v4159 = vadd.f32 0.0, %v4158
      %4160 = vmatprep.mubr.f32.mxu0 0.0
      %4161 = vmatmul.mubr.f32.gmra.mrb[0].mxu0 %v3948
      %v4162 = vpop.f32.mrb[0].mxu0
      %v4163 = vadd.f32 0.0, %v4162
      %v4164 = vpop.f32.mrb[0].mxu0
      %v4165 = vadd.f32 0.0, %v4164
      %4166 = vmatprep.mubr.f32.mxu0 0.0
      %4167 = vmatmul.mubr.f32.gmra.mrb[0].mxu0 %v3950
      %v4168 = vpop.f32.mrb[0].mxu0
      %v4169 = vadd.f32 0.0, %v4168
      %v4170 = vpop.f32.mrb[0].mxu0
      %v4171 = vadd.f32 0.0, %v4170
      %4172 = vmatprep.mubr.f32.mxu0 0.0
      %4173 = vmatmul.mubr.f32.gmra.mrb[0].mxu0 %v3952
      %v4174 = vpop.f32.mrb[0].mxu0
      %v4175 = vadd.f32 0.0, %v4174
      %v4176 = vpop.f32.mrb[0].mxu0
      %v4177 = vadd.f32 0.0, %v4176
      %4178 = vmatprep.mubr.f32.mxu0 0.0
      %4179 = vmatmul.mubr.f32.gmra.mrb[0].mxu0 %v3954
      %v4180 = vpop.f32.mrb[0].mxu0
      %v4181 = vadd.f32 0.0, %v4180
      %v4182 = vpop.f32.mrb[0].mxu0
      %v4183 = vadd.f32 0.0, %v4182
      %4184 = vmatprep.mubr.f32.mxu0 0.0
      %4185 = vmatmul.mubr.f32.gmra.mrb[0].mxu0 %v3956
      %v4186 = vpop.f32.mrb[0].mxu0
      %v4187 = vadd.f32 0.0, %v4186
      %v4188 = vpop.f32.mrb[0].mxu0
      %v4189 = vadd.f32 0.0, %v4188
      %4190 = vmatprep.mubr.f32.mxu0 0.0
      %4191 = vmatmul.mubr.f32.gmra.mrb[0].mxu0 %v3958
      %v4192 = vpop.f32.mrb[0].mxu0
      %v4193 = vadd.f32 0.0, %v4192
      %v4194 = vpop.f32.mrb[0].mxu0
      %v4195 = vadd.f32 0.0, %v4194
      %4196 = vmatprep.mubr.f32.mxu0 0.0
      %4197 = vmatmul.mubr.f32.gmra.mrb[0].mxu0 %v3960
      %v4198 = vpop.f32.mrb[0].mxu0
      %v4199 = vadd.f32 0.0, %v4198
      %v4200 = vpop.f32.mrb[0].mxu0
      %v4201 = vadd.f32 0.0, %v4200
      %4202 = vmatprep.mubr.f32.mxu0 0.0
      %4203 = vmatmul.mubr.f32.gmra.mrb[0].mxu0 %v3962
      %v4204 = vpop.f32.mrb[0].mxu0
      %v4205 = vadd.f32 0.0, %v4204
      %v4206 = vpop.f32.mrb[0].mxu0
      %v4207 = vadd.f32 0.0, %v4206
      %4208 = vmatprep.mubr.f32.mxu0 0.0
      %4209 = vmatmul.mubr.f32.gmra.mrb[0].mxu0 %v3964
      %v4210 = vpop.f32.mrb[0].mxu0
      %v4211 = vadd.f32 0.0, %v4210
      %v4212 = vpop.f32.mrb[0].mxu0
      %v4213 = vadd.f32 0.0, %v4212
      %4214 = vmatprep.mubr.f32.mxu0 0.0
      %4215 = vmatmul.mubr.f32.gmra.mrb[0].mxu0 %v3966
      %v4216 = vpop.f32.mrb[0].mxu0
      %v4217 = vadd.f32 0.0, %v4216
      %v4218 = vpop.f32.mrb[0].mxu0
      %v4219 = vadd.f32 0.0, %v4218
      %4220 = vmatprep.mubr.f32.mxu0 0.0
      %4221 = vmatmul.mubr.f32.gmra.mrb[0].mxu0 %v3968
      %v4222 = vpop.f32.mrb[0].mxu0
      %v4223 = vadd.f32 0.0, %v4222
      %v4224 = vpop.f32.mrb[0].mxu0
      %v4225 = vadd.f32 0.0, %v4224
      %4226 = vdwg.mxu0
      %4227 = vmatprep.subr.mxu0 0.0
      %4228 = vmatpush1.msra.mxu0 %v3800
      %4229 = vmatprep.subr.mxu0 0.0
      %4230 = vmatpush1.msra.mxu0 %v3803
      %4231 = vmatprep.subr.mxu0 0.0
      %4232 = vmatpush1.msra.mxu0 %v3806
      %4233 = vmatprep.subr.mxu0 0.0
      %4234 = vmatpush1.msra.mxu0 %v3809
      %4235 = vmatprep.subr.mxu0 0.0
      %4236 = vmatpush1.msra.mxu0 0.0
      %4237 = vmatprep.subr.mxu0 0.0
      %4238 = vmatpush1.msra.mxu0 0.0
      %4239 = vmatprep.subr.mxu0 0.0
      %4240 = vmatpush1.msra.mxu0 0.0
      %4241 = vmatprep.subr.mxu0 0.0
      %4242 = vmatpush1.msra.mxu0 0.0
      %4243 = vmatprep.subr.mxu0 0.0
      %4244 = vmatpush1.msra.mxu0 0.0
      %4245 = vmatprep.subr.mxu0 0.0
      %4246 = vmatpush1.msra.mxu0 0.0
      %4247 = vmatprep.subr.mxu0 0.0
      %4248 = vmatpush1.msra.mxu0 0.0
      %4249 = vmatprep.subr.mxu0 0.0
      %4250 = vmatpush1.msra.mxu0 0.0
      %4251 = vmatprep.subr.mxu0 0.0
      %4252 = vmatpush1.msra.mxu0 0.0
      %4253 = vmatprep.subr.mxu0 0.0
      %4254 = vmatpush1.msra.mxu0 0.0
      %4255 = vmatprep.subr.mxu0 0.0
      %4256 = vmatpush1.msra.mxu0 0.0
      %4257 = vmatprep.subr.mxu0 0.0
      %4258 = vmatpush1.msra.mxu0 0.0
      %4259 = vmatprep.subr.mxu0 0.0
      %4260 = vmatpush1.msra.mxu0 0.0
      %4261 = vmatprep.subr.mxu0 0.0
      %4262 = vmatpush1.msra.mxu0 0.0
      %4263 = vmatprep.subr.mxu0 0.0
      %4264 = vmatpush1.msra.mxu0 0.0
      %4265 = vmatprep.subr.mxu0 0.0
      %4266 = vmatpush1.msra.mxu0 0.0
      %4267 = vmatprep.subr.mxu0 0.0
      %4268 = vmatpush1.msra.mxu0 0.0
      %4269 = vmatprep.subr.mxu0 0.0
      %4270 = vmatpush1.msra.mxu0 0.0
      %4271 = vmatprep.subr.mxu0 0.0
      %4272 = vmatpush1.msra.mxu0 0.0
      %4273 = vmatprep.subr.mxu0 0.0
      %4274 = vmatpush1.msra.mxu0 0.0
      %4275 = vmatprep.subr.mxu0 0.0
      %4276 = vmatpush1.msra.mxu0 0.0
      %4277 = vmatprep.subr.mxu0 0.0
      %4278 = vmatpush1.msra.mxu0 0.0
      %4279 = vmatprep.subr.mxu0 0.0
      %4280 = vmatpush1.msra.mxu0 0.0
      %4281 = vmatprep.subr.mxu0 0.0
      %4282 = vmatpush1.msra.mxu0 0.0
      %4283 = vmatprep.subr.mxu0 0.0
      %4284 = vmatpush1.msra.mxu0 0.0
      %4285 = vmatprep.subr.mxu0 0.0
      %4286 = vmatpush1.msra.mxu0 0.0
      %4287 = vmatprep.subr.mxu0 0.0
      %4288 = vmatpush1.msra.mxu0 0.0
      %4289 = vmatprep.subr.mxu0 0.0
      %4290 = vmatpush1.msra.mxu0 0.0
      %4291 = vmatprep.mubr.f32.mxu0 0.0
      %4292 = vmatmul.mubr.f32.gmra.mrb[0].mxu0 %v3906
      %v4293 = vpop.f32.mrb[0].mxu0
      %v4294 = vadd.f32 0.0, %v4293
      %v4295 = vpop.f32.mrb[0].mxu0
      %4296 = vmatprep.mubr.f32.mxu0 0.0
      %4297 = vmatmul.mubr.f32.gmra.mrb[0].mxu0 %v3908
      %v4298 = vpop.f32.mrb[0].mxu0
      %v4299 = vadd.f32 0.0, %v4298
      %v4300 = vpop.f32.mrb[0].mxu0
      %4301 = vmatprep.mubr.f32.mxu0 0.0
      %4302 = vmatmul.mubr.f32.gmra.mrb[0].mxu0 %v3910
      %v4303 = vpop.f32.mrb[0].mxu0
      %v4304 = vadd.f32 0.0, %v4303
      %v4305 = vpop.f32.mrb[0].mxu0
      %4306 = vmatprep.mubr.f32.mxu0 0.0
      %4307 = vmatmul.mubr.f32.gmra.mrb[0].mxu0 %v3912
      %v4308 = vpop.f32.mrb[0].mxu0
      %v4309 = vadd.f32 0.0, %v4308
      %v4310 = vpop.f32.mrb[0].mxu0
      %4311 = vmatprep.mubr.f32.mxu0 0.0
      %4312 = vmatmul.mubr.f32.gmra.mrb[0].mxu0 %v3914
      %v4313 = vpop.f32.mrb[0].mxu0
      %v4314 = vadd.f32 0.0, %v4313
      %v4315 = vpop.f32.mrb[0].mxu0
      %4316 = vmatprep.mubr.f32.mxu0 0.0
      %4317 = vmatmul.mubr.f32.gmra.mrb[0].mxu0 %v3916
      %v4318 = vpop.f32.mrb[0].mxu0
      %v4319 = vadd.f32 0.0, %v4318
      %v4320 = vpop.f32.mrb[0].mxu0
      %4321 = vmatprep.mubr.f32.mxu0 0.0
      %4322 = vmatmul.mubr.f32.gmra.mrb[0].mxu0 %v3918
      %v4323 = vpop.f32.mrb[0].mxu0
      %v4324 = vadd.f32 0.0, %v4323
      %v4325 = vpop.f32.mrb[0].mxu0
      %4326 = vmatprep.mubr.f32.mxu0 0.0
      %4327 = vmatmul.mubr.f32.gmra.mrb[0].mxu0 %v3920
      %v4328 = vpop.f32.mrb[0].mxu0
      %v4329 = vadd.f32 0.0, %v4328
      %v4330 = vpop.f32.mrb[0].mxu0
      %4331 = vmatprep.mubr.f32.mxu0 0.0
      %4332 = vmatmul.mubr.f32.gmra.mrb[0].mxu0 %v3922
      %v4333 = vpop.f32.mrb[0].mxu0
      %v4334 = vadd.f32 0.0, %v4333
      %v4335 = vpop.f32.mrb[0].mxu0
      %4336 = vmatprep.mubr.f32.mxu0 0.0
      %4337 = vmatmul.mubr.f32.gmra.mrb[0].mxu0 %v3924
      %v4338 = vpop.f32.mrb[0].mxu0
      %v4339 = vadd.f32 0.0, %v4338
      %v4340 = vpop.f32.mrb[0].mxu0
      %4341 = vmatprep.mubr.f32.mxu0 0.0
      %4342 = vmatmul.mubr.f32.gmra.mrb[0].mxu0 %v3926
      %v4343 = vpop.f32.mrb[0].mxu0
      %v4344 = vadd.f32 0.0, %v4343
      %v4345 = vpop.f32.mrb[0].mxu0
      %4346 = vmatprep.mubr.f32.mxu0 0.0
      %4347 = vmatmul.mubr.f32.gmra.mrb[0].mxu0 %v3928
      %v4348 = vpop.f32.mrb[0].mxu0
      %v4349 = vadd.f32 0.0, %v4348
      %v4350 = vpop.f32.mrb[0].mxu0
      %4351 = vmatprep.mubr.f32.mxu0 0.0
      %4352 = vmatmul.mubr.f32.gmra.mrb[0].mxu0 %v3930
      %v4353 = vpop.f32.mrb[0].mxu0
      %v4354 = vadd.f32 0.0, %v4353
      %v4355 = vpop.f32.mrb[0].mxu0
      %4356 = vmatprep.mubr.f32.mxu0 0.0
      %4357 = vmatmul.mubr.f32.gmra.mrb[0].mxu0 %v3932
      %v4358 = vpop.f32.mrb[0].mxu0
      %v4359 = vadd.f32 0.0, %v4358
      %v4360 = vpop.f32.mrb[0].mxu0
      %4361 = vmatprep.mubr.f32.mxu0 0.0
      %4362 = vmatmul.mubr.f32.gmra.mrb[0].mxu0 %v3934
      %v4363 = vpop.f32.mrb[0].mxu0
      %v4364 = vadd.f32 0.0, %v4363
      %v4365 = vpop.f32.mrb[0].mxu0
      %4366 = vmatprep.mubr.f32.mxu0 0.0
      %4367 = vmatmul.mubr.f32.gmra.mrb[0].mxu0 %v3936
      %v4368 = vpop.f32.mrb[0].mxu0
      %v4369 = vadd.f32 0.0, %v4368
      %v4370 = vpop.f32.mrb[0].mxu0
      %4371 = vmatprep.mubr.f32.mxu0 0.0
      %4372 = vmatmul.mubr.f32.gmra.mrb[0].mxu0 %v3938
      %v4373 = vpop.f32.mrb[0].mxu0
      %v4374 = vadd.f32 0.0, %v4373
      %v4375 = vpop.f32.mrb[0].mxu0
      %4376 = vmatprep.mubr.f32.mxu0 0.0
      %4377 = vmatmul.mubr.f32.gmra.mrb[0].mxu0 %v3940
      %v4378 = vpop.f32.mrb[0].mxu0
      %v4379 = vadd.f32 0.0, %v4378
      %v4380 = vpop.f32.mrb[0].mxu0
      %4381 = vmatprep.mubr.f32.mxu0 0.0
      %4382 = vmatmul.mubr.f32.gmra.mrb[0].mxu0 %v3942
      %v4383 = vpop.f32.mrb[0].mxu0
      %v4384 = vadd.f32 0.0, %v4383
      %v4385 = vpop.f32.mrb[0].mxu0
      %4386 = vmatprep.mubr.f32.mxu0 0.0
      %4387 = vmatmul.mubr.f32.gmra.mrb[0].mxu0 %v3944
      %v4388 = vpop.f32.mrb[0].mxu0
      %v4389 = vadd.f32 0.0, %v4388
      %v4390 = vpop.f32.mrb[0].mxu0
      %4391 = vmatprep.mubr.f32.mxu0 0.0
      %4392 = vmatmul.mubr.f32.gmra.mrb[0].mxu0 %v3946
      %v4393 = vpop.f32.mrb[0].mxu0
      %v4394 = vadd.f32 0.0, %v4393
      %v4395 = vpop.f32.mrb[0].mxu0
      %4396 = vmatprep.mubr.f32.mxu0 0.0
      %4397 = vmatmul.mubr.f32.gmra.mrb[0].mxu0 %v3948
      %v4398 = vpop.f32.mrb[0].mxu0
      %v4399 = vadd.f32 0.0, %v4398
      %v4400 = vpop.f32.mrb[0].mxu0
      %4401 = vmatprep.mubr.f32.mxu0 0.0
      %4402 = vmatmul.mubr.f32.gmra.mrb[0].mxu0 %v3950
      %v4403 = vpop.f32.mrb[0].mxu0
      %v4404 = vadd.f32 0.0, %v4403
      %v4405 = vpop.f32.mrb[0].mxu0
      %4406 = vmatprep.mubr.f32.mxu0 0.0
      %4407 = vmatmul.mubr.f32.gmra.mrb[0].mxu0 %v3952
      %v4408 = vpop.f32.mrb[0].mxu0
      %v4409 = vadd.f32 0.0, %v4408
      %v4410 = vpop.f32.mrb[0].mxu0
      %4411 = vmatprep.mubr.f32.mxu0 0.0
      %4412 = vmatmul.mubr.f32.gmra.mrb[0].mxu0 %v3954
      %v4413 = vpop.f32.mrb[0].mxu0
      %v4414 = vadd.f32 0.0, %v4413
      %v4415 = vpop.f32.mrb[0].mxu0
      %4416 = vmatprep.mubr.f32.mxu0 0.0
      %4417 = vmatmul.mubr.f32.gmra.mrb[0].mxu0 %v3956
      %v4418 = vpop.f32.mrb[0].mxu0
      %v4419 = vadd.f32 0.0, %v4418
      %v4420 = vpop.f32.mrb[0].mxu0
      %4421 = vmatprep.mubr.f32.mxu0 0.0
      %4422 = vmatmul.mubr.f32.gmra.mrb[0].mxu0 %v3958
      %v4423 = vpop.f32.mrb[0].mxu0
      %v4424 = vadd.f32 0.0, %v4423
      %v4425 = vpop.f32.mrb[0].mxu0
      %4426 = vmatprep.mubr.f32.mxu0 0.0
      %4427 = vmatmul.mubr.f32.gmra.mrb[0].mxu0 %v3960
      %v4428 = vpop.f32.mrb[0].mxu0
      %v4429 = vadd.f32 0.0, %v4428
      %v4430 = vpop.f32.mrb[0].mxu0
      %4431 = vmatprep.mubr.f32.mxu0 0.0
      %4432 = vmatmul.mubr.f32.gmra.mrb[0].mxu0 %v3962
      %v4433 = vpop.f32.mrb[0].mxu0
      %v4434 = vadd.f32 0.0, %v4433
      %v4435 = vpop.f32.mrb[0].mxu0
      %4436 = vmatprep.mubr.f32.mxu0 0.0
      %4437 = vmatmul.mubr.f32.gmra.mrb[0].mxu0 %v3964
      %v4438 = vpop.f32.mrb[0].mxu0
      %v4439 = vadd.f32 0.0, %v4438
      %v4440 = vpop.f32.mrb[0].mxu0
      %4441 = vmatprep.mubr.f32.mxu0 0.0
      %4442 = vmatmul.mubr.f32.gmra.mrb[0].mxu0 %v3966
      %v4443 = vpop.f32.mrb[0].mxu0
      %v4444 = vadd.f32 0.0, %v4443
      %v4445 = vpop.f32.mrb[0].mxu0
      %4446 = vmatprep.mubr.f32.mxu0 0.0
      %4447 = vmatmul.mubr.f32.gmra.mrb[0].mxu0 %v3968
      %v4448 = vpop.f32.mrb[0].mxu0
      %v4449 = vadd.f32 0.0, %v4448
      %v4450 = vpop.f32.mrb[0].mxu0
      %4451 = vdwg.mxu0
      %4452 = vst [vmem:[#allocation2 + $0x48] sm:$0xff] %v4037
      %4453 = vst [vmem:[#allocation2 + $0x50] sm:$0xff] %v4039
      %4454 = vst.msk [vmem:[#allocation2 + $0x58] sm:$0xff] %vm477, %v4294
      %4455 = vst [vmem:[#allocation2 + $0x60] sm:$0xff] %v4043
      %4456 = vst [vmem:[#allocation2 + $0x68] sm:$0xff] %v4045
      %4457 = vst.msk [vmem:[#allocation2 + $0x70] sm:$0xff] %vm477, %v4299
      %4458 = vst [vmem:[#allocation2 + $0x78] sm:$0xff] %v4049
      %4459 = vst [vmem:[#allocation2 + $0x80] sm:$0xff] %v4051
      %4460 = vst.msk [vmem:[#allocation2 + $0x88] sm:$0xff] %vm477, %v4304
      %4461 = vst [vmem:[#allocation2 + $0x90] sm:$0xff] %v4055
      %4462 = vst [vmem:[#allocation2 + $0x98] sm:$0xff] %v4057
      %4463 = vst.msk [vmem:[#allocation2 + $0xa0] sm:$0xff] %vm477, %v4309
      %4464 = vst [vmem:[#allocation2 + $0xa8] sm:$0xff] %v4061
      %4465 = vst [vmem:[#allocation2 + $0xb0] sm:$0xff] %v4063
      %4466 = vst.msk [vmem:[#allocation2 + $0xb8] sm:$0xff] %vm477, %v4314
      %4467 = vst [vmem:[#allocation2 + $0xc0] sm:$0xff] %v4067
      %4468 = vst [vmem:[#allocation2 + $0xc8] sm:$0xff] %v4069
      %4469 = vst.msk [vmem:[#allocation2 + $0xd0] sm:$0xff] %vm477, %v4319
      %4470 = vst [vmem:[#allocation2 + $0xd8] sm:$0xff] %v4073
      %4471 = vst [vmem:[#allocation2 + $0xe0] sm:$0xff] %v4075
      %4472 = vst.msk [vmem:[#allocation2 + $0xe8] sm:$0xff] %vm477, %v4324
      %4473 = vst [vmem:[#allocation2 + $0xf0] sm:$0xff] %v4079
      %4474 = vst [vmem:[#allocation2 + $0xf8] sm:$0xff] %v4081
      %4475 = vst.msk [vmem:[#allocation2 + $0x100] sm:$0xff] %vm477, %v4329
      %4476 = vst [vmem:[#allocation2 + $0x108] sm:$0xff] %v4085
      %4477 = vst [vmem:[#allocation2 + $0x110] sm:$0xff] %v4087
      %4478 = vst.msk [vmem:[#allocation2 + $0x118] sm:$0xff] %vm477, %v4334
      %4479 = vst [vmem:[#allocation2 + $0x120] sm:$0xff] %v4091
      %4480 = vst [vmem:[#allocation2 + $0x128] sm:$0xff] %v4093
      %4481 = vst.msk [vmem:[#allocation2 + $0x130] sm:$0xff] %vm477, %v4339
      %4482 = vst [vmem:[#allocation2 + $0x138] sm:$0xff] %v4097
      %4483 = vst [vmem:[#allocation2 + $0x140] sm:$0xff] %v4099
      %4484 = vst.msk [vmem:[#allocation2 + $0x148] sm:$0xff] %vm477, %v4344
      %4485 = vst [vmem:[#allocation2 + $0x150] sm:$0xff] %v4103
      %4486 = vst [vmem:[#allocation2 + $0x158] sm:$0xff] %v4105
      %4487 = vst.msk [vmem:[#allocation2 + $0x160] sm:$0xff] %vm477, %v4349
      %4488 = vst [vmem:[#allocation2 + $0x168] sm:$0xff] %v4109
      %4489 = vst [vmem:[#allocation2 + $0x170] sm:$0xff] %v4111
      %4490 = vst.msk [vmem:[#allocation2 + $0x178] sm:$0xff] %vm477, %v4354
      %4491 = vst [vmem:[#allocation2 + $0x180] sm:$0xff] %v4115
      %4492 = vst [vmem:[#allocation2 + $0x188] sm:$0xff] %v4117
      %4493 = vst.msk [vmem:[#allocation2 + $0x190] sm:$0xff] %vm477, %v4359
      %4494 = vst [vmem:[#allocation2 + $0x198] sm:$0xff] %v4121
      %4495 = vst [vmem:[#allocation2 + $0x1a0] sm:$0xff] %v4123
      %4496 = vst.msk [vmem:[#allocation2 + $0x1a8] sm:$0xff] %vm477, %v4364
      %4497 = vst [vmem:[#allocation2 + $0x1b0] sm:$0xff] %v4127
      %4498 = vst [vmem:[#allocation2 + $0x1b8] sm:$0xff] %v4129
      %4499 = vst.msk [vmem:[#allocation2 + $0x1c0] sm:$0xff] %vm477, %v4369
      %4500 = vst [vmem:[#allocation2 + $0x1c8] sm:$0xff] %v4133
      %4501 = vst [vmem:[#allocation2 + $0x1d0] sm:$0xff] %v4135
      %4502 = vst.msk [vmem:[#allocation2 + $0x1d8] sm:$0xff] %vm477, %v4374
      %4503 = vst [vmem:[#allocation2 + $0x1e0] sm:$0xff] %v4139
      %4504 = vst [vmem:[#allocation2 + $0x1e8] sm:$0xff] %v4141
      %4505 = vst.msk [vmem:[#allocation2 + $0x1f0] sm:$0xff] %vm477, %v4379
      %4506 = vst [vmem:[#allocation2 + $0x1f8] sm:$0xff] %v4145
      %4507 = vst [vmem:[#allocation2 + $0x200] sm:$0xff] %v4147
      %4508 = vst.msk [vmem:[#allocation2 + $0x208] sm:$0xff] %vm477, %v4384
      %4509 = vst [vmem:[#allocation2 + $0x210] sm:$0xff] %v4151
      %4510 = vst [vmem:[#allocation2 + $0x218] sm:$0xff] %v4153
      %4511 = vst.msk [vmem:[#allocation2 + $0x220] sm:$0xff] %vm477, %v4389
      %4512 = vst [vmem:[#allocation2 + $0x228] sm:$0xff] %v4157
      %4513 = vst [vmem:[#allocation2 + $0x230] sm:$0xff] %v4159
      %4514 = vst.msk [vmem:[#allocation2 + $0x238] sm:$0xff] %vm477, %v4394
      %4515 = vst [vmem:[#allocation2 + $0x240] sm:$0xff] %v4163
      %4516 = vst [vmem:[#allocation2 + $0x248] sm:$0xff] %v4165
      %4517 = vst.msk [vmem:[#allocation2 + $0x250] sm:$0xff] %vm477, %v4399
      %4518 = vst [vmem:[#allocation2 + $0x258] sm:$0xff] %v4169
      %4519 = vst [vmem:[#allocation2 + $0x260] sm:$0xff] %v4171
      %4520 = vst.msk [vmem:[#allocation2 + $0x268] sm:$0xff] %vm477, %v4404
      %4521 = vst [vmem:[#allocation2 + $0x270] sm:$0xff] %v4175
      %4522 = vst [vmem:[#allocation2 + $0x278] sm:$0xff] %v4177
      %4523 = vst.msk [vmem:[#allocation2 + $0x280] sm:$0xff] %vm477, %v4409
      %4524 = vst [vmem:[#allocation2 + $0x288] sm:$0xff] %v4181
      %4525 = vst [vmem:[#allocation2 + $0x290] sm:$0xff] %v4183
      %4526 = vst.msk [vmem:[#allocation2 + $0x298] sm:$0xff] %vm477, %v4414
      %4527 = vst [vmem:[#allocation2 + $0x2a0] sm:$0xff] %v4187
      %4528 = vst [vmem:[#allocation2 + $0x2a8] sm:$0xff] %v4189
      %4529 = vst.msk [vmem:[#allocation2 + $0x2b0] sm:$0xff] %vm477, %v4419
      %4530 = vst [vmem:[#allocation2 + $0x2b8] sm:$0xff] %v4193
      %4531 = vst [vmem:[#allocation2 + $0x2c0] sm:$0xff] %v4195
      %4532 = vst.msk [vmem:[#allocation2 + $0x2c8] sm:$0xff] %vm477, %v4424
      %4533 = vst [vmem:[#allocation2 + $0x2d0] sm:$0xff] %v4199
      %4534 = vst [vmem:[#allocation2 + $0x2d8] sm:$0xff] %v4201
      %4535 = vst.msk [vmem:[#allocation2 + $0x2e0] sm:$0xff] %vm477, %v4429
      %4536 = vst [vmem:[#allocation2 + $0x2e8] sm:$0xff] %v4205
      %4537 = vst [vmem:[#allocation2 + $0x2f0] sm:$0xff] %v4207
      %4538 = vst.msk [vmem:[#allocation2 + $0x2f8] sm:$0xff] %vm477, %v4434
      %4539 = vst [vmem:[#allocation2 + $0x300] sm:$0xff] %v4211
      %4540 = vst [vmem:[#allocation2 + $0x308] sm:$0xff] %v4213
      %4541 = vst.msk [vmem:[#allocation2 + $0x310] sm:$0xff] %vm477, %v4439
      %4542 = vst [vmem:[#allocation2 + $0x318] sm:$0xff] %v4217
      %4543 = vst [vmem:[#allocation2 + $0x320] sm:$0xff] %v4219
      %4544 = vst.msk [vmem:[#allocation2 + $0x328] sm:$0xff] %vm477, %v4444
      %4545 = vst [vmem:[#allocation2 + $0x330] sm:$0xff] %v4223
      %4546 = vst [vmem:[#allocation2 + $0x338] sm:$0xff] %v4225
      %4547 = vst.msk [vmem:[#allocation2 + $0x340] sm:$0xff] %vm477, %v4449
      %v4548 = vld [vmem:[#allocation2 + $0x18] sm:$0xff]
      %v4549 = vld [vmem:[#allocation2 + $0x30] sm:$0xff]
      %v4550 = vld [vmem:[#allocation2 + $0x48] sm:$0xff]
      %v4551 = vld [vmem:[#allocation2 + $0x60] sm:$0xff]
      %v4552 = vld [vmem:[#allocation2 + $0x78] sm:$0xff]
      %v4553 = vld [vmem:[#allocation2 + $0x90] sm:$0xff]
      %v4554 = vld [vmem:[#allocation2 + $0xa8] sm:$0xff]
      %v4555 = vld [vmem:[#allocation2 + $0xc0] sm:$0xff]
      %v4556 = vld [vmem:[#allocation2 + $0xd8] sm:$0xff]
      %v4557 = vld [vmem:[#allocation2 + $0xf0] sm:$0xff]
      %v4558 = vld [vmem:[#allocation2 + $0x108] sm:$0xff]
      %v4559 = vld [vmem:[#allocation2 + $0x120] sm:$0xff]
      %v4560 = vld [vmem:[#allocation2 + $0x138] sm:$0xff]
      %v4561 = vld [vmem:[#allocation2 + $0x150] sm:$0xff]
      %v4562 = vld [vmem:[#allocation2 + $0x168] sm:$0xff]
      %v4563 = vld [vmem:[#allocation2 + $0x180] sm:$0xff]
      %v4564 = vld [vmem:[#allocation2 + $0x198] sm:$0xff]
      %v4565 = vld [vmem:[#allocation2 + $0x1b0] sm:$0xff]
      %v4566 = vld [vmem:[#allocation2 + $0x1c8] sm:$0xff]
      %v4567 = vld [vmem:[#allocation2 + $0x1e0] sm:$0xff]
      %v4568 = vld [vmem:[#allocation2 + $0x1f8] sm:$0xff]
      %v4569 = vld [vmem:[#allocation2 + $0x210] sm:$0xff]
      %v4570 = vld [vmem:[#allocation2 + $0x228] sm:$0xff]
      %v4571 = vld [vmem:[#allocation2 + $0x240] sm:$0xff]
      %v4572 = vld [vmem:[#allocation2 + $0x258] sm:$0xff]
      %v4573 = vld [vmem:[#allocation2 + $0x270] sm:$0xff]
      %v4574 = vld [vmem:[#allocation2 + $0x288] sm:$0xff]
      %v4575 = vld [vmem:[#allocation2 + $0x2a0] sm:$0xff]
      %v4576 = vld [vmem:[#allocation2 + $0x2b8] sm:$0xff]
      %v4577 = vld [vmem:[#allocation2 + $0x2d0] sm:$0xff]
      %v4578 = vld [vmem:[#allocation2 + $0x2e8] sm:$0xff]
      %v4579 = vld [vmem:[#allocation2 + $0x300] sm:$0xff]
      %v4580 = vld [vmem:[#allocation2 + $0x50] sm:$0xff]
      %v4581 = vld [vmem:[#allocation2 + $0x68] sm:$0xff]
      %v4582 = vld [vmem:[#allocation2 + $0x80] sm:$0xff]
      %v4583 = vld [vmem:[#allocation2 + $0x98] sm:$0xff]
      %v4584 = vld [vmem:[#allocation2 + $0xb0] sm:$0xff]
      %v4585 = vld [vmem:[#allocation2 + $0xc8] sm:$0xff]
      %v4586 = vld [vmem:[#allocation2 + $0xe0] sm:$0xff]
      %v4587 = vld [vmem:[#allocation2 + $0xf8] sm:$0xff]
      %v4588 = vld [vmem:[#allocation2 + $0x110] sm:$0xff]
      %v4589 = vld [vmem:[#allocation2 + $0x128] sm:$0xff]
      %v4590 = vld [vmem:[#allocation2 + $0x140] sm:$0xff]
      %v4591 = vld [vmem:[#allocation2 + $0x158] sm:$0xff]
      %v4592 = vld [vmem:[#allocation2 + $0x170] sm:$0xff]
      %v4593 = vld [vmem:[#allocation2 + $0x188] sm:$0xff]
      %v4594 = vld [vmem:[#allocation2 + $0x1a0] sm:$0xff]
      %v4595 = vld [vmem:[#allocation2 + $0x1b8] sm:$0xff]
      %v4596 = vld [vmem:[#allocation2 + $0x1d0] sm:$0xff]
      %v4597 = vld [vmem:[#allocation2 + $0x1e8] sm:$0xff]
      %v4598 = vld [vmem:[#allocation2 + $0x200] sm:$0xff]
      %v4599 = vld [vmem:[#allocation2 + $0x218] sm:$0xff]
      %v4600 = vld [vmem:[#allocation2 + $0x230] sm:$0xff]
      %v4601 = vld [vmem:[#allocation2 + $0x248] sm:$0xff]
      %v4602 = vld [vmem:[#allocation2 + $0x260] sm:$0xff]
      %v4603 = vld [vmem:[#allocation2 + $0x278] sm:$0xff]
      %v4604 = vld [vmem:[#allocation2 + $0x290] sm:$0xff]
      %v4605 = vld [vmem:[#allocation2 + $0x2a8] sm:$0xff]
      %v4606 = vld [vmem:[#allocation2 + $0x2c0] sm:$0xff]
      %v4607 = vld [vmem:[#allocation2 + $0x2d8] sm:$0xff]
      %v4608 = vld [vmem:[#allocation2 + $0x2f0] sm:$0xff]
      %v4609 = vld [vmem:[#allocation2 + $0x308] sm:$0xff]
      %v4610 = vld [vmem:[#allocation2 + $0x320] sm:$0xff]
      %v4611 = vld [vmem:[#allocation2 + $0x338] sm:$0xff]
      %4644 = vrot.lane.b32.xlu0 %v4580, 32
      %v4645 = vpop.permute.xlu0 %4644
      %4646 = vrot.lane.b32.xlu0 %v4581, 32
      %v4647 = vpop.permute.xlu0 %4646
      %4648 = vrot.lane.b32.xlu0 %v4582, 32
      %v4649 = vpop.permute.xlu0 %4648
      %4650 = vrot.lane.b32.xlu0 %v4583, 32
      %v4651 = vpop.permute.xlu0 %4650
      %4652 = vrot.lane.b32.xlu0 %v4584, 32
      %v4653 = vpop.permute.xlu0 %4652
      %4654 = vrot.lane.b32.xlu0 %v4585, 32
      %v4655 = vpop.permute.xlu0 %4654
      %4656 = vrot.lane.b32.xlu0 %v4586, 32
      %v4657 = vpop.permute.xlu0 %4656
      %4658 = vrot.lane.b32.xlu0 %v4587, 32
      %v4659 = vpop.permute.xlu0 %4658
      %4660 = vrot.lane.b32.xlu0 %v4588, 32
      %v4661 = vpop.permute.xlu0 %4660
      %4662 = vrot.lane.b32.xlu0 %v4589, 32
      %v4663 = vpop.permute.xlu0 %4662
      %4664 = vrot.lane.b32.xlu0 %v4590, 32
      %v4665 = vpop.permute.xlu0 %4664
      %4666 = vrot.lane.b32.xlu0 %v4591, 32
      %v4667 = vpop.permute.xlu0 %4666
      %4668 = vrot.lane.b32.xlu0 %v4592, 32
      %v4669 = vpop.permute.xlu0 %4668
      %4670 = vrot.lane.b32.xlu0 %v4593, 32
      %v4671 = vpop.permute.xlu0 %4670
      %4672 = vrot.lane.b32.xlu0 %v4594, 32
      %v4673 = vpop.permute.xlu0 %4672
      %4674 = vrot.lane.b32.xlu0 %v4595, 32
      %v4675 = vpop.permute.xlu0 %4674
      %4676 = vrot.lane.b32.xlu0 %v4596, 32
      %v4677 = vpop.permute.xlu0 %4676
      %4678 = vrot.lane.b32.xlu0 %v4597, 32
      %v4679 = vpop.permute.xlu0 %4678
      %4680 = vrot.lane.b32.xlu0 %v4598, 32
      %v4681 = vpop.permute.xlu0 %4680
      %4682 = vrot.lane.b32.xlu0 %v4599, 32
      %v4683 = vpop.permute.xlu0 %4682
      %4684 = vrot.lane.b32.xlu0 %v4600, 32
      %v4685 = vpop.permute.xlu0 %4684
      %4686 = vrot.lane.b32.xlu0 %v4601, 32
      %v4687 = vpop.permute.xlu0 %4686
      %4688 = vrot.lane.b32.xlu0 %v4602, 32
      %v4689 = vpop.permute.xlu0 %4688
      %4690 = vrot.lane.b32.xlu0 %v4603, 32
      %v4691 = vpop.permute.xlu0 %4690
      %4692 = vrot.lane.b32.xlu0 %v4604, 32
      %v4693 = vpop.permute.xlu0 %4692
      %4694 = vrot.lane.b32.xlu0 %v4605, 32
      %v4695 = vpop.permute.xlu0 %4694
      %4696 = vrot.lane.b32.xlu0 %v4606, 32
      %v4697 = vpop.permute.xlu0 %4696
      %4698 = vrot.lane.b32.xlu0 %v4607, 32
      %v4699 = vpop.permute.xlu0 %4698
      %4700 = vrot.lane.b32.xlu0 %v4608, 32
      %v4701 = vpop.permute.xlu0 %4700
      %4702 = vrot.lane.b32.xlu0 %v4609, 32
      %v4703 = vpop.permute.xlu0 %4702
      %4704 = vrot.lane.b32.xlu0 %v4610, 32
      %v4705 = vpop.permute.xlu0 %4704
      %4706 = vrot.lane.b32.xlu0 %v4611, 32
      %v4707 = vpop.permute.xlu0 %4706
      %v4740 = vadd.f32 %v4548, %v4645
      %v4741 = vadd.f32 %v4549, %v4647
      %v4742 = vadd.f32 %v4550, %v4649
      %v4743 = vadd.f32 %v4551, %v4651
      %v4744 = vadd.f32 %v4552, %v4653
      %v4745 = vadd.f32 %v4553, %v4655
      %v4746 = vadd.f32 %v4554, %v4657
      %v4747 = vadd.f32 %v4555, %v4659
      %v4748 = vadd.f32 %v4556, %v4661
      %v4749 = vadd.f32 %v4557, %v4663
      %v4750 = vadd.f32 %v4558, %v4665
      %v4751 = vadd.f32 %v4559, %v4667
      %v4752 = vadd.f32 %v4560, %v4669
      %v4753 = vadd.f32 %v4561, %v4671
      %v4754 = vadd.f32 %v4562, %v4673
      %v4755 = vadd.f32 %v4563, %v4675
      %v4756 = vadd.f32 %v4564, %v4677
      %v4757 = vadd.f32 %v4565, %v4679
      %v4758 = vadd.f32 %v4566, %v4681
      %v4759 = vadd.f32 %v4567, %v4683
      %v4760 = vadd.f32 %v4568, %v4685
      %v4761 = vadd.f32 %v4569, %v4687
      %v4762 = vadd.f32 %v4570, %v4689
      %v4763 = vadd.f32 %v4571, %v4691
      %v4764 = vadd.f32 %v4572, %v4693
      %v4765 = vadd.f32 %v4573, %v4695
      %v4766 = vadd.f32 %v4574, %v4697
      %v4767 = vadd.f32 %v4575, %v4699
      %v4768 = vadd.f32 %v4576, %v4701
      %v4769 = vadd.f32 %v4577, %v4703
      %v4770 = vadd.f32 %v4578, %v4705
      %v4771 = vadd.f32 %v4579, %v4707
      %v4772 = vld [vmem:[#allocation2 + $0x350] sm:$0xff]
      %v4773 = vld [vmem:[#allocation2 + $0x368] sm:$0xff]
      %4776 = vrot.lane.b32.xlu0 %v4582, 64
      %v4777 = vpop.permute.xlu0 %4776
      %4778 = vrot.lane.b32.xlu0 %v4583, 64
      %v4779 = vpop.permute.xlu0 %4778
      %4780 = vrot.lane.b32.xlu0 %v4584, 64
      %v4781 = vpop.permute.xlu0 %4780
      %4782 = vrot.lane.b32.xlu0 %v4585, 64
      %v4783 = vpop.permute.xlu0 %4782
      %4784 = vrot.lane.b32.xlu0 %v4586, 64
      %v4785 = vpop.permute.xlu0 %4784
      %4786 = vrot.lane.b32.xlu0 %v4587, 64
      %v4787 = vpop.permute.xlu0 %4786
      %4788 = vrot.lane.b32.xlu0 %v4588, 64
      %v4789 = vpop.permute.xlu0 %4788
      %4790 = vrot.lane.b32.xlu0 %v4589, 64
      %v4791 = vpop.permute.xlu0 %4790
      %4792 = vrot.lane.b32.xlu0 %v4590, 64
      %v4793 = vpop.permute.xlu0 %4792
      %4794 = vrot.lane.b32.xlu0 %v4591, 64
      %v4795 = vpop.permute.xlu0 %4794
      %4796 = vrot.lane.b32.xlu0 %v4592, 64
      %v4797 = vpop.permute.xlu0 %4796
      %4798 = vrot.lane.b32.xlu0 %v4593, 64
      %v4799 = vpop.permute.xlu0 %4798
      %4800 = vrot.lane.b32.xlu0 %v4594, 64
      %v4801 = vpop.permute.xlu0 %4800
      %4802 = vrot.lane.b32.xlu0 %v4595, 64
      %v4803 = vpop.permute.xlu0 %4802
      %4804 = vrot.lane.b32.xlu0 %v4596, 64
      %v4805 = vpop.permute.xlu0 %4804
      %4806 = vrot.lane.b32.xlu0 %v4597, 64
      %v4807 = vpop.permute.xlu0 %4806
      %4808 = vrot.lane.b32.xlu0 %v4598, 64
      %v4809 = vpop.permute.xlu0 %4808
      %4810 = vrot.lane.b32.xlu0 %v4599, 64
      %v4811 = vpop.permute.xlu0 %4810
      %4812 = vrot.lane.b32.xlu0 %v4600, 64
      %v4813 = vpop.permute.xlu0 %4812
      %4814 = vrot.lane.b32.xlu0 %v4601, 64
      %v4815 = vpop.permute.xlu0 %4814
      %4816 = vrot.lane.b32.xlu0 %v4602, 64
      %v4817 = vpop.permute.xlu0 %4816
      %4818 = vrot.lane.b32.xlu0 %v4603, 64
      %v4819 = vpop.permute.xlu0 %4818
      %4820 = vrot.lane.b32.xlu0 %v4604, 64
      %v4821 = vpop.permute.xlu0 %4820
      %4822 = vrot.lane.b32.xlu0 %v4605, 64
      %v4823 = vpop.permute.xlu0 %4822
      %4824 = vrot.lane.b32.xlu0 %v4606, 64
      %v4825 = vpop.permute.xlu0 %4824
      %4826 = vrot.lane.b32.xlu0 %v4607, 64
      %v4827 = vpop.permute.xlu0 %4826
      %4828 = vrot.lane.b32.xlu0 %v4608, 64
      %v4829 = vpop.permute.xlu0 %4828
      %4830 = vrot.lane.b32.xlu0 %v4609, 64
      %v4831 = vpop.permute.xlu0 %4830
      %4832 = vrot.lane.b32.xlu0 %v4610, 64
      %v4833 = vpop.permute.xlu0 %4832
      %4834 = vrot.lane.b32.xlu0 %v4611, 64
      %v4835 = vpop.permute.xlu0 %4834
      %4836 = vrot.lane.b32.xlu0 %v4772, 64
      %v4837 = vpop.permute.xlu0 %4836
      %4838 = vrot.lane.b32.xlu0 %v4773, 64
      %v4839 = vpop.permute.xlu0 %4838
      %v4872 = vadd.f32 %v4740, %v4777
      %v4873 = vadd.f32 %v4741, %v4779
      %v4874 = vadd.f32 %v4742, %v4781
      %v4875 = vadd.f32 %v4743, %v4783
      %v4876 = vadd.f32 %v4744, %v4785
      %v4877 = vadd.f32 %v4745, %v4787
      %v4878 = vadd.f32 %v4746, %v4789
      %v4879 = vadd.f32 %v4747, %v4791
      %v4880 = vadd.f32 %v4748, %v4793
      %v4881 = vadd.f32 %v4749, %v4795
      %v4882 = vadd.f32 %v4750, %v4797
      %v4883 = vadd.f32 %v4751, %v4799
      %v4884 = vadd.f32 %v4752, %v4801
      %v4885 = vadd.f32 %v4753, %v4803
      %v4886 = vadd.f32 %v4754, %v4805
      %v4887 = vadd.f32 %v4755, %v4807
      %v4888 = vadd.f32 %v4756, %v4809
      %v4889 = vadd.f32 %v4757, %v4811
      %v4890 = vadd.f32 %v4758, %v4813
      %v4891 = vadd.f32 %v4759, %v4815
      %v4892 = vadd.f32 %v4760, %v4817
      %v4893 = vadd.f32 %v4761, %v4819
      %v4894 = vadd.f32 %v4762, %v4821
      %v4895 = vadd.f32 %v4763, %v4823
      %v4896 = vadd.f32 %v4764, %v4825
      %v4897 = vadd.f32 %v4765, %v4827
      %v4898 = vadd.f32 %v4766, %v4829
      %v4899 = vadd.f32 %v4767, %v4831
      %v4900 = vadd.f32 %v4768, %v4833
      %v4901 = vadd.f32 %v4769, %v4835
      %v4902 = vadd.f32 %v4770, %v4837
      %v4903 = vadd.f32 %v4771, %v4839
      %v4904 = vld [vmem:[#allocation2] sm:$0x80]
      %v4905 = vld [vmem:[#allocation2 + $0x300] sm:$0x7f]
      %v4906 = vld [vmem:[#allocation2 + $0x30] sm:$0x80]
      %v4907 = vld [vmem:[#allocation2 + $0x318] sm:$0xff]
      %v4908 = vld [vmem:[#allocation2 + $0x330] sm:$0x7f]
      %4942 = vrot.lane.b32.xlu0 %v4906, 32
      %v4943 = vpop.permute.xlu0 %4942
      %4944 = vrot.lane.b32.xlu0 %v4550, 32
      %v4945 = vpop.permute.xlu0 %4944
      %4946 = vrot.lane.b32.xlu0 %v4551, 32
      %v4947 = vpop.permute.xlu0 %4946
      %4948 = vrot.lane.b32.xlu0 %v4552, 32
      %v4949 = vpop.permute.xlu0 %4948
      %4950 = vrot.lane.b32.xlu0 %v4553, 32
      %v4951 = vpop.permute.xlu0 %4950
      %4952 = vrot.lane.b32.xlu0 %v4554, 32
      %v4953 = vpop.permute.xlu0 %4952
      %4954 = vrot.lane.b32.xlu0 %v4555, 32
      %v4955 = vpop.permute.xlu0 %4954
      %4956 = vrot.lane.b32.xlu0 %v4556, 32
      %v4957 = vpop.permute.xlu0 %4956
      %4958 = vrot.lane.b32.xlu0 %v4557, 32
      %v4959 = vpop.permute.xlu0 %4958
      %4960 = vrot.lane.b32.xlu0 %v4558, 32
      %v4961 = vpop.permute.xlu0 %4960
      %4962 = vrot.lane.b32.xlu0 %v4559, 32
      %v4963 = vpop.permute.xlu0 %4962
      %4964 = vrot.lane.b32.xlu0 %v4560, 32
      %v4965 = vpop.permute.xlu0 %4964
      %4966 = vrot.lane.b32.xlu0 %v4561, 32
      %v4967 = vpop.permute.xlu0 %4966
      %4968 = vrot.lane.b32.xlu0 %v4562, 32
      %v4969 = vpop.permute.xlu0 %4968
      %4970 = vrot.lane.b32.xlu0 %v4563, 32
      %v4971 = vpop.permute.xlu0 %4970
      %4972 = vrot.lane.b32.xlu0 %v4564, 32
      %v4973 = vpop.permute.xlu0 %4972
      %4974 = vrot.lane.b32.xlu0 %v4565, 32
      %v4975 = vpop.permute.xlu0 %4974
      %4976 = vrot.lane.b32.xlu0 %v4566, 32
      %v4977 = vpop.permute.xlu0 %4976
      %4978 = vrot.lane.b32.xlu0 %v4567, 32
      %v4979 = vpop.permute.xlu0 %4978
      %4980 = vrot.lane.b32.xlu0 %v4568, 32
      %v4981 = vpop.permute.xlu0 %4980
      %4982 = vrot.lane.b32.xlu0 %v4569, 32
      %v4983 = vpop.permute.xlu0 %4982
      %4984 = vrot.lane.b32.xlu0 %v4570, 32
      %v4985 = vpop.permute.xlu0 %4984
      %4986 = vrot.lane.b32.xlu0 %v4571, 32
      %v4987 = vpop.permute.xlu0 %4986
      %4988 = vrot.lane.b32.xlu0 %v4572, 32
      %v4989 = vpop.permute.xlu0 %4988
      %4990 = vrot.lane.b32.xlu0 %v4573, 32
      %v4991 = vpop.permute.xlu0 %4990
      %4992 = vrot.lane.b32.xlu0 %v4574, 32
      %v4993 = vpop.permute.xlu0 %4992
      %4994 = vrot.lane.b32.xlu0 %v4575, 32
      %v4995 = vpop.permute.xlu0 %4994
      %4996 = vrot.lane.b32.xlu0 %v4576, 32
      %v4997 = vpop.permute.xlu0 %4996
      %4998 = vrot.lane.b32.xlu0 %v4577, 32
      %v4999 = vpop.permute.xlu0 %4998
      %5000 = vrot.lane.b32.xlu0 %v4578, 32
      %v5001 = vpop.permute.xlu0 %5000
      %5002 = vrot.lane.b32.xlu0 %v4579, 32
      %v5003 = vpop.permute.xlu0 %5002
      %5004 = vrot.lane.b32.xlu0 %v4907, 32
      %v5005 = vpop.permute.xlu0 %5004
      %5006 = vrot.lane.b32.xlu0 %v4908, 32
      %v5007 = vpop.permute.xlu0 %5006
      %v5041 = vadd.f32 %v4904, %v4943
      %v5042 = vadd.f32 %v4548, %v4945
      %v5043 = vadd.f32 %v4549, %v4947
      %v5044 = vadd.f32 %v4550, %v4949
      %v5045 = vadd.f32 %v4551, %v4951
      %v5046 = vadd.f32 %v4552, %v4953
      %v5047 = vadd.f32 %v4553, %v4955
      %v5048 = vadd.f32 %v4554, %v4957
      %v5049 = vadd.f32 %v4555, %v4959
      %v5050 = vadd.f32 %v4556, %v4961
      %v5051 = vadd.f32 %v4557, %v4963
      %v5052 = vadd.f32 %v4558, %v4965
      %v5053 = vadd.f32 %v4559, %v4967
      %v5054 = vadd.f32 %v4560, %v4969
      %v5055 = vadd.f32 %v4561, %v4971
      %v5056 = vadd.f32 %v4562, %v4973
      %v5057 = vadd.f32 %v4563, %v4975
      %v5058 = vadd.f32 %v4564, %v4977
      %v5059 = vadd.f32 %v4565, %v4979
      %v5060 = vadd.f32 %v4566, %v4981
      %v5061 = vadd.f32 %v4567, %v4983
      %v5062 = vadd.f32 %v4568, %v4985
      %v5063 = vadd.f32 %v4569, %v4987
      %v5064 = vadd.f32 %v4570, %v4989
      %v5065 = vadd.f32 %v4571, %v4991
      %v5066 = vadd.f32 %v4572, %v4993
      %v5067 = vadd.f32 %v4573, %v4995
      %v5068 = vadd.f32 %v4574, %v4997
      %v5069 = vadd.f32 %v4575, %v4999
      %v5070 = vadd.f32 %v4576, %v5001
      %v5071 = vadd.f32 %v4577, %v5003
      %v5072 = vadd.f32 %v4578, %v5005
      %v5073 = vadd.f32 %v4905, %v5007
      %v5074 = vld [vmem:[#allocation2 + $0x68] sm:$0x80]
      %v5075 = vld [vmem:[#allocation2 + $0x368] sm:$0x7f]
      %5078 = vrot.lane.b32.xlu0 %v5074, 64
      %v5079 = vpop.permute.xlu0 %5078
      %5080 = vrot.lane.b32.xlu0 %v5075, 64
      %v5081 = vpop.permute.xlu0 %5080
      %v5084 = vadd.f32 %v5041, %v5079
      %v5085 = vadd.f32 %v5042, %v4777
      %v5086 = vadd.f32 %v5043, %v4779
      %v5087 = vadd.f32 %v5044, %v4781
      %v5088 = vadd.f32 %v5045, %v4783
      %v5089 = vadd.f32 %v5046, %v4785
      %v5090 = vadd.f32 %v5047, %v4787
      %v5091 = vadd.f32 %v5048, %v4789
      %v5092 = vadd.f32 %v5049, %v4791
      %v5093 = vadd.f32 %v5050, %v4793
      %v5094 = vadd.f32 %v5051, %v4795
      %v5095 = vadd.f32 %v5052, %v4797
      %v5096 = vadd.f32 %v5053, %v4799
      %v5097 = vadd.f32 %v5054, %v4801
      %v5098 = vadd.f32 %v5055, %v4803
      %v5099 = vadd.f32 %v5056, %v4805
      %v5100 = vadd.f32 %v5057, %v4807
      %v5101 = vadd.f32 %v5058, %v4809
      %v5102 = vadd.f32 %v5059, %v4811
      %v5103 = vadd.f32 %v5060, %v4813
      %v5104 = vadd.f32 %v5061, %v4815
      %v5105 = vadd.f32 %v5062, %v4817
      %v5106 = vadd.f32 %v5063, %v4819
      %v5107 = vadd.f32 %v5064, %v4821
      %v5108 = vadd.f32 %v5065, %v4823
      %v5109 = vadd.f32 %v5066, %v4825
      %v5110 = vadd.f32 %v5067, %v4827
      %v5111 = vadd.f32 %v5068, %v4829
      %v5112 = vadd.f32 %v5069, %v4831
      %v5113 = vadd.f32 %v5070, %v4833
      %v5114 = vadd.f32 %v5071, %v4835
      %v5115 = vadd.f32 %v5072, %v4837
      %v5116 = vadd.f32 %v5073, %v5081
      %v5117 = vld [vmem:[#allocation2 + $0x18] sm:$0xfe]
      %v5118 = vld [vmem:[#allocation2 + $0x318] sm:$0x1]
      %v5119 = vld [vmem:[#allocation2 + $0x50] sm:$0xfe]
      %v5120 = vld [vmem:[#allocation2 + $0x350] sm:$0x1]
      %5123 = vrot.lane.b32.xlu0 %v5119, 32
      %v5124 = vpop.permute.xlu0 %5123
      %5125 = vrot.lane.b32.xlu0 %v5120, 32
      %v5126 = vpop.permute.xlu0 %5125
      %v5129 = vadd.f32 %v5117, %v5124
      %v5130 = vadd.f32 %v5118, %v5126
      %v5131 = vld [vmem:[#allocation2 + $0x88] sm:$0xfe]
      %v5132 = vld [vmem:[#allocation2 + $0xa0] sm:$0xff]
      %v5133 = vld [vmem:[#allocation2 + $0xb8] sm:$0xff]
      %v5134 = vld [vmem:[#allocation2 + $0xd0] sm:$0xff]
      %v5135 = vld [vmem:[#allocation2 + $0xe8] sm:$0xff]
      %v5136 = vld [vmem:[#allocation2 + $0x100] sm:$0xff]
      %v5137 = vld [vmem:[#allocation2 + $0x118] sm:$0xff]
      %v5138 = vld [vmem:[#allocation2 + $0x130] sm:$0xff]
      %v5139 = vld [vmem:[#allocation2 + $0x148] sm:$0xff]
      %v5140 = vld [vmem:[#allocation2 + $0x160] sm:$0xff]
      %v5141 = vld [vmem:[#allocation2 + $0x178] sm:$0xff]
      %v5142 = vld [vmem:[#allocation2 + $0x190] sm:$0xff]
      %v5143 = vld [vmem:[#allocation2 + $0x1a8] sm:$0xff]
      %v5144 = vld [vmem:[#allocation2 + $0x1c0] sm:$0xff]
      %v5145 = vld [vmem:[#allocation2 + $0x1d8] sm:$0xff]
      %v5146 = vld [vmem:[#allocation2 + $0x1f0] sm:$0xff]
      %v5147 = vld [vmem:[#allocation2 + $0x208] sm:$0xff]
      %v5148 = vld [vmem:[#allocation2 + $0x220] sm:$0xff]
      %v5149 = vld [vmem:[#allocation2 + $0x238] sm:$0xff]
      %v5150 = vld [vmem:[#allocation2 + $0x250] sm:$0xff]
      %v5151 = vld [vmem:[#allocation2 + $0x268] sm:$0xff]
      %v5152 = vld [vmem:[#allocation2 + $0x280] sm:$0xff]
      %v5153 = vld [vmem:[#allocation2 + $0x298] sm:$0xff]
      %v5154 = vld [vmem:[#allocation2 + $0x2b0] sm:$0xff]
      %v5155 = vld [vmem:[#allocation2 + $0x2c8] sm:$0xff]
      %v5156 = vld [vmem:[#allocation2 + $0x2e0] sm:$0xff]
      %v5157 = vld [vmem:[#allocation2 + $0x2f8] sm:$0xff]
      %v5158 = vld [vmem:[#allocation2 + $0x310] sm:$0xff]
      %v5159 = vld [vmem:[#allocation2 + $0x328] sm:$0xff]
      %v5160 = vld [vmem:[#allocation2 + $0x340] sm:$0xff]
      %v5161 = vld [vmem:[#allocation2 + $0x358] sm:$0xff]
      %v5162 = vld [vmem:[#allocation2 + $0x370] sm:$0xff]
      %v5163 = vld [vmem:[#allocation2 + $0x388] sm:$0x1]
      %5197 = vrot.lane.b32.xlu0 %v5131, 64
      %v5198 = vpop.permute.xlu0 %5197
      %5199 = vrot.lane.b32.xlu0 %v5132, 64
      %v5200 = vpop.permute.xlu0 %5199
      %5201 = vrot.lane.b32.xlu0 %v5133, 64
      %v5202 = vpop.permute.xlu0 %5201
      %5203 = vrot.lane.b32.xlu0 %v5134, 64
      %v5204 = vpop.permute.xlu0 %5203
      %5205 = vrot.lane.b32.xlu0 %v5135, 64
      %v5206 = vpop.permute.xlu0 %5205
      %5207 = vrot.lane.b32.xlu0 %v5136, 64
      %v5208 = vpop.permute.xlu0 %5207
      %5209 = vrot.lane.b32.xlu0 %v5137, 64
      %v5210 = vpop.permute.xlu0 %5209
      %5211 = vrot.lane.b32.xlu0 %v5138, 64
      %v5212 = vpop.permute.xlu0 %5211
      %5213 = vrot.lane.b32.xlu0 %v5139, 64
      %v5214 = vpop.permute.xlu0 %5213
      %5215 = vrot.lane.b32.xlu0 %v5140, 64
      %v5216 = vpop.permute.xlu0 %5215
      %5217 = vrot.lane.b32.xlu0 %v5141, 64
      %v5218 = vpop.permute.xlu0 %5217
      %5219 = vrot.lane.b32.xlu0 %v5142, 64
      %v5220 = vpop.permute.xlu0 %5219
      %5221 = vrot.lane.b32.xlu0 %v5143, 64
      %v5222 = vpop.permute.xlu0 %5221
      %5223 = vrot.lane.b32.xlu0 %v5144, 64
      %v5224 = vpop.permute.xlu0 %5223
      %5225 = vrot.lane.b32.xlu0 %v5145, 64
      %v5226 = vpop.permute.xlu0 %5225
      %5227 = vrot.lane.b32.xlu0 %v5146, 64
      %v5228 = vpop.permute.xlu0 %5227
      %5229 = vrot.lane.b32.xlu0 %v5147, 64
      %v5230 = vpop.permute.xlu0 %5229
      %5231 = vrot.lane.b32.xlu0 %v5148, 64
      %v5232 = vpop.permute.xlu0 %5231
      %5233 = vrot.lane.b32.xlu0 %v5149, 64
      %v5234 = vpop.permute.xlu0 %5233
      %5235 = vrot.lane.b32.xlu0 %v5150, 64
      %v5236 = vpop.permute.xlu0 %5235
      %5237 = vrot.lane.b32.xlu0 %v5151, 64
      %v5238 = vpop.permute.xlu0 %5237
      %5239 = vrot.lane.b32.xlu0 %v5152, 64
      %v5240 = vpop.permute.xlu0 %5239
      %5241 = vrot.lane.b32.xlu0 %v5153, 64
      %v5242 = vpop.permute.xlu0 %5241
      %5243 = vrot.lane.b32.xlu0 %v5154, 64
      %v5244 = vpop.permute.xlu0 %5243
      %5245 = vrot.lane.b32.xlu0 %v5155, 64
      %v5246 = vpop.permute.xlu0 %5245
      %5247 = vrot.lane.b32.xlu0 %v5156, 64
      %v5248 = vpop.permute.xlu0 %5247
      %5249 = vrot.lane.b32.xlu0 %v5157, 64
      %v5250 = vpop.permute.xlu0 %5249
      %5251 = vrot.lane.b32.xlu0 %v5158, 64
      %v5252 = vpop.permute.xlu0 %5251
      %5253 = vrot.lane.b32.xlu0 %v5159, 64
      %v5254 = vpop.permute.xlu0 %5253
      %5255 = vrot.lane.b32.xlu0 %v5160, 64
      %v5256 = vpop.permute.xlu0 %5255
      %5257 = vrot.lane.b32.xlu0 %v5161, 64
      %v5258 = vpop.permute.xlu0 %5257
      %5259 = vrot.lane.b32.xlu0 %v5162, 64
      %v5260 = vpop.permute.xlu0 %5259
      %5261 = vrot.lane.b32.xlu0 %v5163, 64
      %v5262 = vpop.permute.xlu0 %5261
      %v5296 = vadd.f32 %v5129, %v5198
      %v5297 = vadd.f32 %v4741, %v5200
      %v5298 = vadd.f32 %v4742, %v5202
      %v5299 = vadd.f32 %v4743, %v5204
      %v5300 = vadd.f32 %v4744, %v5206
      %v5301 = vadd.f32 %v4745, %v5208
      %v5302 = vadd.f32 %v4746, %v5210
      %v5303 = vadd.f32 %v4747, %v5212
      %v5304 = vadd.f32 %v4748, %v5214
      %v5305 = vadd.f32 %v4749, %v5216
      %v5306 = vadd.f32 %v4750, %v5218
      %v5307 = vadd.f32 %v4751, %v5220
      %v5308 = vadd.f32 %v4752, %v5222
      %v5309 = vadd.f32 %v4753, %v5224
      %v5310 = vadd.f32 %v4754, %v5226
      %v5311 = vadd.f32 %v4755, %v5228
      %v5312 = vadd.f32 %v4756, %v5230
      %v5313 = vadd.f32 %v4757, %v5232
      %v5314 = vadd.f32 %v4758, %v5234
      %v5315 = vadd.f32 %v4759, %v5236
      %v5316 = vadd.f32 %v4760, %v5238
      %v5317 = vadd.f32 %v4761, %v5240
      %v5318 = vadd.f32 %v4762, %v5242
      %v5319 = vadd.f32 %v4763, %v5244
      %v5320 = vadd.f32 %v4764, %v5246
      %v5321 = vadd.f32 %v4765, %v5248
      %v5322 = vadd.f32 %v4766, %v5250
      %v5323 = vadd.f32 %v4767, %v5252
      %v5324 = vadd.f32 %v4768, %v5254
      %v5325 = vadd.f32 %v4769, %v5256
      %v5326 = vadd.f32 %v4770, %v5258
      %v5327 = vadd.f32 %v4771, %v5260
      %v5328 = vadd.f32 %v5130, %v5262
      %v5329 = vmul.f32 %v5084, %v2661
      %v5330 = vmul.f32 %v5085, %v2663
      %v5331 = vmul.f32 %v5086, %v2665
      %v5332 = vmul.f32 %v5087, %v2667
      %v5333 = vmul.f32 %v5088, %v2669
      %v5334 = vmul.f32 %v5089, %v2671
      %v5335 = vmul.f32 %v5090, %v2673
      %v5336 = vmul.f32 %v5091, %v2675
      %v5337 = vmul.f32 %v5092, %v2677
      %v5338 = vmul.f32 %v5093, %v2679
      %v5339 = vmul.f32 %v5094, %v2681
      %v5340 = vmul.f32 %v5095, %v2683
      %v5341 = vmul.f32 %v5096, %v2685
      %v5342 = vmul.f32 %v5097, %v2687
      %v5343 = vmul.f32 %v5098, %v2689
      %v5344 = vmul.f32 %v5099, %v2691
      %v5345 = vmul.f32 %v5100, %v2693
      %v5346 = vmul.f32 %v5101, %v2695
      %v5347 = vmul.f32 %v5102, %v2697
      %v5348 = vmul.f32 %v5103, %v2699
      %v5349 = vmul.f32 %v5104, %v2701
      %v5350 = vmul.f32 %v5105, %v2703
      %v5351 = vmul.f32 %v5106, %v2705
      %v5352 = vmul.f32 %v5107, %v2707
      %v5353 = vmul.f32 %v5108, %v2709
      %v5354 = vmul.f32 %v5109, %v2711
      %v5355 = vmul.f32 %v5110, %v2713
      %v5356 = vmul.f32 %v5111, %v2715
      %v5357 = vmul.f32 %v5112, %v2717
      %v5358 = vmul.f32 %v5113, %v2719
      %v5359 = vmul.f32 %v5114, %v2721
      %v5360 = vmul.f32 %v5115, %v2723
      %v5361 = vmul.f32 %v5116, %v2722
      %v5395 = vrot.slane %v5329, 7
      %v5396 = vrot.slane %v5330, 7
      %v5397 = vsel %vm2823, %v5395, %v5396
      %v5398 = vrot.slane %v5331, 7
      %v5399 = vsel %vm2823, %v5396, %v5398
      %v5400 = vrot.slane %v5332, 7
      %v5401 = vsel %vm2823, %v5398, %v5400
      %v5402 = vrot.slane %v5333, 7
      %v5403 = vsel %vm2823, %v5400, %v5402
      %v5404 = vrot.slane %v5334, 7
      %v5405 = vsel %vm2823, %v5402, %v5404
      %v5406 = vrot.slane %v5335, 7
      %v5407 = vsel %vm2823, %v5404, %v5406
      %v5408 = vrot.slane %v5336, 7
      %v5409 = vsel %vm2823, %v5406, %v5408
      %v5410 = vrot.slane %v5337, 7
      %v5411 = vsel %vm2823, %v5408, %v5410
      %v5412 = vrot.slane %v5338, 7
      %v5413 = vsel %vm2823, %v5410, %v5412
      %v5414 = vrot.slane %v5339, 7
      %v5415 = vsel %vm2823, %v5412, %v5414
      %v5416 = vrot.slane %v5340, 7
      %v5417 = vsel %vm2823, %v5414, %v5416
      %v5418 = vrot.slane %v5341, 7
      %v5419 = vsel %vm2823, %v5416, %v5418
      %v5420 = vrot.slane %v5342, 7
      %v5421 = vsel %vm2823, %v5418, %v5420
      %v5422 = vrot.slane %v5343, 7
      %v5423 = vsel %vm2823, %v5420, %v5422
      %v5424 = vrot.slane %v5344, 7
      %v5425 = vsel %vm2823, %v5422, %v5424
      %v5426 = vrot.slane %v5345, 7
      %v5427 = vsel %vm2823, %v5424, %v5426
      %v5428 = vrot.slane %v5346, 7
      %v5429 = vsel %vm2823, %v5426, %v5428
      %v5430 = vrot.slane %v5347, 7
      %v5431 = vsel %vm2823, %v5428, %v5430
      %v5432 = vrot.slane %v5348, 7
      %v5433 = vsel %vm2823, %v5430, %v5432
      %v5434 = vrot.slane %v5349, 7
      %v5435 = vsel %vm2823, %v5432, %v5434
      %v5436 = vrot.slane %v5350, 7
      %v5437 = vsel %vm2823, %v5434, %v5436
      %v5438 = vrot.slane %v5351, 7
      %v5439 = vsel %vm2823, %v5436, %v5438
      %v5440 = vrot.slane %v5352, 7
      %v5441 = vsel %vm2823, %v5438, %v5440
      %v5442 = vrot.slane %v5353, 7
      %v5443 = vsel %vm2823, %v5440, %v5442
      %v5444 = vrot.slane %v5354, 7
      %v5445 = vsel %vm2823, %v5442, %v5444
      %v5446 = vrot.slane %v5355, 7
      %v5447 = vsel %vm2823, %v5444, %v5446
      %v5448 = vrot.slane %v5356, 7
      %v5449 = vsel %vm2823, %v5446, %v5448
      %v5450 = vrot.slane %v5357, 7
      %v5451 = vsel %vm2823, %v5448, %v5450
      %v5452 = vrot.slane %v5358, 7
      %v5453 = vsel %vm2823, %v5450, %v5452
      %v5454 = vrot.slane %v5359, 7
      %v5455 = vsel %vm2823, %v5452, %v5454
      %v5456 = vrot.slane %v5360, 7
      %v5457 = vsel %vm2823, %v5454, %v5456
      %v5458 = vrot.slane %v5361, 7
      %v5459 = vsel %vm2823, %v5456, %v5458
      %5460 = vrot.lane.b32.xlu0 %v5397, 32
      %v5461 = vpop.permute.xlu0 %5460
      %5462 = vrot.lane.b32.xlu0 %v5399, 32
      %v5463 = vpop.permute.xlu0 %5462
      %5464 = vrot.lane.b32.xlu0 %v5401, 32
      %v5465 = vpop.permute.xlu0 %5464
      %5466 = vrot.lane.b32.xlu0 %v5403, 32
      %v5467 = vpop.permute.xlu0 %5466
      %5468 = vrot.lane.b32.xlu0 %v5405, 32
      %v5469 = vpop.permute.xlu0 %5468
      %5470 = vrot.lane.b32.xlu0 %v5407, 32
      %v5471 = vpop.permute.xlu0 %5470
      %5472 = vrot.lane.b32.xlu0 %v5409, 32
      %v5473 = vpop.permute.xlu0 %5472
      %5474 = vrot.lane.b32.xlu0 %v5411, 32
      %v5475 = vpop.permute.xlu0 %5474
      %5476 = vrot.lane.b32.xlu0 %v5413, 32
      %v5477 = vpop.permute.xlu0 %5476
      %5478 = vrot.lane.b32.xlu0 %v5415, 32
      %v5479 = vpop.permute.xlu0 %5478
      %5480 = vrot.lane.b32.xlu0 %v5417, 32
      %v5481 = vpop.permute.xlu0 %5480
      %5482 = vrot.lane.b32.xlu0 %v5419, 32
      %v5483 = vpop.permute.xlu0 %5482
      %5484 = vrot.lane.b32.xlu0 %v5421, 32
      %v5485 = vpop.permute.xlu0 %5484
      %5486 = vrot.lane.b32.xlu0 %v5423, 32
      %v5487 = vpop.permute.xlu0 %5486
      %5488 = vrot.lane.b32.xlu0 %v5425, 32
      %v5489 = vpop.permute.xlu0 %5488
      %5490 = vrot.lane.b32.xlu0 %v5427, 32
      %v5491 = vpop.permute.xlu0 %5490
      %5492 = vrot.lane.b32.xlu0 %v5429, 32
      %v5493 = vpop.permute.xlu0 %5492
      %5494 = vrot.lane.b32.xlu0 %v5431, 32
      %v5495 = vpop.permute.xlu0 %5494
      %5496 = vrot.lane.b32.xlu0 %v5433, 32
      %v5497 = vpop.permute.xlu0 %5496
      %5498 = vrot.lane.b32.xlu0 %v5435, 32
      %v5499 = vpop.permute.xlu0 %5498
      %5500 = vrot.lane.b32.xlu0 %v5437, 32
      %v5501 = vpop.permute.xlu0 %5500
      %5502 = vrot.lane.b32.xlu0 %v5439, 32
      %v5503 = vpop.permute.xlu0 %5502
      %5504 = vrot.lane.b32.xlu0 %v5441, 32
      %v5505 = vpop.permute.xlu0 %5504
      %5506 = vrot.lane.b32.xlu0 %v5443, 32
      %v5507 = vpop.permute.xlu0 %5506
      %5508 = vrot.lane.b32.xlu0 %v5445, 32
      %v5509 = vpop.permute.xlu0 %5508
      %5510 = vrot.lane.b32.xlu0 %v5447, 32
      %v5511 = vpop.permute.xlu0 %5510
      %5512 = vrot.lane.b32.xlu0 %v5449, 32
      %v5513 = vpop.permute.xlu0 %5512
      %5514 = vrot.lane.b32.xlu0 %v5451, 32
      %v5515 = vpop.permute.xlu0 %5514
      %5516 = vrot.lane.b32.xlu0 %v5453, 32
      %v5517 = vpop.permute.xlu0 %5516
      %5518 = vrot.lane.b32.xlu0 %v5455, 32
      %v5519 = vpop.permute.xlu0 %5518
      %5520 = vrot.lane.b32.xlu0 %v5457, 32
      %v5521 = vpop.permute.xlu0 %5520
      %5522 = vrot.lane.b32.xlu0 %v5459, 32
      %v5523 = vpop.permute.xlu0 %5522
      %v5556 = vadd.f32 %v4872, %v5461
      %v5557 = vadd.f32 %v4873, %v5463
      %v5558 = vadd.f32 %v4874, %v5465
      %v5559 = vadd.f32 %v4875, %v5467
      %v5560 = vadd.f32 %v4876, %v5469
      %v5561 = vadd.f32 %v4877, %v5471
      %v5562 = vadd.f32 %v4878, %v5473
      %v5563 = vadd.f32 %v4879, %v5475
      %v5564 = vadd.f32 %v4880, %v5477
      %v5565 = vadd.f32 %v4881, %v5479
      %v5566 = vadd.f32 %v4882, %v5481
      %v5567 = vadd.f32 %v4883, %v5483
      %v5568 = vadd.f32 %v4884, %v5485
      %v5569 = vadd.f32 %v4885, %v5487
      %v5570 = vadd.f32 %v4886, %v5489
      %v5571 = vadd.f32 %v4887, %v5491
      %v5572 = vadd.f32 %v4888, %v5493
      %v5573 = vadd.f32 %v4889, %v5495
      %v5574 = vadd.f32 %v4890, %v5497
      %v5575 = vadd.f32 %v4891, %v5499
      %v5576 = vadd.f32 %v4892, %v5501
      %v5577 = vadd.f32 %v4893, %v5503
      %v5578 = vadd.f32 %v4894, %v5505
      %v5579 = vadd.f32 %v4895, %v5507
      %v5580 = vadd.f32 %v4896, %v5509
      %v5581 = vadd.f32 %v4897, %v5511
      %v5582 = vadd.f32 %v4898, %v5513
      %v5583 = vadd.f32 %v4899, %v5515
      %v5584 = vadd.f32 %v4900, %v5517
      %v5585 = vadd.f32 %v4901, %v5519
      %v5586 = vadd.f32 %v4902, %v5521
      %v5587 = vadd.f32 %v4903, %v5523
      %v5588 = vmul.f32 %v5296, %v3049
      %v5589 = vmul.f32 %v5297, %v3051
      %v5590 = vmul.f32 %v5298, %v3053
      %v5591 = vmul.f32 %v5299, %v3055
      %v5592 = vmul.f32 %v5300, %v3057
      %v5593 = vmul.f32 %v5301, %v3059
      %v5594 = vmul.f32 %v5302, %v3061
      %v5595 = vmul.f32 %v5303, %v3063
      %v5596 = vmul.f32 %v5304, %v3065
      %v5597 = vmul.f32 %v5305, %v3067
      %v5598 = vmul.f32 %v5306, %v3069
      %v5599 = vmul.f32 %v5307, %v3071
      %v5600 = vmul.f32 %v5308, %v3073
      %v5601 = vmul.f32 %v5309, %v3075
      %v5602 = vmul.f32 %v5310, %v3077
      %v5603 = vmul.f32 %v5311, %v3079
      %v5604 = vmul.f32 %v5312, %v3081
      %v5605 = vmul.f32 %v5313, %v3083
      %v5606 = vmul.f32 %v5314, %v3085
      %v5607 = vmul.f32 %v5315, %v3087
      %v5608 = vmul.f32 %v5316, %v3089
      %v5609 = vmul.f32 %v5317, %v3091
      %v5610 = vmul.f32 %v5318, %v3093
      %v5611 = vmul.f32 %v5319, %v3095
      %v5612 = vmul.f32 %v5320, %v3097
      %v5613 = vmul.f32 %v5321, %v3099
      %v5614 = vmul.f32 %v5322, %v3101
      %v5615 = vmul.f32 %v5323, %v3103
      %v5616 = vmul.f32 %v5324, %v3105
      %v5617 = vmul.f32 %v5325, %v3107
      %v5618 = vmul.f32 %v5326, %v3109
      %v5619 = vmul.f32 %v5327, %v3111
      %v5620 = vmul.f32 %v5328, %v3110
      %v5654 = vrot.slane %v5588, 1
      %v5655 = vrot.slane %v5589, 1
      %v5656 = vsel %vm2660, %v5654, %v5655
      %v5657 = vrot.slane %v5590, 1
      %v5658 = vsel %vm2660, %v5655, %v5657
      %v5659 = vrot.slane %v5591, 1
      %v5660 = vsel %vm2660, %v5657, %v5659
      %v5661 = vrot.slane %v5592, 1
      %v5662 = vsel %vm2660, %v5659, %v5661
      %v5663 = vrot.slane %v5593, 1
      %v5664 = vsel %vm2660, %v5661, %v5663
      %v5665 = vrot.slane %v5594, 1
      %v5666 = vsel %vm2660, %v5663, %v5665
      %v5667 = vrot.slane %v5595, 1
      %v5668 = vsel %vm2660, %v5665, %v5667
      %v5669 = vrot.slane %v5596, 1
      %v5670 = vsel %vm2660, %v5667, %v5669
      %v5671 = vrot.slane %v5597, 1
      %v5672 = vsel %vm2660, %v5669, %v5671
      %v5673 = vrot.slane %v5598, 1
      %v5674 = vsel %vm2660, %v5671, %v5673
      %v5675 = vrot.slane %v5599, 1
      %v5676 = vsel %vm2660, %v5673, %v5675
      %v5677 = vrot.slane %v5600, 1
      %v5678 = vsel %vm2660, %v5675, %v5677
      %v5679 = vrot.slane %v5601, 1
      %v5680 = vsel %vm2660, %v5677, %v5679
      %v5681 = vrot.slane %v5602, 1
      %v5682 = vsel %vm2660, %v5679, %v5681
      %v5683 = vrot.slane %v5603, 1
      %v5684 = vsel %vm2660, %v5681, %v5683
      %v5685 = vrot.slane %v5604, 1
      %v5686 = vsel %vm2660, %v5683, %v5685
      %v5687 = vrot.slane %v5605, 1
      %v5688 = vsel %vm2660, %v5685, %v5687
      %v5689 = vrot.slane %v5606, 1
      %v5690 = vsel %vm2660, %v5687, %v5689
      %v5691 = vrot.slane %v5607, 1
      %v5692 = vsel %vm2660, %v5689, %v5691
      %v5693 = vrot.slane %v5608, 1
      %v5694 = vsel %vm2660, %v5691, %v5693
      %v5695 = vrot.slane %v5609, 1
      %v5696 = vsel %vm2660, %v5693, %v5695
      %v5697 = vrot.slane %v5610, 1
      %v5698 = vsel %vm2660, %v5695, %v5697
      %v5699 = vrot.slane %v5611, 1
      %v5700 = vsel %vm2660, %v5697, %v5699
      %v5701 = vrot.slane %v5612, 1
      %v5702 = vsel %vm2660, %v5699, %v5701
      %v5703 = vrot.slane %v5613, 1
      %v5704 = vsel %vm2660, %v5701, %v5703
      %v5705 = vrot.slane %v5614, 1
      %v5706 = vsel %vm2660, %v5703, %v5705
      %v5707 = vrot.slane %v5615, 1
      %v5708 = vsel %vm2660, %v5705, %v5707
      %v5709 = vrot.slane %v5616, 1
      %v5710 = vsel %vm2660, %v5707, %v5709
      %v5711 = vrot.slane %v5617, 1
      %v5712 = vsel %vm2660, %v5709, %v5711
      %v5713 = vrot.slane %v5618, 1
      %v5714 = vsel %vm2660, %v5711, %v5713
      %v5715 = vrot.slane %v5619, 1
      %v5716 = vsel %vm2660, %v5713, %v5715
      %v5717 = vrot.slane %v5620, 1
      %v5718 = vsel %vm2660, %v5715, %v5717
      %5719 = vrot.lane.b32.xlu0 %v5656, 96
      %v5720 = vpop.permute.xlu0 %5719
      %5721 = vrot.lane.b32.xlu0 %v5658, 96
      %v5722 = vpop.permute.xlu0 %5721
      %5723 = vrot.lane.b32.xlu0 %v5660, 96
      %v5724 = vpop.permute.xlu0 %5723
      %5725 = vrot.lane.b32.xlu0 %v5662, 96
      %v5726 = vpop.permute.xlu0 %5725
      %5727 = vrot.lane.b32.xlu0 %v5664, 96
      %v5728 = vpop.permute.xlu0 %5727
      %5729 = vrot.lane.b32.xlu0 %v5666, 96
      %v5730 = vpop.permute.xlu0 %5729
      %5731 = vrot.lane.b32.xlu0 %v5668, 96
      %v5732 = vpop.permute.xlu0 %5731
      %5733 = vrot.lane.b32.xlu0 %v5670, 96
      %v5734 = vpop.permute.xlu0 %5733
      %5735 = vrot.lane.b32.xlu0 %v5672, 96
      %v5736 = vpop.permute.xlu0 %5735
      %5737 = vrot.lane.b32.xlu0 %v5674, 96
      %v5738 = vpop.permute.xlu0 %5737
      %5739 = vrot.lane.b32.xlu0 %v5676, 96
      %v5740 = vpop.permute.xlu0 %5739
      %5741 = vrot.lane.b32.xlu0 %v5678, 96
      %v5742 = vpop.permute.xlu0 %5741
      %5743 = vrot.lane.b32.xlu0 %v5680, 96
      %v5744 = vpop.permute.xlu0 %5743
      %5745 = vrot.lane.b32.xlu0 %v5682, 96
      %v5746 = vpop.permute.xlu0 %5745
      %5747 = vrot.lane.b32.xlu0 %v5684, 96
      %v5748 = vpop.permute.xlu0 %5747
      %5749 = vrot.lane.b32.xlu0 %v5686, 96
      %v5750 = vpop.permute.xlu0 %5749
      %5751 = vrot.lane.b32.xlu0 %v5688, 96
      %v5752 = vpop.permute.xlu0 %5751
      %5753 = vrot.lane.b32.xlu0 %v5690, 96
      %v5754 = vpop.permute.xlu0 %5753
      %5755 = vrot.lane.b32.xlu0 %v5692, 96
      %v5756 = vpop.permute.xlu0 %5755
      %5757 = vrot.lane.b32.xlu0 %v5694, 96
      %v5758 = vpop.permute.xlu0 %5757
      %5759 = vrot.lane.b32.xlu0 %v5696, 96
      %v5760 = vpop.permute.xlu0 %5759
      %5761 = vrot.lane.b32.xlu0 %v5698, 96
      %v5762 = vpop.permute.xlu0 %5761
      %5763 = vrot.lane.b32.xlu0 %v5700, 96
      %v5764 = vpop.permute.xlu0 %5763
      %5765 = vrot.lane.b32.xlu0 %v5702, 96
      %v5766 = vpop.permute.xlu0 %5765
      %5767 = vrot.lane.b32.xlu0 %v5704, 96
      %v5768 = vpop.permute.xlu0 %5767
      %5769 = vrot.lane.b32.xlu0 %v5706, 96
      %v5770 = vpop.permute.xlu0 %5769
      %5771 = vrot.lane.b32.xlu0 %v5708, 96
      %v5772 = vpop.permute.xlu0 %5771
      %5773 = vrot.lane.b32.xlu0 %v5710, 96
      %v5774 = vpop.permute.xlu0 %5773
      %5775 = vrot.lane.b32.xlu0 %v5712, 96
      %v5776 = vpop.permute.xlu0 %5775
      %5777 = vrot.lane.b32.xlu0 %v5714, 96
      %v5778 = vpop.permute.xlu0 %5777
      %5779 = vrot.lane.b32.xlu0 %v5716, 96
      %v5780 = vpop.permute.xlu0 %5779
      %5781 = vrot.lane.b32.xlu0 %v5718, 96
      %v5782 = vpop.permute.xlu0 %5781
      %v5815 = vadd.f32 %v5556, %v5720
      %v5816 = vadd.f32 %v5557, %v5722
      %v5817 = vadd.f32 %v5558, %v5724
      %v5818 = vadd.f32 %v5559, %v5726
      %v5819 = vadd.f32 %v5560, %v5728
      %v5820 = vadd.f32 %v5561, %v5730
      %v5821 = vadd.f32 %v5562, %v5732
      %v5822 = vadd.f32 %v5563, %v5734
      %v5823 = vadd.f32 %v5564, %v5736
      %v5824 = vadd.f32 %v5565, %v5738
      %v5825 = vadd.f32 %v5566, %v5740
      %v5826 = vadd.f32 %v5567, %v5742
      %v5827 = vadd.f32 %v5568, %v5744
      %v5828 = vadd.f32 %v5569, %v5746
      %v5829 = vadd.f32 %v5570, %v5748
      %v5830 = vadd.f32 %v5571, %v5750
      %v5831 = vadd.f32 %v5572, %v5752
      %v5832 = vadd.f32 %v5573, %v5754
      %v5833 = vadd.f32 %v5574, %v5756
      %v5834 = vadd.f32 %v5575, %v5758
      %v5835 = vadd.f32 %v5576, %v5760
      %v5836 = vadd.f32 %v5577, %v5762
      %v5837 = vadd.f32 %v5578, %v5764
      %v5838 = vadd.f32 %v5579, %v5766
      %v5839 = vadd.f32 %v5580, %v5768
      %v5840 = vadd.f32 %v5581, %v5770
      %v5841 = vadd.f32 %v5582, %v5772
      %v5842 = vadd.f32 %v5583, %v5774
      %v5843 = vadd.f32 %v5584, %v5776
      %v5844 = vadd.f32 %v5585, %v5778
      %v5845 = vadd.f32 %v5586, %v5780
      %v5846 = vadd.f32 %v5587, %v5782
      %v5847 = vld [vmem:[%s8] sm:$0x1]
      %v5849 = vlaneseq
      %v5850 = vshrl.u32 %v5849, 7
      %v5851 = vsub.s32 0, %v5850
      %v5852 = vrot.slane %v5847, %v5851
      %5853 = vrot.lane.b32.xlu0 %v5852, 32
      %v5854 = vpop.permute.xlu0 %5853
      %v5856 = vadd.f32 %v5815, %v5854
      %v5857 = vadd.f32 %v5816, %v5854
      %v5858 = vadd.f32 %v5817, %v5854
      %v5859 = vadd.f32 %v5818, %v5854
      %v5860 = vadd.f32 %v5819, %v5854
      %v5861 = vadd.f32 %v5820, %v5854
      %v5862 = vadd.f32 %v5821, %v5854
      %v5863 = vadd.f32 %v5822, %v5854
      %v5864 = vadd.f32 %v5823, %v5854
      %v5865 = vadd.f32 %v5824, %v5854
      %v5866 = vadd.f32 %v5825, %v5854
      %v5867 = vadd.f32 %v5826, %v5854
      %v5868 = vadd.f32 %v5827, %v5854
      %v5869 = vadd.f32 %v5828, %v5854
      %v5870 = vadd.f32 %v5829, %v5854
      %v5871 = vadd.f32 %v5830, %v5854
      %v5872 = vadd.f32 %v5831, %v5854
      %v5873 = vadd.f32 %v5832, %v5854
      %v5874 = vadd.f32 %v5833, %v5854
      %v5875 = vadd.f32 %v5834, %v5854
      %v5876 = vadd.f32 %v5835, %v5854
      %v5877 = vadd.f32 %v5836, %v5854
      %v5878 = vadd.f32 %v5837, %v5854
      %v5879 = vadd.f32 %v5838, %v5854
      %v5880 = vadd.f32 %v5839, %v5854
      %v5881 = vadd.f32 %v5840, %v5854
      %v5882 = vadd.f32 %v5841, %v5854
      %v5883 = vadd.f32 %v5842, %v5854
      %v5884 = vadd.f32 %v5843, %v5854
      %v5885 = vadd.f32 %v5844, %v5854
      %v5886 = vadd.f32 %v5845, %v5854
      %v5887 = vadd.f32 %v5846, %v5854
      %v5888 = vld [vmem:[%s466] sm:$0xff]
      %v5889 = vld [vmem:[%s466 + $0x8] sm:$0xff]
      %v5890 = vld [vmem:[%s466 + $0x10] sm:$0xff]
      %v5891 = vld [vmem:[%s466 + $0x18] sm:$0xff]
      %v5892 = vld [vmem:[%s466 + $0x20] sm:$0xff]
      %v5893 = vld [vmem:[%s466 + $0x28] sm:$0xff]
      %v5894 = vld [vmem:[%s466 + $0x30] sm:$0xff]
      %v5895 = vld [vmem:[%s466 + $0x38] sm:$0xff]
      %v5896 = vld [vmem:[%s466 + $0x40] sm:$0xff]
      %v5897 = vld [vmem:[%s466 + $0x48] sm:$0xff]
      %v5898 = vld [vmem:[%s466 + $0x50] sm:$0xff]
      %v5899 = vld [vmem:[%s466 + $0x58] sm:$0xff]
      %v5900 = vld [vmem:[%s466 + $0x60] sm:$0xff]
      %v5901 = vld [vmem:[%s466 + $0x68] sm:$0xff]
      %v5902 = vld [vmem:[%s466 + $0x70] sm:$0xff]
      %v5903 = vld [vmem:[%s466 + $0x78] sm:$0xff]
      %v5904 = vld [vmem:[%s466 + $0x80] sm:$0xff]
      %v5905 = vld [vmem:[%s466 + $0x88] sm:$0xff]
      %v5906 = vld [vmem:[%s466 + $0x90] sm:$0xff]
      %v5907 = vld [vmem:[%s466 + $0x98] sm:$0xff]
      %v5908 = vld [vmem:[%s466 + $0xa0] sm:$0xff]
      %v5909 = vld [vmem:[%s466 + $0xa8] sm:$0xff]
      %v5910 = vld [vmem:[%s466 + $0xb0] sm:$0xff]
      %v5911 = vld [vmem:[%s466 + $0xb8] sm:$0xff]
      %v5912 = vld [vmem:[%s466 + $0xc0] sm:$0xff]
      %v5913 = vld [vmem:[%s466 + $0xc8] sm:$0xff]
      %v5914 = vld [vmem:[%s466 + $0xd0] sm:$0xff]
      %v5915 = vld [vmem:[%s466 + $0xd8] sm:$0xff]
      %v5916 = vld [vmem:[%s466 + $0xe0] sm:$0xff]
      %v5917 = vld [vmem:[%s466 + $0xe8] sm:$0xff]
      %v5918 = vld [vmem:[%s466 + $0xf0] sm:$0xff]
      %v5919 = vld [vmem:[%s466 + $0xf8] sm:$0xff]
      %v5920 = vld [vmem:[%s9] sm:$0xff]
      %v5921 = vld [vmem:[%s9 + $0x8] sm:$0xff]
      %v5922 = vld [vmem:[%s9 + $0x10] sm:$0xff]
      %v5923 = vld [vmem:[%s9 + $0x18] sm:$0xff]
      %v5924 = vld [vmem:[%s9 + $0x20] sm:$0xff]
      %v5925 = vld [vmem:[%s9 + $0x28] sm:$0xff]
      %v5926 = vld [vmem:[%s9 + $0x30] sm:$0xff]
      %v5927 = vld [vmem:[%s9 + $0x38] sm:$0xff]
      %v5928 = vld [vmem:[%s9 + $0x40] sm:$0xff]
      %v5929 = vld [vmem:[%s9 + $0x48] sm:$0xff]
      %v5930 = vld [vmem:[%s9 + $0x50] sm:$0xff]
      %v5931 = vld [vmem:[%s9 + $0x58] sm:$0xff]
      %v5932 = vld [vmem:[%s9 + $0x60] sm:$0x3]
      %v5933 = vld [vmem:[%s9 + $0x68] sm:$0x3]
      %v5934 = vld [vmem:[%s9 + $0x70] sm:$0x3]
      %vm5935 = vcmask 277504
      %v5937 = vsel %vm5935, %v5888, 0
      %v5940 = vsel %vm5935, %v5889, 0
      %v5943 = vsel %vm5935, %v5890, 0
      %v5946 = vsel %vm5935, %v5891, 0
      %v5949 = vsel %vm5935, %v5892, 0
      %v5952 = vsel %vm5935, %v5893, 0
      %v5955 = vsel %vm5935, %v5894, 0
      %v5958 = vsel %vm5935, %v5895, 0
      %v5961 = vsel %vm5935, %v5896, 0
      %v5964 = vsel %vm5935, %v5897, 0
      %v5967 = vsel %vm5935, %v5898, 0
      %v5970 = vsel %vm5935, %v5899, 0
      %v5973 = vsel %vm5935, %v5900, 0
      %v5976 = vsel %vm5935, %v5901, 0
      %v5979 = vsel %vm5935, %v5902, 0
      %v5982 = vsel %vm5935, %v5903, 0
      %v5985 = vsel %vm5935, %v5904, 0
      %v5988 = vsel %vm5935, %v5905, 0
      %v5991 = vsel %vm5935, %v5906, 0
      %v5994 = vsel %vm5935, %v5907, 0
      %v5997 = vsel %vm5935, %v5908, 0
      %v6000 = vsel %vm5935, %v5909, 0
      %v6003 = vsel %vm5935, %v5910, 0
      %v6006 = vsel %vm5935, %v5911, 0
      %v6009 = vsel %vm5935, %v5912, 0
      %v6012 = vsel %vm5935, %v5913, 0
      %v6015 = vsel %vm5935, %v5914, 0
      %v6018 = vsel %vm5935, %v5915, 0
      %v6021 = vsel %vm5935, %v5916, 0
      %v6024 = vsel %vm5935, %v5917, 0
      %v6027 = vsel %vm5935, %v5918, 0
      %v6030 = vsel %vm5935, %v5919, 0
      %v6033 = vsel %vm1259, %v5932, 0
      %v6036 = vsel %vm1259, %v5933, 0
      %v6039 = vsel %vm1259, %v5934, 0
      %6041 = vmatprep.subr.mxu0 %v5921
      %6042 = vmatpush1.msra.mxu0 %v5920
      %6043 = vmatprep.subr.mxu0 %v5924
      %6044 = vmatpush1.msra.mxu0 %v5923
      %6045 = vmatprep.subr.mxu0 %v5927
      %6046 = vmatpush1.msra.mxu0 %v5926
      %6047 = vmatprep.subr.mxu0 %v5930
      %6048 = vmatpush1.msra.mxu0 %v5929
      %6049 = vmatprep.subr.mxu0 %v6036
      %6050 = vmatpush1.msra.mxu0 %v6033
      %6051 = vmatprep.subr.mxu0 0.0
      %6052 = vmatpush1.msra.mxu0 0.0
      %6053 = vmatprep.subr.mxu0 0.0
      %6054 = vmatpush1.msra.mxu0 0.0
      %6055 = vmatprep.subr.mxu0 0.0
      %6056 = vmatpush1.msra.mxu0 0.0
      %6057 = vmatprep.subr.mxu0 0.0
      %6058 = vmatpush1.msra.mxu0 0.0
      %6059 = vmatprep.subr.mxu0 0.0
      %6060 = vmatpush1.msra.mxu0 0.0
      %6061 = vmatprep.subr.mxu0 0.0
      %6062 = vmatpush1.msra.mxu0 0.0
      %6063 = vmatprep.subr.mxu0 0.0
      %6064 = vmatpush1.msra.mxu0 0.0
      %6065 = vmatprep.subr.mxu0 0.0
      %6066 = vmatpush1.msra.mxu0 0.0
      %6067 = vmatprep.subr.mxu0 0.0
      %6068 = vmatpush1.msra.mxu0 0.0
      %6069 = vmatprep.subr.mxu0 0.0
      %6070 = vmatpush1.msra.mxu0 0.0
      %6071 = vmatprep.subr.mxu0 0.0
      %6072 = vmatpush1.msra.mxu0 0.0
      %6073 = vmatprep.subr.mxu0 0.0
      %6074 = vmatpush1.msra.mxu0 0.0
      %6075 = vmatprep.subr.mxu0 0.0
      %6076 = vmatpush1.msra.mxu0 0.0
      %6077 = vmatprep.subr.mxu0 0.0
      %6078 = vmatpush1.msra.mxu0 0.0
      %6079 = vmatprep.subr.mxu0 0.0
      %6080 = vmatpush1.msra.mxu0 0.0
      %6081 = vmatprep.subr.mxu0 0.0
      %6082 = vmatpush1.msra.mxu0 0.0
      %6083 = vmatprep.subr.mxu0 0.0
      %6084 = vmatpush1.msra.mxu0 0.0
      %6085 = vmatprep.subr.mxu0 0.0
      %6086 = vmatpush1.msra.mxu0 0.0
      %6087 = vmatprep.subr.mxu0 0.0
      %6088 = vmatpush1.msra.mxu0 0.0
      %6089 = vmatprep.subr.mxu0 0.0
      %6090 = vmatpush1.msra.mxu0 0.0
      %6091 = vmatprep.subr.mxu0 0.0
      %6092 = vmatpush1.msra.mxu0 0.0
      %6093 = vmatprep.subr.mxu0 0.0
      %6094 = vmatpush1.msra.mxu0 0.0
      %6095 = vmatprep.subr.mxu0 0.0
      %6096 = vmatpush1.msra.mxu0 0.0
      %6097 = vmatprep.subr.mxu0 0.0
      %6098 = vmatpush1.msra.mxu0 0.0
      %6099 = vmatprep.subr.mxu0 0.0
      %6100 = vmatpush1.msra.mxu0 0.0
      %6101 = vmatprep.subr.mxu0 0.0
      %6102 = vmatpush1.msra.mxu0 0.0
      %6103 = vmatprep.subr.mxu0 0.0
      %6104 = vmatpush1.msra.mxu0 0.0
      %6105 = vmatprep.mubr.f32.mxu0 0.0
      %6106 = vmatmul.mubr.f32.gmra.mrb[0].mxu0 %v5937
      %v6107 = vpop.f32.mrb[0].mxu0
      %v6108 = vadd.f32 0.0, %v6107
      %v6109 = vpop.f32.mrb[0].mxu0
      %v6110 = vadd.f32 0.0, %v6109
      %6111 = vmatprep.mubr.f32.mxu0 0.0
      %6112 = vmatmul.mubr.f32.gmra.mrb[0].mxu0 %v5940
      %v6113 = vpop.f32.mrb[0].mxu0
      %v6114 = vadd.f32 0.0, %v6113
      %v6115 = vpop.f32.mrb[0].mxu0
      %v6116 = vadd.f32 0.0, %v6115
      %6117 = vmatprep.mubr.f32.mxu0 0.0
      %6118 = vmatmul.mubr.f32.gmra.mrb[0].mxu0 %v5943
      %v6119 = vpop.f32.mrb[0].mxu0
      %v6120 = vadd.f32 0.0, %v6119
      %v6121 = vpop.f32.mrb[0].mxu0
      %v6122 = vadd.f32 0.0, %v6121
      %6123 = vmatprep.mubr.f32.mxu0 0.0
      %6124 = vmatmul.mubr.f32.gmra.mrb[0].mxu0 %v5946
      %v6125 = vpop.f32.mrb[0].mxu0
      %v6126 = vadd.f32 0.0, %v6125
      %v6127 = vpop.f32.mrb[0].mxu0
      %v6128 = vadd.f32 0.0, %v6127
      %6129 = vmatprep.mubr.f32.mxu0 0.0
      %6130 = vmatmul.mubr.f32.gmra.mrb[0].mxu0 %v5949
      %v6131 = vpop.f32.mrb[0].mxu0
      %v6132 = vadd.f32 0.0, %v6131
      %v6133 = vpop.f32.mrb[0].mxu0
      %v6134 = vadd.f32 0.0, %v6133
      %6135 = vmatprep.mubr.f32.mxu0 0.0
      %6136 = vmatmul.mubr.f32.gmra.mrb[0].mxu0 %v5952
      %v6137 = vpop.f32.mrb[0].mxu0
      %v6138 = vadd.f32 0.0, %v6137
      %v6139 = vpop.f32.mrb[0].mxu0
      %v6140 = vadd.f32 0.0, %v6139
      %6141 = vmatprep.mubr.f32.mxu0 0.0
      %6142 = vmatmul.mubr.f32.gmra.mrb[0].mxu0 %v5955
      %v6143 = vpop.f32.mrb[0].mxu0
      %v6144 = vadd.f32 0.0, %v6143
      %v6145 = vpop.f32.mrb[0].mxu0
      %v6146 = vadd.f32 0.0, %v6145
      %6147 = vmatprep.mubr.f32.mxu0 0.0
      %6148 = vmatmul.mubr.f32.gmra.mrb[0].mxu0 %v5958
      %v6149 = vpop.f32.mrb[0].mxu0
      %v6150 = vadd.f32 0.0, %v6149
      %v6151 = vpop.f32.mrb[0].mxu0
      %v6152 = vadd.f32 0.0, %v6151
      %6153 = vmatprep.mubr.f32.mxu0 0.0
      %6154 = vmatmul.mubr.f32.gmra.mrb[0].mxu0 %v5961
      %v6155 = vpop.f32.mrb[0].mxu0
      %v6156 = vadd.f32 0.0, %v6155
      %v6157 = vpop.f32.mrb[0].mxu0
      %v6158 = vadd.f32 0.0, %v6157
      %6159 = vmatprep.mubr.f32.mxu0 0.0
      %6160 = vmatmul.mubr.f32.gmra.mrb[0].mxu0 %v5964
      %v6161 = vpop.f32.mrb[0].mxu0
      %v6162 = vadd.f32 0.0, %v6161
      %v6163 = vpop.f32.mrb[0].mxu0
      %v6164 = vadd.f32 0.0, %v6163
      %6165 = vmatprep.mubr.f32.mxu0 0.0
      %6166 = vmatmul.mubr.f32.gmra.mrb[0].mxu0 %v5967
      %v6167 = vpop.f32.mrb[0].mxu0
      %v6168 = vadd.f32 0.0, %v6167
      %v6169 = vpop.f32.mrb[0].mxu0
      %v6170 = vadd.f32 0.0, %v6169
      %6171 = vmatprep.mubr.f32.mxu0 0.0
      %6172 = vmatmul.mubr.f32.gmra.mrb[0].mxu0 %v5970
      %v6173 = vpop.f32.mrb[0].mxu0
      %v6174 = vadd.f32 0.0, %v6173
      %v6175 = vpop.f32.mrb[0].mxu0
      %v6176 = vadd.f32 0.0, %v6175
      %6177 = vmatprep.mubr.f32.mxu0 0.0
      %6178 = vmatmul.mubr.f32.gmra.mrb[0].mxu0 %v5973
      %v6179 = vpop.f32.mrb[0].mxu0
      %v6180 = vadd.f32 0.0, %v6179
      %v6181 = vpop.f32.mrb[0].mxu0
      %v6182 = vadd.f32 0.0, %v6181
      %6183 = vmatprep.mubr.f32.mxu0 0.0
      %6184 = vmatmul.mubr.f32.gmra.mrb[0].mxu0 %v5976
      %v6185 = vpop.f32.mrb[0].mxu0
      %v6186 = vadd.f32 0.0, %v6185
      %v6187 = vpop.f32.mrb[0].mxu0
      %v6188 = vadd.f32 0.0, %v6187
      %6189 = vmatprep.mubr.f32.mxu0 0.0
      %6190 = vmatmul.mubr.f32.gmra.mrb[0].mxu0 %v5979
      %v6191 = vpop.f32.mrb[0].mxu0
      %v6192 = vadd.f32 0.0, %v6191
      %v6193 = vpop.f32.mrb[0].mxu0
      %v6194 = vadd.f32 0.0, %v6193
      %6195 = vmatprep.mubr.f32.mxu0 0.0
      %6196 = vmatmul.mubr.f32.gmra.mrb[0].mxu0 %v5982
      %v6197 = vpop.f32.mrb[0].mxu0
      %v6198 = vadd.f32 0.0, %v6197
      %v6199 = vpop.f32.mrb[0].mxu0
      %v6200 = vadd.f32 0.0, %v6199
      %6201 = vmatprep.mubr.f32.mxu0 0.0
      %6202 = vmatmul.mubr.f32.gmra.mrb[0].mxu0 %v5985
      %v6203 = vpop.f32.mrb[0].mxu0
      %v6204 = vadd.f32 0.0, %v6203
      %v6205 = vpop.f32.mrb[0].mxu0
      %v6206 = vadd.f32 0.0, %v6205
      %6207 = vmatprep.mubr.f32.mxu0 0.0
      %6208 = vmatmul.mubr.f32.gmra.mrb[0].mxu0 %v5988
      %v6209 = vpop.f32.mrb[0].mxu0
      %v6210 = vadd.f32 0.0, %v6209
      %v6211 = vpop.f32.mrb[0].mxu0
      %v6212 = vadd.f32 0.0, %v6211
      %6213 = vmatprep.mubr.f32.mxu0 0.0
      %6214 = vmatmul.mubr.f32.gmra.mrb[0].mxu0 %v5991
      %v6215 = vpop.f32.mrb[0].mxu0
      %v6216 = vadd.f32 0.0, %v6215
      %v6217 = vpop.f32.mrb[0].mxu0
      %v6218 = vadd.f32 0.0, %v6217
      %6219 = vmatprep.mubr.f32.mxu0 0.0
      %6220 = vmatmul.mubr.f32.gmra.mrb[0].mxu0 %v5994
      %v6221 = vpop.f32.mrb[0].mxu0
      %v6222 = vadd.f32 0.0, %v6221
      %v6223 = vpop.f32.mrb[0].mxu0
      %v6224 = vadd.f32 0.0, %v6223
      %6225 = vmatprep.mubr.f32.mxu0 0.0
      %6226 = vmatmul.mubr.f32.gmra.mrb[0].mxu0 %v5997
      %v6227 = vpop.f32.mrb[0].mxu0
      %v6228 = vadd.f32 0.0, %v6227
      %v6229 = vpop.f32.mrb[0].mxu0
      %v6230 = vadd.f32 0.0, %v6229
      %6231 = vmatprep.mubr.f32.mxu0 0.0
      %6232 = vmatmul.mubr.f32.gmra.mrb[0].mxu0 %v6000
      %v6233 = vpop.f32.mrb[0].mxu0
      %v6234 = vadd.f32 0.0, %v6233
      %v6235 = vpop.f32.mrb[0].mxu0
      %v6236 = vadd.f32 0.0, %v6235
      %6237 = vmatprep.mubr.f32.mxu0 0.0
      %6238 = vmatmul.mubr.f32.gmra.mrb[0].mxu0 %v6003
      %v6239 = vpop.f32.mrb[0].mxu0
      %v6240 = vadd.f32 0.0, %v6239
      %v6241 = vpop.f32.mrb[0].mxu0
      %v6242 = vadd.f32 0.0, %v6241
      %6243 = vmatprep.mubr.f32.mxu0 0.0
      %6244 = vmatmul.mubr.f32.gmra.mrb[0].mxu0 %v6006
      %v6245 = vpop.f32.mrb[0].mxu0
      %v6246 = vadd.f32 0.0, %v6245
      %v6247 = vpop.f32.mrb[0].mxu0
      %v6248 = vadd.f32 0.0, %v6247
      %6249 = vmatprep.mubr.f32.mxu0 0.0
      %6250 = vmatmul.mubr.f32.gmra.mrb[0].mxu0 %v6009
      %v6251 = vpop.f32.mrb[0].mxu0
      %v6252 = vadd.f32 0.0, %v6251
      %v6253 = vpop.f32.mrb[0].mxu0
      %v6254 = vadd.f32 0.0, %v6253
      %6255 = vmatprep.mubr.f32.mxu0 0.0
      %6256 = vmatmul.mubr.f32.gmra.mrb[0].mxu0 %v6012
      %v6257 = vpop.f32.mrb[0].mxu0
      %v6258 = vadd.f32 0.0, %v6257
      %v6259 = vpop.f32.mrb[0].mxu0
      %v6260 = vadd.f32 0.0, %v6259
      %6261 = vmatprep.mubr.f32.mxu0 0.0
      %6262 = vmatmul.mubr.f32.gmra.mrb[0].mxu0 %v6015
      %v6263 = vpop.f32.mrb[0].mxu0
      %v6264 = vadd.f32 0.0, %v6263
      %v6265 = vpop.f32.mrb[0].mxu0
      %v6266 = vadd.f32 0.0, %v6265
      %6267 = vmatprep.mubr.f32.mxu0 0.0
      %6268 = vmatmul.mubr.f32.gmra.mrb[0].mxu0 %v6018
      %v6269 = vpop.f32.mrb[0].mxu0
      %v6270 = vadd.f32 0.0, %v6269
      %v6271 = vpop.f32.mrb[0].mxu0
      %v6272 = vadd.f32 0.0, %v6271
      %6273 = vmatprep.mubr.f32.mxu0 0.0
      %6274 = vmatmul.mubr.f32.gmra.mrb[0].mxu0 %v6021
      %v6275 = vpop.f32.mrb[0].mxu0
      %v6276 = vadd.f32 0.0, %v6275
      %v6277 = vpop.f32.mrb[0].mxu0
      %v6278 = vadd.f32 0.0, %v6277
      %6279 = vmatprep.mubr.f32.mxu0 0.0
      %6280 = vmatmul.mubr.f32.gmra.mrb[0].mxu0 %v6024
      %v6281 = vpop.f32.mrb[0].mxu0
      %v6282 = vadd.f32 0.0, %v6281
      %v6283 = vpop.f32.mrb[0].mxu0
      %v6284 = vadd.f32 0.0, %v6283
      %6285 = vmatprep.mubr.f32.mxu0 0.0
      %6286 = vmatmul.mubr.f32.gmra.mrb[0].mxu0 %v6027
      %v6287 = vpop.f32.mrb[0].mxu0
      %v6288 = vadd.f32 0.0, %v6287
      %v6289 = vpop.f32.mrb[0].mxu0
      %v6290 = vadd.f32 0.0, %v6289
      %6291 = vmatprep.mubr.f32.mxu0 0.0
      %6292 = vmatmul.mubr.f32.gmra.mrb[0].mxu0 %v6030
      %v6293 = vpop.f32.mrb[0].mxu0
      %v6294 = vadd.f32 0.0, %v6293
      %v6295 = vpop.f32.mrb[0].mxu0
      %v6296 = vadd.f32 0.0, %v6295
      %6297 = vdwg.mxu0
      %6298 = vmatprep.subr.mxu0 0.0
      %6299 = vmatpush1.msra.mxu0 %v5922
      %6300 = vmatprep.subr.mxu0 0.0
      %6301 = vmatpush1.msra.mxu0 %v5925
      %6302 = vmatprep.subr.mxu0 0.0
      %6303 = vmatpush1.msra.mxu0 %v5928
      %6304 = vmatprep.subr.mxu0 0.0
      %6305 = vmatpush1.msra.mxu0 %v5931
      %6306 = vmatprep.subr.mxu0 0.0
      %6307 = vmatpush1.msra.mxu0 %v6039
      %6308 = vmatprep.subr.mxu0 0.0
      %6309 = vmatpush1.msra.mxu0 0.0
      %6310 = vmatprep.subr.mxu0 0.0
      %6311 = vmatpush1.msra.mxu0 0.0
      %6312 = vmatprep.subr.mxu0 0.0
      %6313 = vmatpush1.msra.mxu0 0.0
      %6314 = vmatprep.subr.mxu0 0.0
      %6315 = vmatpush1.msra.mxu0 0.0
      %6316 = vmatprep.subr.mxu0 0.0
      %6317 = vmatpush1.msra.mxu0 0.0
      %6318 = vmatprep.subr.mxu0 0.0
      %6319 = vmatpush1.msra.mxu0 0.0
      %6320 = vmatprep.subr.mxu0 0.0
      %6321 = vmatpush1.msra.mxu0 0.0
      %6322 = vmatprep.subr.mxu0 0.0
      %6323 = vmatpush1.msra.mxu0 0.0
      %6324 = vmatprep.subr.mxu0 0.0
      %6325 = vmatpush1.msra.mxu0 0.0
      %6326 = vmatprep.subr.mxu0 0.0
      %6327 = vmatpush1.msra.mxu0 0.0
      %6328 = vmatprep.subr.mxu0 0.0
      %6329 = vmatpush1.msra.mxu0 0.0
      %6330 = vmatprep.subr.mxu0 0.0
      %6331 = vmatpush1.msra.mxu0 0.0
      %6332 = vmatprep.subr.mxu0 0.0
      %6333 = vmatpush1.msra.mxu0 0.0
      %6334 = vmatprep.subr.mxu0 0.0
      %6335 = vmatpush1.msra.mxu0 0.0
      %6336 = vmatprep.subr.mxu0 0.0
      %6337 = vmatpush1.msra.mxu0 0.0
      %6338 = vmatprep.subr.mxu0 0.0
      %6339 = vmatpush1.msra.mxu0 0.0
      %6340 = vmatprep.subr.mxu0 0.0
      %6341 = vmatpush1.msra.mxu0 0.0
      %6342 = vmatprep.subr.mxu0 0.0
      %6343 = vmatpush1.msra.mxu0 0.0
      %6344 = vmatprep.subr.mxu0 0.0
      %6345 = vmatpush1.msra.mxu0 0.0
      %6346 = vmatprep.subr.mxu0 0.0
      %6347 = vmatpush1.msra.mxu0 0.0
      %6348 = vmatprep.subr.mxu0 0.0
      %6349 = vmatpush1.msra.mxu0 0.0
      %6350 = vmatprep.subr.mxu0 0.0
      %6351 = vmatpush1.msra.mxu0 0.0
      %6352 = vmatprep.subr.mxu0 0.0
      %6353 = vmatpush1.msra.mxu0 0.0
      %6354 = vmatprep.subr.mxu0 0.0
      %6355 = vmatpush1.msra.mxu0 0.0
      %6356 = vmatprep.subr.mxu0 0.0
      %6357 = vmatpush1.msra.mxu0 0.0
      %6358 = vmatprep.subr.mxu0 0.0
      %6359 = vmatpush1.msra.mxu0 0.0
      %6360 = vmatprep.subr.mxu0 0.0
      %6361 = vmatpush1.msra.mxu0 0.0
      %6362 = vmatprep.mubr.f32.mxu0 0.0
      %6363 = vmatmul.mubr.f32.gmra.mrb[0].mxu0 %v5937
      %v6364 = vpop.f32.mrb[0].mxu0
      %v6365 = vadd.f32 0.0, %v6364
      %v6366 = vpop.f32.mrb[0].mxu0
      %6367 = vmatprep.mubr.f32.mxu0 0.0
      %6368 = vmatmul.mubr.f32.gmra.mrb[0].mxu0 %v5940
      %v6369 = vpop.f32.mrb[0].mxu0
      %v6370 = vadd.f32 0.0, %v6369
      %v6371 = vpop.f32.mrb[0].mxu0
      %6372 = vmatprep.mubr.f32.mxu0 0.0
      %6373 = vmatmul.mubr.f32.gmra.mrb[0].mxu0 %v5943
      %v6374 = vpop.f32.mrb[0].mxu0
      %v6375 = vadd.f32 0.0, %v6374
      %v6376 = vpop.f32.mrb[0].mxu0
      %6377 = vmatprep.mubr.f32.mxu0 0.0
      %6378 = vmatmul.mubr.f32.gmra.mrb[0].mxu0 %v5946
      %v6379 = vpop.f32.mrb[0].mxu0
      %v6380 = vadd.f32 0.0, %v6379
      %v6381 = vpop.f32.mrb[0].mxu0
      %6382 = vmatprep.mubr.f32.mxu0 0.0
      %6383 = vmatmul.mubr.f32.gmra.mrb[0].mxu0 %v5949
      %v6384 = vpop.f32.mrb[0].mxu0
      %v6385 = vadd.f32 0.0, %v6384
      %v6386 = vpop.f32.mrb[0].mxu0
      %6387 = vmatprep.mubr.f32.mxu0 0.0
      %6388 = vmatmul.mubr.f32.gmra.mrb[0].mxu0 %v5952
      %v6389 = vpop.f32.mrb[0].mxu0
      %v6390 = vadd.f32 0.0, %v6389
      %v6391 = vpop.f32.mrb[0].mxu0
      %6392 = vmatprep.mubr.f32.mxu0 0.0
      %6393 = vmatmul.mubr.f32.gmra.mrb[0].mxu0 %v5955
      %v6394 = vpop.f32.mrb[0].mxu0
      %v6395 = vadd.f32 0.0, %v6394
      %v6396 = vpop.f32.mrb[0].mxu0
      %6397 = vmatprep.mubr.f32.mxu0 0.0
      %6398 = vmatmul.mubr.f32.gmra.mrb[0].mxu0 %v5958
      %v6399 = vpop.f32.mrb[0].mxu0
      %v6400 = vadd.f32 0.0, %v6399
      %v6401 = vpop.f32.mrb[0].mxu0
      %6402 = vmatprep.mubr.f32.mxu0 0.0
      %6403 = vmatmul.mubr.f32.gmra.mrb[0].mxu0 %v5961
      %v6404 = vpop.f32.mrb[0].mxu0
      %v6405 = vadd.f32 0.0, %v6404
      %v6406 = vpop.f32.mrb[0].mxu0
      %6407 = vmatprep.mubr.f32.mxu0 0.0
      %6408 = vmatmul.mubr.f32.gmra.mrb[0].mxu0 %v5964
      %v6409 = vpop.f32.mrb[0].mxu0
      %v6410 = vadd.f32 0.0, %v6409
      %v6411 = vpop.f32.mrb[0].mxu0
      %6412 = vmatprep.mubr.f32.mxu0 0.0
      %6413 = vmatmul.mubr.f32.gmra.mrb[0].mxu0 %v5967
      %v6414 = vpop.f32.mrb[0].mxu0
      %v6415 = vadd.f32 0.0, %v6414
      %v6416 = vpop.f32.mrb[0].mxu0
      %6417 = vmatprep.mubr.f32.mxu0 0.0
      %6418 = vmatmul.mubr.f32.gmra.mrb[0].mxu0 %v5970
      %v6419 = vpop.f32.mrb[0].mxu0
      %v6420 = vadd.f32 0.0, %v6419
      %v6421 = vpop.f32.mrb[0].mxu0
      %6422 = vmatprep.mubr.f32.mxu0 0.0
      %6423 = vmatmul.mubr.f32.gmra.mrb[0].mxu0 %v5973
      %v6424 = vpop.f32.mrb[0].mxu0
      %v6425 = vadd.f32 0.0, %v6424
      %v6426 = vpop.f32.mrb[0].mxu0
      %6427 = vmatprep.mubr.f32.mxu0 0.0
      %6428 = vmatmul.mubr.f32.gmra.mrb[0].mxu0 %v5976
      %v6429 = vpop.f32.mrb[0].mxu0
      %v6430 = vadd.f32 0.0, %v6429
      %v6431 = vpop.f32.mrb[0].mxu0
      %6432 = vmatprep.mubr.f32.mxu0 0.0
      %6433 = vmatmul.mubr.f32.gmra.mrb[0].mxu0 %v5979
      %v6434 = vpop.f32.mrb[0].mxu0
      %v6435 = vadd.f32 0.0, %v6434
      %v6436 = vpop.f32.mrb[0].mxu0
      %6437 = vmatprep.mubr.f32.mxu0 0.0
      %6438 = vmatmul.mubr.f32.gmra.mrb[0].mxu0 %v5982
      %v6439 = vpop.f32.mrb[0].mxu0
      %v6440 = vadd.f32 0.0, %v6439
      %v6441 = vpop.f32.mrb[0].mxu0
      %6442 = vmatprep.mubr.f32.mxu0 0.0
      %6443 = vmatmul.mubr.f32.gmra.mrb[0].mxu0 %v5985
      %v6444 = vpop.f32.mrb[0].mxu0
      %v6445 = vadd.f32 0.0, %v6444
      %v6446 = vpop.f32.mrb[0].mxu0
      %6447 = vmatprep.mubr.f32.mxu0 0.0
      %6448 = vmatmul.mubr.f32.gmra.mrb[0].mxu0 %v5988
      %v6449 = vpop.f32.mrb[0].mxu0
      %v6450 = vadd.f32 0.0, %v6449
      %v6451 = vpop.f32.mrb[0].mxu0
      %6452 = vmatprep.mubr.f32.mxu0 0.0
      %6453 = vmatmul.mubr.f32.gmra.mrb[0].mxu0 %v5991
      %v6454 = vpop.f32.mrb[0].mxu0
      %v6455 = vadd.f32 0.0, %v6454
      %v6456 = vpop.f32.mrb[0].mxu0
      %6457 = vmatprep.mubr.f32.mxu0 0.0
      %6458 = vmatmul.mubr.f32.gmra.mrb[0].mxu0 %v5994
      %v6459 = vpop.f32.mrb[0].mxu0
      %v6460 = vadd.f32 0.0, %v6459
      %v6461 = vpop.f32.mrb[0].mxu0
      %6462 = vmatprep.mubr.f32.mxu0 0.0
      %6463 = vmatmul.mubr.f32.gmra.mrb[0].mxu0 %v5997
      %v6464 = vpop.f32.mrb[0].mxu0
      %v6465 = vadd.f32 0.0, %v6464
      %v6466 = vpop.f32.mrb[0].mxu0
      %6467 = vmatprep.mubr.f32.mxu0 0.0
      %6468 = vmatmul.mubr.f32.gmra.mrb[0].mxu0 %v6000
      %v6469 = vpop.f32.mrb[0].mxu0
      %v6470 = vadd.f32 0.0, %v6469
      %v6471 = vpop.f32.mrb[0].mxu0
      %6472 = vmatprep.mubr.f32.mxu0 0.0
      %6473 = vmatmul.mubr.f32.gmra.mrb[0].mxu0 %v6003
      %v6474 = vpop.f32.mrb[0].mxu0
      %v6475 = vadd.f32 0.0, %v6474
      %v6476 = vpop.f32.mrb[0].mxu0
      %6477 = vmatprep.mubr.f32.mxu0 0.0
      %6478 = vmatmul.mubr.f32.gmra.mrb[0].mxu0 %v6006
      %v6479 = vpop.f32.mrb[0].mxu0
      %v6480 = vadd.f32 0.0, %v6479
      %v6481 = vpop.f32.mrb[0].mxu0
      %6482 = vmatprep.mubr.f32.mxu0 0.0
      %6483 = vmatmul.mubr.f32.gmra.mrb[0].mxu0 %v6009
      %v6484 = vpop.f32.mrb[0].mxu0
      %v6485 = vadd.f32 0.0, %v6484
      %v6486 = vpop.f32.mrb[0].mxu0
      %6487 = vmatprep.mubr.f32.mxu0 0.0
      %6488 = vmatmul.mubr.f32.gmra.mrb[0].mxu0 %v6012
      %v6489 = vpop.f32.mrb[0].mxu0
      %v6490 = vadd.f32 0.0, %v6489
      %v6491 = vpop.f32.mrb[0].mxu0
      %6492 = vmatprep.mubr.f32.mxu0 0.0
      %6493 = vmatmul.mubr.f32.gmra.mrb[0].mxu0 %v6015
      %v6494 = vpop.f32.mrb[0].mxu0
      %v6495 = vadd.f32 0.0, %v6494
      %v6496 = vpop.f32.mrb[0].mxu0
      %6497 = vmatprep.mubr.f32.mxu0 0.0
      %6498 = vmatmul.mubr.f32.gmra.mrb[0].mxu0 %v6018
      %v6499 = vpop.f32.mrb[0].mxu0
      %v6500 = vadd.f32 0.0, %v6499
      %v6501 = vpop.f32.mrb[0].mxu0
      %6502 = vmatprep.mubr.f32.mxu0 0.0
      %6503 = vmatmul.mubr.f32.gmra.mrb[0].mxu0 %v6021
      %v6504 = vpop.f32.mrb[0].mxu0
      %v6505 = vadd.f32 0.0, %v6504
      %v6506 = vpop.f32.mrb[0].mxu0
      %6507 = vmatprep.mubr.f32.mxu0 0.0
      %6508 = vmatmul.mubr.f32.gmra.mrb[0].mxu0 %v6024
      %v6509 = vpop.f32.mrb[0].mxu0
      %v6510 = vadd.f32 0.0, %v6509
      %v6511 = vpop.f32.mrb[0].mxu0
      %6512 = vmatprep.mubr.f32.mxu0 0.0
      %6513 = vmatmul.mubr.f32.gmra.mrb[0].mxu0 %v6027
      %v6514 = vpop.f32.mrb[0].mxu0
      %v6515 = vadd.f32 0.0, %v6514
      %v6516 = vpop.f32.mrb[0].mxu0
      %6517 = vmatprep.mubr.f32.mxu0 0.0
      %6518 = vmatmul.mubr.f32.gmra.mrb[0].mxu0 %v6030
      %v6519 = vpop.f32.mrb[0].mxu0
      %v6520 = vadd.f32 0.0, %v6519
      %v6521 = vpop.f32.mrb[0].mxu0
      %6522 = vdwg.mxu0
      %6523 = vst [vmem:[#allocation2 + $0x48] sm:$0xff] %v6108
      %6524 = vst [vmem:[#allocation2 + $0x50] sm:$0xff] %v6110
      %6525 = vst.msk [vmem:[#allocation2 + $0x58] sm:$0xff] %vm477, %v6365
      %6526 = vst [vmem:[#allocation2 + $0x60] sm:$0xff] %v6114
      %6527 = vst [vmem:[#allocation2 + $0x68] sm:$0xff] %v6116
      %6528 = vst.msk [vmem:[#allocation2 + $0x70] sm:$0xff] %vm477, %v6370
      %6529 = vst [vmem:[#allocation2 + $0x78] sm:$0xff] %v6120
      %6530 = vst [vmem:[#allocation2 + $0x80] sm:$0xff] %v6122
      %6531 = vst.msk [vmem:[#allocation2 + $0x88] sm:$0xff] %vm477, %v6375
      %6532 = vst [vmem:[#allocation2 + $0x90] sm:$0xff] %v6126
      %6533 = vst [vmem:[#allocation2 + $0x98] sm:$0xff] %v6128
      %6534 = vst.msk [vmem:[#allocation2 + $0xa0] sm:$0xff] %vm477, %v6380
      %6535 = vst [vmem:[#allocation2 + $0xa8] sm:$0xff] %v6132
      %6536 = vst [vmem:[#allocation2 + $0xb0] sm:$0xff] %v6134
      %6537 = vst.msk [vmem:[#allocation2 + $0xb8] sm:$0xff] %vm477, %v6385
      %6538 = vst [vmem:[#allocation2 + $0xc0] sm:$0xff] %v6138
      %6539 = vst [vmem:[#allocation2 + $0xc8] sm:$0xff] %v6140
      %6540 = vst.msk [vmem:[#allocation2 + $0xd0] sm:$0xff] %vm477, %v6390
      %6541 = vst [vmem:[#allocation2 + $0xd8] sm:$0xff] %v6144
      %6542 = vst [vmem:[#allocation2 + $0xe0] sm:$0xff] %v6146
      %6543 = vst.msk [vmem:[#allocation2 + $0xe8] sm:$0xff] %vm477, %v6395
      %6544 = vst [vmem:[#allocation2 + $0xf0] sm:$0xff] %v6150
      %6545 = vst [vmem:[#allocation2 + $0xf8] sm:$0xff] %v6152
      %6546 = vst.msk [vmem:[#allocation2 + $0x100] sm:$0xff] %vm477, %v6400
      %6547 = vst [vmem:[#allocation2 + $0x108] sm:$0xff] %v6156
      %6548 = vst [vmem:[#allocation2 + $0x110] sm:$0xff] %v6158
      %6549 = vst.msk [vmem:[#allocation2 + $0x118] sm:$0xff] %vm477, %v6405
      %6550 = vst [vmem:[#allocation2 + $0x120] sm:$0xff] %v6162
      %6551 = vst [vmem:[#allocation2 + $0x128] sm:$0xff] %v6164
      %6552 = vst.msk [vmem:[#allocation2 + $0x130] sm:$0xff] %vm477, %v6410
      %6553 = vst [vmem:[#allocation2 + $0x138] sm:$0xff] %v6168
      %6554 = vst [vmem:[#allocation2 + $0x140] sm:$0xff] %v6170
      %6555 = vst.msk [vmem:[#allocation2 + $0x148] sm:$0xff] %vm477, %v6415
      %6556 = vst [vmem:[#allocation2 + $0x150] sm:$0xff] %v6174
      %6557 = vst [vmem:[#allocation2 + $0x158] sm:$0xff] %v6176
      %6558 = vst.msk [vmem:[#allocation2 + $0x160] sm:$0xff] %vm477, %v6420
      %6559 = vst [vmem:[#allocation2 + $0x168] sm:$0xff] %v6180
      %6560 = vst [vmem:[#allocation2 + $0x170] sm:$0xff] %v6182
      %6561 = vst.msk [vmem:[#allocation2 + $0x178] sm:$0xff] %vm477, %v6425
      %6562 = vst [vmem:[#allocation2 + $0x180] sm:$0xff] %v6186
      %6563 = vst [vmem:[#allocation2 + $0x188] sm:$0xff] %v6188
      %6564 = vst.msk [vmem:[#allocation2 + $0x190] sm:$0xff] %vm477, %v6430
      %6565 = vst [vmem:[#allocation2 + $0x198] sm:$0xff] %v6192
      %6566 = vst [vmem:[#allocation2 + $0x1a0] sm:$0xff] %v6194
      %6567 = vst.msk [vmem:[#allocation2 + $0x1a8] sm:$0xff] %vm477, %v6435
      %6568 = vst [vmem:[#allocation2 + $0x1b0] sm:$0xff] %v6198
      %6569 = vst [vmem:[#allocation2 + $0x1b8] sm:$0xff] %v6200
      %6570 = vst.msk [vmem:[#allocation2 + $0x1c0] sm:$0xff] %vm477, %v6440
      %6571 = vst [vmem:[#allocation2 + $0x1c8] sm:$0xff] %v6204
      %6572 = vst [vmem:[#allocation2 + $0x1d0] sm:$0xff] %v6206
      %6573 = vst.msk [vmem:[#allocation2 + $0x1d8] sm:$0xff] %vm477, %v6445
      %6574 = vst [vmem:[#allocation2 + $0x1e0] sm:$0xff] %v6210
      %6575 = vst [vmem:[#allocation2 + $0x1e8] sm:$0xff] %v6212
      %6576 = vst.msk [vmem:[#allocation2 + $0x1f0] sm:$0xff] %vm477, %v6450
      %6577 = vst [vmem:[#allocation2 + $0x1f8] sm:$0xff] %v6216
      %6578 = vst [vmem:[#allocation2 + $0x200] sm:$0xff] %v6218
      %6579 = vst.msk [vmem:[#allocation2 + $0x208] sm:$0xff] %vm477, %v6455
      %6580 = vst [vmem:[#allocation2 + $0x210] sm:$0xff] %v6222
      %6581 = vst [vmem:[#allocation2 + $0x218] sm:$0xff] %v6224
      %6582 = vst.msk [vmem:[#allocation2 + $0x220] sm:$0xff] %vm477, %v6460
      %6583 = vst [vmem:[#allocation2 + $0x228] sm:$0xff] %v6228
      %6584 = vst [vmem:[#allocation2 + $0x230] sm:$0xff] %v6230
      %6585 = vst.msk [vmem:[#allocation2 + $0x238] sm:$0xff] %vm477, %v6465
      %6586 = vst [vmem:[#allocation2 + $0x240] sm:$0xff] %v6234
      %6587 = vst [vmem:[#allocation2 + $0x248] sm:$0xff] %v6236
      %6588 = vst.msk [vmem:[#allocation2 + $0x250] sm:$0xff] %vm477, %v6470
      %6589 = vst [vmem:[#allocation2 + $0x258] sm:$0xff] %v6240
      %6590 = vst [vmem:[#allocation2 + $0x260] sm:$0xff] %v6242
      %6591 = vst.msk [vmem:[#allocation2 + $0x268] sm:$0xff] %vm477, %v6475
      %6592 = vst [vmem:[#allocation2 + $0x270] sm:$0xff] %v6246
      %6593 = vst [vmem:[#allocation2 + $0x278] sm:$0xff] %v6248
      %6594 = vst.msk [vmem:[#allocation2 + $0x280] sm:$0xff] %vm477, %v6480
      %6595 = vst [vmem:[#allocation2 + $0x288] sm:$0xff] %v6252
      %6596 = vst [vmem:[#allocation2 + $0x290] sm:$0xff] %v6254
      %6597 = vst.msk [vmem:[#allocation2 + $0x298] sm:$0xff] %vm477, %v6485
      %6598 = vst [vmem:[#allocation2 + $0x2a0] sm:$0xff] %v6258
      %6599 = vst [vmem:[#allocation2 + $0x2a8] sm:$0xff] %v6260
      %6600 = vst.msk [vmem:[#allocation2 + $0x2b0] sm:$0xff] %vm477, %v6490
      %6601 = vst [vmem:[#allocation2 + $0x2b8] sm:$0xff] %v6264
      %6602 = vst [vmem:[#allocation2 + $0x2c0] sm:$0xff] %v6266
      %6603 = vst.msk [vmem:[#allocation2 + $0x2c8] sm:$0xff] %vm477, %v6495
      %6604 = vst [vmem:[#allocation2 + $0x2d0] sm:$0xff] %v6270
      %6605 = vst [vmem:[#allocation2 + $0x2d8] sm:$0xff] %v6272
      %6606 = vst.msk [vmem:[#allocation2 + $0x2e0] sm:$0xff] %vm477, %v6500
      %6607 = vst [vmem:[#allocation2 + $0x2e8] sm:$0xff] %v6276
      %6608 = vst [vmem:[#allocation2 + $0x2f0] sm:$0xff] %v6278
      %6609 = vst.msk [vmem:[#allocation2 + $0x2f8] sm:$0xff] %vm477, %v6505
      %6610 = vst [vmem:[#allocation2 + $0x300] sm:$0xff] %v6282
      %6611 = vst [vmem:[#allocation2 + $0x308] sm:$0xff] %v6284
      %6612 = vst.msk [vmem:[#allocation2 + $0x310] sm:$0xff] %vm477, %v6510
      %6613 = vst [vmem:[#allocation2 + $0x318] sm:$0xff] %v6288
      %6614 = vst [vmem:[#allocation2 + $0x320] sm:$0xff] %v6290
      %6615 = vst.msk [vmem:[#allocation2 + $0x328] sm:$0xff] %vm477, %v6515
      %6616 = vst [vmem:[#allocation2 + $0x330] sm:$0xff] %v6294
      %6617 = vst [vmem:[#allocation2 + $0x338] sm:$0xff] %v6296
      %6618 = vst.msk [vmem:[#allocation2 + $0x340] sm:$0xff] %vm477, %v6520
      %v6619 = vld [vmem:[#allocation2 + $0x18] sm:$0xff]
      %v6620 = vld [vmem:[#allocation2 + $0x30] sm:$0xff]
      %v6621 = vld [vmem:[#allocation2 + $0x48] sm:$0xff]
      %v6622 = vld [vmem:[#allocation2 + $0x60] sm:$0xff]
      %v6623 = vld [vmem:[#allocation2 + $0x78] sm:$0xff]
      %v6624 = vld [vmem:[#allocation2 + $0x90] sm:$0xff]
      %v6625 = vld [vmem:[#allocation2 + $0xa8] sm:$0xff]
      %v6626 = vld [vmem:[#allocation2 + $0xc0] sm:$0xff]
      %v6627 = vld [vmem:[#allocation2 + $0xd8] sm:$0xff]
      %v6628 = vld [vmem:[#allocation2 + $0xf0] sm:$0xff]
      %v6629 = vld [vmem:[#allocation2 + $0x108] sm:$0xff]
      %v6630 = vld [vmem:[#allocation2 + $0x120] sm:$0xff]
      %v6631 = vld [vmem:[#allocation2 + $0x138] sm:$0xff]
      %v6632 = vld [vmem:[#allocation2 + $0x150] sm:$0xff]
      %v6633 = vld [vmem:[#allocation2 + $0x168] sm:$0xff]
      %v6634 = vld [vmem:[#allocation2 + $0x180] sm:$0xff]
      %v6635 = vld [vmem:[#allocation2 + $0x198] sm:$0xff]
      %v6636 = vld [vmem:[#allocation2 + $0x1b0] sm:$0xff]
      %v6637 = vld [vmem:[#allocation2 + $0x1c8] sm:$0xff]
      %v6638 = vld [vmem:[#allocation2 + $0x1e0] sm:$0xff]
      %v6639 = vld [vmem:[#allocation2 + $0x1f8] sm:$0xff]
      %v6640 = vld [vmem:[#allocation2 + $0x210] sm:$0xff]
      %v6641 = vld [vmem:[#allocation2 + $0x228] sm:$0xff]
      %v6642 = vld [vmem:[#allocation2 + $0x240] sm:$0xff]
      %v6643 = vld [vmem:[#allocation2 + $0x258] sm:$0xff]
      %v6644 = vld [vmem:[#allocation2 + $0x270] sm:$0xff]
      %v6645 = vld [vmem:[#allocation2 + $0x288] sm:$0xff]
      %v6646 = vld [vmem:[#allocation2 + $0x2a0] sm:$0xff]
      %v6647 = vld [vmem:[#allocation2 + $0x2b8] sm:$0xff]
      %v6648 = vld [vmem:[#allocation2 + $0x2d0] sm:$0xff]
      %v6649 = vld [vmem:[#allocation2 + $0x2e8] sm:$0xff]
      %v6650 = vld [vmem:[#allocation2 + $0x300] sm:$0xff]
      %v6651 = vld [vmem:[#allocation2 + $0x50] sm:$0xff]
      %v6652 = vld [vmem:[#allocation2 + $0x68] sm:$0xff]
      %v6653 = vld [vmem:[#allocation2 + $0x80] sm:$0xff]
      %v6654 = vld [vmem:[#allocation2 + $0x98] sm:$0xff]
      %v6655 = vld [vmem:[#allocation2 + $0xb0] sm:$0xff]
      %v6656 = vld [vmem:[#allocation2 + $0xc8] sm:$0xff]
      %v6657 = vld [vmem:[#allocation2 + $0xe0] sm:$0xff]
      %v6658 = vld [vmem:[#allocation2 + $0xf8] sm:$0xff]
      %v6659 = vld [vmem:[#allocation2 + $0x110] sm:$0xff]
      %v6660 = vld [vmem:[#allocation2 + $0x128] sm:$0xff]
      %v6661 = vld [vmem:[#allocation2 + $0x140] sm:$0xff]
      %v6662 = vld [vmem:[#allocation2 + $0x158] sm:$0xff]
      %v6663 = vld [vmem:[#allocation2 + $0x170] sm:$0xff]
      %v6664 = vld [vmem:[#allocation2 + $0x188] sm:$0xff]
      %v6665 = vld [vmem:[#allocation2 + $0x1a0] sm:$0xff]
      %v6666 = vld [vmem:[#allocation2 + $0x1b8] sm:$0xff]
      %v6667 = vld [vmem:[#allocation2 + $0x1d0] sm:$0xff]
      %v6668 = vld [vmem:[#allocation2 + $0x1e8] sm:$0xff]
      %v6669 = vld [vmem:[#allocation2 + $0x200] sm:$0xff]
      %v6670 = vld [vmem:[#allocation2 + $0x218] sm:$0xff]
      %v6671 = vld [vmem:[#allocation2 + $0x230] sm:$0xff]
      %v6672 = vld [vmem:[#allocation2 + $0x248] sm:$0xff]
      %v6673 = vld [vmem:[#allocation2 + $0x260] sm:$0xff]
      %v6674 = vld [vmem:[#allocation2 + $0x278] sm:$0xff]
      %v6675 = vld [vmem:[#allocation2 + $0x290] sm:$0xff]
      %v6676 = vld [vmem:[#allocation2 + $0x2a8] sm:$0xff]
      %v6677 = vld [vmem:[#allocation2 + $0x2c0] sm:$0xff]
      %v6678 = vld [vmem:[#allocation2 + $0x2d8] sm:$0xff]
      %v6679 = vld [vmem:[#allocation2 + $0x2f0] sm:$0xff]
      %v6680 = vld [vmem:[#allocation2 + $0x308] sm:$0xff]
      %v6681 = vld [vmem:[#allocation2 + $0x320] sm:$0xff]
      %v6682 = vld [vmem:[#allocation2 + $0x338] sm:$0xff]
      %6715 = vrot.lane.b32.xlu0 %v6651, 32
      %v6716 = vpop.permute.xlu0 %6715
      %6717 = vrot.lane.b32.xlu0 %v6652, 32
      %v6718 = vpop.permute.xlu0 %6717
      %6719 = vrot.lane.b32.xlu0 %v6653, 32
      %v6720 = vpop.permute.xlu0 %6719
      %6721 = vrot.lane.b32.xlu0 %v6654, 32
      %v6722 = vpop.permute.xlu0 %6721
      %6723 = vrot.lane.b32.xlu0 %v6655, 32
      %v6724 = vpop.permute.xlu0 %6723
      %6725 = vrot.lane.b32.xlu0 %v6656, 32
      %v6726 = vpop.permute.xlu0 %6725
      %6727 = vrot.lane.b32.xlu0 %v6657, 32
      %v6728 = vpop.permute.xlu0 %6727
      %6729 = vrot.lane.b32.xlu0 %v6658, 32
      %v6730 = vpop.permute.xlu0 %6729
      %6731 = vrot.lane.b32.xlu0 %v6659, 32
      %v6732 = vpop.permute.xlu0 %6731
      %6733 = vrot.lane.b32.xlu0 %v6660, 32
      %v6734 = vpop.permute.xlu0 %6733
      %6735 = vrot.lane.b32.xlu0 %v6661, 32
      %v6736 = vpop.permute.xlu0 %6735
      %6737 = vrot.lane.b32.xlu0 %v6662, 32
      %v6738 = vpop.permute.xlu0 %6737
      %6739 = vrot.lane.b32.xlu0 %v6663, 32
      %v6740 = vpop.permute.xlu0 %6739
      %6741 = vrot.lane.b32.xlu0 %v6664, 32
      %v6742 = vpop.permute.xlu0 %6741
      %6743 = vrot.lane.b32.xlu0 %v6665, 32
      %v6744 = vpop.permute.xlu0 %6743
      %6745 = vrot.lane.b32.xlu0 %v6666, 32
      %v6746 = vpop.permute.xlu0 %6745
      %6747 = vrot.lane.b32.xlu0 %v6667, 32
      %v6748 = vpop.permute.xlu0 %6747
      %6749 = vrot.lane.b32.xlu0 %v6668, 32
      %v6750 = vpop.permute.xlu0 %6749
      %6751 = vrot.lane.b32.xlu0 %v6669, 32
      %v6752 = vpop.permute.xlu0 %6751
      %6753 = vrot.lane.b32.xlu0 %v6670, 32
      %v6754 = vpop.permute.xlu0 %6753
      %6755 = vrot.lane.b32.xlu0 %v6671, 32
      %v6756 = vpop.permute.xlu0 %6755
      %6757 = vrot.lane.b32.xlu0 %v6672, 32
      %v6758 = vpop.permute.xlu0 %6757
      %6759 = vrot.lane.b32.xlu0 %v6673, 32
      %v6760 = vpop.permute.xlu0 %6759
      %6761 = vrot.lane.b32.xlu0 %v6674, 32
      %v6762 = vpop.permute.xlu0 %6761
      %6763 = vrot.lane.b32.xlu0 %v6675, 32
      %v6764 = vpop.permute.xlu0 %6763
      %6765 = vrot.lane.b32.xlu0 %v6676, 32
      %v6766 = vpop.permute.xlu0 %6765
      %6767 = vrot.lane.b32.xlu0 %v6677, 32
      %v6768 = vpop.permute.xlu0 %6767
      %6769 = vrot.lane.b32.xlu0 %v6678, 32
      %v6770 = vpop.permute.xlu0 %6769
      %6771 = vrot.lane.b32.xlu0 %v6679, 32
      %v6772 = vpop.permute.xlu0 %6771
      %6773 = vrot.lane.b32.xlu0 %v6680, 32
      %v6774 = vpop.permute.xlu0 %6773
      %6775 = vrot.lane.b32.xlu0 %v6681, 32
      %v6776 = vpop.permute.xlu0 %6775
      %6777 = vrot.lane.b32.xlu0 %v6682, 32
      %v6778 = vpop.permute.xlu0 %6777
      %v6811 = vadd.f32 %v6619, %v6716
      %v6812 = vadd.f32 %v6620, %v6718
      %v6813 = vadd.f32 %v6621, %v6720
      %v6814 = vadd.f32 %v6622, %v6722
      %v6815 = vadd.f32 %v6623, %v6724
      %v6816 = vadd.f32 %v6624, %v6726
      %v6817 = vadd.f32 %v6625, %v6728
      %v6818 = vadd.f32 %v6626, %v6730
      %v6819 = vadd.f32 %v6627, %v6732
      %v6820 = vadd.f32 %v6628, %v6734
      %v6821 = vadd.f32 %v6629, %v6736
      %v6822 = vadd.f32 %v6630, %v6738
      %v6823 = vadd.f32 %v6631, %v6740
      %v6824 = vadd.f32 %v6632, %v6742
      %v6825 = vadd.f32 %v6633, %v6744
      %v6826 = vadd.f32 %v6634, %v6746
      %v6827 = vadd.f32 %v6635, %v6748
      %v6828 = vadd.f32 %v6636, %v6750
      %v6829 = vadd.f32 %v6637, %v6752
      %v6830 = vadd.f32 %v6638, %v6754
      %v6831 = vadd.f32 %v6639, %v6756
      %v6832 = vadd.f32 %v6640, %v6758
      %v6833 = vadd.f32 %v6641, %v6760
      %v6834 = vadd.f32 %v6642, %v6762
      %v6835 = vadd.f32 %v6643, %v6764
      %v6836 = vadd.f32 %v6644, %v6766
      %v6837 = vadd.f32 %v6645, %v6768
      %v6838 = vadd.f32 %v6646, %v6770
      %v6839 = vadd.f32 %v6647, %v6772
      %v6840 = vadd.f32 %v6648, %v6774
      %v6841 = vadd.f32 %v6649, %v6776
      %v6842 = vadd.f32 %v6650, %v6778
      %v6843 = vld [vmem:[#allocation2 + $0x350] sm:$0xff]
      %v6844 = vld [vmem:[#allocation2 + $0x368] sm:$0xff]
      %6847 = vrot.lane.b32.xlu0 %v6653, 64
      %v6848 = vpop.permute.xlu0 %6847
      %6849 = vrot.lane.b32.xlu0 %v6654, 64
      %v6850 = vpop.permute.xlu0 %6849
      %6851 = vrot.lane.b32.xlu0 %v6655, 64
      %v6852 = vpop.permute.xlu0 %6851
      %6853 = vrot.lane.b32.xlu0 %v6656, 64
      %v6854 = vpop.permute.xlu0 %6853
      %6855 = vrot.lane.b32.xlu0 %v6657, 64
      %v6856 = vpop.permute.xlu0 %6855
      %6857 = vrot.lane.b32.xlu0 %v6658, 64
      %v6858 = vpop.permute.xlu0 %6857
      %6859 = vrot.lane.b32.xlu0 %v6659, 64
      %v6860 = vpop.permute.xlu0 %6859
      %6861 = vrot.lane.b32.xlu0 %v6660, 64
      %v6862 = vpop.permute.xlu0 %6861
      %6863 = vrot.lane.b32.xlu0 %v6661, 64
      %v6864 = vpop.permute.xlu0 %6863
      %6865 = vrot.lane.b32.xlu0 %v6662, 64
      %v6866 = vpop.permute.xlu0 %6865
      %6867 = vrot.lane.b32.xlu0 %v6663, 64
      %v6868 = vpop.permute.xlu0 %6867
      %6869 = vrot.lane.b32.xlu0 %v6664, 64
      %v6870 = vpop.permute.xlu0 %6869
      %6871 = vrot.lane.b32.xlu0 %v6665, 64
      %v6872 = vpop.permute.xlu0 %6871
      %6873 = vrot.lane.b32.xlu0 %v6666, 64
      %v6874 = vpop.permute.xlu0 %6873
      %6875 = vrot.lane.b32.xlu0 %v6667, 64
      %v6876 = vpop.permute.xlu0 %6875
      %6877 = vrot.lane.b32.xlu0 %v6668, 64
      %v6878 = vpop.permute.xlu0 %6877
      %6879 = vrot.lane.b32.xlu0 %v6669, 64
      %v6880 = vpop.permute.xlu0 %6879
      %6881 = vrot.lane.b32.xlu0 %v6670, 64
      %v6882 = vpop.permute.xlu0 %6881
      %6883 = vrot.lane.b32.xlu0 %v6671, 64
      %v6884 = vpop.permute.xlu0 %6883
      %6885 = vrot.lane.b32.xlu0 %v6672, 64
      %v6886 = vpop.permute.xlu0 %6885
      %6887 = vrot.lane.b32.xlu0 %v6673, 64
      %v6888 = vpop.permute.xlu0 %6887
      %6889 = vrot.lane.b32.xlu0 %v6674, 64
      %v6890 = vpop.permute.xlu0 %6889
      %6891 = vrot.lane.b32.xlu0 %v6675, 64
      %v6892 = vpop.permute.xlu0 %6891
      %6893 = vrot.lane.b32.xlu0 %v6676, 64
      %v6894 = vpop.permute.xlu0 %6893
      %6895 = vrot.lane.b32.xlu0 %v6677, 64
      %v6896 = vpop.permute.xlu0 %6895
      %6897 = vrot.lane.b32.xlu0 %v6678, 64
      %v6898 = vpop.permute.xlu0 %6897
      %6899 = vrot.lane.b32.xlu0 %v6679, 64
      %v6900 = vpop.permute.xlu0 %6899
      %6901 = vrot.lane.b32.xlu0 %v6680, 64
      %v6902 = vpop.permute.xlu0 %6901
      %6903 = vrot.lane.b32.xlu0 %v6681, 64
      %v6904 = vpop.permute.xlu0 %6903
      %6905 = vrot.lane.b32.xlu0 %v6682, 64
      %v6906 = vpop.permute.xlu0 %6905
      %6907 = vrot.lane.b32.xlu0 %v6843, 64
      %v6908 = vpop.permute.xlu0 %6907
      %6909 = vrot.lane.b32.xlu0 %v6844, 64
      %v6910 = vpop.permute.xlu0 %6909
      %v6943 = vadd.f32 %v6811, %v6848
      %v6944 = vadd.f32 %v6812, %v6850
      %v6945 = vadd.f32 %v6813, %v6852
      %v6946 = vadd.f32 %v6814, %v6854
      %v6947 = vadd.f32 %v6815, %v6856
      %v6948 = vadd.f32 %v6816, %v6858
      %v6949 = vadd.f32 %v6817, %v6860
      %v6950 = vadd.f32 %v6818, %v6862
      %v6951 = vadd.f32 %v6819, %v6864
      %v6952 = vadd.f32 %v6820, %v6866
      %v6953 = vadd.f32 %v6821, %v6868
      %v6954 = vadd.f32 %v6822, %v6870
      %v6955 = vadd.f32 %v6823, %v6872
      %v6956 = vadd.f32 %v6824, %v6874
      %v6957 = vadd.f32 %v6825, %v6876
      %v6958 = vadd.f32 %v6826, %v6878
      %v6959 = vadd.f32 %v6827, %v6880
      %v6960 = vadd.f32 %v6828, %v6882
      %v6961 = vadd.f32 %v6829, %v6884
      %v6962 = vadd.f32 %v6830, %v6886
      %v6963 = vadd.f32 %v6831, %v6888
      %v6964 = vadd.f32 %v6832, %v6890
      %v6965 = vadd.f32 %v6833, %v6892
      %v6966 = vadd.f32 %v6834, %v6894
      %v6967 = vadd.f32 %v6835, %v6896
      %v6968 = vadd.f32 %v6836, %v6898
      %v6969 = vadd.f32 %v6837, %v6900
      %v6970 = vadd.f32 %v6838, %v6902
      %v6971 = vadd.f32 %v6839, %v6904
      %v6972 = vadd.f32 %v6840, %v6906
      %v6973 = vadd.f32 %v6841, %v6908
      %v6974 = vadd.f32 %v6842, %v6910
      %v6975 = vld [vmem:[#allocation2] sm:$0x80]
      %v6976 = vld [vmem:[#allocation2 + $0x300] sm:$0x7f]
      %v6977 = vld [vmem:[#allocation2 + $0x30] sm:$0x80]
      %v6978 = vld [vmem:[#allocation2 + $0x318] sm:$0xff]
      %v6979 = vld [vmem:[#allocation2 + $0x330] sm:$0x7f]
      %7013 = vrot.lane.b32.xlu0 %v6977, 32
      %v7014 = vpop.permute.xlu0 %7013
      %7015 = vrot.lane.b32.xlu0 %v6621, 32
      %v7016 = vpop.permute.xlu0 %7015
      %7017 = vrot.lane.b32.xlu0 %v6622, 32
      %v7018 = vpop.permute.xlu0 %7017
      %7019 = vrot.lane.b32.xlu0 %v6623, 32
      %v7020 = vpop.permute.xlu0 %7019
      %7021 = vrot.lane.b32.xlu0 %v6624, 32
      %v7022 = vpop.permute.xlu0 %7021
      %7023 = vrot.lane.b32.xlu0 %v6625, 32
      %v7024 = vpop.permute.xlu0 %7023
      %7025 = vrot.lane.b32.xlu0 %v6626, 32
      %v7026 = vpop.permute.xlu0 %7025
      %7027 = vrot.lane.b32.xlu0 %v6627, 32
      %v7028 = vpop.permute.xlu0 %7027
      %7029 = vrot.lane.b32.xlu0 %v6628, 32
      %v7030 = vpop.permute.xlu0 %7029
      %7031 = vrot.lane.b32.xlu0 %v6629, 32
      %v7032 = vpop.permute.xlu0 %7031
      %7033 = vrot.lane.b32.xlu0 %v6630, 32
      %v7034 = vpop.permute.xlu0 %7033
      %7035 = vrot.lane.b32.xlu0 %v6631, 32
      %v7036 = vpop.permute.xlu0 %7035
      %7037 = vrot.lane.b32.xlu0 %v6632, 32
      %v7038 = vpop.permute.xlu0 %7037
      %7039 = vrot.lane.b32.xlu0 %v6633, 32
      %v7040 = vpop.permute.xlu0 %7039
      %7041 = vrot.lane.b32.xlu0 %v6634, 32
      %v7042 = vpop.permute.xlu0 %7041
      %7043 = vrot.lane.b32.xlu0 %v6635, 32
      %v7044 = vpop.permute.xlu0 %7043
      %7045 = vrot.lane.b32.xlu0 %v6636, 32
      %v7046 = vpop.permute.xlu0 %7045
      %7047 = vrot.lane.b32.xlu0 %v6637, 32
      %v7048 = vpop.permute.xlu0 %7047
      %7049 = vrot.lane.b32.xlu0 %v6638, 32
      %v7050 = vpop.permute.xlu0 %7049
      %7051 = vrot.lane.b32.xlu0 %v6639, 32
      %v7052 = vpop.permute.xlu0 %7051
      %7053 = vrot.lane.b32.xlu0 %v6640, 32
      %v7054 = vpop.permute.xlu0 %7053
      %7055 = vrot.lane.b32.xlu0 %v6641, 32
      %v7056 = vpop.permute.xlu0 %7055
      %7057 = vrot.lane.b32.xlu0 %v6642, 32
      %v7058 = vpop.permute.xlu0 %7057
      %7059 = vrot.lane.b32.xlu0 %v6643, 32
      %v7060 = vpop.permute.xlu0 %7059
      %7061 = vrot.lane.b32.xlu0 %v6644, 32
      %v7062 = vpop.permute.xlu0 %7061
      %7063 = vrot.lane.b32.xlu0 %v6645, 32
      %v7064 = vpop.permute.xlu0 %7063
      %7065 = vrot.lane.b32.xlu0 %v6646, 32
      %v7066 = vpop.permute.xlu0 %7065
      %7067 = vrot.lane.b32.xlu0 %v6647, 32
      %v7068 = vpop.permute.xlu0 %7067
      %7069 = vrot.lane.b32.xlu0 %v6648, 32
      %v7070 = vpop.permute.xlu0 %7069
      %7071 = vrot.lane.b32.xlu0 %v6649, 32
      %v7072 = vpop.permute.xlu0 %7071
      %7073 = vrot.lane.b32.xlu0 %v6650, 32
      %v7074 = vpop.permute.xlu0 %7073
      %7075 = vrot.lane.b32.xlu0 %v6978, 32
      %v7076 = vpop.permute.xlu0 %7075
      %7077 = vrot.lane.b32.xlu0 %v6979, 32
      %v7078 = vpop.permute.xlu0 %7077
      %v7112 = vadd.f32 %v6975, %v7014
      %v7113 = vadd.f32 %v6619, %v7016
      %v7114 = vadd.f32 %v6620, %v7018
      %v7115 = vadd.f32 %v6621, %v7020
      %v7116 = vadd.f32 %v6622, %v7022
      %v7117 = vadd.f32 %v6623, %v7024
      %v7118 = vadd.f32 %v6624, %v7026
      %v7119 = vadd.f32 %v6625, %v7028
      %v7120 = vadd.f32 %v6626, %v7030
      %v7121 = vadd.f32 %v6627, %v7032
      %v7122 = vadd.f32 %v6628, %v7034
      %v7123 = vadd.f32 %v6629, %v7036
      %v7124 = vadd.f32 %v6630, %v7038
      %v7125 = vadd.f32 %v6631, %v7040
      %v7126 = vadd.f32 %v6632, %v7042
      %v7127 = vadd.f32 %v6633, %v7044
      %v7128 = vadd.f32 %v6634, %v7046
      %v7129 = vadd.f32 %v6635, %v7048
      %v7130 = vadd.f32 %v6636, %v7050
      %v7131 = vadd.f32 %v6637, %v7052
      %v7132 = vadd.f32 %v6638, %v7054
      %v7133 = vadd.f32 %v6639, %v7056
      %v7134 = vadd.f32 %v6640, %v7058
      %v7135 = vadd.f32 %v6641, %v7060
      %v7136 = vadd.f32 %v6642, %v7062
      %v7137 = vadd.f32 %v6643, %v7064
      %v7138 = vadd.f32 %v6644, %v7066
      %v7139 = vadd.f32 %v6645, %v7068
      %v7140 = vadd.f32 %v6646, %v7070
      %v7141 = vadd.f32 %v6647, %v7072
      %v7142 = vadd.f32 %v6648, %v7074
      %v7143 = vadd.f32 %v6649, %v7076
      %v7144 = vadd.f32 %v6976, %v7078
      %v7145 = vld [vmem:[#allocation2 + $0x68] sm:$0x80]
      %v7146 = vld [vmem:[#allocation2 + $0x368] sm:$0x7f]
      %7149 = vrot.lane.b32.xlu0 %v7145, 64
      %v7150 = vpop.permute.xlu0 %7149
      %7151 = vrot.lane.b32.xlu0 %v7146, 64
      %v7152 = vpop.permute.xlu0 %7151
      %v7155 = vadd.f32 %v7112, %v7150
      %v7156 = vadd.f32 %v7113, %v6848
      %v7157 = vadd.f32 %v7114, %v6850
      %v7158 = vadd.f32 %v7115, %v6852
      %v7159 = vadd.f32 %v7116, %v6854
      %v7160 = vadd.f32 %v7117, %v6856
      %v7161 = vadd.f32 %v7118, %v6858
      %v7162 = vadd.f32 %v7119, %v6860
      %v7163 = vadd.f32 %v7120, %v6862
      %v7164 = vadd.f32 %v7121, %v6864
      %v7165 = vadd.f32 %v7122, %v6866
      %v7166 = vadd.f32 %v7123, %v6868
      %v7167 = vadd.f32 %v7124, %v6870
      %v7168 = vadd.f32 %v7125, %v6872
      %v7169 = vadd.f32 %v7126, %v6874
      %v7170 = vadd.f32 %v7127, %v6876
      %v7171 = vadd.f32 %v7128, %v6878
      %v7172 = vadd.f32 %v7129, %v6880
      %v7173 = vadd.f32 %v7130, %v6882
      %v7174 = vadd.f32 %v7131, %v6884
      %v7175 = vadd.f32 %v7132, %v6886
      %v7176 = vadd.f32 %v7133, %v6888
      %v7177 = vadd.f32 %v7134, %v6890
      %v7178 = vadd.f32 %v7135, %v6892
      %v7179 = vadd.f32 %v7136, %v6894
      %v7180 = vadd.f32 %v7137, %v6896
      %v7181 = vadd.f32 %v7138, %v6898
      %v7182 = vadd.f32 %v7139, %v6900
      %v7183 = vadd.f32 %v7140, %v6902
      %v7184 = vadd.f32 %v7141, %v6904
      %v7185 = vadd.f32 %v7142, %v6906
      %v7186 = vadd.f32 %v7143, %v6908
      %v7187 = vadd.f32 %v7144, %v7152
      %v7188 = vld [vmem:[#allocation2 + $0x18] sm:$0xfe]
      %v7189 = vld [vmem:[#allocation2 + $0x318] sm:$0x1]
      %v7190 = vld [vmem:[#allocation2 + $0x50] sm:$0xfe]
      %v7191 = vld [vmem:[#allocation2 + $0x350] sm:$0x1]
      %7194 = vrot.lane.b32.xlu0 %v7190, 32
      %v7195 = vpop.permute.xlu0 %7194
      %7196 = vrot.lane.b32.xlu0 %v7191, 32
      %v7197 = vpop.permute.xlu0 %7196
      %v7200 = vadd.f32 %v7188, %v7195
      %v7201 = vadd.f32 %v7189, %v7197
      %v7202 = vld [vmem:[#allocation2 + $0x88] sm:$0xfe]
      %v7203 = vld [vmem:[#allocation2 + $0xa0] sm:$0xff]
      %v7204 = vld [vmem:[#allocation2 + $0xb8] sm:$0xff]
      %v7205 = vld [vmem:[#allocation2 + $0xd0] sm:$0xff]
      %v7206 = vld [vmem:[#allocation2 + $0xe8] sm:$0xff]
      %v7207 = vld [vmem:[#allocation2 + $0x100] sm:$0xff]
      %v7208 = vld [vmem:[#allocation2 + $0x118] sm:$0xff]
      %v7209 = vld [vmem:[#allocation2 + $0x130] sm:$0xff]
      %v7210 = vld [vmem:[#allocation2 + $0x148] sm:$0xff]
      %v7211 = vld [vmem:[#allocation2 + $0x160] sm:$0xff]
      %v7212 = vld [vmem:[#allocation2 + $0x178] sm:$0xff]
      %v7213 = vld [vmem:[#allocation2 + $0x190] sm:$0xff]
      %v7214 = vld [vmem:[#allocation2 + $0x1a8] sm:$0xff]
      %v7215 = vld [vmem:[#allocation2 + $0x1c0] sm:$0xff]
      %v7216 = vld [vmem:[#allocation2 + $0x1d8] sm:$0xff]
      %v7217 = vld [vmem:[#allocation2 + $0x1f0] sm:$0xff]
      %v7218 = vld [vmem:[#allocation2 + $0x208] sm:$0xff]
      %v7219 = vld [vmem:[#allocation2 + $0x220] sm:$0xff]
      %v7220 = vld [vmem:[#allocation2 + $0x238] sm:$0xff]
      %v7221 = vld [vmem:[#allocation2 + $0x250] sm:$0xff]
      %v7222 = vld [vmem:[#allocation2 + $0x268] sm:$0xff]
      %v7223 = vld [vmem:[#allocation2 + $0x280] sm:$0xff]
      %v7224 = vld [vmem:[#allocation2 + $0x298] sm:$0xff]
      %v7225 = vld [vmem:[#allocation2 + $0x2b0] sm:$0xff]
      %v7226 = vld [vmem:[#allocation2 + $0x2c8] sm:$0xff]
      %v7227 = vld [vmem:[#allocation2 + $0x2e0] sm:$0xff]
      %v7228 = vld [vmem:[#allocation2 + $0x2f8] sm:$0xff]
      %v7229 = vld [vmem:[#allocation2 + $0x310] sm:$0xff]
      %v7230 = vld [vmem:[#allocation2 + $0x328] sm:$0xff]
      %v7231 = vld [vmem:[#allocation2 + $0x340] sm:$0xff]
      %v7232 = vld [vmem:[#allocation2 + $0x358] sm:$0xff]
      %v7233 = vld [vmem:[#allocation2 + $0x370] sm:$0xff]
      %v7234 = vld [vmem:[#allocation2 + $0x388] sm:$0x1]
      %7268 = vrot.lane.b32.xlu0 %v7202, 64
      %v7269 = vpop.permute.xlu0 %7268
      %7270 = vrot.lane.b32.xlu0 %v7203, 64
      %v7271 = vpop.permute.xlu0 %7270
      %7272 = vrot.lane.b32.xlu0 %v7204, 64
      %v7273 = vpop.permute.xlu0 %7272
      %7274 = vrot.lane.b32.xlu0 %v7205, 64
      %v7275 = vpop.permute.xlu0 %7274
      %7276 = vrot.lane.b32.xlu0 %v7206, 64
      %v7277 = vpop.permute.xlu0 %7276
      %7278 = vrot.lane.b32.xlu0 %v7207, 64
      %v7279 = vpop.permute.xlu0 %7278
      %7280 = vrot.lane.b32.xlu0 %v7208, 64
      %v7281 = vpop.permute.xlu0 %7280
      %7282 = vrot.lane.b32.xlu0 %v7209, 64
      %v7283 = vpop.permute.xlu0 %7282
      %7284 = vrot.lane.b32.xlu0 %v7210, 64
      %v7285 = vpop.permute.xlu0 %7284
      %7286 = vrot.lane.b32.xlu0 %v7211, 64
      %v7287 = vpop.permute.xlu0 %7286
      %7288 = vrot.lane.b32.xlu0 %v7212, 64
      %v7289 = vpop.permute.xlu0 %7288
      %7290 = vrot.lane.b32.xlu0 %v7213, 64
      %v7291 = vpop.permute.xlu0 %7290
      %7292 = vrot.lane.b32.xlu0 %v7214, 64
      %v7293 = vpop.permute.xlu0 %7292
      %7294 = vrot.lane.b32.xlu0 %v7215, 64
      %v7295 = vpop.permute.xlu0 %7294
      %7296 = vrot.lane.b32.xlu0 %v7216, 64
      %v7297 = vpop.permute.xlu0 %7296
      %7298 = vrot.lane.b32.xlu0 %v7217, 64
      %v7299 = vpop.permute.xlu0 %7298
      %7300 = vrot.lane.b32.xlu0 %v7218, 64
      %v7301 = vpop.permute.xlu0 %7300
      %7302 = vrot.lane.b32.xlu0 %v7219, 64
      %v7303 = vpop.permute.xlu0 %7302
      %7304 = vrot.lane.b32.xlu0 %v7220, 64
      %v7305 = vpop.permute.xlu0 %7304
      %7306 = vrot.lane.b32.xlu0 %v7221, 64
      %v7307 = vpop.permute.xlu0 %7306
      %7308 = vrot.lane.b32.xlu0 %v7222, 64
      %v7309 = vpop.permute.xlu0 %7308
      %7310 = vrot.lane.b32.xlu0 %v7223, 64
      %v7311 = vpop.permute.xlu0 %7310
      %7312 = vrot.lane.b32.xlu0 %v7224, 64
      %v7313 = vpop.permute.xlu0 %7312
      %7314 = vrot.lane.b32.xlu0 %v7225, 64
      %v7315 = vpop.permute.xlu0 %7314
      %7316 = vrot.lane.b32.xlu0 %v7226, 64
      %v7317 = vpop.permute.xlu0 %7316
      %7318 = vrot.lane.b32.xlu0 %v7227, 64
      %v7319 = vpop.permute.xlu0 %7318
      %7320 = vrot.lane.b32.xlu0 %v7228, 64
      %v7321 = vpop.permute.xlu0 %7320
      %7322 = vrot.lane.b32.xlu0 %v7229, 64
      %v7323 = vpop.permute.xlu0 %7322
      %7324 = vrot.lane.b32.xlu0 %v7230, 64
      %v7325 = vpop.permute.xlu0 %7324
      %7326 = vrot.lane.b32.xlu0 %v7231, 64
      %v7327 = vpop.permute.xlu0 %7326
      %7328 = vrot.lane.b32.xlu0 %v7232, 64
      %v7329 = vpop.permute.xlu0 %7328
      %7330 = vrot.lane.b32.xlu0 %v7233, 64
      %v7331 = vpop.permute.xlu0 %7330
      %7332 = vrot.lane.b32.xlu0 %v7234, 64
      %v7333 = vpop.permute.xlu0 %7332
      %v7367 = vadd.f32 %v7200, %v7269
      %v7368 = vadd.f32 %v6812, %v7271
      %v7369 = vadd.f32 %v6813, %v7273
      %v7370 = vadd.f32 %v6814, %v7275
      %v7371 = vadd.f32 %v6815, %v7277
      %v7372 = vadd.f32 %v6816, %v7279
      %v7373 = vadd.f32 %v6817, %v7281
      %v7374 = vadd.f32 %v6818, %v7283
      %v7375 = vadd.f32 %v6819, %v7285
      %v7376 = vadd.f32 %v6820, %v7287
      %v7377 = vadd.f32 %v6821, %v7289
      %v7378 = vadd.f32 %v6822, %v7291
      %v7379 = vadd.f32 %v6823, %v7293
      %v7380 = vadd.f32 %v6824, %v7295
      %v7381 = vadd.f32 %v6825, %v7297
      %v7382 = vadd.f32 %v6826, %v7299
      %v7383 = vadd.f32 %v6827, %v7301
      %v7384 = vadd.f32 %v6828, %v7303
      %v7385 = vadd.f32 %v6829, %v7305
      %v7386 = vadd.f32 %v6830, %v7307
      %v7387 = vadd.f32 %v6831, %v7309
      %v7388 = vadd.f32 %v6832, %v7311
      %v7389 = vadd.f32 %v6833, %v7313
      %v7390 = vadd.f32 %v6834, %v7315
      %v7391 = vadd.f32 %v6835, %v7317
      %v7392 = vadd.f32 %v6836, %v7319
      %v7393 = vadd.f32 %v6837, %v7321
      %v7394 = vadd.f32 %v6838, %v7323
      %v7395 = vadd.f32 %v6839, %v7325
      %v7396 = vadd.f32 %v6840, %v7327
      %v7397 = vadd.f32 %v6841, %v7329
      %v7398 = vadd.f32 %v6842, %v7331
      %v7399 = vadd.f32 %v7201, %v7333
      %v7400 = vmul.f32 %v7155, %v2661
      %v7401 = vmul.f32 %v7156, %v2663
      %v7402 = vmul.f32 %v7157, %v2665
      %v7403 = vmul.f32 %v7158, %v2667
      %v7404 = vmul.f32 %v7159, %v2669
      %v7405 = vmul.f32 %v7160, %v2671
      %v7406 = vmul.f32 %v7161, %v2673
      %v7407 = vmul.f32 %v7162, %v2675
      %v7408 = vmul.f32 %v7163, %v2677
      %v7409 = vmul.f32 %v7164, %v2679
      %v7410 = vmul.f32 %v7165, %v2681
      %v7411 = vmul.f32 %v7166, %v2683
      %v7412 = vmul.f32 %v7167, %v2685
      %v7413 = vmul.f32 %v7168, %v2687
      %v7414 = vmul.f32 %v7169, %v2689
      %v7415 = vmul.f32 %v7170, %v2691
      %v7416 = vmul.f32 %v7171, %v2693
      %v7417 = vmul.f32 %v7172, %v2695
      %v7418 = vmul.f32 %v7173, %v2697
      %v7419 = vmul.f32 %v7174, %v2699
      %v7420 = vmul.f32 %v7175, %v2701
      %v7421 = vmul.f32 %v7176, %v2703
      %v7422 = vmul.f32 %v7177, %v2705
      %v7423 = vmul.f32 %v7178, %v2707
      %v7424 = vmul.f32 %v7179, %v2709
      %v7425 = vmul.f32 %v7180, %v2711
      %v7426 = vmul.f32 %v7181, %v2713
      %v7427 = vmul.f32 %v7182, %v2715
      %v7428 = vmul.f32 %v7183, %v2717
      %v7429 = vmul.f32 %v7184, %v2719
      %v7430 = vmul.f32 %v7185, %v2721
      %v7431 = vmul.f32 %v7186, %v2723
      %v7432 = vmul.f32 %v7187, %v2722
      %v7466 = vrot.slane %v7400, 7
      %v7467 = vrot.slane %v7401, 7
      %v7468 = vsel %vm2823, %v7466, %v7467
      %v7469 = vrot.slane %v7402, 7
      %v7470 = vsel %vm2823, %v7467, %v7469
      %v7471 = vrot.slane %v7403, 7
      %v7472 = vsel %vm2823, %v7469, %v7471
      %v7473 = vrot.slane %v7404, 7
      %v7474 = vsel %vm2823, %v7471, %v7473
      %v7475 = vrot.slane %v7405, 7
      %v7476 = vsel %vm2823, %v7473, %v7475
      %v7477 = vrot.slane %v7406, 7
      %v7478 = vsel %vm2823, %v7475, %v7477
      %v7479 = vrot.slane %v7407, 7
      %v7480 = vsel %vm2823, %v7477, %v7479
      %v7481 = vrot.slane %v7408, 7
      %v7482 = vsel %vm2823, %v7479, %v7481
      %v7483 = vrot.slane %v7409, 7
      %v7484 = vsel %vm2823, %v7481, %v7483
      %v7485 = vrot.slane %v7410, 7
      %v7486 = vsel %vm2823, %v7483, %v7485
      %v7487 = vrot.slane %v7411, 7
      %v7488 = vsel %vm2823, %v7485, %v7487
      %v7489 = vrot.slane %v7412, 7
      %v7490 = vsel %vm2823, %v7487, %v7489
      %v7491 = vrot.slane %v7413, 7
      %v7492 = vsel %vm2823, %v7489, %v7491
      %v7493 = vrot.slane %v7414, 7
      %v7494 = vsel %vm2823, %v7491, %v7493
      %v7495 = vrot.slane %v7415, 7
      %v7496 = vsel %vm2823, %v7493, %v7495
      %v7497 = vrot.slane %v7416, 7
      %v7498 = vsel %vm2823, %v7495, %v7497
      %v7499 = vrot.slane %v7417, 7
      %v7500 = vsel %vm2823, %v7497, %v7499
      %v7501 = vrot.slane %v7418, 7
      %v7502 = vsel %vm2823, %v7499, %v7501
      %v7503 = vrot.slane %v7419, 7
      %v7504 = vsel %vm2823, %v7501, %v7503
      %v7505 = vrot.slane %v7420, 7
      %v7506 = vsel %vm2823, %v7503, %v7505
      %v7507 = vrot.slane %v7421, 7
      %v7508 = vsel %vm2823, %v7505, %v7507
      %v7509 = vrot.slane %v7422, 7
      %v7510 = vsel %vm2823, %v7507, %v7509
      %v7511 = vrot.slane %v7423, 7
      %v7512 = vsel %vm2823, %v7509, %v7511
      %v7513 = vrot.slane %v7424, 7
      %v7514 = vsel %vm2823, %v7511, %v7513
      %v7515 = vrot.slane %v7425, 7
      %v7516 = vsel %vm2823, %v7513, %v7515
      %v7517 = vrot.slane %v7426, 7
      %v7518 = vsel %vm2823, %v7515, %v7517
      %v7519 = vrot.slane %v7427, 7
      %v7520 = vsel %vm2823, %v7517, %v7519
      %v7521 = vrot.slane %v7428, 7
      %v7522 = vsel %vm2823, %v7519, %v7521
      %v7523 = vrot.slane %v7429, 7
      %v7524 = vsel %vm2823, %v7521, %v7523
      %v7525 = vrot.slane %v7430, 7
      %v7526 = vsel %vm2823, %v7523, %v7525
      %v7527 = vrot.slane %v7431, 7
      %v7528 = vsel %vm2823, %v7525, %v7527
      %v7529 = vrot.slane %v7432, 7
      %v7530 = vsel %vm2823, %v7527, %v7529
      %7531 = vrot.lane.b32.xlu0 %v7468, 32
      %v7532 = vpop.permute.xlu0 %7531
      %7533 = vrot.lane.b32.xlu0 %v7470, 32
      %v7534 = vpop.permute.xlu0 %7533
      %7535 = vrot.lane.b32.xlu0 %v7472, 32
      %v7536 = vpop.permute.xlu0 %7535
      %7537 = vrot.lane.b32.xlu0 %v7474, 32
      %v7538 = vpop.permute.xlu0 %7537
      %7539 = vrot.lane.b32.xlu0 %v7476, 32
      %v7540 = vpop.permute.xlu0 %7539
      %7541 = vrot.lane.b32.xlu0 %v7478, 32
      %v7542 = vpop.permute.xlu0 %7541
      %7543 = vrot.lane.b32.xlu0 %v7480, 32
      %v7544 = vpop.permute.xlu0 %7543
      %7545 = vrot.lane.b32.xlu0 %v7482, 32
      %v7546 = vpop.permute.xlu0 %7545
      %7547 = vrot.lane.b32.xlu0 %v7484, 32
      %v7548 = vpop.permute.xlu0 %7547
      %7549 = vrot.lane.b32.xlu0 %v7486, 32
      %v7550 = vpop.permute.xlu0 %7549
      %7551 = vrot.lane.b32.xlu0 %v7488, 32
      %v7552 = vpop.permute.xlu0 %7551
      %7553 = vrot.lane.b32.xlu0 %v7490, 32
      %v7554 = vpop.permute.xlu0 %7553
      %7555 = vrot.lane.b32.xlu0 %v7492, 32
      %v7556 = vpop.permute.xlu0 %7555
      %7557 = vrot.lane.b32.xlu0 %v7494, 32
      %v7558 = vpop.permute.xlu0 %7557
      %7559 = vrot.lane.b32.xlu0 %v7496, 32
      %v7560 = vpop.permute.xlu0 %7559
      %7561 = vrot.lane.b32.xlu0 %v7498, 32
      %v7562 = vpop.permute.xlu0 %7561
      %7563 = vrot.lane.b32.xlu0 %v7500, 32
      %v7564 = vpop.permute.xlu0 %7563
      %7565 = vrot.lane.b32.xlu0 %v7502, 32
      %v7566 = vpop.permute.xlu0 %7565
      %7567 = vrot.lane.b32.xlu0 %v7504, 32
      %v7568 = vpop.permute.xlu0 %7567
      %7569 = vrot.lane.b32.xlu0 %v7506, 32
      %v7570 = vpop.permute.xlu0 %7569
      %7571 = vrot.lane.b32.xlu0 %v7508, 32
      %v7572 = vpop.permute.xlu0 %7571
      %7573 = vrot.lane.b32.xlu0 %v7510, 32
      %v7574 = vpop.permute.xlu0 %7573
      %7575 = vrot.lane.b32.xlu0 %v7512, 32
      %v7576 = vpop.permute.xlu0 %7575
      %7577 = vrot.lane.b32.xlu0 %v7514, 32
      %v7578 = vpop.permute.xlu0 %7577
      %7579 = vrot.lane.b32.xlu0 %v7516, 32
      %v7580 = vpop.permute.xlu0 %7579
      %7581 = vrot.lane.b32.xlu0 %v7518, 32
      %v7582 = vpop.permute.xlu0 %7581
      %7583 = vrot.lane.b32.xlu0 %v7520, 32
      %v7584 = vpop.permute.xlu0 %7583
      %7585 = vrot.lane.b32.xlu0 %v7522, 32
      %v7586 = vpop.permute.xlu0 %7585
      %7587 = vrot.lane.b32.xlu0 %v7524, 32
      %v7588 = vpop.permute.xlu0 %7587
      %7589 = vrot.lane.b32.xlu0 %v7526, 32
      %v7590 = vpop.permute.xlu0 %7589
      %7591 = vrot.lane.b32.xlu0 %v7528, 32
      %v7592 = vpop.permute.xlu0 %7591
      %7593 = vrot.lane.b32.xlu0 %v7530, 32
      %v7594 = vpop.permute.xlu0 %7593
      %v7627 = vadd.f32 %v6943, %v7532
      %v7628 = vadd.f32 %v6944, %v7534
      %v7629 = vadd.f32 %v6945, %v7536
      %v7630 = vadd.f32 %v6946, %v7538
      %v7631 = vadd.f32 %v6947, %v7540
      %v7632 = vadd.f32 %v6948, %v7542
      %v7633 = vadd.f32 %v6949, %v7544
      %v7634 = vadd.f32 %v6950, %v7546
      %v7635 = vadd.f32 %v6951, %v7548
      %v7636 = vadd.f32 %v6952, %v7550
      %v7637 = vadd.f32 %v6953, %v7552
      %v7638 = vadd.f32 %v6954, %v7554
      %v7639 = vadd.f32 %v6955, %v7556
      %v7640 = vadd.f32 %v6956, %v7558
      %v7641 = vadd.f32 %v6957, %v7560
      %v7642 = vadd.f32 %v6958, %v7562
      %v7643 = vadd.f32 %v6959, %v7564
      %v7644 = vadd.f32 %v6960, %v7566
      %v7645 = vadd.f32 %v6961, %v7568
      %v7646 = vadd.f32 %v6962, %v7570
      %v7647 = vadd.f32 %v6963, %v7572
      %v7648 = vadd.f32 %v6964, %v7574
      %v7649 = vadd.f32 %v6965, %v7576
      %v7650 = vadd.f32 %v6966, %v7578
      %v7651 = vadd.f32 %v6967, %v7580
      %v7652 = vadd.f32 %v6968, %v7582
      %v7653 = vadd.f32 %v6969, %v7584
      %v7654 = vadd.f32 %v6970, %v7586
      %v7655 = vadd.f32 %v6971, %v7588
      %v7656 = vadd.f32 %v6972, %v7590
      %v7657 = vadd.f32 %v6973, %v7592
      %v7658 = vadd.f32 %v6974, %v7594
      %v7659 = vmul.f32 %v7367, %v3049
      %v7660 = vmul.f32 %v7368, %v3051
      %v7661 = vmul.f32 %v7369, %v3053
      %v7662 = vmul.f32 %v7370, %v3055
      %v7663 = vmul.f32 %v7371, %v3057
      %v7664 = vmul.f32 %v7372, %v3059
      %v7665 = vmul.f32 %v7373, %v3061
      %v7666 = vmul.f32 %v7374, %v3063
      %v7667 = vmul.f32 %v7375, %v3065
      %v7668 = vmul.f32 %v7376, %v3067
      %v7669 = vmul.f32 %v7377, %v3069
      %v7670 = vmul.f32 %v7378, %v3071
      %v7671 = vmul.f32 %v7379, %v3073
      %v7672 = vmul.f32 %v7380, %v3075
      %v7673 = vmul.f32 %v7381, %v3077
      %v7674 = vmul.f32 %v7382, %v3079
      %v7675 = vmul.f32 %v7383, %v3081
      %v7676 = vmul.f32 %v7384, %v3083
      %v7677 = vmul.f32 %v7385, %v3085
      %v7678 = vmul.f32 %v7386, %v3087
      %v7679 = vmul.f32 %v7387, %v3089
      %v7680 = vmul.f32 %v7388, %v3091
      %v7681 = vmul.f32 %v7389, %v3093
      %v7682 = vmul.f32 %v7390, %v3095
      %v7683 = vmul.f32 %v7391, %v3097
      %v7684 = vmul.f32 %v7392, %v3099
      %v7685 = vmul.f32 %v7393, %v3101
      %v7686 = vmul.f32 %v7394, %v3103
      %v7687 = vmul.f32 %v7395, %v3105
      %v7688 = vmul.f32 %v7396, %v3107
      %v7689 = vmul.f32 %v7397, %v3109
      %v7690 = vmul.f32 %v7398, %v3111
      %v7691 = vmul.f32 %v7399, %v3110
      %v7725 = vrot.slane %v7659, 1
      %v7726 = vrot.slane %v7660, 1
      %v7727 = vsel %vm2660, %v7725, %v7726
      %v7728 = vrot.slane %v7661, 1
      %v7729 = vsel %vm2660, %v7726, %v7728
      %v7730 = vrot.slane %v7662, 1
      %v7731 = vsel %vm2660, %v7728, %v7730
      %v7732 = vrot.slane %v7663, 1
      %v7733 = vsel %vm2660, %v7730, %v7732
      %v7734 = vrot.slane %v7664, 1
      %v7735 = vsel %vm2660, %v7732, %v7734
      %v7736 = vrot.slane %v7665, 1
      %v7737 = vsel %vm2660, %v7734, %v7736
      %v7738 = vrot.slane %v7666, 1
      %v7739 = vsel %vm2660, %v7736, %v7738
      %v7740 = vrot.slane %v7667, 1
      %v7741 = vsel %vm2660, %v7738, %v7740
      %v7742 = vrot.slane %v7668, 1
      %v7743 = vsel %vm2660, %v7740, %v7742
      %v7744 = vrot.slane %v7669, 1
      %v7745 = vsel %vm2660, %v7742, %v7744
      %v7746 = vrot.slane %v7670, 1
      %v7747 = vsel %vm2660, %v7744, %v7746
      %v7748 = vrot.slane %v7671, 1
      %v7749 = vsel %vm2660, %v7746, %v7748
      %v7750 = vrot.slane %v7672, 1
      %v7751 = vsel %vm2660, %v7748, %v7750
      %v7752 = vrot.slane %v7673, 1
      %v7753 = vsel %vm2660, %v7750, %v7752
      %v7754 = vrot.slane %v7674, 1
      %v7755 = vsel %vm2660, %v7752, %v7754
      %v7756 = vrot.slane %v7675, 1
      %v7757 = vsel %vm2660, %v7754, %v7756
      %v7758 = vrot.slane %v7676, 1
      %v7759 = vsel %vm2660, %v7756, %v7758
      %v7760 = vrot.slane %v7677, 1
      %v7761 = vsel %vm2660, %v7758, %v7760
      %v7762 = vrot.slane %v7678, 1
      %v7763 = vsel %vm2660, %v7760, %v7762
      %v7764 = vrot.slane %v7679, 1
      %v7765 = vsel %vm2660, %v7762, %v7764
      %v7766 = vrot.slane %v7680, 1
      %v7767 = vsel %vm2660, %v7764, %v7766
      %v7768 = vrot.slane %v7681, 1
      %v7769 = vsel %vm2660, %v7766, %v7768
      %v7770 = vrot.slane %v7682, 1
      %v7771 = vsel %vm2660, %v7768, %v7770
      %v7772 = vrot.slane %v7683, 1
      %v7773 = vsel %vm2660, %v7770, %v7772
      %v7774 = vrot.slane %v7684, 1
      %v7775 = vsel %vm2660, %v7772, %v7774
      %v7776 = vrot.slane %v7685, 1
      %v7777 = vsel %vm2660, %v7774, %v7776
      %v7778 = vrot.slane %v7686, 1
      %v7779 = vsel %vm2660, %v7776, %v7778
      %v7780 = vrot.slane %v7687, 1
      %v7781 = vsel %vm2660, %v7778, %v7780
      %v7782 = vrot.slane %v7688, 1
      %v7783 = vsel %vm2660, %v7780, %v7782
      %v7784 = vrot.slane %v7689, 1
      %v7785 = vsel %vm2660, %v7782, %v7784
      %v7786 = vrot.slane %v7690, 1
      %v7787 = vsel %vm2660, %v7784, %v7786
      %v7788 = vrot.slane %v7691, 1
      %v7789 = vsel %vm2660, %v7786, %v7788
      %7790 = vrot.lane.b32.xlu0 %v7727, 96
      %v7791 = vpop.permute.xlu0 %7790
      %7792 = vrot.lane.b32.xlu0 %v7729, 96
      %v7793 = vpop.permute.xlu0 %7792
      %7794 = vrot.lane.b32.xlu0 %v7731, 96
      %v7795 = vpop.permute.xlu0 %7794
      %7796 = vrot.lane.b32.xlu0 %v7733, 96
      %v7797 = vpop.permute.xlu0 %7796
      %7798 = vrot.lane.b32.xlu0 %v7735, 96
      %v7799 = vpop.permute.xlu0 %7798
      %7800 = vrot.lane.b32.xlu0 %v7737, 96
      %v7801 = vpop.permute.xlu0 %7800
      %7802 = vrot.lane.b32.xlu0 %v7739, 96
      %v7803 = vpop.permute.xlu0 %7802
      %7804 = vrot.lane.b32.xlu0 %v7741, 96
      %v7805 = vpop.permute.xlu0 %7804
      %7806 = vrot.lane.b32.xlu0 %v7743, 96
      %v7807 = vpop.permute.xlu0 %7806
      %7808 = vrot.lane.b32.xlu0 %v7745, 96
      %v7809 = vpop.permute.xlu0 %7808
      %7810 = vrot.lane.b32.xlu0 %v7747, 96
      %v7811 = vpop.permute.xlu0 %7810
      %7812 = vrot.lane.b32.xlu0 %v7749, 96
      %v7813 = vpop.permute.xlu0 %7812
      %7814 = vrot.lane.b32.xlu0 %v7751, 96
      %v7815 = vpop.permute.xlu0 %7814
      %7816 = vrot.lane.b32.xlu0 %v7753, 96
      %v7817 = vpop.permute.xlu0 %7816
      %7818 = vrot.lane.b32.xlu0 %v7755, 96
      %v7819 = vpop.permute.xlu0 %7818
      %7820 = vrot.lane.b32.xlu0 %v7757, 96
      %v7821 = vpop.permute.xlu0 %7820
      %7822 = vrot.lane.b32.xlu0 %v7759, 96
      %v7823 = vpop.permute.xlu0 %7822
      %7824 = vrot.lane.b32.xlu0 %v7761, 96
      %v7825 = vpop.permute.xlu0 %7824
      %7826 = vrot.lane.b32.xlu0 %v7763, 96
      %v7827 = vpop.permute.xlu0 %7826
      %7828 = vrot.lane.b32.xlu0 %v7765, 96
      %v7829 = vpop.permute.xlu0 %7828
      %7830 = vrot.lane.b32.xlu0 %v7767, 96
      %v7831 = vpop.permute.xlu0 %7830
      %7832 = vrot.lane.b32.xlu0 %v7769, 96
      %v7833 = vpop.permute.xlu0 %7832
      %7834 = vrot.lane.b32.xlu0 %v7771, 96
      %v7835 = vpop.permute.xlu0 %7834
      %7836 = vrot.lane.b32.xlu0 %v7773, 96
      %v7837 = vpop.permute.xlu0 %7836
      %7838 = vrot.lane.b32.xlu0 %v7775, 96
      %v7839 = vpop.permute.xlu0 %7838
      %7840 = vrot.lane.b32.xlu0 %v7777, 96
      %v7841 = vpop.permute.xlu0 %7840
      %7842 = vrot.lane.b32.xlu0 %v7779, 96
      %v7843 = vpop.permute.xlu0 %7842
      %7844 = vrot.lane.b32.xlu0 %v7781, 96
      %v7845 = vpop.permute.xlu0 %7844
      %7846 = vrot.lane.b32.xlu0 %v7783, 96
      %v7847 = vpop.permute.xlu0 %7846
      %7848 = vrot.lane.b32.xlu0 %v7785, 96
      %v7849 = vpop.permute.xlu0 %7848
      %7850 = vrot.lane.b32.xlu0 %v7787, 96
      %v7851 = vpop.permute.xlu0 %7850
      %7852 = vrot.lane.b32.xlu0 %v7789, 96
      %v7853 = vpop.permute.xlu0 %7852
      %v7886 = vadd.f32 %v7627, %v7791
      %v7887 = vadd.f32 %v7628, %v7793
      %v7888 = vadd.f32 %v7629, %v7795
      %v7889 = vadd.f32 %v7630, %v7797
      %v7890 = vadd.f32 %v7631, %v7799
      %v7891 = vadd.f32 %v7632, %v7801
      %v7892 = vadd.f32 %v7633, %v7803
      %v7893 = vadd.f32 %v7634, %v7805
      %v7894 = vadd.f32 %v7635, %v7807
      %v7895 = vadd.f32 %v7636, %v7809
      %v7896 = vadd.f32 %v7637, %v7811
      %v7897 = vadd.f32 %v7638, %v7813
      %v7898 = vadd.f32 %v7639, %v7815
      %v7899 = vadd.f32 %v7640, %v7817
      %v7900 = vadd.f32 %v7641, %v7819
      %v7901 = vadd.f32 %v7642, %v7821
      %v7902 = vadd.f32 %v7643, %v7823
      %v7903 = vadd.f32 %v7644, %v7825
      %v7904 = vadd.f32 %v7645, %v7827
      %v7905 = vadd.f32 %v7646, %v7829
      %v7906 = vadd.f32 %v7647, %v7831
      %v7907 = vadd.f32 %v7648, %v7833
      %v7908 = vadd.f32 %v7649, %v7835
      %v7909 = vadd.f32 %v7650, %v7837
      %v7910 = vadd.f32 %v7651, %v7839
      %v7911 = vadd.f32 %v7652, %v7841
      %v7912 = vadd.f32 %v7653, %v7843
      %v7913 = vadd.f32 %v7654, %v7845
      %v7914 = vadd.f32 %v7655, %v7847
      %v7915 = vadd.f32 %v7656, %v7849
      %v7916 = vadd.f32 %v7657, %v7851
      %v7917 = vadd.f32 %v7658, %v7853
      %v7918 = vld [vmem:[%s10] sm:$0x1]
      %v7920 = vlaneseq
      %v7921 = vshrl.u32 %v7920, 7
      %v7922 = vsub.s32 0, %v7921
      %v7923 = vrot.slane %v7918, %v7922
      %7924 = vrot.lane.b32.xlu0 %v7923, 32
      %v7925 = vpop.permute.xlu0 %7924
      %v7927 = vadd.f32 %v7886, %v7925
      %v7928 = vadd.f32 %v7887, %v7925
      %v7929 = vadd.f32 %v7888, %v7925
      %v7930 = vadd.f32 %v7889, %v7925
      %v7931 = vadd.f32 %v7890, %v7925
      %v7932 = vadd.f32 %v7891, %v7925
      %v7933 = vadd.f32 %v7892, %v7925
      %v7934 = vadd.f32 %v7893, %v7925
      %v7935 = vadd.f32 %v7894, %v7925
      %v7936 = vadd.f32 %v7895, %v7925
      %v7937 = vadd.f32 %v7896, %v7925
      %v7938 = vadd.f32 %v7897, %v7925
      %v7939 = vadd.f32 %v7898, %v7925
      %v7940 = vadd.f32 %v7899, %v7925
      %v7941 = vadd.f32 %v7900, %v7925
      %v7942 = vadd.f32 %v7901, %v7925
      %v7943 = vadd.f32 %v7902, %v7925
      %v7944 = vadd.f32 %v7903, %v7925
      %v7945 = vadd.f32 %v7904, %v7925
      %v7946 = vadd.f32 %v7905, %v7925
      %v7947 = vadd.f32 %v7906, %v7925
      %v7948 = vadd.f32 %v7907, %v7925
      %v7949 = vadd.f32 %v7908, %v7925
      %v7950 = vadd.f32 %v7909, %v7925
      %v7951 = vadd.f32 %v7910, %v7925
      %v7952 = vadd.f32 %v7911, %v7925
      %v7953 = vadd.f32 %v7912, %v7925
      %v7954 = vadd.f32 %v7913, %v7925
      %v7955 = vadd.f32 %v7914, %v7925
      %v7956 = vadd.f32 %v7915, %v7925
      %v7957 = vadd.f32 %v7916, %v7925
      %v7958 = vadd.f32 %v7917, %v7925
      %7991 = vrot.lane.b32.xlu0 %v5856, 96
      %v7992 = vpop.permute.xlu0 %7991
      %7993 = vrot.lane.b32.xlu0 %v5857, 96
      %v7994 = vpop.permute.xlu0 %7993
      %7995 = vrot.lane.b32.xlu0 %v5858, 96
      %v7996 = vpop.permute.xlu0 %7995
      %7997 = vrot.lane.b32.xlu0 %v5859, 96
      %v7998 = vpop.permute.xlu0 %7997
      %7999 = vrot.lane.b32.xlu0 %v5860, 96
      %v8000 = vpop.permute.xlu0 %7999
      %8001 = vrot.lane.b32.xlu0 %v5861, 96
      %v8002 = vpop.permute.xlu0 %8001
      %8003 = vrot.lane.b32.xlu0 %v5862, 96
      %v8004 = vpop.permute.xlu0 %8003
      %8005 = vrot.lane.b32.xlu0 %v5863, 96
      %v8006 = vpop.permute.xlu0 %8005
      %8007 = vrot.lane.b32.xlu0 %v5864, 96
      %v8008 = vpop.permute.xlu0 %8007
      %8009 = vrot.lane.b32.xlu0 %v5865, 96
      %v8010 = vpop.permute.xlu0 %8009
      %8011 = vrot.lane.b32.xlu0 %v5866, 96
      %v8012 = vpop.permute.xlu0 %8011
      %8013 = vrot.lane.b32.xlu0 %v5867, 96
      %v8014 = vpop.permute.xlu0 %8013
      %8015 = vrot.lane.b32.xlu0 %v5868, 96
      %v8016 = vpop.permute.xlu0 %8015
      %8017 = vrot.lane.b32.xlu0 %v5869, 96
      %v8018 = vpop.permute.xlu0 %8017
      %8019 = vrot.lane.b32.xlu0 %v5870, 96
      %v8020 = vpop.permute.xlu0 %8019
      %8021 = vrot.lane.b32.xlu0 %v5871, 96
      %v8022 = vpop.permute.xlu0 %8021
      %8023 = vrot.lane.b32.xlu0 %v5872, 96
      %v8024 = vpop.permute.xlu0 %8023
      %8025 = vrot.lane.b32.xlu0 %v5873, 96
      %v8026 = vpop.permute.xlu0 %8025
      %8027 = vrot.lane.b32.xlu0 %v5874, 96
      %v8028 = vpop.permute.xlu0 %8027
      %8029 = vrot.lane.b32.xlu0 %v5875, 96
      %v8030 = vpop.permute.xlu0 %8029
      %8031 = vrot.lane.b32.xlu0 %v5876, 96
      %v8032 = vpop.permute.xlu0 %8031
      %8033 = vrot.lane.b32.xlu0 %v5877, 96
      %v8034 = vpop.permute.xlu0 %8033
      %8035 = vrot.lane.b32.xlu0 %v5878, 96
      %v8036 = vpop.permute.xlu0 %8035
      %8037 = vrot.lane.b32.xlu0 %v5879, 96
      %v8038 = vpop.permute.xlu0 %8037
      %8039 = vrot.lane.b32.xlu0 %v5880, 96
      %v8040 = vpop.permute.xlu0 %8039
      %8041 = vrot.lane.b32.xlu0 %v5881, 96
      %v8042 = vpop.permute.xlu0 %8041
      %8043 = vrot.lane.b32.xlu0 %v5882, 96
      %v8044 = vpop.permute.xlu0 %8043
      %8045 = vrot.lane.b32.xlu0 %v5883, 96
      %v8046 = vpop.permute.xlu0 %8045
      %8047 = vrot.lane.b32.xlu0 %v5884, 96
      %v8048 = vpop.permute.xlu0 %8047
      %8049 = vrot.lane.b32.xlu0 %v5885, 96
      %v8050 = vpop.permute.xlu0 %8049
      %8051 = vrot.lane.b32.xlu0 %v5886, 96
      %v8052 = vpop.permute.xlu0 %8051
      %8053 = vrot.lane.b32.xlu0 %v5887, 96
      %v8054 = vpop.permute.xlu0 %8053
      %v8087 = vsel %vm477, %v7992, %v7927
      %v8088 = vsel %vm477, %v7994, %v7928
      %v8089 = vsel %vm477, %v7996, %v7929
      %v8090 = vsel %vm477, %v7998, %v7930
      %v8091 = vsel %vm477, %v8000, %v7931
      %v8092 = vsel %vm477, %v8002, %v7932
      %v8093 = vsel %vm477, %v8004, %v7933
      %v8094 = vsel %vm477, %v8006, %v7934
      %v8095 = vsel %vm477, %v8008, %v7935
      %v8096 = vsel %vm477, %v8010, %v7936
      %v8097 = vsel %vm477, %v8012, %v7937
      %v8098 = vsel %vm477, %v8014, %v7938
      %v8099 = vsel %vm477, %v8016, %v7939
      %v8100 = vsel %vm477, %v8018, %v7940
      %v8101 = vsel %vm477, %v8020, %v7941
      %v8102 = vsel %vm477, %v8022, %v7942
      %v8103 = vsel %vm477, %v8024, %v7943
      %v8104 = vsel %vm477, %v8026, %v7944
      %v8105 = vsel %vm477, %v8028, %v7945
      %v8106 = vsel %vm477, %v8030, %v7946
      %v8107 = vsel %vm477, %v8032, %v7947
      %v8108 = vsel %vm477, %v8034, %v7948
      %v8109 = vsel %vm477, %v8036, %v7949
      %v8110 = vsel %vm477, %v8038, %v7950
      %v8111 = vsel %vm477, %v8040, %v7951
      %v8112 = vsel %vm477, %v8042, %v7952
      %v8113 = vsel %vm477, %v8044, %v7953
      %v8114 = vsel %vm477, %v8046, %v7954
      %v8115 = vsel %vm477, %v8048, %v7955
      %v8116 = vsel %vm477, %v8050, %v7956
      %v8117 = vsel %vm477, %v8052, %v7957
      %v8118 = vsel %vm477, %v8054, %v7958
      %vm8119 = vcmask 523264
      %v8120 = vsel %vm8119, %v8087, 0.0
      %v8121 = vsel %vm8119, %v8088, 0.0
      %v8122 = vadd.f32 %v8120, %v8121
      %v8123 = vsel %vm8119, %v8089, 0.0
      %v8124 = vadd.f32 %v8122, %v8123
      %v8125 = vsel %vm8119, %v8090, 0.0
      %v8126 = vadd.f32 %v8124, %v8125
      %v8127 = vsel %vm8119, %v8091, 0.0
      %v8128 = vadd.f32 %v8126, %v8127
      %v8129 = vsel %vm8119, %v8092, 0.0
      %v8130 = vadd.f32 %v8128, %v8129
      %v8131 = vsel %vm8119, %v8093, 0.0
      %v8132 = vadd.f32 %v8130, %v8131
      %v8133 = vsel %vm8119, %v8094, 0.0
      %v8134 = vadd.f32 %v8132, %v8133
      %v8135 = vsel %vm8119, %v8095, 0.0
      %v8136 = vadd.f32 %v8134, %v8135
      %v8137 = vsel %vm8119, %v8096, 0.0
      %v8138 = vadd.f32 %v8136, %v8137
      %v8139 = vsel %vm8119, %v8097, 0.0
      %v8140 = vadd.f32 %v8138, %v8139
      %v8141 = vsel %vm8119, %v8098, 0.0
      %v8142 = vadd.f32 %v8140, %v8141
      %v8143 = vsel %vm8119, %v8099, 0.0
      %v8144 = vadd.f32 %v8142, %v8143
      %v8145 = vsel %vm8119, %v8100, 0.0
      %v8146 = vadd.f32 %v8144, %v8145
      %v8147 = vsel %vm8119, %v8101, 0.0
      %v8148 = vadd.f32 %v8146, %v8147
      %v8149 = vsel %vm8119, %v8102, 0.0
      %v8150 = vadd.f32 %v8148, %v8149
      %v8151 = vsel %vm8119, %v8103, 0.0
      %v8152 = vadd.f32 %v8150, %v8151
      %v8153 = vsel %vm8119, %v8104, 0.0
      %v8154 = vadd.f32 %v8152, %v8153
      %v8155 = vsel %vm8119, %v8105, 0.0
      %v8156 = vadd.f32 %v8154, %v8155
      %v8157 = vsel %vm8119, %v8106, 0.0
      %v8158 = vadd.f32 %v8156, %v8157
      %v8159 = vsel %vm8119, %v8107, 0.0
      %v8160 = vadd.f32 %v8158, %v8159
      %v8161 = vsel %vm8119, %v8108, 0.0
      %v8162 = vadd.f32 %v8160, %v8161
      %v8163 = vsel %vm8119, %v8109, 0.0
      %v8164 = vadd.f32 %v8162, %v8163
      %v8165 = vsel %vm8119, %v8110, 0.0
      %v8166 = vadd.f32 %v8164, %v8165
      %v8167 = vsel %vm8119, %v8111, 0.0
      %v8168 = vadd.f32 %v8166, %v8167
      %v8169 = vsel %vm8119, %v8112, 0.0
      %v8170 = vadd.f32 %v8168, %v8169
      %v8171 = vsel %vm8119, %v8113, 0.0
      %v8172 = vadd.f32 %v8170, %v8171
      %v8173 = vsel %vm8119, %v8114, 0.0
      %v8174 = vadd.f32 %v8172, %v8173
      %v8175 = vsel %vm8119, %v8115, 0.0
      %v8176 = vadd.f32 %v8174, %v8175
      %v8177 = vsel %vm8119, %v8116, 0.0
      %v8178 = vadd.f32 %v8176, %v8177
      %v8179 = vsel %vm8119, %v8117, 0.0
      %v8180 = vadd.f32 %v8178, %v8179
      %v8181 = vsel %vm8119, %v8118, 0.0
      %v8182 = vadd.f32 %v8180, %v8181
      %v8183 = vrot.slane %v8182, 4
      %v8184 = vadd.f32 %v8182, %v8183
      %v8185 = vrot.slane %v8184, 2
      %v8186 = vadd.f32 %v8184, %v8185
      %v8187 = vrot.slane %v8186, 1
      %v8188 = vadd.f32 %v8186, %v8187
      %v8189 = vmul.f32 %v8188, 0.00390625
      %v8190 = vsub.f32 %v8087, %v8189
      %v8191 = vsub.f32 %v8088, %v8189
      %v8192 = vsub.f32 %v8089, %v8189
      %v8193 = vsub.f32 %v8090, %v8189
      %v8194 = vsub.f32 %v8091, %v8189
      %v8195 = vsub.f32 %v8092, %v8189
      %v8196 = vsub.f32 %v8093, %v8189
      %v8197 = vsub.f32 %v8094, %v8189
      %v8198 = vsub.f32 %v8095, %v8189
      %v8199 = vsub.f32 %v8096, %v8189
      %v8200 = vsub.f32 %v8097, %v8189
      %v8201 = vsub.f32 %v8098, %v8189
      %v8202 = vsub.f32 %v8099, %v8189
      %v8203 = vsub.f32 %v8100, %v8189
      %v8204 = vsub.f32 %v8101, %v8189
      %v8205 = vsub.f32 %v8102, %v8189
      %v8206 = vsub.f32 %v8103, %v8189
      %v8207 = vsub.f32 %v8104, %v8189
      %v8208 = vsub.f32 %v8105, %v8189
      %v8209 = vsub.f32 %v8106, %v8189
      %v8210 = vsub.f32 %v8107, %v8189
      %v8211 = vsub.f32 %v8108, %v8189
      %v8212 = vsub.f32 %v8109, %v8189
      %v8213 = vsub.f32 %v8110, %v8189
      %v8214 = vsub.f32 %v8111, %v8189
      %v8215 = vsub.f32 %v8112, %v8189
      %v8216 = vsub.f32 %v8113, %v8189
      %v8217 = vsub.f32 %v8114, %v8189
      %v8218 = vsub.f32 %v8115, %v8189
      %v8219 = vsub.f32 %v8116, %v8189
      %v8220 = vsub.f32 %v8117, %v8189
      %v8221 = vsub.f32 %v8118, %v8189
      %v8222 = vmul.f32 %v8190, %v8190
      %v8223 = vmul.f32 %v8191, %v8191
      %v8224 = vmul.f32 %v8192, %v8192
      %v8225 = vmul.f32 %v8193, %v8193
      %v8226 = vmul.f32 %v8194, %v8194
      %v8227 = vmul.f32 %v8195, %v8195
      %v8228 = vmul.f32 %v8196, %v8196
      %v8229 = vmul.f32 %v8197, %v8197
      %v8230 = vmul.f32 %v8198, %v8198
      %v8231 = vmul.f32 %v8199, %v8199
      %v8232 = vmul.f32 %v8200, %v8200
      %v8233 = vmul.f32 %v8201, %v8201
      %v8234 = vmul.f32 %v8202, %v8202
      %v8235 = vmul.f32 %v8203, %v8203
      %v8236 = vmul.f32 %v8204, %v8204
      %v8237 = vmul.f32 %v8205, %v8205
      %v8238 = vmul.f32 %v8206, %v8206
      %v8239 = vmul.f32 %v8207, %v8207
      %v8240 = vmul.f32 %v8208, %v8208
      %v8241 = vmul.f32 %v8209, %v8209
      %v8242 = vmul.f32 %v8210, %v8210
      %v8243 = vmul.f32 %v8211, %v8211
      %v8244 = vmul.f32 %v8212, %v8212
      %v8245 = vmul.f32 %v8213, %v8213
      %v8246 = vmul.f32 %v8214, %v8214
      %v8247 = vmul.f32 %v8215, %v8215
      %v8248 = vmul.f32 %v8216, %v8216
      %v8249 = vmul.f32 %v8217, %v8217
      %v8250 = vmul.f32 %v8218, %v8218
      %v8251 = vmul.f32 %v8219, %v8219
      %v8252 = vmul.f32 %v8220, %v8220
      %v8253 = vmul.f32 %v8221, %v8221
      %v8254 = vsel %vm8119, %v8222, 0.0
      %v8255 = vsel %vm8119, %v8223, 0.0
      %v8256 = vadd.f32 %v8254, %v8255
      %v8257 = vsel %vm8119, %v8224, 0.0
      %v8258 = vadd.f32 %v8256, %v8257
      %v8259 = vsel %vm8119, %v8225, 0.0
      %v8260 = vadd.f32 %v8258, %v8259
      %v8261 = vsel %vm8119, %v8226, 0.0
      %v8262 = vadd.f32 %v8260, %v8261
      %v8263 = vsel %vm8119, %v8227, 0.0
      %v8264 = vadd.f32 %v8262, %v8263
      %v8265 = vsel %vm8119, %v8228, 0.0
      %v8266 = vadd.f32 %v8264, %v8265
      %v8267 = vsel %vm8119, %v8229, 0.0
      %v8268 = vadd.f32 %v8266, %v8267
      %v8269 = vsel %vm8119, %v8230, 0.0
      %v8270 = vadd.f32 %v8268, %v8269
      %v8271 = vsel %vm8119, %v8231, 0.0
      %v8272 = vadd.f32 %v8270, %v8271
      %v8273 = vsel %vm8119, %v8232, 0.0
      %v8274 = vadd.f32 %v8272, %v8273
      %v8275 = vsel %vm8119, %v8233, 0.0
      %v8276 = vadd.f32 %v8274, %v8275
      %v8277 = vsel %vm8119, %v8234, 0.0
      %v8278 = vadd.f32 %v8276, %v8277
      %v8279 = vsel %vm8119, %v8235, 0.0
      %v8280 = vadd.f32 %v8278, %v8279
      %v8281 = vsel %vm8119, %v8236, 0.0
      %v8282 = vadd.f32 %v8280, %v8281
      %v8283 = vsel %vm8119, %v8237, 0.0
      %v8284 = vadd.f32 %v8282, %v8283
      %v8285 = vsel %vm8119, %v8238, 0.0
      %v8286 = vadd.f32 %v8284, %v8285
      %v8287 = vsel %vm8119, %v8239, 0.0
      %v8288 = vadd.f32 %v8286, %v8287
      %v8289 = vsel %vm8119, %v8240, 0.0
      %v8290 = vadd.f32 %v8288, %v8289
      %v8291 = vsel %vm8119, %v8241, 0.0
      %v8292 = vadd.f32 %v8290, %v8291
      %v8293 = vsel %vm8119, %v8242, 0.0
      %v8294 = vadd.f32 %v8292, %v8293
      %v8295 = vsel %vm8119, %v8243, 0.0
      %v8296 = vadd.f32 %v8294, %v8295
      %v8297 = vsel %vm8119, %v8244, 0.0
      %v8298 = vadd.f32 %v8296, %v8297
      %v8299 = vsel %vm8119, %v8245, 0.0
      %v8300 = vadd.f32 %v8298, %v8299
      %v8301 = vsel %vm8119, %v8246, 0.0
      %v8302 = vadd.f32 %v8300, %v8301
      %v8303 = vsel %vm8119, %v8247, 0.0
      %v8304 = vadd.f32 %v8302, %v8303
      %v8305 = vsel %vm8119, %v8248, 0.0
      %v8306 = vadd.f32 %v8304, %v8305
      %v8307 = vsel %vm8119, %v8249, 0.0
      %v8308 = vadd.f32 %v8306, %v8307
      %v8309 = vsel %vm8119, %v8250, 0.0
      %v8310 = vadd.f32 %v8308, %v8309
      %v8311 = vsel %vm8119, %v8251, 0.0
      %v8312 = vadd.f32 %v8310, %v8311
      %v8313 = vsel %vm8119, %v8252, 0.0
      %v8314 = vadd.f32 %v8312, %v8313
      %v8315 = vsel %vm8119, %v8253, 0.0
      %v8316 = vadd.f32 %v8314, %v8315
      %v8317 = vrot.slane %v8316, 4
      %v8318 = vadd.f32 %v8316, %v8317
      %v8319 = vrot.slane %v8318, 2
      %v8320 = vadd.f32 %v8318, %v8319
      %v8321 = vrot.slane %v8320, 1
      %v8322 = vadd.f32 %v8320, %v8321
      %v8323 = vmul.f32 %v8322, 0.00390625
      %v8324 = vadd.f32 %v8323, 1e-05
      %v8325 = vrsqrt.pop %v8324
      %v8326 = vmul.f32 %v8190, %v8325
      %v8327 = vmul.f32 %v8191, %v8325
      %v8328 = vmul.f32 %v8192, %v8325
      %v8329 = vmul.f32 %v8193, %v8325
      %v8330 = vmul.f32 %v8194, %v8325
      %v8331 = vmul.f32 %v8195, %v8325
      %v8332 = vmul.f32 %v8196, %v8325
      %v8333 = vmul.f32 %v8197, %v8325
      %v8334 = vmul.f32 %v8198, %v8325
      %v8335 = vmul.f32 %v8199, %v8325
      %v8336 = vmul.f32 %v8200, %v8325
      %v8337 = vmul.f32 %v8201, %v8325
      %v8338 = vmul.f32 %v8202, %v8325
      %v8339 = vmul.f32 %v8203, %v8325
      %v8340 = vmul.f32 %v8204, %v8325
      %v8341 = vmul.f32 %v8205, %v8325
      %v8342 = vmul.f32 %v8206, %v8325
      %v8343 = vmul.f32 %v8207, %v8325
      %v8344 = vmul.f32 %v8208, %v8325
      %v8345 = vmul.f32 %v8209, %v8325
      %v8346 = vmul.f32 %v8210, %v8325
      %v8347 = vmul.f32 %v8211, %v8325
      %v8348 = vmul.f32 %v8212, %v8325
      %v8349 = vmul.f32 %v8213, %v8325
      %v8350 = vmul.f32 %v8214, %v8325
      %v8351 = vmul.f32 %v8215, %v8325
      %v8352 = vmul.f32 %v8216, %v8325
      %v8353 = vmul.f32 %v8217, %v8325
      %v8354 = vmul.f32 %v8218, %v8325
      %v8355 = vmul.f32 %v8219, %v8325
      %v8356 = vmul.f32 %v8220, %v8325
      %v8357 = vmul.f32 %v8221, %v8325
      %v8358 = vld [vmem:[%s11] sm:$0x1]
      %v8360 = vlaneseq
      %v8361 = vshrl.u32 %v8360, 7
      %v8362 = vsub.s32 0, %v8361
      %v8363 = vrot.slane %v8358, %v8362
      %v8365 = vmul.f32 %v8326, %v8363
      %v8366 = vmul.f32 %v8327, %v8363
      %v8367 = vmul.f32 %v8328, %v8363
      %v8368 = vmul.f32 %v8329, %v8363
      %v8369 = vmul.f32 %v8330, %v8363
      %v8370 = vmul.f32 %v8331, %v8363
      %v8371 = vmul.f32 %v8332, %v8363
      %v8372 = vmul.f32 %v8333, %v8363
      %v8373 = vmul.f32 %v8334, %v8363
      %v8374 = vmul.f32 %v8335, %v8363
      %v8375 = vmul.f32 %v8336, %v8363
      %v8376 = vmul.f32 %v8337, %v8363
      %v8377 = vmul.f32 %v8338, %v8363
      %v8378 = vmul.f32 %v8339, %v8363
      %v8379 = vmul.f32 %v8340, %v8363
      %v8380 = vmul.f32 %v8341, %v8363
      %v8381 = vmul.f32 %v8342, %v8363
      %v8382 = vmul.f32 %v8343, %v8363
      %v8383 = vmul.f32 %v8344, %v8363
      %v8384 = vmul.f32 %v8345, %v8363
      %v8385 = vmul.f32 %v8346, %v8363
      %v8386 = vmul.f32 %v8347, %v8363
      %v8387 = vmul.f32 %v8348, %v8363
      %v8388 = vmul.f32 %v8349, %v8363
      %v8389 = vmul.f32 %v8350, %v8363
      %v8390 = vmul.f32 %v8351, %v8363
      %v8391 = vmul.f32 %v8352, %v8363
      %v8392 = vmul.f32 %v8353, %v8363
      %v8393 = vmul.f32 %v8354, %v8363
      %v8394 = vmul.f32 %v8355, %v8363
      %v8395 = vmul.f32 %v8356, %v8363
      %v8396 = vmul.f32 %v8357, %v8363
      %v8397 = vld [vmem:[%s12] sm:$0x1]
      %v8399 = vlaneseq
      %v8400 = vshrl.u32 %v8399, 7
      %v8401 = vsub.s32 0, %v8400
      %v8402 = vrot.slane %v8397, %v8401
      %v8404 = vadd.f32 %v8365, %v8402
      %v8405 = vadd.f32 %v8366, %v8402
      %v8406 = vadd.f32 %v8367, %v8402
      %v8407 = vadd.f32 %v8368, %v8402
      %v8408 = vadd.f32 %v8369, %v8402
      %v8409 = vadd.f32 %v8370, %v8402
      %v8410 = vadd.f32 %v8371, %v8402
      %v8411 = vadd.f32 %v8372, %v8402
      %v8412 = vadd.f32 %v8373, %v8402
      %v8413 = vadd.f32 %v8374, %v8402
      %v8414 = vadd.f32 %v8375, %v8402
      %v8415 = vadd.f32 %v8376, %v8402
      %v8416 = vadd.f32 %v8377, %v8402
      %v8417 = vadd.f32 %v8378, %v8402
      %v8418 = vadd.f32 %v8379, %v8402
      %v8419 = vadd.f32 %v8380, %v8402
      %v8420 = vadd.f32 %v8381, %v8402
      %v8421 = vadd.f32 %v8382, %v8402
      %v8422 = vadd.f32 %v8383, %v8402
      %v8423 = vadd.f32 %v8384, %v8402
      %v8424 = vadd.f32 %v8385, %v8402
      %v8425 = vadd.f32 %v8386, %v8402
      %v8426 = vadd.f32 %v8387, %v8402
      %v8427 = vadd.f32 %v8388, %v8402
      %v8428 = vadd.f32 %v8389, %v8402
      %v8429 = vadd.f32 %v8390, %v8402
      %v8430 = vadd.f32 %v8391, %v8402
      %v8431 = vadd.f32 %v8392, %v8402
      %v8432 = vadd.f32 %v8393, %v8402
      %v8433 = vadd.f32 %v8394, %v8402
      %v8434 = vadd.f32 %v8395, %v8402
      %v8435 = vadd.f32 %v8396, %v8402
      %v8436 = vmax.f32 %v8404, 0.0
      %v8437 = vmax.f32 %v8405, 0.0
      %v8438 = vmax.f32 %v8406, 0.0
      %v8439 = vmax.f32 %v8407, 0.0
      %v8440 = vmax.f32 %v8408, 0.0
      %v8441 = vmax.f32 %v8409, 0.0
      %v8442 = vmax.f32 %v8410, 0.0
      %v8443 = vmax.f32 %v8411, 0.0
      %v8444 = vmax.f32 %v8412, 0.0
      %v8445 = vmax.f32 %v8413, 0.0
      %v8446 = vmax.f32 %v8414, 0.0
      %v8447 = vmax.f32 %v8415, 0.0
      %v8448 = vmax.f32 %v8416, 0.0
      %v8449 = vmax.f32 %v8417, 0.0
      %v8450 = vmax.f32 %v8418, 0.0
      %v8451 = vmax.f32 %v8419, 0.0
      %v8452 = vmax.f32 %v8420, 0.0
      %v8453 = vmax.f32 %v8421, 0.0
      %v8454 = vmax.f32 %v8422, 0.0
      %v8455 = vmax.f32 %v8423, 0.0
      %v8456 = vmax.f32 %v8424, 0.0
      %v8457 = vmax.f32 %v8425, 0.0
      %v8458 = vmax.f32 %v8426, 0.0
      %v8459 = vmax.f32 %v8427, 0.0
      %v8460 = vmax.f32 %v8428, 0.0
      %v8461 = vmax.f32 %v8429, 0.0
      %v8462 = vmax.f32 %v8430, 0.0
      %v8463 = vmax.f32 %v8431, 0.0
      %v8464 = vmax.f32 %v8432, 0.0
      %v8465 = vmax.f32 %v8433, 0.0
      %v8466 = vmax.f32 %v8434, 0.0
      %v8467 = vmax.f32 %v8435, 0.0
      %v8468 = vld [vmem:[%s469] sm:$0x1]
      %v8470 = vlaneseq
      %v8471 = vshrl.u32 %v8470, 7
      %v8472 = vsub.s32 0, %v8471
      %v8473 = vrot.slane %v8468, %v8472
      %v8475 = vmul.f32 %v8436, %v8473
      %v8476 = vmul.f32 %v8437, %v8473
      %v8477 = vmul.f32 %v8438, %v8473
      %v8478 = vmul.f32 %v8439, %v8473
      %v8479 = vmul.f32 %v8440, %v8473
      %v8480 = vmul.f32 %v8441, %v8473
      %v8481 = vmul.f32 %v8442, %v8473
      %v8482 = vmul.f32 %v8443, %v8473
      %v8483 = vmul.f32 %v8444, %v8473
      %v8484 = vmul.f32 %v8445, %v8473
      %v8485 = vmul.f32 %v8446, %v8473
      %v8486 = vmul.f32 %v8447, %v8473
      %v8487 = vmul.f32 %v8448, %v8473
      %v8488 = vmul.f32 %v8449, %v8473
      %v8489 = vmul.f32 %v8450, %v8473
      %v8490 = vmul.f32 %v8451, %v8473
      %v8491 = vmul.f32 %v8452, %v8473
      %v8492 = vmul.f32 %v8453, %v8473
      %v8493 = vmul.f32 %v8454, %v8473
      %v8494 = vmul.f32 %v8455, %v8473
      %v8495 = vmul.f32 %v8456, %v8473
      %v8496 = vmul.f32 %v8457, %v8473
      %v8497 = vmul.f32 %v8458, %v8473
      %v8498 = vmul.f32 %v8459, %v8473
      %v8499 = vmul.f32 %v8460, %v8473
      %v8500 = vmul.f32 %v8461, %v8473
      %v8501 = vmul.f32 %v8462, %v8473
      %v8502 = vmul.f32 %v8463, %v8473
      %v8503 = vmul.f32 %v8464, %v8473
      %v8504 = vmul.f32 %v8465, %v8473
      %v8505 = vmul.f32 %v8466, %v8473
      %v8506 = vmul.f32 %v8467, %v8473
      %8507 = vst.msk [vmem:[%s474] sm:$0xff] %vm8119, %v8475
      %8508 = vst.msk [vmem:[%s474 + $0x8] sm:$0xff] %vm8119, %v8476
      %8509 = vst.msk [vmem:[%s474 + $0x10] sm:$0xff] %vm8119, %v8477
      %8510 = vst.msk [vmem:[%s474 + $0x18] sm:$0xff] %vm8119, %v8478
      %8511 = vst.msk [vmem:[%s474 + $0x20] sm:$0xff] %vm8119, %v8479
      %8512 = vst.msk [vmem:[%s474 + $0x28] sm:$0xff] %vm8119, %v8480
      %8513 = vst.msk [vmem:[%s474 + $0x30] sm:$0xff] %vm8119, %v8481
      %8514 = vst.msk [vmem:[%s474 + $0x38] sm:$0xff] %vm8119, %v8482
      %8515 = vst.msk [vmem:[%s474 + $0x40] sm:$0xff] %vm8119, %v8483
      %8516 = vst.msk [vmem:[%s474 + $0x48] sm:$0xff] %vm8119, %v8484
      %8517 = vst.msk [vmem:[%s474 + $0x50] sm:$0xff] %vm8119, %v8485
      %8518 = vst.msk [vmem:[%s474 + $0x58] sm:$0xff] %vm8119, %v8486
      %8519 = vst.msk [vmem:[%s474 + $0x60] sm:$0xff] %vm8119, %v8487
      %8520 = vst.msk [vmem:[%s474 + $0x68] sm:$0xff] %vm8119, %v8488
      %8521 = vst.msk [vmem:[%s474 + $0x70] sm:$0xff] %vm8119, %v8489
      %8522 = vst.msk [vmem:[%s474 + $0x78] sm:$0xff] %vm8119, %v8490
      %8523 = vst.msk [vmem:[%s474 + $0x80] sm:$0xff] %vm8119, %v8491
      %8524 = vst.msk [vmem:[%s474 + $0x88] sm:$0xff] %vm8119, %v8492
      %8525 = vst.msk [vmem:[%s474 + $0x90] sm:$0xff] %vm8119, %v8493
      %8526 = vst.msk [vmem:[%s474 + $0x98] sm:$0xff] %vm8119, %v8494
      %8527 = vst.msk [vmem:[%s474 + $0xa0] sm:$0xff] %vm8119, %v8495
      %8528 = vst.msk [vmem:[%s474 + $0xa8] sm:$0xff] %vm8119, %v8496
      %8529 = vst.msk [vmem:[%s474 + $0xb0] sm:$0xff] %vm8119, %v8497
      %8530 = vst.msk [vmem:[%s474 + $0xb8] sm:$0xff] %vm8119, %v8498
      %8531 = vst.msk [vmem:[%s474 + $0xc0] sm:$0xff] %vm8119, %v8499
      %8532 = vst.msk [vmem:[%s474 + $0xc8] sm:$0xff] %vm8119, %v8500
      %8533 = vst.msk [vmem:[%s474 + $0xd0] sm:$0xff] %vm8119, %v8501
      %8534 = vst.msk [vmem:[%s474 + $0xd8] sm:$0xff] %vm8119, %v8502
      %8535 = vst.msk [vmem:[%s474 + $0xe0] sm:$0xff] %vm8119, %v8503
      %8536 = vst.msk [vmem:[%s474 + $0xe8] sm:$0xff] %vm8119, %v8504
      %8537 = vst.msk [vmem:[%s474 + $0xf0] sm:$0xff] %vm8119, %v8505
      %8538 = vst.msk [vmem:[%s474 + $0xf8] sm:$0xff] %vm8119, %v8506
      %p8539 = scmp.lt.s32.totalorder %s24, 1
      %s8540 = scalar_select %p8539, %s24, 1
      %s8541 = smul.addr %s8540, 32
      %s8542 = smul.addr %s8541, 8
      %s8543 = scalar_lea.vmem %s13, %s8542
      // Predicated region
      $region73: #{tpu_custom_call.1} parent=71 // pred_check
        %p8544 = pneg %p330
      $region74: #{tpu_custom_call.1} parent=71 // pred_check_branch
        %8546 = sbr.rel (%p8544) target = $region76
      $region75: #{tpu_custom_call.1} parent=71 // pred_region
        _
      $region76: #{tpu_custom_call.1} parent=71 // pred_fallthru
        _
    $region72: #{tpu_custom_call.1} parent=5 // pred_fallthru
      _
    %p8547 = scmp.le.s32.totalorder 2, %s19
    // Predicated region
    $region77: #{tpu_custom_call.1} parent=5 // pred_check
      %p8548 = pneg %p8547
    $region78: #{tpu_custom_call.1} parent=5 // pred_check_branch
      %8550 = sbr.rel (%p8548) target = $region80
    $region79: #{tpu_custom_call.1} parent=5 // pred_region
      %s8551 = ssub.s32 %s19, 2
      // Predicated region
      $region81: #{tpu_custom_call.1} parent=79 // pred_check
        %p8552 = pneg %p336
      $region82: #{tpu_custom_call.1} parent=79 // pred_check_branch
        %8554 = sbr.rel (%p8552) target = $region84
      $region83: #{tpu_custom_call.1} parent=79 // pred_region
        %p8555 = scmp.lt.s32.totalorder %s25, 1
        %s8556 = scalar_select %p8555, %s25, 1
        %s8557 = smul.addr %s8556, 32
        %s8558 = smul.addr %s8557, 8
        %s8559 = scalar_lea.vmem %s13, %s8558
      $region84: #{tpu_custom_call.1} parent=79 // pred_fallthru
        _
    $region80: #{tpu_custom_call.1} parent=5 // pred_fallthru
      _
  $region6: #{tpu_custom_call.1} parent=0 // loop_footer
    %s23 = sadd.s32 1, %s19
  $region7: #{tpu_custom_call.1} parent=0 // loop_footer_branch
    %18 = sbr.rel target = $region3
  $region8: #{tpu_custom_call.1} parent=0 // loop_exit
    _

</llo_original>
